<compile_context>
chip_gen: v7x
topology: tpu7x:2x2x1
jax: 0.10.0
libtpu: 0.0.40
codegen_flags: <defaults>
</compile_context>

<pallas_src>
import functools
import math

import jax
import jax.numpy as jnp
from jax import lax
from jax.experimental import pallas as pl
from jax.experimental.pallas import tpu as pltpu

ACT_DTYPE = jnp.bfloat16          # HBM dtype for weights + activations (f32 accum in-kernel)
_CONV_CFG = ((7, 2, 3), (5, 2, 2), (3, 2, 1))   # (kernel, stride, padding) of the CNN frontend
_LN_EPS = 1e-5


def _vmem_limit_bytes():
    # 96 MiB on 128-MiB VMEM parts (v5e/v6e), 32 MiB on v7x (64 MiB physical per TC).
    try:
        cap = pltpu.get_tpu_info().vmem_capacity_bytes
        return int(min(max(cap - 32 * 1024 * 1024, 32 * 1024 * 1024), 96 * 1024 * 1024))
    except Exception:
        return 32 * 1024 * 1024


_VMEM_LIMIT = _vmem_limit_bytes()


# --------------------------------- small helpers --------------------------------------

def _round_up(x, m):
    return ((x + m - 1) // m) * m


def _pick_tile(dim, preferred, multiple):
    """Largest tile <= preferred that divides `dim` and is a multiple of `multiple`;
    falls back to the full dim (call sites keep dims bounded via padding)."""
    if dim <= preferred:
        return dim
    t = (preferred // multiple) * multiple
    while t >= multiple:
        if dim % t == 0:
            return t
        t -= multiple
    return dim


def _gelu_tanh(x):
    # TODO(synk): PyTorch F.gelu defaults to the exact erf form; this EUP-friendly tanh
    # approximation differs by < ~1e-3 absolute.
    c = math.sqrt(2.0 / math.pi)
    return 0.5 * x * (1.0 + jnp.tanh(c * (x + 0.044715 * x * x * x)))


def _im2col(x, ksize, stride, pad):
    """x: (B, L, C) -> patches (B*L_out, ksize*C).
    TODO(synk): patch extraction still materializes in XLA; could be folded into the Pallas
    matmul via overlapping K-block index_maps, but the frontend is small vs the encoder."""
    B, L, C = x.shape
    L_out = (L + 2 * pad - ksize) // stride + 1
    xp = jnp.pad(x, ((0, 0), (pad, pad), (0, 0)))
    cols = [xp[:, i:i + stride * (L_out - 1) + 1:stride, :] for i in range(ksize)]
    patches = jnp.stack(cols, axis=2).reshape(B * L_out, ksize * C)
    return patches, L_out


def _fold_bn(w_flat, b, gamma, beta, mean, var, eps=1e-5):
    """Fold eval-mode BatchNorm1d into the (flattened) conv weights/bias (exact affine fold)."""
    scale = gamma / jnp.sqrt(var + eps)
    return w_flat * scale[None, :], (b - mean) * scale + beta


# ----------------------- tiled linear kernel (LN / bias / GELU / residual fused) ------

def _linear_kernel(activation, fuse_ln, add_res, *refs):
    x_ref, w_ref, b_ref = refs[0], refs[1], refs[2]
    idx = 3
    if fuse_ln:
        g_ref, bt_ref = refs[idx], refs[idx + 1]
        idx += 2
    if add_res:
        res_ref = refs[idx]
        idx += 1
    o_ref, acc_ref = refs[idx], refs[idx + 1]

    k = pl.program_id(2)

    @pl.when(k == 0)
    def _init():
        acc_ref[...] = jnp.zeros_like(acc_ref)

    x = x_ref[...]
    if fuse_ln:                                    # pre-LayerNorm fused into the prologue
        xf = x.astype(jnp.float32)
        mu = jnp.mean(xf, axis=-1, keepdims=True)
        xc = xf - mu
        var = jnp.mean(xc * xc, axis=-1, keepdims=True)
        x = xc * lax.rsqrt(var + _LN_EPS) * g_ref[...] + bt_ref[...]
    x = x.astype(w_ref.dtype)
    acc_ref[...] += jnp.dot(x, w_ref[...], preferred_element_type=jnp.float32)

    @pl.when(k == pl.num_programs(2) - 1)
    def _fin():
        r = acc_ref[...] + b_ref[...]
        if activation == "gelu":
            r = _gelu_tanh(r)
        if add_res:                                # residual add fused into the epilogue
            r = r + res_ref[...].astype(jnp.float32)
        o_ref[...] = r.astype(o_ref.dtype)


def linear(x, w, b, *, activation=None, ln=None, residual=None, out_dtype=None,
           tm_target=512, tn_target=512, tk_target=512):
    """y = activation( LN?(x) @ w + b ) [+ residual].  x:(M,K) w:(K,N) b:(N,)."""
    if out_dtype is None:
        out_dtype = ACT_DTYPE
    M, K = x.shape
    N = w.shape[1]
    fuse_ln = ln is not None
    add_res = residual is not None

    # lane-dense outputs: pad N up to a multiple of 128 (padded cols sliced off afterwards)
    N_pad = max(128, _round_up(N, 128))
    if N_pad != N:
        w = jnp.pad(w, ((0, 0), (0, N_pad - N)))
        b = jnp.pad(b, ((0, N_pad - N),))
        if add_res:
            residual = jnp.pad(residual, ((0, 0), (0, N_pad - N)))
    # bounded row tiles: pad M so a <= tm_target tile always divides (no silent full-M blocks)
    if M <= tm_target:
        tm, M_pad = M, M
    else:
        M_pad = _round_up(M, tm_target)
        tm = tm_target
    if M_pad != M:
        x = jnp.pad(x, ((0, M_pad - M), (0, 0)))
        if add_res:
            residual = jnp.pad(residual, ((0, M_pad - M), (0, 0)))

    tn = _pick_tile(N_pad, tn_target, 128)
    tk = K if fuse_ln else _pick_tile(K, tk_target, 128)   # fused LN needs full rows

    in_specs = [
        pl.BlockSpec((tm, tk), lambda i, j, k: (i, k)),
        pl.BlockSpec((tk, tn), lambda i, j, k: (k, j)),
        pl.BlockSpec((1, tn), lambda i, j, k: (0, j)),
    ]
    args = [x, w, b.reshape(1, N_pad).astype(jnp.float32)]
    if fuse_ln:
        gamma, beta = ln
        in_specs += [pl.BlockSpec((1, K), lambda i, j, k: (0, 0)),
                     pl.BlockSpec((1, K), lambda i, j, k: (0, 0))]
        args += [gamma.reshape(1, K).astype(jnp.float32),
                 beta.reshape(1, K).astype(jnp.float32)]
    if add_res:
        in_specs.append(pl.BlockSpec((tm, tn), lambda i, j, k: (i, j)))
        args.append(residual)

    out = pl.pallas_call(
        functools.partial(_linear_kernel, activation, fuse_ln, add_res),
        out_shape=jax.ShapeDtypeStruct((M_pad, N_pad), out_dtype),
        grid=(M_pad // tm, N_pad // tn, K // tk),
        in_specs=in_specs,
        out_specs=pl.BlockSpec((tm, tn), lambda i, j, k: (i, j)),
        scratch_shapes=[pltpu.VMEM((tm, tn), jnp.float32)],
        compiler_params=pltpu.CompilerParams(
            dimension_semantics=("parallel", "parallel", "arbitrary"),
            vmem_limit_bytes=_VMEM_LIMIT),
    )(*args)
    if M_pad != M or N_pad != N:
        out = out[:M, :N]
    return out


# ------------------------ flash-style GQA attention (direct qkv reads) -----------------

def _flash_gqa_kernel(inv_scale, rep, head_dim,
                      q_ref, kv_ref, bias_ref, mask_ref, o_ref,
                      q_scr, msk_scr, m_scr, l_scr, acc_scr):
    """One (batch, kv-group, q-tile) x streamed kv-tile step.

    q_ref   : (1, tq, rep*Dh)  q slab of this group's heads, read straight from qkv buffer
    kv_ref  : (1, tk, 2*Dh)    interleaved [K_g | V_g] slab of the group
    bias_ref: (rep, tq, tk)    relative-position bias (bf16, padded keys pre-masked)
    mask_ref: (1, tq, 1)       query-row mask (masked_fill -10000.0 semantics)
    o_ref   : (1, tq, rep*Dh)  lane-dense output slab (heads of the group contiguous in lanes)
    """
    kj = pl.program_id(3)
    tq = q_ref.shape[1]
    tk = kv_ref.shape[1]
    Dh = head_dim

    @pl.when(kj == 0)
    def _init():
        q_slab = q_ref[0]                              # (tq, rep*Dh)
        mrow = mask_ref[0].astype(jnp.float32)         # (tq, 1)
        for r in range(rep):                           # retile q ONCE per q-tile
            q_scr[r * tq:(r + 1) * tq, :] = q_slab[:, r * Dh:(r + 1) * Dh]
            msk_scr[r * tq:(r + 1) * tq, :] = mrow
        m_scr[...] = jnp.full_like(m_scr, -jnp.inf)
        l_scr[...] = jnp.zeros_like(l_scr)
        acc_scr[...] = jnp.zeros_like(acc_scr)

    kv = kv_ref[0]                                     # (tk, 2*Dh)
    k = kv[:, :Dh]
    v = kv[:, Dh:]

    # scores: contract last axes directly (no explicit transpose of K)
    s = lax.dot_general(q_scr[...], k, (((1,), (1,)), ((), ())),
                        preferred_element_type=jnp.float32)
    s = s * inv_scale                                  # (rep*tq, tk)
    # TODO(synk): bias could be built in-kernel from the tiny (2*md+1, H) table to remove this
    # stream entirely; kept as a bf16 stream (half the previous bytes) for lowering safety.
    s = s + bias_ref[...].reshape(rep * tq, tk).astype(jnp.float32)
    s = jnp.where(msk_scr[...] != 0.0, s, -10000.0)    # masked_fill along the query dim

    # online softmax update
    m_prev = m_scr[...]
    m_new = jnp.maximum(m_prev, jnp.max(s, axis=-1, keepdims=True))
    alpha = jnp.exp(m_prev - m_new)
    p = jnp.exp(s - m_new)
    l_scr[...] = alpha * l_scr[...] + jnp.sum(p, axis=-1, keepdims=True)
    acc_scr[...] = alpha * acc_scr[...] + jnp.dot(
        p.astype(v.dtype), v, preferred_element_type=jnp.float32)
    m_scr[...] = m_new

    @pl.when(kj == pl.num_programs(3) - 1)
    def _fin():
        out = acc_scr[...] * pl.reciprocal(l_scr[...], approx=True)   # (rep*tq, Dh)
        o_ref[0] = jnp.concatenate(
            [out[r * tq:(r + 1) * tq, :] for r in range(rep)], axis=-1
        ).astype(o_ref.dtype)


def _attn_tiles(S):
    """(S_pad, tq, tk) such that the tiles divide S_pad and stay bounded."""
    if S <= 256:
        s_pad = _round_up(S, 8)
        return s_pad, s_pad, s_pad
    s_pad = _round_up(S, 256)
    return s_pad, 256, 256


def gqa_flash_attention(qkv, pos_bias, mask_p, *, d_model, num_heads, num_groups,
                        head_dim, S, S_pad, tq, tk):
    """qkv: (B, S, d_model + G*2*Dh) laid out [Q | K_0 V_0 | K_1 V_1 | ...] (bf16),
    pos_bias: (H, S_pad, S_pad) bf16 (padded keys pre-masked), mask_p: (B, S_pad, 1) int32
    -> (B, S, d_model) attention output (attention weights are never materialized)."""
    B = qkv.shape[0]
    G = num_groups
    rep = num_heads // G
    Dh = head_dim
    assert (rep * Dh) % 128 == 0, "rep*head_dim must be a multiple of 128 for lane-block reads"
    assert (2 * Dh) % 128 == 0, "2*head_dim must be a multiple of 128 for the KV slab"
    assert d_model % (2 * Dh) == 0, "d_model must be a multiple of 2*head_dim"
    if S_pad != S:
        qkv = jnp.pad(qkv, ((0, 0), (0, S_pad - S), (0, 0)))
    kv_base = d_model // (2 * Dh)                      # lane-block offset of the KV region
    inv_scale = 1.0 / math.sqrt(float(head_dim))

    out = pl.pallas_call(
        functools.partial(_flash_gqa_kernel, inv_scale, rep, Dh),
        out_shape=jax.ShapeDtypeStruct((B, S_pad, d_model), ACT_DTYPE),
        grid=(B, G, S_pad // tq, S_pad // tk),         # kv axis innermost ("arbitrary")
        in_specs=[
            pl.BlockSpec((1, tq, rep * Dh), lambda b, g, qi, kj: (b, qi, g)),
            pl.BlockSpec((1, tk, 2 * Dh), lambda b, g, qi, kj: (b, kj, kv_base + g)),
            pl.BlockSpec((rep, tq, tk), lambda b, g, qi, kj: (g, qi, kj)),
            pl.BlockSpec((1, tq, 1), lambda b, g, qi, kj: (b, qi, 0)),
        ],
        out_specs=pl.BlockSpec((1, tq, rep * Dh), lambda b, g, qi, kj: (b, qi, g)),
        scratch_shapes=[
            pltpu.VMEM((rep * tq, Dh), qkv.dtype),     # retiled q
            pltpu.VMEM((rep * tq, 1), jnp.float32),    # query-row mask
            pltpu.VMEM((rep * tq, 1), jnp.float32),    # running max m
            pltpu.VMEM((rep * tq, 1), jnp.float32),    # running denom l
            pltpu.VMEM((rep * tq, Dh), jnp.float32),   # output accumulator
        ],
        compiler_params=pltpu.CompilerParams(
            dimension_semantics=("parallel", "parallel", "parallel", "arbitrary"),
            vmem_limit_bytes=_VMEM_LIMIT),
    )(qkv, qkv, pos_bias, mask_p)
    return out[:, :S] if S_pad != S else out


# ------------------------------- relative position bias -------------------------------

def relative_position_bias(table, S, S_pad, max_distance, dtype):
    """table: (2*max_distance+1, H) -> (H, S_pad, S_pad) bias; padded key columns masked."""
    pos = jnp.arange(S_pad)
    rel = pos[None, :] - pos[:, None]
    idx = jnp.clip(rel, -max_distance, max_distance) + max_distance
    bias = jnp.transpose(table[idx], (2, 0, 1)).astype(jnp.float32)      # (H, S_pad, S_pad)
    if S_pad != S:
        key_pad = jnp.arange(S_pad) >= S
        bias = jnp.where(key_pad[None, None, :], -1e9, bias)
    return bias.astype(dtype)


# --------------------------------- parameter handling ---------------------------------

def init_params(key, d_model, num_heads, num_groups, num_layers, output_dim,
                max_distance=128):
    head_dim = d_model // num_heads
    kv_dim = num_groups * head_dim
    keys = iter(jax.random.split(key, 256))

    def nxt():
        return next(keys)

    def linear_init(d_in, d_out):
        bound = 1.0 / math.sqrt(d_in)
        return (jax.random.uniform(nxt(), (d_in, d_out), jnp.float32, -bound, bound),
                jax.random.uniform(nxt(), (d_out,), jnp.float32, -bound, bound))

    def conv_init(c_in, c_out, ksize):
        bound = 1.0 / math.sqrt(c_in * ksize)
        return (jax.random.uniform(nxt(), (ksize, c_in, c_out), jnp.float32, -bound, bound),
                jax.random.uniform(nxt(), (c_out,), jnp.float32, -bound, bound))

    def bn_init(c):
        return dict(gamma=jax.random.uniform(nxt(), (c,), jnp.float32, 0.5, 1.5),
                    beta=jax.random.uniform(nxt(), (c,), jnp.float32, -0.1, 0.1),
                    mean=0.1 * jax.random.normal(nxt(), (c,), jnp.float32),
                    var=jax.random.uniform(nxt(), (c,), jnp.float32, 0.5, 1.5))

    p = {}
    c1 = d_model // 2
    p["conv1_w"], p["conv1_b"] = conv_init(2, c1, 7)
    p["bn1"] = bn_init(c1)
    p["conv2_w"], p["conv2_b"] = conv_init(c1, d_model, 5)
    p["bn2"] = bn_init(d_model)
    p["conv3_w"], p["conv3_b"] = conv_init(d_model, d_model, 3)
    p["bn3"] = bn_init(d_model)
    p["rel_bias_table"] = jax.random.normal(nxt(), (2 * max_distance + 1, num_heads), jnp.float32)

    layers = []
    for _ in range(num_layers):
        wq, bq = linear_init(d_model, d_model)
        wk, bk = linear_init(d_model, kv_dim)
        wv, bv = linear_init(d_model, kv_dim)
        wo, bo = linear_init(d_model, d_model)
        w1, b1 = linear_init(d_model, 4 * d_model)
        w2, b2 = linear_init(4 * d_model, d_model)
        layers.append(dict(
            wq=wq, bq=bq, wk=wk, bk=bk, wv=wv, bv=bv, wo=wo, bo=bo,
            w1=w1, b1=b1, w2=w2, b2=b2,
            ln1_g=jnp.ones((d_model,), jnp.float32), ln1_b=jnp.zeros((d_model,), jnp.float32),
            ln2_g=jnp.ones((d_model,), jnp.float32), ln2_b=jnp.zeros((d_model,), jnp.float32)))
    p["layers"] = layers
    p["fc_w"], p["fc_b"] = linear_init(d_model, output_dim)
    return p


def prepare_params(params, num_heads, num_groups):
    """Inference-time weight prep: fold BN into conv weights, fuse+interleave QKV as
    [Q | K_0 V_0 | K_1 V_1 | ...], cast weights to bf16 (biases / LN params stay f32)."""
    act, f32 = ACT_DTYPE, jnp.float32
    pp = {"rel_bias_table": params["rel_bias_table"].astype(f32)}
    for i, (ksz, _, _) in enumerate(_CONV_CFG, start=1):
        w = params[f"conv{i}_w"]                                   # (k, C_in, C_out)
        k_, cin, cout = w.shape
        bn = params[f"bn{i}"]
        wf, bf = _fold_bn(w.reshape(k_ * cin, cout), params[f"conv{i}_b"],
                          bn["gamma"], bn["beta"], bn["mean"], bn["var"], _LN_EPS)
        pp[f"conv{i}_w"] = wf.astype(act)
        pp[f"conv{i}_b"] = bf.astype(f32)

    d_model = params["layers"][0]["wq"].shape[0]
    Dh = d_model // num_heads
    layers = []
    for lp in params["layers"]:
        wcols, bcols = [lp["wq"]], [lp["bq"]]
        for g in range(num_groups):
            wcols += [lp["wk"][:, g * Dh:(g + 1) * Dh], lp["wv"][:, g * Dh:(g + 1) * Dh]]
            bcols += [lp["bk"][g * Dh:(g + 1) * Dh], lp["bv"][g * Dh:(g + 1) * Dh]]
        layers.append(dict(
            wqkv=jnp.concatenate(wcols, axis=1).astype(act),
            bqkv=jnp.concatenate(bcols, axis=0).astype(f32),
            wo=lp["wo"].astype(act), bo=lp["bo"].astype(f32),
            w1=lp["w1"].astype(act), b1=lp["b1"].astype(f32),
            w2=lp["w2"].astype(act), b2=lp["b2"].astype(f32),
            ln1_g=lp["ln1_g"].astype(f32), ln1_b=lp["ln1_b"].astype(f32),
            ln2_g=lp["ln2_g"].astype(f32), ln2_b=lp["ln2_b"].astype(f32)))
    pp["layers"] = layers
    pp["fc_w"] = params["fc_w"].astype(act)
    pp["fc_b"] = params["fc_b"].astype(f32)
    return pp


# ---------------------------------- model forward -------------------------------------

def encoder_layer(lp, x, mask_p, pos_bias, num_heads, num_groups, S_pad, tq, tk):
    B, S, D = x.shape
    Dh = D // num_heads
    x2 = x.reshape(B * S, D)
    # pre-norm attention block (LN fused into the QKV matmul)
    qkv = linear(x2, lp["wqkv"], lp["bqkv"], ln=(lp["ln1_g"], lp["ln1_b"]))
    attn = gqa_flash_attention(qkv.reshape(B, S, -1), pos_bias, mask_p,
                               d_model=D, num_heads=num_heads, num_groups=num_groups,
                               head_dim=Dh, S=S, S_pad=S_pad, tq=tq, tk=tk)
    x2 = linear(attn.reshape(B * S, D), lp["wo"], lp["bo"], residual=x2)   # + residual fused
    # FFN block (LN fused, GELU fused, residual fused); dropouts are eval-mode identities
    h1 = linear(x2, lp["w1"], lp["b1"], ln=(lp["ln2_g"], lp["ln2_b"]), activation="gelu")
    x2 = linear(h1, lp["w2"], lp["b2"], residual=x2)
    return x2.reshape(B, S, D)


def transformer_forward(pp, x, num_heads, num_groups, max_distance=128):
    """x: (B, L, 2) -> (emissions (B, S, output_dim) f32, mask (B, S) bool)."""
    B = x.shape[0]
    h = x.astype(ACT_DTYPE)
    # --- CNN frontend: Conv1d -> BatchNorm1d(eval, folded) -> GELU, three times ---
    for i, (ksz, stride, pad) in enumerate(_CONV_CFG, start=1):
        patches, L_out = _im2col(h, ksz, stride, pad)
        y = linear(patches, pp[f"conv{i}_w"], pp[f"conv{i}_b"], activation="gelu")
        h = y.reshape(B, L_out, -1)
    S, d_model = h.shape[1], h.shape[2]

    S_pad, tq, tk = _attn_tiles(S)
    mask = jnp.ones((B, S, 1), jnp.int32)              # model builds an all-ones mask
    mask_p = jnp.pad(mask, ((0, 0), (0, S_pad - S), (0, 0))) if S_pad != S else mask
    pos_bias = relative_position_bias(pp["rel_bias_table"], S, S_pad, max_distance, ACT_DTYPE)

    for lp in pp["layers"]:
        h = encoder_layer(lp, h, mask_p, pos_bias, num_heads, num_groups, S_pad, tq, tk)

    em = linear(h.reshape(B * S, d_model), pp["fc_w"], pp["fc_b"], out_dtype=jnp.float32)
    # TODO(synk): torchcrf.CRF is an attribute of the module but is not invoked in
    # TransformerModel.forward, so it is intentionally not implemented.
    return em.reshape(B, S, -1), mask[:, :, 0].astype(jnp.bool_)


# ------------------------- plain-JAX reference (matched precision) ---------------------

def reference_forward(pp, x, num_heads, num_groups, max_distance=128):
    """Mirrors the kernel path's bf16 storage points / tanh-GELU so the comparison is tight."""
    f32, act = jnp.float32, ACT_DTYPE
    B = x.shape[0]
    h = x.astype(act)
    for i, (ksz, stride, pad) in enumerate(_CONV_CFG, start=1):
        patches, L_out = _im2col(h, ksz, stride, pad)
        y = jnp.dot(patches, pp[f"conv{i}_w"], preferred_element_type=f32) + pp[f"conv{i}_b"]
        h = _gelu_tanh(y).astype(act).reshape(B, L_out, -1)

    S, D = h.shape[1], h.shape[2]
    H, G = num_heads, num_groups
    Dh, rep = D // H, H // G
    inv_scale = 1.0 / math.sqrt(float(Dh))
    mask = jnp.ones((B, S), jnp.bool_)
    bias = relative_position_bias(pp["rel_bias_table"], S, S, max_distance, act).astype(f32)

    def ln(z, g, b):
        zf = z.astype(f32)
        mu = jnp.mean(zf, -1, keepdims=True)
        zc = zf - mu
        var = jnp.mean(zc * zc, -1, keepdims=True)
        return zc * lax.rsqrt(var + _LN_EPS) * g + b

    for lp in pp["layers"]:
        xn = ln(h, lp["ln1_g"], lp["ln1_b"]).astype(act)
        qkv = (jnp.dot(xn.reshape(B * S, D), lp["wqkv"], preferred_element_type=f32)
               + lp["bqkv"]).astype(act).reshape(B, S, -1)
        q = qkv[..., :D].reshape(B, S, H, Dh).transpose(0, 2, 1, 3)
        k = jnp.stack([qkv[..., D + g * 2 * Dh:D + g * 2 * Dh + Dh] for g in range(G)], 1)
        v = jnp.stack([qkv[..., D + g * 2 * Dh + Dh:D + (g + 1) * 2 * Dh] for g in range(G)], 1)
        k = jnp.repeat(k, rep, axis=1)
        v = jnp.repeat(v, rep, axis=1)
        s = jnp.einsum("bhqd,bhkd->bhqk", q, k, preferred_element_type=f32) * inv_scale
        s = s + bias[None]
        s = jnp.where(mask[:, None, :, None], s, -10000.0)
        m = jnp.max(s, -1, keepdims=True)
        p = jnp.exp(s - m)
        l = jnp.sum(p, -1, keepdims=True)
        o = jnp.einsum("bhqk,bhkd->bhqd", p.astype(act), v, preferred_element_type=f32) / l
        o = o.transpose(0, 2, 1, 3).reshape(B * S, D).astype(act)
        res = (jnp.dot(o, lp["wo"], preferred_element_type=f32) + lp["bo"]
               + h.reshape(B * S, D).astype(f32)).astype(act)
        xn2 = ln(res, lp["ln2_g"], lp["ln2_b"]).astype(act)
        h1 = _gelu_tanh(jnp.dot(xn2, lp["w1"], preferred_element_type=f32) + lp["b1"]).astype(act)
        h = (jnp.dot(h1, lp["w2"], preferred_element_type=f32) + lp["b2"]
             + res.astype(f32)).astype(act).reshape(B, S, D)

    em = jnp.dot(h.reshape(B * S, D), pp["fc_w"], preferred_element_type=f32) + pp["fc_b"]
    return em.reshape(B, S, -1), mask


# --------------------------------------- main -----------------------------------------

if __name__ == "__main__":
    # small config: d_model=256, H=4, G=2 -> head_dim=64, rep=2, rep*Dh=128 (lane-dense)
    d_model, num_heads, num_groups = 256, 4, 2
    num_layers, output_dim = 2, 5
    B, L = 2, 64                                     # three stride-2 convs -> S = 8

    root = jax.random.PRNGKey(0)
    kp, kx = jax.random.split(root)
    raw = init_params(kp, d_model, num_heads, num_groups, num_layers, output_dim)
    x = jax.random.normal(kx, (B, L, 2), jnp.float32)
    pp = prepare_params(raw, num_heads, num_groups)

    fwd = jax.jit(functools.partial(transformer_forward,
                                    num_heads=num_heads, num_groups=num_groups))
    emissions, mask = fwd(pp, x)
    emissions = jax.block_until_ready(emissions)
    mask = jax.block_until_ready(mask)

    ref_em, ref_mask = reference_forward(pp, x, num_heads, num_groups)
    S = L // 8
    assert emissions.shape == (B, S, output_dim), emissions.shape
    assert mask.shape == (B, S) and bool(jnp.all(mask == ref_mask))
    max_err = float(jnp.max(jnp.abs(emissions - ref_em)))
    assert jnp.allclose(emissions, ref_em, atol=2e-2, rtol=2e-2), f"max_err={max_err}"

    print("KERNEL_OK")
</pallas_src>

<mosaic_0001>
module attributes {stable_mosaic.version = 11 : i64} {
  func.func @_linear_kernel(%arg0: i32, %arg1: i32, %arg2: i32, %arg3: memref<64x14xbf16, #tpu.memory_space<vmem>>, %arg4: memref<14x128xbf16, #tpu.memory_space<vmem>>, %arg5: memref<1x128xf32, #tpu.memory_space<vmem>>, %arg6: memref<64x128xbf16, #tpu.memory_space<vmem>>, %arg7: memref<64x128xf32, #tpu.memory_space<vmem>>) attributes {dimension_semantics = [#tpu.dimension_semantics<parallel>, #tpu.dimension_semantics<parallel>, #tpu.dimension_semantics<arbitrary>], iteration_bounds = array<i64: 1, 1, 1>, scalar_prefetch = 0 : i64, scratch_operands = 1 : i64, tpu.core_type = #tpu.core_type<tc>, window_params = [{transform_indices = @transform_0, window_bounds = array<i64: 64, 14>}, {transform_indices = @transform_1, window_bounds = array<i64: 14, 128>}, {transform_indices = @transform_2, window_bounds = array<i64: 1, 128>}, {transform_indices = @transform_3, window_bounds = array<i64: 64, 128>}]} {
    %c0_i32 = arith.constant 0 : i32
    %0 = arith.cmpi eq, %arg2, %c0_i32 : i32
    %1 = arith.extui %0 : i1 to i32
    %c0_i32_0 = arith.constant 0 : i32
    %2 = arith.cmpi ne, %1, %c0_i32_0 : i32
    scf.if %2 {
      %cst_10 = arith.constant 0.000000e+00 : f32
      %12 = vector.broadcast %cst_10 : f32 to vector<64x128xf32>
      %c0_11 = arith.constant 0 : index
      %c0_12 = arith.constant 0 : index
      %13 = vector.load %arg7[%c0_11, %c0_12] : memref<64x128xf32, #tpu.memory_space<vmem>>, vector<64x128xf32>
      tpu.vector_store %arg7[%c0_11, %c0_12], %12 {strides = array<i32>} : memref<64x128xf32, #tpu.memory_space<vmem>>, vector<64x128xf32>,
    } else {
    }
    %c0 = arith.constant 0 : index
    %c0_1 = arith.constant 0 : index
    %3 = vector.load %arg3[%c0, %c0_1] : memref<64x14xbf16, #tpu.memory_space<vmem>>, vector<64x14xbf16>
    %c0_2 = arith.constant 0 : index
    %c0_3 = arith.constant 0 : index
    %4 = vector.load %arg7[%c0_2, %c0_3] : memref<64x128xf32, #tpu.memory_space<vmem>>, vector<64x128xf32>
    %c0_4 = arith.constant 0 : index
    %c0_5 = arith.constant 0 : index
    %5 = vector.load %arg4[%c0_4, %c0_5] : memref<14x128xbf16, #tpu.memory_space<vmem>>, vector<14x128xbf16>
    %cst = arith.constant dense<0.000000e+00> : vector<64x128xf32>
    %6 = tpu.matmul %3, %5, %cst {dimension_numbers = #tpu.dot_dimension_numbers<[1], [0], [0], [1], [0, 0, 1, 1], [], []>} : vector<64x14xbf16>, vector<14x128xbf16>, vector<64x128xf32> -> vector<64x128xf32>
    %7 = arith.addf %4, %6 : vector<64x128xf32>
    %c0_6 = arith.constant 0 : index
    %c0_7 = arith.constant 0 : index
    %8 = vector.load %arg7[%c0_6, %c0_7] : memref<64x128xf32, #tpu.memory_space<vmem>>, vector<64x128xf32>
    tpu.vector_store %arg7[%c0_6, %c0_7], %7 {strides = array<i32>} : memref<64x128xf32, #tpu.memory_space<vmem>>, vector<64x128xf32>,
    %c0_i32_8 = arith.constant 0 : i32
    %9 = arith.cmpi eq, %arg2, %c0_i32_8 : i32
    %10 = arith.extui %9 : i1 to i32
    %c0_i32_9 = arith.constant 0 : i32
    %11 = arith.cmpi ne, %10, %c0_i32_9 : i32
    scf.if %11 {
      %c0_10 = arith.constant 0 : index
      %c0_11 = arith.constant 0 : index
      %12 = vector.load %arg7[%c0_10, %c0_11] : memref<64x128xf32, #tpu.memory_space<vmem>>, vector<64x128xf32>
      %c0_12 = arith.constant 0 : index
      %c0_13 = arith.constant 0 : index
      %13 = vector.load %arg5[%c0_12, %c0_13] : memref<1x128xf32, #tpu.memory_space<vmem>>, vector<1x128xf32>
      %14 = vector.broadcast %13 : vector<1x128xf32> to vector<64x128xf32>
      %15 = arith.addf %12, %14 : vector<64x128xf32>
      %cst_14 = arith.constant 5.000000e-01 : f32
      %16 = vector.broadcast %cst_14 : f32 to vector<64x128xf32>
      %17 = arith.mulf %16, %15 : vector<64x128xf32>
      %cst_15 = arith.constant 4.471500e-02 : f32
      %18 = vector.broadcast %cst_15 : f32 to vector<64x128xf32>
      %19 = arith.mulf %18, %15 : vector<64x128xf32>
      %20 = arith.mulf %19, %15 : vector<64x128xf32>
      %21 = arith.mulf %20, %15 : vector<64x128xf32>
      %22 = arith.addf %15, %21 : vector<64x128xf32>
      %cst_16 = arith.constant 0.797884583 : f32
      %23 = vector.broadcast %cst_16 : f32 to vector<64x128xf32>
      %24 = arith.mulf %23, %22 : vector<64x128xf32>
      %25 = math.tanh %24 : vector<64x128xf32>
      %cst_17 = arith.constant 1.000000e+00 : f32
      %26 = vector.broadcast %cst_17 : f32 to vector<64x128xf32>
      %27 = arith.addf %26, %25 : vector<64x128xf32>
      %28 = arith.mulf %17, %27 : vector<64x128xf32>
      %29 = arith.truncf %28 : vector<64x128xf32> to vector<64x128xbf16>
      %c0_18 = arith.constant 0 : index
      %c0_19 = arith.constant 0 : index
      %30 = vector.load %arg6[%c0_18, %c0_19] : memref<64x128xbf16, #tpu.memory_space<vmem>>, vector<64x128xbf16>
      tpu.vector_store %arg6[%c0_18, %c0_19], %29 {strides = array<i32>} : memref<64x128xbf16, #tpu.memory_space<vmem>>, vector<64x128xbf16>,
    } else {
    }
    return
  }
  func.func @transform_0(%arg0: i32, %arg1: i32, %arg2: i32) -> (i32, i32) {
    %c0_i32 = arith.constant 0 : i32
    return %arg0, %arg2 : i32, i32
  }
  func.func @transform_1(%arg0: i32, %arg1: i32, %arg2: i32) -> (i32, i32) {
    %c0_i32 = arith.constant 0 : i32
    return %arg2, %arg1 : i32, i32
  }
  func.func @transform_2(%arg0: i32, %arg1: i32, %arg2: i32) -> (i32, i32) {
    %c0_i32 = arith.constant 0 : i32
    %c0_i32_0 = arith.constant 0 : i32
    return %c0_i32, %arg1 : i32, i32
  }
  func.func @transform_3(%arg0: i32, %arg1: i32, %arg2: i32) -> (i32, i32) {
    %c0_i32 = arith.constant 0 : i32
    return %arg0, %arg1 : i32, i32
  }
}

module attributes {stable_mosaic.version = 11 : i64} {
  func.func @_linear_kernel(%arg0: i32, %arg1: i32, %arg2: i32, %arg3: memref<32x128xbf16, #tpu.memory_space<vmem>>, %arg4: memref<128x256xbf16, #tpu.memory_space<vmem>>, %arg5: memref<1x256xf32, #tpu.memory_space<vmem>>, %arg6: memref<32x256xbf16, #tpu.memory_space<vmem>>, %arg7: memref<32x256xf32, #tpu.memory_space<vmem>>) attributes {dimension_semantics = [#tpu.dimension_semantics<parallel>, #tpu.dimension_semantics<parallel>, #tpu.dimension_semantics<arbitrary>], iteration_bounds = array<i64: 1, 1, 5>, scalar_prefetch = 0 : i64, scratch_operands = 1 : i64, tpu.core_type = #tpu.core_type<tc>, window_params = [{transform_indices = @transform_0, window_bounds = array<i64: 32, 128>}, {transform_indices = @transform_1, window_bounds = array<i64: 128, 256>}, {transform_indices = @transform_2, window_bounds = array<i64: 1, 256>}, {transform_indices = @transform_3, window_bounds = array<i64: 32, 256>}]} {
    %c0_i32 = arith.constant 0 : i32
    %0 = arith.cmpi eq, %arg2, %c0_i32 : i32
    %1 = arith.extui %0 : i1 to i32
    %c0_i32_0 = arith.constant 0 : i32
    %2 = arith.cmpi ne, %1, %c0_i32_0 : i32
    scf.if %2 {
      %cst_9 = arith.constant 0.000000e+00 : f32
      %12 = vector.broadcast %cst_9 : f32 to vector<32x256xf32>
      %c0_10 = arith.constant 0 : index
      %c0_11 = arith.constant 0 : index
      %13 = vector.load %arg7[%c0_10, %c0_11] : memref<32x256xf32, #tpu.memory_space<vmem>>, vector<32x256xf32>
      tpu.vector_store %arg7[%c0_10, %c0_11], %12 {strides = array<i32>} : memref<32x256xf32, #tpu.memory_space<vmem>>, vector<32x256xf32>,
    } else {
    }
    %c0 = arith.constant 0 : index
    %c0_1 = arith.constant 0 : index
    %3 = vector.load %arg3[%c0, %c0_1] : memref<32x128xbf16, #tpu.memory_space<vmem>>, vector<32x128xbf16>
    %c0_2 = arith.constant 0 : index
    %c0_3 = arith.constant 0 : index
    %4 = vector.load %arg7[%c0_2, %c0_3] : memref<32x256xf32, #tpu.memory_space<vmem>>, vector<32x256xf32>
    %c0_4 = arith.constant 0 : index
    %c0_5 = arith.constant 0 : index
    %5 = vector.load %arg4[%c0_4, %c0_5] : memref<128x256xbf16, #tpu.memory_space<vmem>>, vector<128x256xbf16>
    %cst = arith.constant dense<0.000000e+00> : vector<32x256xf32>
    %6 = tpu.matmul %3, %5, %cst {dimension_numbers = #tpu.dot_dimension_numbers<[1], [0], [0], [1], [0, 0, 1, 1], [], []>} : vector<32x128xbf16>, vector<128x256xbf16>, vector<32x256xf32> -> vector<32x256xf32>
    %7 = arith.addf %4, %6 : vector<32x256xf32>
    %c0_6 = arith.constant 0 : index
    %c0_7 = arith.constant 0 : index
    %8 = vector.load %arg7[%c0_6, %c0_7] : memref<32x256xf32, #tpu.memory_space<vmem>>, vector<32x256xf32>
    tpu.vector_store %arg7[%c0_6, %c0_7], %7 {strides = array<i32>} : memref<32x256xf32, #tpu.memory_space<vmem>>, vector<32x256xf32>,
    %c4_i32 = arith.constant 4 : i32
    %9 = arith.cmpi eq, %arg2, %c4_i32 : i32
    %10 = arith.extui %9 : i1 to i32
    %c0_i32_8 = arith.constant 0 : i32
    %11 = arith.cmpi ne, %10, %c0_i32_8 : i32
    scf.if %11 {
      %c0_9 = arith.constant 0 : index
      %c0_10 = arith.constant 0 : index
      %12 = vector.load %arg7[%c0_9, %c0_10] : memref<32x256xf32, #tpu.memory_space<vmem>>, vector<32x256xf32>
      %c0_11 = arith.constant 0 : index
      %c0_12 = arith.constant 0 : index
      %13 = vector.load %arg5[%c0_11, %c0_12] : memref<1x256xf32, #tpu.memory_space<vmem>>, vector<1x256xf32>
      %14 = vector.broadcast %13 : vector<1x256xf32> to vector<32x256xf32>
      %15 = arith.addf %12, %14 : vector<32x256xf32>
      %cst_13 = arith.constant 5.000000e-01 : f32
      %16 = vector.broadcast %cst_13 : f32 to vector<32x256xf32>
      %17 = arith.mulf %16, %15 : vector<32x256xf32>
      %cst_14 = arith.constant 4.471500e-02 : f32
      %18 = vector.broadcast %cst_14 : f32 to vector<32x256xf32>
      %19 = arith.mulf %18, %15 : vector<32x256xf32>
      %20 = arith.mulf %19, %15 : vector<32x256xf32>
      %21 = arith.mulf %20, %15 : vector<32x256xf32>
      %22 = arith.addf %15, %21 : vector<32x256xf32>
      %cst_15 = arith.constant 0.797884583 : f32
      %23 = vector.broadcast %cst_15 : f32 to vector<32x256xf32>
      %24 = arith.mulf %23, %22 : vector<32x256xf32>
      %25 = math.tanh %24 : vector<32x256xf32>
      %cst_16 = arith.constant 1.000000e+00 : f32
      %26 = vector.broadcast %cst_16 : f32 to vector<32x256xf32>
      %27 = arith.addf %26, %25 : vector<32x256xf32>
      %28 = arith.mulf %17, %27 : vector<32x256xf32>
      %29 = arith.truncf %28 : vector<32x256xf32> to vector<32x256xbf16>
      %c0_17 = arith.constant 0 : index
      %c0_18 = arith.constant 0 : index
      %30 = vector.load %arg6[%c0_17, %c0_18] : memref<32x256xbf16, #tpu.memory_space<vmem>>, vector<32x256xbf16>
      tpu.vector_store %arg6[%c0_17, %c0_18], %29 {strides = array<i32>} : memref<32x256xbf16, #tpu.memory_space<vmem>>, vector<32x256xbf16>,
    } else {
    }
    return
  }
  func.func @transform_0(%arg0: i32, %arg1: i32, %arg2: i32) -> (i32, i32) {
    %c0_i32 = arith.constant 0 : i32
    return %arg0, %arg2 : i32, i32
  }
  func.func @transform_1(%arg0: i32, %arg1: i32, %arg2: i32) -> (i32, i32) {
    %c0_i32 = arith.constant 0 : i32
    return %arg2, %arg1 : i32, i32
  }
  func.func @transform_2(%arg0: i32, %arg1: i32, %arg2: i32) -> (i32, i32) {
    %c0_i32 = arith.constant 0 : i32
    %c0_i32_0 = arith.constant 0 : i32
    return %c0_i32, %arg1 : i32, i32
  }
  func.func @transform_3(%arg0: i32, %arg1: i32, %arg2: i32) -> (i32, i32) {
    %c0_i32 = arith.constant 0 : i32
    return %arg0, %arg1 : i32, i32
  }
}

module attributes {stable_mosaic.version = 11 : i64} {
  func.func @_linear_kernel(%arg0: i32, %arg1: i32, %arg2: i32, %arg3: memref<16x384xbf16, #tpu.memory_space<vmem>>, %arg4: memref<384x256xbf16, #tpu.memory_space<vmem>>, %arg5: memref<1x256xf32, #tpu.memory_space<vmem>>, %arg6: memref<16x256xbf16, #tpu.memory_space<vmem>>, %arg7: memref<16x256xf32, #tpu.memory_space<vmem>>) attributes {dimension_semantics = [#tpu.dimension_semantics<parallel>, #tpu.dimension_semantics<parallel>, #tpu.dimension_semantics<arbitrary>], iteration_bounds = array<i64: 1, 1, 2>, scalar_prefetch = 0 : i64, scratch_operands = 1 : i64, tpu.core_type = #tpu.core_type<tc>, window_params = [{transform_indices = @transform_0, window_bounds = array<i64: 16, 384>}, {transform_indices = @transform_1, window_bounds = array<i64: 384, 256>}, {transform_indices = @transform_2, window_bounds = array<i64: 1, 256>}, {transform_indices = @transform_3, window_bounds = array<i64: 16, 256>}]} {
    %c0_i32 = arith.constant 0 : i32
    %0 = arith.cmpi eq, %arg2, %c0_i32 : i32
    %1 = arith.extui %0 : i1 to i32
    %c0_i32_0 = arith.constant 0 : i32
    %2 = arith.cmpi ne, %1, %c0_i32_0 : i32
    scf.if %2 {
      %cst_9 = arith.constant 0.000000e+00 : f32
      %12 = vector.broadcast %cst_9 : f32 to vector<16x256xf32>
      %c0_10 = arith.constant 0 : index
      %c0_11 = arith.constant 0 : index
      %13 = vector.load %arg7[%c0_10, %c0_11] : memref<16x256xf32, #tpu.memory_space<vmem>>, vector<16x256xf32>
      tpu.vector_store %arg7[%c0_10, %c0_11], %12 {strides = array<i32>} : memref<16x256xf32, #tpu.memory_space<vmem>>, vector<16x256xf32>,
    } else {
    }
    %c0 = arith.constant 0 : index
    %c0_1 = arith.constant 0 : index
    %3 = vector.load %arg3[%c0, %c0_1] : memref<16x384xbf16, #tpu.memory_space<vmem>>, vector<16x384xbf16>
    %c0_2 = arith.constant 0 : index
    %c0_3 = arith.constant 0 : index
    %4 = vector.load %arg7[%c0_2, %c0_3] : memref<16x256xf32, #tpu.memory_space<vmem>>, vector<16x256xf32>
    %c0_4 = arith.constant 0 : index
    %c0_5 = arith.constant 0 : index
    %5 = vector.load %arg4[%c0_4, %c0_5] : memref<384x256xbf16, #tpu.memory_space<vmem>>, vector<384x256xbf16>
    %cst = arith.constant dense<0.000000e+00> : vector<16x256xf32>
    %6 = tpu.matmul %3, %5, %cst {dimension_numbers = #tpu.dot_dimension_numbers<[1], [0], [0], [1], [0, 0, 1, 1], [], []>} : vector<16x384xbf16>, vector<384x256xbf16>, vector<16x256xf32> -> vector<16x256xf32>
    %7 = arith.addf %4, %6 : vector<16x256xf32>
    %c0_6 = arith.constant 0 : index
    %c0_7 = arith.constant 0 : index
    %8 = vector.load %arg7[%c0_6, %c0_7] : memref<16x256xf32, #tpu.memory_space<vmem>>, vector<16x256xf32>
    tpu.vector_store %arg7[%c0_6, %c0_7], %7 {strides = array<i32>} : memref<16x256xf32, #tpu.memory_space<vmem>>, vector<16x256xf32>,
    %c1_i32 = arith.constant 1 : i32
    %9 = arith.cmpi eq, %arg2, %c1_i32 : i32
    %10 = arith.extui %9 : i1 to i32
    %c0_i32_8 = arith.constant 0 : i32
    %11 = arith.cmpi ne, %10, %c0_i32_8 : i32
    scf.if %11 {
      %c0_9 = arith.constant 0 : index
      %c0_10 = arith.constant 0 : index
      %12 = vector.load %arg7[%c0_9, %c0_10] : memref<16x256xf32, #tpu.memory_space<vmem>>, vector<16x256xf32>
      %c0_11 = arith.constant 0 : index
      %c0_12 = arith.constant 0 : index
      %13 = vector.load %arg5[%c0_11, %c0_12] : memref<1x256xf32, #tpu.memory_space<vmem>>, vector<1x256xf32>
      %14 = vector.broadcast %13 : vector<1x256xf32> to vector<16x256xf32>
      %15 = arith.addf %12, %14 : vector<16x256xf32>
      %cst_13 = arith.constant 5.000000e-01 : f32
      %16 = vector.broadcast %cst_13 : f32 to vector<16x256xf32>
      %17 = arith.mulf %16, %15 : vector<16x256xf32>
      %cst_14 = arith.constant 4.471500e-02 : f32
      %18 = vector.broadcast %cst_14 : f32 to vector<16x256xf32>
      %19 = arith.mulf %18, %15 : vector<16x256xf32>
      %20 = arith.mulf %19, %15 : vector<16x256xf32>
      %21 = arith.mulf %20, %15 : vector<16x256xf32>
      %22 = arith.addf %15, %21 : vector<16x256xf32>
      %cst_15 = arith.constant 0.797884583 : f32
      %23 = vector.broadcast %cst_15 : f32 to vector<16x256xf32>
      %24 = arith.mulf %23, %22 : vector<16x256xf32>
      %25 = math.tanh %24 : vector<16x256xf32>
      %cst_16 = arith.constant 1.000000e+00 : f32
      %26 = vector.broadcast %cst_16 : f32 to vector<16x256xf32>
      %27 = arith.addf %26, %25 : vector<16x256xf32>
      %28 = arith.mulf %17, %27 : vector<16x256xf32>
      %29 = arith.truncf %28 : vector<16x256xf32> to vector<16x256xbf16>
      %c0_17 = arith.constant 0 : index
      %c0_18 = arith.constant 0 : index
      %30 = vector.load %arg6[%c0_17, %c0_18] : memref<16x256xbf16, #tpu.memory_space<vmem>>, vector<16x256xbf16>
      tpu.vector_store %arg6[%c0_17, %c0_18], %29 {strides = array<i32>} : memref<16x256xbf16, #tpu.memory_space<vmem>>, vector<16x256xbf16>,
    } else {
    }
    return
  }
  func.func @transform_0(%arg0: i32, %arg1: i32, %arg2: i32) -> (i32, i32) {
    %c0_i32 = arith.constant 0 : i32
    return %arg0, %arg2 : i32, i32
  }
  func.func @transform_1(%arg0: i32, %arg1: i32, %arg2: i32) -> (i32, i32) {
    %c0_i32 = arith.constant 0 : i32
    return %arg2, %arg1 : i32, i32
  }
  func.func @transform_2(%arg0: i32, %arg1: i32, %arg2: i32) -> (i32, i32) {
    %c0_i32 = arith.constant 0 : i32
    %c0_i32_0 = arith.constant 0 : i32
    return %c0_i32, %arg1 : i32, i32
  }
  func.func @transform_3(%arg0: i32, %arg1: i32, %arg2: i32) -> (i32, i32) {
    %c0_i32 = arith.constant 0 : i32
    return %arg0, %arg1 : i32, i32
  }
}

module attributes {stable_mosaic.version = 11 : i64} {
  func.func @_linear_kernel(%arg0: i32, %arg1: i32, %arg2: i32, %arg3: memref<16x256xbf16, #tpu.memory_space<vmem>>, %arg4: memref<256x512xbf16, #tpu.memory_space<vmem>>, %arg5: memref<1x512xf32, #tpu.memory_space<vmem>>, %arg6: memref<1x256xf32, #tpu.memory_space<vmem>>, %arg7: memref<1x256xf32, #tpu.memory_space<vmem>>, %arg8: memref<16x512xbf16, #tpu.memory_space<vmem>>, %arg9: memref<16x512xf32, #tpu.memory_space<vmem>>) attributes {dimension_semantics = [#tpu.dimension_semantics<parallel>, #tpu.dimension_semantics<parallel>, #tpu.dimension_semantics<arbitrary>], iteration_bounds = array<i64: 1, 1, 1>, scalar_prefetch = 0 : i64, scratch_operands = 1 : i64, tpu.core_type = #tpu.core_type<tc>, window_params = [{transform_indices = @transform_0, window_bounds = array<i64: 16, 256>}, {transform_indices = @transform_1, window_bounds = array<i64: 256, 512>}, {transform_indices = @transform_2, window_bounds = array<i64: 1, 512>}, {pipeline_mode = #tpu.pipeline_mode<synchronous>, transform_indices = @transform_3, window_bounds = array<i64: 1, 256>}, {pipeline_mode = #tpu.pipeline_mode<synchronous>, transform_indices = @transform_4, window_bounds = array<i64: 1, 256>}, {transform_indices = @transform_5, window_bounds = array<i64: 16, 512>}]} {
    %c0_i32 = arith.constant 0 : i32
    %0 = arith.cmpi eq, %arg2, %c0_i32 : i32
    %1 = arith.extui %0 : i1 to i32
    %c0_i32_0 = arith.constant 0 : i32
    %2 = arith.cmpi ne, %1, %c0_i32_0 : i32
    scf.if %2 {
      %cst_19 = arith.constant 0.000000e+00 : f32
      %36 = vector.broadcast %cst_19 : f32 to vector<16x512xf32>
      %c0_20 = arith.constant 0 : index
      %c0_21 = arith.constant 0 : index
      %37 = vector.load %arg9[%c0_20, %c0_21] : memref<16x512xf32, #tpu.memory_space<vmem>>, vector<16x512xf32>
      tpu.vector_store %arg9[%c0_20, %c0_21], %36 {strides = array<i32>} : memref<16x512xf32, #tpu.memory_space<vmem>>, vector<16x512xf32>,
    } else {
    }
    %c0 = arith.constant 0 : index
    %c0_1 = arith.constant 0 : index
    %3 = vector.load %arg3[%c0, %c0_1] : memref<16x256xbf16, #tpu.memory_space<vmem>>, vector<16x256xbf16>
    %4 = arith.extf %3 : vector<16x256xbf16> to vector<16x256xf32>
    %cst = arith.constant dense<0.000000e+00> : vector<16xf32>
    %5 = vector.multi_reduction <add>, %4, %cst [1] : vector<16x256xf32> to vector<16xf32>
    %6 = vector.shape_cast %5 : vector<16xf32> to vector<16x1xf32>
    %cst_2 = arith.constant 2.560000e+02 : f32
    %7 = vector.broadcast %cst_2 : f32 to vector<16x1xf32>
    %8 = arith.divf %6, %7 : vector<16x1xf32>
    %9 = vector.broadcast %8 : vector<16x1xf32> to vector<16x256xf32>
    %10 = arith.subf %4, %9 : vector<16x256xf32>
    %11 = arith.mulf %10, %10 : vector<16x256xf32>
    %cst_3 = arith.constant dense<0.000000e+00> : vector<16xf32>
    %12 = vector.multi_reduction <add>, %11, %cst_3 [1] : vector<16x256xf32> to vector<16xf32>
    %13 = vector.shape_cast %12 : vector<16xf32> to vector<16x1xf32>
    %cst_4 = arith.constant 2.560000e+02 : f32
    %14 = vector.broadcast %cst_4 : f32 to vector<16x1xf32>
    %15 = arith.divf %13, %14 : vector<16x1xf32>
    %cst_5 = arith.constant 9.99999974E-6 : f32
    %16 = vector.broadcast %cst_5 : f32 to vector<16x1xf32>
    %17 = arith.addf %15, %16 : vector<16x1xf32>
    %18 = math.rsqrt %17 : vector<16x1xf32>
    %19 = vector.broadcast %18 : vector<16x1xf32> to vector<16x256xf32>
    %20 = arith.mulf %10, %19 : vector<16x256xf32>
    %c0_6 = arith.constant 0 : index
    %c0_7 = arith.constant 0 : index
    %21 = vector.load %arg6[%c0_6, %c0_7] : memref<1x256xf32, #tpu.memory_space<vmem>>, vector<1x256xf32>
    %22 = vector.broadcast %21 : vector<1x256xf32> to vector<16x256xf32>
    %23 = arith.mulf %20, %22 : vector<16x256xf32>
    %c0_8 = arith.constant 0 : index
    %c0_9 = arith.constant 0 : index
    %24 = vector.load %arg7[%c0_8, %c0_9] : memref<1x256xf32, #tpu.memory_space<vmem>>, vector<1x256xf32>
    %25 = vector.broadcast %24 : vector<1x256xf32> to vector<16x256xf32>
    %26 = arith.addf %23, %25 : vector<16x256xf32>
    %27 = arith.truncf %26 : vector<16x256xf32> to vector<16x256xbf16>
    %c0_10 = arith.constant 0 : index
    %c0_11 = arith.constant 0 : index
    %28 = vector.load %arg9[%c0_10, %c0_11] : memref<16x512xf32, #tpu.memory_space<vmem>>, vector<16x512xf32>
    %c0_12 = arith.constant 0 : index
    %c0_13 = arith.constant 0 : index
    %29 = vector.load %arg4[%c0_12, %c0_13] : memref<256x512xbf16, #tpu.memory_space<vmem>>, vector<256x512xbf16>
    %cst_14 = arith.constant dense<0.000000e+00> : vector<16x512xf32>
    %30 = tpu.matmul %27, %29, %cst_14 {dimension_numbers = #tpu.dot_dimension_numbers<[1], [0], [0], [1], [0, 0, 1, 1], [], []>} : vector<16x256xbf16>, vector<256x512xbf16>, vector<16x512xf32> -> vector<16x512xf32>
    %31 = arith.addf %28, %30 : vector<16x512xf32>
    %c0_15 = arith.constant 0 : index
    %c0_16 = arith.constant 0 : index
    %32 = vector.load %arg9[%c0_15, %c0_16] : memref<16x512xf32, #tpu.memory_space<vmem>>, vector<16x512xf32>
    tpu.vector_store %arg9[%c0_15, %c0_16], %31 {strides = array<i32>} : memref<16x512xf32, #tpu.memory_space<vmem>>, vector<16x512xf32>,
    %c0_i32_17 = arith.constant 0 : i32
    %33 = arith.cmpi eq, %arg2, %c0_i32_17 : i32
    %34 = arith.extui %33 : i1 to i32
    %c0_i32_18 = arith.constant 0 : i32
    %35 = arith.cmpi ne, %34, %c0_i32_18 : i32
    scf.if %35 {
      %c0_19 = arith.constant 0 : index
      %c0_20 = arith.constant 0 : index
      %36 = vector.load %arg9[%c0_19, %c0_20] : memref<16x512xf32, #tpu.memory_space<vmem>>, vector<16x512xf32>
      %c0_21 = arith.constant 0 : index
      %c0_22 = arith.constant 0 : index
      %37 = vector.load %arg5[%c0_21, %c0_22] : memref<1x512xf32, #tpu.memory_space<vmem>>, vector<1x512xf32>
      %38 = vector.broadcast %37 : vector<1x512xf32> to vector<16x512xf32>
      %39 = arith.addf %36, %38 : vector<16x512xf32>
      %40 = arith.truncf %39 : vector<16x512xf32> to vector<16x512xbf16>
      %c0_23 = arith.constant 0 : index
      %c0_24 = arith.constant 0 : index
      %41 = vector.load %arg8[%c0_23, %c0_24] : memref<16x512xbf16, #tpu.memory_space<vmem>>, vector<16x512xbf16>
      tpu.vector_store %arg8[%c0_23, %c0_24], %40 {strides = array<i32>} : memref<16x512xbf16, #tpu.memory_space<vmem>>, vector<16x512xbf16>,
    } else {
    }
    return
  }
  func.func @transform_0(%arg0: i32, %arg1: i32, %arg2: i32) -> (i32, i32) {
    %c0_i32 = arith.constant 0 : i32
    return %arg0, %arg2 : i32, i32
  }
  func.func @transform_1(%arg0: i32, %arg1: i32, %arg2: i32) -> (i32, i32) {
    %c0_i32 = arith.constant 0 : i32
    return %arg2, %arg1 : i32, i32
  }
  func.func @transform_2(%arg0: i32, %arg1: i32, %arg2: i32) -> (i32, i32) {
    %c0_i32 = arith.constant 0 : i32
    %c0_i32_0 = arith.constant 0 : i32
    return %c0_i32, %arg1 : i32, i32
  }
  func.func @transform_3(%arg0: i32, %arg1: i32, %arg2: i32) -> (i32, i32) {
    %c0_i32 = arith.constant 0 : i32
    %c0_i32_0 = arith.constant 0 : i32
    %c0_i32_1 = arith.constant 0 : i32
    return %c0_i32, %c0_i32_0 : i32, i32
  }
  func.func @transform_4(%arg0: i32, %arg1: i32, %arg2: i32) -> (i32, i32) {
    %c0_i32 = arith.constant 0 : i32
    %c0_i32_0 = arith.constant 0 : i32
    %c0_i32_1 = arith.constant 0 : i32
    return %c0_i32, %c0_i32_0 : i32, i32
  }
  func.func @transform_5(%arg0: i32, %arg1: i32, %arg2: i32) -> (i32, i32) {
    %c0_i32 = arith.constant 0 : i32
    return %arg0, %arg1 : i32, i32
  }
}

module attributes {stable_mosaic.version = 11 : i64} {
  func.func @_flash_gqa_kernel(%arg0: i32, %arg1: i32, %arg2: i32, %arg3: i32, %arg4: memref<1x8x128xbf16, #tpu.memory_space<vmem>>, %arg5: memref<1x8x128xbf16, #tpu.memory_space<vmem>>, %arg6: memref<2x8x8xbf16, #tpu.memory_space<vmem>>, %arg7: memref<1x8x1xi32, #tpu.memory_space<vmem>>, %arg8: memref<1x8x128xbf16, #tpu.memory_space<vmem>>, %arg9: memref<16x64xbf16, #tpu.memory_space<vmem>>, %arg10: memref<16x1xf32, #tpu.memory_space<vmem>>, %arg11: memref<16x1xf32, #tpu.memory_space<vmem>>, %arg12: memref<16x1xf32, #tpu.memory_space<vmem>>, %arg13: memref<16x64xf32, #tpu.memory_space<vmem>>) attributes {dimension_semantics = [#tpu.dimension_semantics<parallel>, #tpu.dimension_semantics<parallel>, #tpu.dimension_semantics<parallel>, #tpu.dimension_semantics<arbitrary>], iteration_bounds = array<i64: 2, 2, 1, 1>, scalar_prefetch = 0 : i64, scratch_operands = 5 : i64, tpu.core_type = #tpu.core_type<tc>, window_params = [{transform_indices = @transform_0, window_bounds = array<i64: 1, 8, 128>}, {transform_indices = @transform_1, window_bounds = array<i64: 1, 8, 128>}, {transform_indices = @transform_2, window_bounds = array<i64: 2, 8, 8>}, {transform_indices = @transform_3, window_bounds = array<i64: 1, 8, 1>}, {transform_indices = @transform_4, window_bounds = array<i64: 1, 8, 128>}]} {
    %c0_i32 = arith.constant 0 : i32
    %0 = arith.cmpi eq, %arg3, %c0_i32 : i32
    %1 = arith.extui %0 : i1 to i32
    %c0_i32_0 = arith.constant 0 : i32
    %2 = arith.cmpi ne, %1, %c0_i32_0 : i32
    scf.if %2 {
      %c0_30 = arith.constant 0 : index
      %c0_31 = arith.constant 0 : index
      %c0_32 = arith.constant 0 : index
      %48 = vector.load %arg4[%c0_30, %c0_31, %c0_32] : memref<1x8x128xbf16, #tpu.memory_space<vmem>>, vector<1x8x128xbf16>
      %49 = vector.shape_cast %48 : vector<1x8x128xbf16> to vector<8x128xbf16>
      %c0_33 = arith.constant 0 : index
      %c0_34 = arith.constant 0 : index
      %c0_35 = arith.constant 0 : index
      %50 = vector.load %arg7[%c0_33, %c0_34, %c0_35] : memref<1x8x1xi32, #tpu.memory_space<vmem>>, vector<1x8x1xi32>
      %51 = vector.shape_cast %50 : vector<1x8x1xi32> to vector<8x1xi32>
      %52 = arith.sitofp %51 : vector<8x1xi32> to vector<8x1xf32>
      %53 = vector.extract_strided_slice %49 {offsets = [0, 0], sizes = [8, 64], strides = [1, 1]} : vector<8x128xbf16> to vector<8x64xbf16>
      %c0_36 = arith.constant 0 : index
      %c0_37 = arith.constant 0 : index
      %54 = vector.load %arg9[%c0_36, %c0_37] : memref<16x64xbf16, #tpu.memory_space<vmem>>, vector<8x64xbf16>
      tpu.vector_store %arg9[%c0_36, %c0_37], %53 {strides = array<i32>} : memref<16x64xbf16, #tpu.memory_space<vmem>>, vector<8x64xbf16>,
      %c0_38 = arith.constant 0 : index
      %c0_39 = arith.constant 0 : index
      %55 = vector.load %arg10[%c0_38, %c0_39] : memref<16x1xf32, #tpu.memory_space<vmem>>, vector<8x1xf32>
      tpu.vector_store %arg10[%c0_38, %c0_39], %52 {strides = array<i32>} : memref<16x1xf32, #tpu.memory_space<vmem>>, vector<8x1xf32>,
      %56 = vector.extract_strided_slice %49 {offsets = [0, 64], sizes = [8, 64], strides = [1, 1]} : vector<8x128xbf16> to vector<8x64xbf16>
      %c8 = arith.constant 8 : index
      %c0_40 = arith.constant 0 : index
      %57 = vector.load %arg9[%c8, %c0_40] : memref<16x64xbf16, #tpu.memory_space<vmem>>, vector<8x64xbf16>
      tpu.vector_store %arg9[%c8, %c0_40], %56 {strides = array<i32>} : memref<16x64xbf16, #tpu.memory_space<vmem>>, vector<8x64xbf16>,
      %c8_41 = arith.constant 8 : index
      %c0_42 = arith.constant 0 : index
      %58 = vector.load %arg10[%c8_41, %c0_42] : memref<16x1xf32, #tpu.memory_space<vmem>>, vector<8x1xf32>
      tpu.vector_store %arg10[%c8_41, %c0_42], %52 {strides = array<i32>} : memref<16x1xf32, #tpu.memory_space<vmem>>, vector<8x1xf32>,
      %cst_43 = arith.constant 0xFF800000 : f32
      %59 = vector.broadcast %cst_43 : f32 to vector<16x1xf32>
      %c0_44 = arith.constant 0 : index
      %c0_45 = arith.constant 0 : index
      %60 = vector.load %arg11[%c0_44, %c0_45] : memref<16x1xf32, #tpu.memory_space<vmem>>, vector<16x1xf32>
      tpu.vector_store %arg11[%c0_44, %c0_45], %59 {strides = array<i32>} : memref<16x1xf32, #tpu.memory_space<vmem>>, vector<16x1xf32>,
      %cst_46 = arith.constant 0.000000e+00 : f32
      %61 = vector.broadcast %cst_46 : f32 to vector<16x1xf32>
      %c0_47 = arith.constant 0 : index
      %c0_48 = arith.constant 0 : index
      %62 = vector.load %arg12[%c0_47, %c0_48] : memref<16x1xf32, #tpu.memory_space<vmem>>, vector<16x1xf32>
      tpu.vector_store %arg12[%c0_47, %c0_48], %61 {strides = array<i32>} : memref<16x1xf32, #tpu.memory_space<vmem>>, vector<16x1xf32>,
      %cst_49 = arith.constant 0.000000e+00 : f32
      %63 = vector.broadcast %cst_49 : f32 to vector<16x64xf32>
      %c0_50 = arith.constant 0 : index
      %c0_51 = arith.constant 0 : index
      %64 = vector.load %arg13[%c0_50, %c0_51] : memref<16x64xf32, #tpu.memory_space<vmem>>, vector<16x64xf32>
      tpu.vector_store %arg13[%c0_50, %c0_51], %63 {strides = array<i32>} : memref<16x64xf32, #tpu.memory_space<vmem>>, vector<16x64xf32>,
    } else {
    }
    %c0 = arith.constant 0 : index
    %c0_1 = arith.constant 0 : index
    %c0_2 = arith.constant 0 : index
    %3 = vector.load %arg5[%c0, %c0_1, %c0_2] : memref<1x8x128xbf16, #tpu.memory_space<vmem>>, vector<1x8x128xbf16>
    %4 = vector.shape_cast %3 : vector<1x8x128xbf16> to vector<8x128xbf16>
    %5 = vector.extract_strided_slice %4 {offsets = [0, 0], sizes = [8, 64], strides = [1, 1]} : vector<8x128xbf16> to vector<8x64xbf16>
    %6 = vector.extract_strided_slice %4 {offsets = [0, 64], sizes = [8, 64], strides = [1, 1]} : vector<8x128xbf16> to vector<8x64xbf16>
    %c0_3 = arith.constant 0 : index
    %c0_4 = arith.constant 0 : index
    %7 = vector.load %arg9[%c0_3, %c0_4] : memref<16x64xbf16, #tpu.memory_space<vmem>>, vector<16x64xbf16>
    %cst = arith.constant dense<0.000000e+00> : vector<16x8xf32>
    %8 = tpu.matmul %7, %5, %cst {dimension_numbers = #tpu.dot_dimension_numbers<[1], [1], [0], [0], [0, 0, 1, 0], [], []>} : vector<16x64xbf16>, vector<8x64xbf16>, vector<16x8xf32> -> vector<16x8xf32>
    %cst_5 = arith.constant 1.250000e-01 : f32
    %9 = vector.broadcast %cst_5 : f32 to vector<16x8xf32>
    %10 = arith.mulf %8, %9 : vector<16x8xf32>
    %c0_6 = arith.constant 0 : index
    %c0_7 = arith.constant 0 : index
    %c0_8 = arith.constant 0 : index
    %11 = vector.load %arg6[%c0_6, %c0_7, %c0_8] : memref<2x8x8xbf16, #tpu.memory_space<vmem>>, vector<2x8x8xbf16>
    %12 = vector.shape_cast %11 : vector<2x8x8xbf16> to vector<16x8xbf16>
    %13 = arith.extf %12 : vector<16x8xbf16> to vector<16x8xf32>
    %14 = arith.addf %10, %13 : vector<16x8xf32>
    %c0_9 = arith.constant 0 : index
    %c0_10 = arith.constant 0 : index
    %15 = vector.load %arg10[%c0_9, %c0_10] : memref<16x1xf32, #tpu.memory_space<vmem>>, vector<16x1xf32>
    %cst_11 = arith.constant 0.000000e+00 : f32
    %16 = vector.broadcast %cst_11 : f32 to vector<16x1xf32>
    %17 = arith.cmpf one, %15, %16 : vector<16x1xf32>
    %cst_12 = arith.constant -1.000000e+04 : f32
    %18 = vector.shape_cast %17 : vector<16x1xi1> to vector<16x1xi1>
    %19 = vector.broadcast %18 : vector<16x1xi1> to vector<16x8xi1>
    %20 = vector.broadcast %cst_12 : f32 to vector<16x8xf32>
    %21 = arith.select %19, %14, %20 : vector<16x8xi1>, vector<16x8xf32>
    %c0_13 = arith.constant 0 : index
    %c0_14 = arith.constant 0 : index
    %22 = vector.load %arg11[%c0_13, %c0_14] : memref<16x1xf32, #tpu.memory_space<vmem>>, vector<16x1xf32>
    %cst_15 = arith.constant dense<0xFF800000> : vector<16xf32>
    %23 = vector.multi_reduction <maximumf>, %21, %cst_15 [1] : vector<16x8xf32> to vector<16xf32>
    %24 = vector.shape_cast %23 : vector<16xf32> to vector<16x1xf32>
    %25 = arith.maximumf %22, %24 : vector<16x1xf32>
    %26 = arith.subf %22, %25 : vector<16x1xf32>
    %27 = math.exp %26 : vector<16x1xf32>
    %28 = vector.broadcast %25 : vector<16x1xf32> to vector<16x8xf32>
    %29 = arith.subf %21, %28 : vector<16x8xf32>
    %30 = math.exp %29 : vector<16x8xf32>
    %c0_16 = arith.constant 0 : index
    %c0_17 = arith.constant 0 : index
    %31 = vector.load %arg12[%c0_16, %c0_17] : memref<16x1xf32, #tpu.memory_space<vmem>>, vector<16x1xf32>
    %32 = arith.mulf %27, %31 : vector<16x1xf32>
    %cst_18 = arith.constant dense<0.000000e+00> : vector<16xf32>
    %33 = vector.multi_reduction <add>, %30, %cst_18 [1] : vector<16x8xf32> to vector<16xf32>
    %34 = vector.shape_cast %33 : vector<16xf32> to vector<16x1xf32>
    %35 = arith.addf %32, %34 : vector<16x1xf32>
    %c0_19 = arith.constant 0 : index
    %c0_20 = arith.constant 0 : index
    %36 = vector.load %arg12[%c0_19, %c0_20] : memref<16x1xf32, #tpu.memory_space<vmem>>, vector<16x1xf32>
    tpu.vector_store %arg12[%c0_19, %c0_20], %35 {strides = array<i32>} : memref<16x1xf32, #tpu.memory_space<vmem>>, vector<16x1xf32>,
    %c0_21 = arith.constant 0 : index
    %c0_22 = arith.constant 0 : index
    %37 = vector.load %arg13[%c0_21, %c0_22] : memref<16x64xf32, #tpu.memory_space<vmem>>, vector<16x64xf32>
    %38 = vector.broadcast %27 : vector<16x1xf32> to vector<16x64xf32>
    %39 = arith.mulf %38, %37 : vector<16x64xf32>
    %40 = arith.truncf %30 : vector<16x8xf32> to vector<16x8xbf16>
    %cst_23 = arith.constant dense<0.000000e+00> : vector<16x64xf32>
    %41 = tpu.matmul %40, %6, %cst_23 {dimension_numbers = #tpu.dot_dimension_numbers<[1], [0], [0], [1], [0, 0, 1, 1], [], []>} : vector<16x8xbf16>, vector<8x64xbf16>, vector<16x64xf32> -> vector<16x64xf32>
    %42 = arith.addf %39, %41 : vector<16x64xf32>
    %c0_24 = arith.constant 0 : index
    %c0_25 = arith.constant 0 : index
    %43 = vector.load %arg13[%c0_24, %c0_25] : memref<16x64xf32, #tpu.memory_space<vmem>>, vector<16x64xf32>
    tpu.vector_store %arg13[%c0_24, %c0_25], %42 {strides = array<i32>} : memref<16x64xf32, #tpu.memory_space<vmem>>, vector<16x64xf32>,
    %c0_26 = arith.constant 0 : index
    %c0_27 = arith.constant 0 : index
    %44 = vector.load %arg11[%c0_26, %c0_27] : memref<16x1xf32, #tpu.memory_space<vmem>>, vector<16x1xf32>
    tpu.vector_store %arg11[%c0_26, %c0_27], %25 {strides = array<i32>} : memref<16x1xf32, #tpu.memory_space<vmem>>, vector<16x1xf32>,
    %c0_i32_28 = arith.constant 0 : i32
    %45 = arith.cmpi eq, %arg3, %c0_i32_28 : i32
    %46 = arith.extui %45 : i1 to i32
    %c0_i32_29 = arith.constant 0 : i32
    %47 = arith.cmpi ne, %46, %c0_i32_29 : i32
    scf.if %47 {
      %c0_30 = arith.constant 0 : index
      %c0_31 = arith.constant 0 : index
      %48 = vector.load %arg13[%c0_30, %c0_31] : memref<16x64xf32, #tpu.memory_space<vmem>>, vector<16x64xf32>
      %c0_32 = arith.constant 0 : index
      %c0_33 = arith.constant 0 : index
      %49 = vector.load %arg12[%c0_32, %c0_33] : memref<16x1xf32, #tpu.memory_space<vmem>>, vector<16x1xf32>
      %50 = tpu.reciprocal %49 {approx = true} : vector<16x1xf32> -> vector<16x1xf32>
      %51 = vector.broadcast %50 : vector<16x1xf32> to vector<16x64xf32>
      %52 = arith.mulf %48, %51 : vector<16x64xf32>
      %53 = vector.extract_strided_slice %52 {offsets = [0, 0], sizes = [8, 64], strides = [1, 1]} : vector<16x64xf32> to vector<8x64xf32>
      %54 = vector.extract_strided_slice %52 {offsets = [8, 0], sizes = [8, 64], strides = [1, 1]} : vector<16x64xf32> to vector<8x64xf32>
      %55 = tpu.concatenate %53, %54 in 1 : vector<8x64xf32>, vector<8x64xf32> -> vector<8x128xf32>
      %56 = arith.truncf %55 : vector<8x128xf32> to vector<8x128xbf16>
      %c0_34 = arith.constant 0 : index
      %c0_35 = arith.constant 0 : index
      %c0_36 = arith.constant 0 : index
      %57 = vector.load %arg8[%c0_34, %c0_35, %c0_36] : memref<1x8x128xbf16, #tpu.memory_space<vmem>>, vector<1x8x128xbf16>
      %58 = vector.shape_cast %57 : vector<1x8x128xbf16> to vector<8x128xbf16>
      %59 = vector.shape_cast %56 : vector<8x128xbf16> to vector<1x8x128xbf16>
      tpu.vector_store %arg8[%c0_34, %c0_35, %c0_36], %59 {strides = array<i32>} : memref<1x8x128xbf16, #tpu.memory_space<vmem>>, vector<1x8x128xbf16>,
    } else {
    }
    return
  }
  func.func @transform_0(%arg0: i32, %arg1: i32, %arg2: i32, %arg3: i32) -> (i32, i32, i32) {
    %c0_i32 = arith.constant 0 : i32
    return %arg0, %arg2, %arg1 : i32, i32, i32
  }
  func.func @transform_1(%arg0: i32, %arg1: i32, %arg2: i32, %arg3: i32) -> (i32, i32, i32) {
    %c2_i32 = arith.constant 2 : i32
    %0 = arith.addi %c2_i32, %arg1 : i32
    %c0_i32 = arith.constant 0 : i32
    return %arg0, %arg3, %0 : i32, i32, i32
  }
  func.func @transform_2(%arg0: i32, %arg1: i32, %arg2: i32, %arg3: i32) -> (i32, i32, i32) {
    %c0_i32 = arith.constant 0 : i32
    return %arg1, %arg2, %arg3 : i32, i32, i32
  }
  func.func @transform_3(%arg0: i32, %arg1: i32, %arg2: i32, %arg3: i32) -> (i32, i32, i32) {
    %c0_i32 = arith.constant 0 : i32
    %c0_i32_0 = arith.constant 0 : i32
    return %arg0, %arg2, %c0_i32 : i32, i32, i32
  }
  func.func @transform_4(%arg0: i32, %arg1: i32, %arg2: i32, %arg3: i32) -> (i32, i32, i32) {
    %c0_i32 = arith.constant 0 : i32
    return %arg0, %arg2, %arg1 : i32, i32, i32
  }
}

module attributes {stable_mosaic.version = 11 : i64} {
  func.func @_linear_kernel(%arg0: i32, %arg1: i32, %arg2: i32, %arg3: memref<16x256xbf16, #tpu.memory_space<vmem>>, %arg4: memref<256x256xbf16, #tpu.memory_space<vmem>>, %arg5: memref<1x256xf32, #tpu.memory_space<vmem>>, %arg6: memref<16x256xbf16, #tpu.memory_space<vmem>>, %arg7: memref<16x256xbf16, #tpu.memory_space<vmem>>, %arg8: memref<16x256xf32, #tpu.memory_space<vmem>>) attributes {dimension_semantics = [#tpu.dimension_semantics<parallel>, #tpu.dimension_semantics<parallel>, #tpu.dimension_semantics<arbitrary>], iteration_bounds = array<i64: 1, 1, 1>, scalar_prefetch = 0 : i64, scratch_operands = 1 : i64, tpu.core_type = #tpu.core_type<tc>, window_params = [{transform_indices = @transform_0, window_bounds = array<i64: 16, 256>}, {transform_indices = @transform_1, window_bounds = array<i64: 256, 256>}, {transform_indices = @transform_2, window_bounds = array<i64: 1, 256>}, {transform_indices = @transform_3, window_bounds = array<i64: 16, 256>}, {transform_indices = @transform_4, window_bounds = array<i64: 16, 256>}]} {
    %c0_i32 = arith.constant 0 : i32
    %0 = arith.cmpi eq, %arg2, %c0_i32 : i32
    %1 = arith.extui %0 : i1 to i32
    %c0_i32_0 = arith.constant 0 : i32
    %2 = arith.cmpi ne, %1, %c0_i32_0 : i32
    scf.if %2 {
      %cst_10 = arith.constant 0.000000e+00 : f32
      %12 = vector.broadcast %cst_10 : f32 to vector<16x256xf32>
      %c0_11 = arith.constant 0 : index
      %c0_12 = arith.constant 0 : index
      %13 = vector.load %arg8[%c0_11, %c0_12] : memref<16x256xf32, #tpu.memory_space<vmem>>, vector<16x256xf32>
      tpu.vector_store %arg8[%c0_11, %c0_12], %12 {strides = array<i32>} : memref<16x256xf32, #tpu.memory_space<vmem>>, vector<16x256xf32>,
    } else {
    }
    %c0 = arith.constant 0 : index
    %c0_1 = arith.constant 0 : index
    %3 = vector.load %arg3[%c0, %c0_1] : memref<16x256xbf16, #tpu.memory_space<vmem>>, vector<16x256xbf16>
    %c0_2 = arith.constant 0 : index
    %c0_3 = arith.constant 0 : index
    %4 = vector.load %arg8[%c0_2, %c0_3] : memref<16x256xf32, #tpu.memory_space<vmem>>, vector<16x256xf32>
    %c0_4 = arith.constant 0 : index
    %c0_5 = arith.constant 0 : index
    %5 = vector.load %arg4[%c0_4, %c0_5] : memref<256x256xbf16, #tpu.memory_space<vmem>>, vector<256x256xbf16>
    %cst = arith.constant dense<0.000000e+00> : vector<16x256xf32>
    %6 = tpu.matmul %3, %5, %cst {dimension_numbers = #tpu.dot_dimension_numbers<[1], [0], [0], [1], [0, 0, 1, 1], [], []>} : vector<16x256xbf16>, vector<256x256xbf16>, vector<16x256xf32> -> vector<16x256xf32>
    %7 = arith.addf %4, %6 : vector<16x256xf32>
    %c0_6 = arith.constant 0 : index
    %c0_7 = arith.constant 0 : index
    %8 = vector.load %arg8[%c0_6, %c0_7] : memref<16x256xf32, #tpu.memory_space<vmem>>, vector<16x256xf32>
    tpu.vector_store %arg8[%c0_6, %c0_7], %7 {strides = array<i32>} : memref<16x256xf32, #tpu.memory_space<vmem>>, vector<16x256xf32>,
    %c0_i32_8 = arith.constant 0 : i32
    %9 = arith.cmpi eq, %arg2, %c0_i32_8 : i32
    %10 = arith.extui %9 : i1 to i32
    %c0_i32_9 = arith.constant 0 : i32
    %11 = arith.cmpi ne, %10, %c0_i32_9 : i32
    scf.if %11 {
      %c0_10 = arith.constant 0 : index
      %c0_11 = arith.constant 0 : index
      %12 = vector.load %arg8[%c0_10, %c0_11] : memref<16x256xf32, #tpu.memory_space<vmem>>, vector<16x256xf32>
      %c0_12 = arith.constant 0 : index
      %c0_13 = arith.constant 0 : index
      %13 = vector.load %arg5[%c0_12, %c0_13] : memref<1x256xf32, #tpu.memory_space<vmem>>, vector<1x256xf32>
      %14 = vector.broadcast %13 : vector<1x256xf32> to vector<16x256xf32>
      %15 = arith.addf %12, %14 : vector<16x256xf32>
      %c0_14 = arith.constant 0 : index
      %c0_15 = arith.constant 0 : index
      %16 = vector.load %arg6[%c0_14, %c0_15] : memref<16x256xbf16, #tpu.memory_space<vmem>>, vector<16x256xbf16>
      %17 = arith.extf %16 : vector<16x256xbf16> to vector<16x256xf32>
      %18 = arith.addf %15, %17 : vector<16x256xf32>
      %19 = arith.truncf %18 : vector<16x256xf32> to vector<16x256xbf16>
      %c0_16 = arith.constant 0 : index
      %c0_17 = arith.constant 0 : index
      %20 = vector.load %arg7[%c0_16, %c0_17] : memref<16x256xbf16, #tpu.memory_space<vmem>>, vector<16x256xbf16>
      tpu.vector_store %arg7[%c0_16, %c0_17], %19 {strides = array<i32>} : memref<16x256xbf16, #tpu.memory_space<vmem>>, vector<16x256xbf16>,
    } else {
    }
    return
  }
  func.func @transform_0(%arg0: i32, %arg1: i32, %arg2: i32) -> (i32, i32) {
    %c0_i32 = arith.constant 0 : i32
    return %arg0, %arg2 : i32, i32
  }
  func.func @transform_1(%arg0: i32, %arg1: i32, %arg2: i32) -> (i32, i32) {
    %c0_i32 = arith.constant 0 : i32
    return %arg2, %arg1 : i32, i32
  }
  func.func @transform_2(%arg0: i32, %arg1: i32, %arg2: i32) -> (i32, i32) {
    %c0_i32 = arith.constant 0 : i32
    %c0_i32_0 = arith.constant 0 : i32
    return %c0_i32, %arg1 : i32, i32
  }
  func.func @transform_3(%arg0: i32, %arg1: i32, %arg2: i32) -> (i32, i32) {
    %c0_i32 = arith.constant 0 : i32
    return %arg0, %arg1 : i32, i32
  }
  func.func @transform_4(%arg0: i32, %arg1: i32, %arg2: i32) -> (i32, i32) {
    %c0_i32 = arith.constant 0 : i32
    return %arg0, %arg1 : i32, i32
  }
}

module attributes {stable_mosaic.version = 11 : i64} {
  func.func @_linear_kernel(%arg0: i32, %arg1: i32, %arg2: i32, %arg3: memref<16x256xbf16, #tpu.memory_space<vmem>>, %arg4: memref<256x512xbf16, #tpu.memory_space<vmem>>, %arg5: memref<1x512xf32, #tpu.memory_space<vmem>>, %arg6: memref<1x256xf32, #tpu.memory_space<vmem>>, %arg7: memref<1x256xf32, #tpu.memory_space<vmem>>, %arg8: memref<16x512xbf16, #tpu.memory_space<vmem>>, %arg9: memref<16x512xf32, #tpu.memory_space<vmem>>) attributes {dimension_semantics = [#tpu.dimension_semantics<parallel>, #tpu.dimension_semantics<parallel>, #tpu.dimension_semantics<arbitrary>], iteration_bounds = array<i64: 1, 2, 1>, scalar_prefetch = 0 : i64, scratch_operands = 1 : i64, tpu.core_type = #tpu.core_type<tc>, window_params = [{transform_indices = @transform_0, window_bounds = array<i64: 16, 256>}, {transform_indices = @transform_1, window_bounds = array<i64: 256, 512>}, {transform_indices = @transform_2, window_bounds = array<i64: 1, 512>}, {pipeline_mode = #tpu.pipeline_mode<synchronous>, transform_indices = @transform_3, window_bounds = array<i64: 1, 256>}, {pipeline_mode = #tpu.pipeline_mode<synchronous>, transform_indices = @transform_4, window_bounds = array<i64: 1, 256>}, {transform_indices = @transform_5, window_bounds = array<i64: 16, 512>}]} {
    %c0_i32 = arith.constant 0 : i32
    %0 = arith.cmpi eq, %arg2, %c0_i32 : i32
    %1 = arith.extui %0 : i1 to i32
    %c0_i32_0 = arith.constant 0 : i32
    %2 = arith.cmpi ne, %1, %c0_i32_0 : i32
    scf.if %2 {
      %cst_19 = arith.constant 0.000000e+00 : f32
      %36 = vector.broadcast %cst_19 : f32 to vector<16x512xf32>
      %c0_20 = arith.constant 0 : index
      %c0_21 = arith.constant 0 : index
      %37 = vector.load %arg9[%c0_20, %c0_21] : memref<16x512xf32, #tpu.memory_space<vmem>>, vector<16x512xf32>
      tpu.vector_store %arg9[%c0_20, %c0_21], %36 {strides = array<i32>} : memref<16x512xf32, #tpu.memory_space<vmem>>, vector<16x512xf32>,
    } else {
    }
    %c0 = arith.constant 0 : index
    %c0_1 = arith.constant 0 : index
    %3 = vector.load %arg3[%c0, %c0_1] : memref<16x256xbf16, #tpu.memory_space<vmem>>, vector<16x256xbf16>
    %4 = arith.extf %3 : vector<16x256xbf16> to vector<16x256xf32>
    %cst = arith.constant dense<0.000000e+00> : vector<16xf32>
    %5 = vector.multi_reduction <add>, %4, %cst [1] : vector<16x256xf32> to vector<16xf32>
    %6 = vector.shape_cast %5 : vector<16xf32> to vector<16x1xf32>
    %cst_2 = arith.constant 2.560000e+02 : f32
    %7 = vector.broadcast %cst_2 : f32 to vector<16x1xf32>
    %8 = arith.divf %6, %7 : vector<16x1xf32>
    %9 = vector.broadcast %8 : vector<16x1xf32> to vector<16x256xf32>
    %10 = arith.subf %4, %9 : vector<16x256xf32>
    %11 = arith.mulf %10, %10 : vector<16x256xf32>
    %cst_3 = arith.constant dense<0.000000e+00> : vector<16xf32>
    %12 = vector.multi_reduction <add>, %11, %cst_3 [1] : vector<16x256xf32> to vector<16xf32>
    %13 = vector.shape_cast %12 : vector<16xf32> to vector<16x1xf32>
    %cst_4 = arith.constant 2.560000e+02 : f32
    %14 = vector.broadcast %cst_4 : f32 to vector<16x1xf32>
    %15 = arith.divf %13, %14 : vector<16x1xf32>
    %cst_5 = arith.constant 9.99999974E-6 : f32
    %16 = vector.broadcast %cst_5 : f32 to vector<16x1xf32>
    %17 = arith.addf %15, %16 : vector<16x1xf32>
    %18 = math.rsqrt %17 : vector<16x1xf32>
    %19 = vector.broadcast %18 : vector<16x1xf32> to vector<16x256xf32>
    %20 = arith.mulf %10, %19 : vector<16x256xf32>
    %c0_6 = arith.constant 0 : index
    %c0_7 = arith.constant 0 : index
    %21 = vector.load %arg6[%c0_6, %c0_7] : memref<1x256xf32, #tpu.memory_space<vmem>>, vector<1x256xf32>
    %22 = vector.broadcast %21 : vector<1x256xf32> to vector<16x256xf32>
    %23 = arith.mulf %20, %22 : vector<16x256xf32>
    %c0_8 = arith.constant 0 : index
    %c0_9 = arith.constant 0 : index
    %24 = vector.load %arg7[%c0_8, %c0_9] : memref<1x256xf32, #tpu.memory_space<vmem>>, vector<1x256xf32>
    %25 = vector.broadcast %24 : vector<1x256xf32> to vector<16x256xf32>
    %26 = arith.addf %23, %25 : vector<16x256xf32>
    %27 = arith.truncf %26 : vector<16x256xf32> to vector<16x256xbf16>
    %c0_10 = arith.constant 0 : index
    %c0_11 = arith.constant 0 : index
    %28 = vector.load %arg9[%c0_10, %c0_11] : memref<16x512xf32, #tpu.memory_space<vmem>>, vector<16x512xf32>
    %c0_12 = arith.constant 0 : index
    %c0_13 = arith.constant 0 : index
    %29 = vector.load %arg4[%c0_12, %c0_13] : memref<256x512xbf16, #tpu.memory_space<vmem>>, vector<256x512xbf16>
    %cst_14 = arith.constant dense<0.000000e+00> : vector<16x512xf32>
    %30 = tpu.matmul %27, %29, %cst_14 {dimension_numbers = #tpu.dot_dimension_numbers<[1], [0], [0], [1], [0, 0, 1, 1], [], []>} : vector<16x256xbf16>, vector<256x512xbf16>, vector<16x512xf32> -> vector<16x512xf32>
    %31 = arith.addf %28, %30 : vector<16x512xf32>
    %c0_15 = arith.constant 0 : index
    %c0_16 = arith.constant 0 : index
    %32 = vector.load %arg9[%c0_15, %c0_16] : memref<16x512xf32, #tpu.memory_space<vmem>>, vector<16x512xf32>
    tpu.vector_store %arg9[%c0_15, %c0_16], %31 {strides = array<i32>} : memref<16x512xf32, #tpu.memory_space<vmem>>, vector<16x512xf32>,
    %c0_i32_17 = arith.constant 0 : i32
    %33 = arith.cmpi eq, %arg2, %c0_i32_17 : i32
    %34 = arith.extui %33 : i1 to i32
    %c0_i32_18 = arith.constant 0 : i32
    %35 = arith.cmpi ne, %34, %c0_i32_18 : i32
    scf.if %35 {
      %c0_19 = arith.constant 0 : index
      %c0_20 = arith.constant 0 : index
      %36 = vector.load %arg9[%c0_19, %c0_20] : memref<16x512xf32, #tpu.memory_space<vmem>>, vector<16x512xf32>
      %c0_21 = arith.constant 0 : index
      %c0_22 = arith.constant 0 : index
      %37 = vector.load %arg5[%c0_21, %c0_22] : memref<1x512xf32, #tpu.memory_space<vmem>>, vector<1x512xf32>
      %38 = vector.broadcast %37 : vector<1x512xf32> to vector<16x512xf32>
      %39 = arith.addf %36, %38 : vector<16x512xf32>
      %cst_23 = arith.constant 5.000000e-01 : f32
      %40 = vector.broadcast %cst_23 : f32 to vector<16x512xf32>
      %41 = arith.mulf %40, %39 : vector<16x512xf32>
      %cst_24 = arith.constant 4.471500e-02 : f32
      %42 = vector.broadcast %cst_24 : f32 to vector<16x512xf32>
      %43 = arith.mulf %42, %39 : vector<16x512xf32>
      %44 = arith.mulf %43, %39 : vector<16x512xf32>
      %45 = arith.mulf %44, %39 : vector<16x512xf32>
      %46 = arith.addf %39, %45 : vector<16x512xf32>
      %cst_25 = arith.constant 0.797884583 : f32
      %47 = vector.broadcast %cst_25 : f32 to vector<16x512xf32>
      %48 = arith.mulf %47, %46 : vector<16x512xf32>
      %49 = math.tanh %48 : vector<16x512xf32>
      %cst_26 = arith.constant 1.000000e+00 : f32
      %50 = vector.broadcast %cst_26 : f32 to vector<16x512xf32>
      %51 = arith.addf %50, %49 : vector<16x512xf32>
      %52 = arith.mulf %41, %51 : vector<16x512xf32>
      %53 = arith.truncf %52 : vector<16x512xf32> to vector<16x512xbf16>
      %c0_27 = arith.constant 0 : index
      %c0_28 = arith.constant 0 : index
      %54 = vector.load %arg8[%c0_27, %c0_28] : memref<16x512xbf16, #tpu.memory_space<vmem>>, vector<16x512xbf16>
      tpu.vector_store %arg8[%c0_27, %c0_28], %53 {strides = array<i32>} : memref<16x512xbf16, #tpu.memory_space<vmem>>, vector<16x512xbf16>,
    } else {
    }
    return
  }
  func.func @transform_0(%arg0: i32, %arg1: i32, %arg2: i32) -> (i32, i32) {
    %c0_i32 = arith.constant 0 : i32
    return %arg0, %arg2 : i32, i32
  }
  func.func @transform_1(%arg0: i32, %arg1: i32, %arg2: i32) -> (i32, i32) {
    %c0_i32 = arith.constant 0 : i32
    return %arg2, %arg1 : i32, i32
  }
  func.func @transform_2(%arg0: i32, %arg1: i32, %arg2: i32) -> (i32, i32) {
    %c0_i32 = arith.constant 0 : i32
    %c0_i32_0 = arith.constant 0 : i32
    return %c0_i32, %arg1 : i32, i32
  }
  func.func @transform_3(%arg0: i32, %arg1: i32, %arg2: i32) -> (i32, i32) {
    %c0_i32 = arith.constant 0 : i32
    %c0_i32_0 = arith.constant 0 : i32
    %c0_i32_1 = arith.constant 0 : i32
    return %c0_i32, %c0_i32_0 : i32, i32
  }
  func.func @transform_4(%arg0: i32, %arg1: i32, %arg2: i32) -> (i32, i32) {
    %c0_i32 = arith.constant 0 : i32
    %c0_i32_0 = arith.constant 0 : i32
    %c0_i32_1 = arith.constant 0 : i32
    return %c0_i32, %c0_i32_0 : i32, i32
  }
  func.func @transform_5(%arg0: i32, %arg1: i32, %arg2: i32) -> (i32, i32) {
    %c0_i32 = arith.constant 0 : i32
    return %arg0, %arg1 : i32, i32
  }
}

module attributes {stable_mosaic.version = 11 : i64} {
  func.func @_linear_kernel(%arg0: i32, %arg1: i32, %arg2: i32, %arg3: memref<16x512xbf16, #tpu.memory_space<vmem>>, %arg4: memref<512x256xbf16, #tpu.memory_space<vmem>>, %arg5: memref<1x256xf32, #tpu.memory_space<vmem>>, %arg6: memref<16x256xbf16, #tpu.memory_space<vmem>>, %arg7: memref<16x256xbf16, #tpu.memory_space<vmem>>, %arg8: memref<16x256xf32, #tpu.memory_space<vmem>>) attributes {dimension_semantics = [#tpu.dimension_semantics<parallel>, #tpu.dimension_semantics<parallel>, #tpu.dimension_semantics<arbitrary>], iteration_bounds = array<i64: 1, 1, 2>, scalar_prefetch = 0 : i64, scratch_operands = 1 : i64, tpu.core_type = #tpu.core_type<tc>, window_params = [{transform_indices = @transform_0, window_bounds = array<i64: 16, 512>}, {transform_indices = @transform_1, window_bounds = array<i64: 512, 256>}, {transform_indices = @transform_2, window_bounds = array<i64: 1, 256>}, {transform_indices = @transform_3, window_bounds = array<i64: 16, 256>}, {transform_indices = @transform_4, window_bounds = array<i64: 16, 256>}]} {
    %c0_i32 = arith.constant 0 : i32
    %0 = arith.cmpi eq, %arg2, %c0_i32 : i32
    %1 = arith.extui %0 : i1 to i32
    %c0_i32_0 = arith.constant 0 : i32
    %2 = arith.cmpi ne, %1, %c0_i32_0 : i32
    scf.if %2 {
      %cst_9 = arith.constant 0.000000e+00 : f32
      %12 = vector.broadcast %cst_9 : f32 to vector<16x256xf32>
      %c0_10 = arith.constant 0 : index
      %c0_11 = arith.constant 0 : index
      %13 = vector.load %arg8[%c0_10, %c0_11] : memref<16x256xf32, #tpu.memory_space<vmem>>, vector<16x256xf32>
      tpu.vector_store %arg8[%c0_10, %c0_11], %12 {strides = array<i32>} : memref<16x256xf32, #tpu.memory_space<vmem>>, vector<16x256xf32>,
    } else {
    }
    %c0 = arith.constant 0 : index
    %c0_1 = arith.constant 0 : index
    %3 = vector.load %arg3[%c0, %c0_1] : memref<16x512xbf16, #tpu.memory_space<vmem>>, vector<16x512xbf16>
    %c0_2 = arith.constant 0 : index
    %c0_3 = arith.constant 0 : index
    %4 = vector.load %arg8[%c0_2, %c0_3] : memref<16x256xf32, #tpu.memory_space<vmem>>, vector<16x256xf32>
    %c0_4 = arith.constant 0 : index
    %c0_5 = arith.constant 0 : index
    %5 = vector.load %arg4[%c0_4, %c0_5] : memref<512x256xbf16, #tpu.memory_space<vmem>>, vector<512x256xbf16>
    %cst = arith.constant dense<0.000000e+00> : vector<16x256xf32>
    %6 = tpu.matmul %3, %5, %cst {dimension_numbers = #tpu.dot_dimension_numbers<[1], [0], [0], [1], [0, 0, 1, 1], [], []>} : vector<16x512xbf16>, vector<512x256xbf16>, vector<16x256xf32> -> vector<16x256xf32>
    %7 = arith.addf %4, %6 : vector<16x256xf32>
    %c0_6 = arith.constant 0 : index
    %c0_7 = arith.constant 0 : index
    %8 = vector.load %arg8[%c0_6, %c0_7] : memref<16x256xf32, #tpu.memory_space<vmem>>, vector<16x256xf32>
    tpu.vector_store %arg8[%c0_6, %c0_7], %7 {strides = array<i32>} : memref<16x256xf32, #tpu.memory_space<vmem>>, vector<16x256xf32>,
    %c1_i32 = arith.constant 1 : i32
    %9 = arith.cmpi eq, %arg2, %c1_i32 : i32
    %10 = arith.extui %9 : i1 to i32
    %c0_i32_8 = arith.constant 0 : i32
    %11 = arith.cmpi ne, %10, %c0_i32_8 : i32
    scf.if %11 {
      %c0_9 = arith.constant 0 : index
      %c0_10 = arith.constant 0 : index
      %12 = vector.load %arg8[%c0_9, %c0_10] : memref<16x256xf32, #tpu.memory_space<vmem>>, vector<16x256xf32>
      %c0_11 = arith.constant 0 : index
      %c0_12 = arith.constant 0 : index
      %13 = vector.load %arg5[%c0_11, %c0_12] : memref<1x256xf32, #tpu.memory_space<vmem>>, vector<1x256xf32>
      %14 = vector.broadcast %13 : vector<1x256xf32> to vector<16x256xf32>
      %15 = arith.addf %12, %14 : vector<16x256xf32>
      %c0_13 = arith.constant 0 : index
      %c0_14 = arith.constant 0 : index
      %16 = vector.load %arg6[%c0_13, %c0_14] : memref<16x256xbf16, #tpu.memory_space<vmem>>, vector<16x256xbf16>
      %17 = arith.extf %16 : vector<16x256xbf16> to vector<16x256xf32>
      %18 = arith.addf %15, %17 : vector<16x256xf32>
      %19 = arith.truncf %18 : vector<16x256xf32> to vector<16x256xbf16>
      %c0_15 = arith.constant 0 : index
      %c0_16 = arith.constant 0 : index
      %20 = vector.load %arg7[%c0_15, %c0_16] : memref<16x256xbf16, #tpu.memory_space<vmem>>, vector<16x256xbf16>
      tpu.vector_store %arg7[%c0_15, %c0_16], %19 {strides = array<i32>} : memref<16x256xbf16, #tpu.memory_space<vmem>>, vector<16x256xbf16>,
    } else {
    }
    return
  }
  func.func @transform_0(%arg0: i32, %arg1: i32, %arg2: i32) -> (i32, i32) {
    %c0_i32 = arith.constant 0 : i32
    return %arg0, %arg2 : i32, i32
  }
  func.func @transform_1(%arg0: i32, %arg1: i32, %arg2: i32) -> (i32, i32) {
    %c0_i32 = arith.constant 0 : i32
    return %arg2, %arg1 : i32, i32
  }
  func.func @transform_2(%arg0: i32, %arg1: i32, %arg2: i32) -> (i32, i32) {
    %c0_i32 = arith.constant 0 : i32
    %c0_i32_0 = arith.constant 0 : i32
    return %c0_i32, %arg1 : i32, i32
  }
  func.func @transform_3(%arg0: i32, %arg1: i32, %arg2: i32) -> (i32, i32) {
    %c0_i32 = arith.constant 0 : i32
    return %arg0, %arg1 : i32, i32
  }
  func.func @transform_4(%arg0: i32, %arg1: i32, %arg2: i32) -> (i32, i32) {
    %c0_i32 = arith.constant 0 : i32
    return %arg0, %arg1 : i32, i32
  }
}

module attributes {stable_mosaic.version = 11 : i64} {
  func.func @_linear_kernel(%arg0: i32, %arg1: i32, %arg2: i32, %arg3: memref<16x256xbf16, #tpu.memory_space<vmem>>, %arg4: memref<256x128xbf16, #tpu.memory_space<vmem>>, %arg5: memref<1x128xf32, #tpu.memory_space<vmem>>, %arg6: memref<16x128xf32, #tpu.memory_space<vmem>>, %arg7: memref<16x128xf32, #tpu.memory_space<vmem>>) attributes {dimension_semantics = [#tpu.dimension_semantics<parallel>, #tpu.dimension_semantics<parallel>, #tpu.dimension_semantics<arbitrary>], iteration_bounds = array<i64: 1, 1, 1>, scalar_prefetch = 0 : i64, scratch_operands = 1 : i64, tpu.core_type = #tpu.core_type<tc>, window_params = [{transform_indices = @transform_0, window_bounds = array<i64: 16, 256>}, {transform_indices = @transform_1, window_bounds = array<i64: 256, 128>}, {transform_indices = @transform_2, window_bounds = array<i64: 1, 128>}, {transform_indices = @transform_3, window_bounds = array<i64: 16, 128>}]} {
    %c0_i32 = arith.constant 0 : i32
    %0 = arith.cmpi eq, %arg2, %c0_i32 : i32
    %1 = arith.extui %0 : i1 to i32
    %c0_i32_0 = arith.constant 0 : i32
    %2 = arith.cmpi ne, %1, %c0_i32_0 : i32
    scf.if %2 {
      %cst_10 = arith.constant 0.000000e+00 : f32
      %12 = vector.broadcast %cst_10 : f32 to vector<16x128xf32>
      %c0_11 = arith.constant 0 : index
      %c0_12 = arith.constant 0 : index
      %13 = vector.load %arg7[%c0_11, %c0_12] : memref<16x128xf32, #tpu.memory_space<vmem>>, vector<16x128xf32>
      tpu.vector_store %arg7[%c0_11, %c0_12], %12 {strides = array<i32>} : memref<16x128xf32, #tpu.memory_space<vmem>>, vector<16x128xf32>,
    } else {
    }
    %c0 = arith.constant 0 : index
    %c0_1 = arith.constant 0 : index
    %3 = vector.load %arg3[%c0, %c0_1] : memref<16x256xbf16, #tpu.memory_space<vmem>>, vector<16x256xbf16>
    %c0_2 = arith.constant 0 : index
    %c0_3 = arith.constant 0 : index
    %4 = vector.load %arg7[%c0_2, %c0_3] : memref<16x128xf32, #tpu.memory_space<vmem>>, vector<16x128xf32>
    %c0_4 = arith.constant 0 : index
    %c0_5 = arith.constant 0 : index
    %5 = vector.load %arg4[%c0_4, %c0_5] : memref<256x128xbf16, #tpu.memory_space<vmem>>, vector<256x128xbf16>
    %cst = arith.constant dense<0.000000e+00> : vector<16x128xf32>
    %6 = tpu.matmul %3, %5, %cst {dimension_numbers = #tpu.dot_dimension_numbers<[1], [0], [0], [1], [0, 0, 1, 1], [], []>} : vector<16x256xbf16>, vector<256x128xbf16>, vector<16x128xf32> -> vector<16x128xf32>
    %7 = arith.addf %4, %6 : vector<16x128xf32>
    %c0_6 = arith.constant 0 : index
    %c0_7 = arith.constant 0 : index
    %8 = vector.load %arg7[%c0_6, %c0_7] : memref<16x128xf32, #tpu.memory_space<vmem>>, vector<16x128xf32>
    tpu.vector_store %arg7[%c0_6, %c0_7], %7 {strides = array<i32>} : memref<16x128xf32, #tpu.memory_space<vmem>>, vector<16x128xf32>,
    %c0_i32_8 = arith.constant 0 : i32
    %9 = arith.cmpi eq, %arg2, %c0_i32_8 : i32
    %10 = arith.extui %9 : i1 to i32
    %c0_i32_9 = arith.constant 0 : i32
    %11 = arith.cmpi ne, %10, %c0_i32_9 : i32
    scf.if %11 {
      %c0_10 = arith.constant 0 : index
      %c0_11 = arith.constant 0 : index
      %12 = vector.load %arg7[%c0_10, %c0_11] : memref<16x128xf32, #tpu.memory_space<vmem>>, vector<16x128xf32>
      %c0_12 = arith.constant 0 : index
      %c0_13 = arith.constant 0 : index
      %13 = vector.load %arg5[%c0_12, %c0_13] : memref<1x128xf32, #tpu.memory_space<vmem>>, vector<1x128xf32>
      %14 = vector.broadcast %13 : vector<1x128xf32> to vector<16x128xf32>
      %15 = arith.addf %12, %14 : vector<16x128xf32>
      %c0_14 = arith.constant 0 : index
      %c0_15 = arith.constant 0 : index
      %16 = vector.load %arg6[%c0_14, %c0_15] : memref<16x128xf32, #tpu.memory_space<vmem>>, vector<16x128xf32>
      tpu.vector_store %arg6[%c0_14, %c0_15], %15 {strides = array<i32>} : memref<16x128xf32, #tpu.memory_space<vmem>>, vector<16x128xf32>,
    } else {
    }
    return
  }
  func.func @transform_0(%arg0: i32, %arg1: i32, %arg2: i32) -> (i32, i32) {
    %c0_i32 = arith.constant 0 : i32
    return %arg0, %arg2 : i32, i32
  }
  func.func @transform_1(%arg0: i32, %arg1: i32, %arg2: i32) -> (i32, i32) {
    %c0_i32 = arith.constant 0 : i32
    return %arg2, %arg1 : i32, i32
  }
  func.func @transform_2(%arg0: i32, %arg1: i32, %arg2: i32) -> (i32, i32) {
    %c0_i32 = arith.constant 0 : i32
    %c0_i32_0 = arith.constant 0 : i32
    return %c0_i32, %arg1 : i32, i32
  }
  func.func @transform_3(%arg0: i32, %arg1: i32, %arg2: i32) -> (i32, i32) {
    %c0_i32 = arith.constant 0 : i32
    return %arg0, %arg1 : i32, i32
  }
}

</mosaic_0001>

<llo_original>
// kernel: transformer_forward.15
$region0: #{transformer_forward.15}
  #allocation0 [shape = 'u32[]', space=smem, size = 0x4, offset = 0x4, fixed_abs, tag = 'smem constant byte address 0x4 - core index']
  #allocation1 [shape = 'u32[144,128]{1,0:T(1,128)}', space=vmem, size = 0x12000, scoped, tag = 'internal scratch']
  #allocation2 [shape = 'f32[32,256]{1,0:T(8,128)}', space=vmem, size = 0x8000, scoped, tag = 'scratch operand']
  %s0 = inlined_call_operand.vmem [shape: bf16[32,640], index: 0, kind: input, shape index: {}]
  %s1 = inlined_call_operand.vmem [shape: bf16[640,256], index: 1, kind: input, shape index: {}]
  %s2 = inlined_call_operand.vmem [shape: f32[1,256], index: 2, kind: input, shape index: {}]
  %s3 = inlined_call_operand.vmem [shape: bf16[32,256], index: 3, kind: output, shape index: {}]
  %s4 = sld [smem:[#allocation0]]
  $region94: #{transformer_forward.15} parent=0
    _
  %s6 = ssub.s32 1, %s4
  %s7 = scalar_select 0, %s6, %s4
  $region1: #{transformer_forward.15} parent=0
    #allocation3 [shape = 'u8[16384]{0}', space=vmem, size = 0x4000, scoped, tag = 'input window, operand 0']
    loop: start=0, step=1, limit=7
    $region2: #{transformer_forward.15} parent=1 // loop_pre_header
      _
    $region3: #{transformer_forward.15} parent=1 // loop_header
      %s9 = sphi 0, %s13
      %p10 = scmp.ge.s32.totalorder %s9, 7
      %s16 = sphi 0, %s35
      %s17 = sphi 0, %s31
      %s18 = sphi 0, %s27
      %s19 = sphi 0, %s16
      %s20 = sphi 0, %s17
      %s21 = sphi 0, %s18
      %s22 = sphi 0, %s19
      %s23 = sphi 0, %s20
      %s24 = sphi 0, %s21
      %s40 = sphi 0, %s42
      %s43 = sphi 0, %s40
      %s44 = sphi 0, %s43
      %s60 = sphi 0, %s44
      %s68 = sphi 0, %s70
      %s71 = sphi 0, %s68
      %s72 = sphi 0, %s71
      %s88 = sphi 0, %s72
      %s94 = sphi 0, %s96
      %s97 = sphi 0, %s94
      %s98 = sphi 0, %s97
      %s114 = sphi 0, %s98
      %s122 = sphi 0, %s124
      %s125 = sphi 0, %s122
      %s126 = sphi 0, %s125
      %s142 = sphi 0, %s126
    $region4: #{transformer_forward.15} parent=1 // loop_header_branch
      %12 = sbr.rel (%p10) target = $region8
    $region5: #{transformer_forward.15} parent=1 // loop_body
      %s14 = ssub.s32 %s9, 1
      %s15 = ssub.s32 %s9, 2
      %s25 = sadd.s32 1, %s18
      %p26 = scmp.ge.s32.totalorder %s25, 5
      %s27 = scalar_select %p26, 0, %s25
      %s28 = sadd.s32 1, %s17
      %s29 = scalar_select %p26, %s28, %s17
      %p30 = scmp.ge.s32.totalorder %s29, 1
      %s31 = scalar_select %p30, 0, %s29
      %s32 = sadd.s32 1, %s16
      %s33 = scalar_select %p30, %s32, %s16
      %p34 = scmp.ge.s32.totalorder %s33, 1
      %s35 = scalar_select %p34, 0, %s33
      %s36 = ssub.s32 %s16, %s35
      %s37 = ssub.s32 %s18, %s27
      %s38 = sor.u32 %s36, %s37
      %p39 = scmp.eq.s32.totalorder %s38, 0
      %s41 = sadd.s32 %s40, 1
      %s42 = scalar_select %p39, %s40, %s41
      %p45 = pneg %p39
      %p46 = scmp.eq.s32.totalorder %s9, 4
      %p47 = por %p45, %p46
      %p48 = scmp.ne.s32.totalorder %s40, %s43
      %p49 = scmp.eq.s32.totalorder %s9, 0
      %p50 = por %p48, %p49
      %p51 = scmp.ne.s32.totalorder %s40, %s43
      %p52 = scmp.eq.s32.totalorder %s14, 4
      %p53 = por %p51, %p52
      %p54 = scmp.ne.s32.totalorder %s43, %s44
      %p55 = scmp.eq.s32.totalorder %s14, 0
      %p56 = por %p54, %p55
      %p57 = scmp.ne.s32.totalorder %s43, %s44
      %p58 = scmp.eq.s32.totalorder %s15, 4
      %p59 = por %p57, %p58
      %p61 = scmp.ne.s32.totalorder %s44, %s60
      %p62 = scmp.eq.s32.totalorder %s15, 0
      %p63 = por %p61, %p62
      %s64 = ssub.s32 %s18, %s27
      %s65 = ssub.s32 %s17, %s31
      %s66 = sor.u32 %s64, %s65
      %p67 = scmp.eq.s32.totalorder %s66, 0
      %s69 = sadd.s32 %s68, 1
      %s70 = scalar_select %p67, %s68, %s69
      %p73 = pneg %p67
      %p74 = scmp.eq.s32.totalorder %s9, 4
      %p75 = por %p73, %p74
      %p76 = scmp.ne.s32.totalorder %s68, %s71
      %p77 = scmp.eq.s32.totalorder %s9, 0
      %p78 = por %p76, %p77
      %p79 = scmp.ne.s32.totalorder %s68, %s71
      %p80 = scmp.eq.s32.totalorder %s14, 4
      %p81 = por %p79, %p80
      %p82 = scmp.ne.s32.totalorder %s71, %s72
      %p83 = scmp.eq.s32.totalorder %s14, 0
      %p84 = por %p82, %p83
      %p85 = scmp.ne.s32.totalorder %s71, %s72
      %p86 = scmp.eq.s32.totalorder %s15, 4
      %p87 = por %p85, %p86
      %p89 = scmp.ne.s32.totalorder %s72, %s88
      %p90 = scmp.eq.s32.totalorder %s15, 0
      %p91 = por %p89, %p90
      %s92 = ssub.s32 %s17, %s31
      %p93 = scmp.eq.s32.totalorder %s92, 0
      %s95 = sadd.s32 %s94, 1
      %s96 = scalar_select %p93, %s94, %s95
      %p99 = pneg %p93
      %p100 = scmp.eq.s32.totalorder %s9, 4
      %p101 = por %p99, %p100
      %p102 = scmp.ne.s32.totalorder %s94, %s97
      %p103 = scmp.eq.s32.totalorder %s9, 0
      %p104 = por %p102, %p103
      %p105 = scmp.ne.s32.totalorder %s94, %s97
      %p106 = scmp.eq.s32.totalorder %s14, 4
      %p107 = por %p105, %p106
      %p108 = scmp.ne.s32.totalorder %s97, %s98
      %p109 = scmp.eq.s32.totalorder %s14, 0
      %p110 = por %p108, %p109
      %p111 = scmp.ne.s32.totalorder %s97, %s98
      %p112 = scmp.eq.s32.totalorder %s15, 4
      %p113 = por %p111, %p112
      %p115 = scmp.ne.s32.totalorder %s98, %s114
      %p116 = scmp.eq.s32.totalorder %s15, 0
      %p117 = por %p115, %p116
      %s118 = ssub.s32 %s16, %s35
      %s119 = ssub.s32 %s17, %s31
      %s120 = sor.u32 %s118, %s119
      %p121 = scmp.eq.s32.totalorder %s120, 0
      %s123 = sadd.s32 %s122, 1
      %s124 = scalar_select %p121, %s122, %s123
      %p127 = pneg %p121
      %p128 = scmp.eq.s32.totalorder %s9, 4
      %p129 = por %p127, %p128
      %p130 = scmp.ne.s32.totalorder %s122, %s125
      %p131 = scmp.eq.s32.totalorder %s9, 0
      %p132 = por %p130, %p131
      %p133 = scmp.ne.s32.totalorder %s122, %s125
      %p134 = scmp.eq.s32.totalorder %s14, 4
      %p135 = por %p133, %p134
      %p136 = scmp.ne.s32.totalorder %s125, %s126
      %p137 = scmp.eq.s32.totalorder %s14, 0
      %p138 = por %p136, %p137
      %p139 = scmp.ne.s32.totalorder %s125, %s126
      %p140 = scmp.eq.s32.totalorder %s15, 4
      %p141 = por %p139, %p140
      %p143 = scmp.ne.s32.totalorder %s126, %s142
      %p144 = scmp.eq.s32.totalorder %s15, 0
      %p145 = por %p143, %p144
      %p146 = scmp.le.s32.totalorder 1, %s9
      %p147 = scmp.lt.s32.totalorder %s9, 6
      %p148 = pnand %p146, %p147
      %p149 = pneg %p148
      // Predicated region
      $region9: #{transformer_forward.15} parent=5 // pred_check
        _
      $region10: #{transformer_forward.15} parent=5 // pred_check_branch
        %151 = sbr.rel (%p148) target = $region12
      $region11: #{transformer_forward.15} parent=5 // pred_region
        %s152 = ssub.s32 %s9, 1
        // Predicated region
        $region13: #{transformer_forward.15} parent=11 // pred_check
          %p153 = pneg %p110
        $region14: #{transformer_forward.15} parent=11 // pred_check_branch
          %155 = sbr.rel (%p153) target = $region16
        $region15: #{transformer_forward.15} parent=11 // pred_region
          %s156 = smul.u32 2, %s20
          %p157 = scmp.lt.s32.totalorder %s156, 1
          %s158 = scalar_select %p157, %s156, 1
          %s159 = scalar_lea.vmem %s2, %s158
          %s160 = smul.u32 2, %s20
        $region16: #{transformer_forward.15} parent=11 // pred_fallthru
          _
      $region12: #{transformer_forward.15} parent=5 // pred_fallthru
        _
      %p161 = scmp.lt.s32.totalorder %s9, 5
      // Predicated region
      $region17: #{transformer_forward.15} parent=5 // pred_check
        %p162 = pneg %p161
      $region18: #{transformer_forward.15} parent=5 // pred_check_branch
        %164 = sbr.rel (%p162) target = $region20
      $region19: #{transformer_forward.15} parent=5 // pred_region
        // Predicated region
        $region21: #{transformer_forward.15} parent=19 // pred_check
          %p165 = pneg %p50
        $region22: #{transformer_forward.15} parent=19 // pred_check_branch
          %167 = sbr.rel (%p165) target = $region24
        $region23: #{transformer_forward.15} parent=19 // pred_region
          %s168 = sand.u32 %s40, 1
          %s169 = sand.u32 %s40, 1
          %s170 = smul.addr %s169, 16
          %s171 = scalar_lea.vmem [#allocation3], %s170
          %s172 = smul.u32 4, %s16
          %s173 = smul.addr %s172, 5
          %s174 = sadd.s32 %s18, %s173
          %s175 = smul.addr %s174, 4
          %s176 = scalar_lea.vmem %s0, %s175
          // Predicated region
          $region25: #{transformer_forward.15} parent=23 // pred_check
            _
          $region26: #{transformer_forward.15} parent=23 // pred_check_branch
            %178 = sbr.rel (0) target = $region28
          $region27: #{transformer_forward.15} parent=23 // pred_region
            // Predicated region
            $region29: #{transformer_forward.15} parent=27 // pred_check
              _
            $region30: #{transformer_forward.15} parent=27 // pred_check_branch
              %180 = sbr.rel target = $region32
            $region31: #{transformer_forward.15} parent=27 // pred_region
              // Predicated region
              $region44: #{transformer_forward.15} parent=31 // pred_check
                _
              $region45: #{transformer_forward.15} parent=31 // pred_check_branch
                %201 = sbr.rel (0) target = $region47
              $region46: #{transformer_forward.15} parent=31 // pred_region
                loop: start=0, step=1, limit=1
                $region48: #{transformer_forward.15} parent=46 // loop_pre_header
                  _
                $region49: #{transformer_forward.15} parent=46 // loop_header
                  %s203 = sphi 0, %s207
                  %p204 = scmp.ge.s32.totalorder %s203, 1
                  %s208 = sphi %s176, %s176
                  %s209 = sphi %s171, %s171
                $region50: #{transformer_forward.15} parent=46 // loop_header_branch
                  %206 = sbr.rel (%p204) target = $region54
                $region51: #{transformer_forward.15} parent=46 // loop_body
                  _
                $region52: #{transformer_forward.15} parent=46 // loop_footer
                  %s207 = sadd.s32 1, %s203
                $region53: #{transformer_forward.15} parent=46 // loop_footer_branch
                  %202 = sbr.rel target = $region49
                $region54: #{transformer_forward.15} parent=46 // loop_exit
                  _
                loop: start=0, step=1, limit=1
                $region55: #{transformer_forward.15} parent=46 // loop_pre_header
                  _
                $region56: #{transformer_forward.15} parent=46 // loop_header
                  %s212 = sphi 0, %s216
                  %p213 = scmp.ge.s32.totalorder %s212, 1
                  %s217 = sphi %s176, %s176
                  %s218 = sphi %s171, %s171
                $region57: #{transformer_forward.15} parent=46 // loop_header_branch
                  %215 = sbr.rel (%p213) target = $region61
                $region58: #{transformer_forward.15} parent=46 // loop_body
                  %v219 = vld [vmem:[%s217] sm:$0xf]
                  %220 = vst [vmem:[%s218] sm:$0xf] %v219
                  %v221 = vld [vmem:[%s217 + $0x14] sm:$0xf]
                  %222 = vst [vmem:[%s218 + $0x4] sm:$0xf] %v221
                  %v223 = vld [vmem:[%s217 + $0x28] sm:$0xf]
                  %224 = vst [vmem:[%s218 + $0x8] sm:$0xf] %v223
                  %v225 = vld [vmem:[%s217 + $0x3c] sm:$0xf]
                  %226 = vst [vmem:[%s218 + $0xc] sm:$0xf] %v225
                $region59: #{transformer_forward.15} parent=46 // loop_footer
                  %s216 = sadd.s32 1, %s212
                $region60: #{transformer_forward.15} parent=46 // loop_footer_branch
                  %211 = sbr.rel target = $region56
                $region61: #{transformer_forward.15} parent=46 // loop_exit
                  _
              $region47: #{transformer_forward.15} parent=31 // pred_fallthru
                _
            $region32: #{transformer_forward.15} parent=27 // pred_fallthru
              _
            // Predicated region
            $region33: #{transformer_forward.15} parent=27 // pred_check
              _
            $region34: #{transformer_forward.15} parent=27 // pred_check_branch
              %182 = sbr.rel (0) target = $region36
            $region35: #{transformer_forward.15} parent=27 // pred_region
              loop: start=0, step=1, limit=1
              $region37: #{transformer_forward.15} parent=35 // loop_pre_header
                _
              $region38: #{transformer_forward.15} parent=35 // loop_header
                %s185 = sphi 0, %s189
                %p186 = scmp.ge.s32.totalorder %s185, 1
                %s190 = sphi %s176, %s176
                %s191 = sphi %s171, %s171
              $region39: #{transformer_forward.15} parent=35 // loop_header_branch
                %188 = sbr.rel (%p186) target = $region43
              $region40: #{transformer_forward.15} parent=35 // loop_body
                %v192 = vld [vmem:[%s190] sm:$0xf]
                %193 = vst [vmem:[%s191] sm:$0xf] %v192
                %v194 = vld [vmem:[%s190 + $0x14] sm:$0xf]
                %195 = vst [vmem:[%s191 + $0x4] sm:$0xf] %v194
                %v196 = vld [vmem:[%s190 + $0x28] sm:$0xf]
                %197 = vst [vmem:[%s191 + $0x8] sm:$0xf] %v196
                %v198 = vld [vmem:[%s190 + $0x3c] sm:$0xf]
                %199 = vst [vmem:[%s191 + $0xc] sm:$0xf] %v198
              $region41: #{transformer_forward.15} parent=35 // loop_footer
                %s189 = sadd.s32 1, %s185
              $region42: #{transformer_forward.15} parent=35 // loop_footer_branch
                %184 = sbr.rel target = $region38
              $region43: #{transformer_forward.15} parent=35 // loop_exit
                _
            $region36: #{transformer_forward.15} parent=27 // pred_fallthru
              _
          $region28: #{transformer_forward.15} parent=23 // pred_fallthru
            _
          %227 = vnop
        $region24: #{transformer_forward.15} parent=19 // pred_fallthru
          _
        // Predicated region
        $region62: #{transformer_forward.15} parent=19 // pred_check
          %p228 = pneg %p78
        $region63: #{transformer_forward.15} parent=19 // pred_check_branch
          %230 = sbr.rel (%p228) target = $region65
        $region64: #{transformer_forward.15} parent=19 // pred_region
          %s231 = smul.u32 16, %s18
          %s232 = smul.u32 2, %s17
          %p233 = scmp.lt.s32.totalorder %s231, 79
          %s234 = scalar_select %p233, %s231, 79
          %p235 = scmp.lt.s32.totalorder %s232, 1
          %s236 = scalar_select %p235, %s232, 1
          %s237 = smul.addr %s234, 2
          %s238 = sadd.s32 %s236, %s237
          %s239 = smul.addr %s238, 4
          %s240 = scalar_lea.vmem %s1, %s239
          %s241 = smul.u32 16, %s18
          %s242 = smul.u32 2, %s17
        $region65: #{transformer_forward.15} parent=19 // pred_fallthru
          _
      $region20: #{transformer_forward.15} parent=5 // pred_fallthru
        _
      %p243 = scmp.le.s32.totalorder 1, %s9
      %p244 = scmp.lt.s32.totalorder %s9, 6
      %p245 = pnand %p243, %p244
      %p246 = pneg %p245
      // Predicated region
      $region66: #{transformer_forward.15} parent=5 // pred_check
        _
      $region67: #{transformer_forward.15} parent=5 // pred_check_branch
        %248 = sbr.rel (%p245) target = $region69
      $region68: #{transformer_forward.15} parent=5 // pred_region
        %s249 = ssub.s32 %s9, 1
        %s250 = sand.u32 %s43, 1
        %s251 = sand.u32 %s43, 1
        %s252 = smul.addr %s251, 16
        %s253 = scalar_lea.vmem [#allocation3], %s252
        // Predicated region
        $region70: #{transformer_forward.15} parent=68 // pred_check
          %p254 = pneg %p56
        $region71: #{transformer_forward.15} parent=68 // pred_check_branch
          %256 = sbr.rel (%p254) target = $region73
        $region72: #{transformer_forward.15} parent=68 // pred_region
          _
        $region73: #{transformer_forward.15} parent=68 // pred_fallthru
          _
        %s257 = sand.u32 %s43, 1
        %s258 = sand.u32 %s43, 1
        %s259 = smul.addr %s258, 16
        %s260 = scalar_lea.vmem [#allocation3], %s259
        %p261 = pneg %p56
        %p262 = pneg %p53
        %s263 = smul.u32 16, %s21
        %s264 = smul.u32 2, %s20
        %p265 = scmp.lt.s32.totalorder %s263, 79
        %s266 = scalar_select %p265, %s263, 79
        %p267 = scmp.lt.s32.totalorder %s264, 1
        %s268 = scalar_select %p267, %s264, 1
        %s269 = smul.addr %s266, 2
        %s270 = sadd.s32 %s268, %s269
        %s271 = smul.addr %s270, 4
        %s272 = scalar_lea.vmem %s1, %s271
        %p273 = pneg %p84
        %p274 = pneg %p81
        %s275 = smul.u32 2, %s20
        %p276 = scmp.lt.s32.totalorder %s275, 1
        %s277 = scalar_select %p276, %s275, 1
        %s278 = scalar_lea.vmem %s2, %s277
        %p279 = pneg %p110
        %p280 = pneg %p107
        %p281 = pneg %p138
        %p282 = pneg %p135
        %s283 = smul.u32 4, %s19
        %s284 = smul.u32 2, %s20
        %p285 = scmp.lt.s32.totalorder %s283, 3
        %s286 = scalar_select %p285, %s283, 3
        %p287 = scmp.lt.s32.totalorder %s284, 1
        %s288 = scalar_select %p287, %s284, 1
        %s289 = smul.addr %s286, 2
        %s290 = sadd.s32 %s288, %s289
        %s291 = smul.addr %s290, 4
        %s292 = scalar_lea.vmem %s3, %s291
        %s293 = smul.u32 4, %s19
        %s294 = smul.u32 16, %s21
        %s295 = smul.u32 2, %s20
        %p296 = scmp.lt.s32.totalorder %s294, 79
        %s297 = scalar_select %p296, %s294, 79
        %p298 = scmp.lt.s32.totalorder %s295, 1
        %s299 = scalar_select %p298, %s295, 1
        %s300 = smul.addr %s297, 2
        %s301 = sadd.s32 %s299, %s300
        %s302 = smul.addr %s301, 4
        %s303 = scalar_lea.vmem %s1, %s302
        %s304 = smul.u32 16, %s21
        %s305 = smul.u32 2, %s20
        %s306 = smul.u32 2, %s20
        %p307 = scmp.lt.s32.totalorder %s306, 1
        %s308 = scalar_select %p307, %s306, 1
        %s309 = scalar_lea.vmem %s2, %s308
        %s310 = smul.u32 2, %s20
        %s311 = smul.u32 4, %s19
        %s312 = smul.u32 2, %s20
        %p313 = scmp.lt.s32.totalorder %s311, 3
        %s314 = scalar_select %p313, %s311, 3
        %p315 = scmp.lt.s32.totalorder %s312, 1
        %s316 = scalar_select %p315, %s312, 1
        %s317 = smul.addr %s314, 2
        %s318 = sadd.s32 %s316, %s317
        %s319 = smul.addr %s318, 4
        %s320 = scalar_lea.vmem %s3, %s319
        %s321 = smul.u32 4, %s19
        %s322 = smul.u32 2, %s20
        %p324 = scmp.eq.s32.totalorder %s21, 0
        // Predicated region
        $region74: #{transformer_forward.15} parent=68 // pred_check
          %p325 = pneg %p324
        $region75: #{transformer_forward.15} parent=68 // pred_check_branch
          %327 = sbr.rel (%p325) target = $region77
        $region76: #{transformer_forward.15} parent=68 // pred_region
          %328 = vst [vmem:[#allocation2] sm:$0xff] 0.0
          %329 = vst [vmem:[#allocation2 + $0x8] sm:$0xff] 0.0
          %330 = vst [vmem:[#allocation2 + $0x10] sm:$0xff] 0.0
          %331 = vst [vmem:[#allocation2 + $0x18] sm:$0xff] 0.0
          %332 = vst [vmem:[#allocation2 + $0x20] sm:$0xff] 0.0
          %333 = vst [vmem:[#allocation2 + $0x28] sm:$0xff] 0.0
          %334 = vst [vmem:[#allocation2 + $0x30] sm:$0xff] 0.0
          %335 = vst [vmem:[#allocation2 + $0x38] sm:$0xff] 0.0
        $region77: #{transformer_forward.15} parent=68 // pred_fallthru
          _
        %v336 = vld [vmem:[%s253] sm:$0xf]
        %v337 = vld [vmem:[%s253 + $0x4] sm:$0xf]
        %v338 = vld [vmem:[%s253 + $0x8] sm:$0xf]
        %v339 = vld [vmem:[%s253 + $0xc] sm:$0xf]
        %v340 = vld [vmem:[#allocation2] sm:$0xff]
        %v341 = vld [vmem:[#allocation2 + $0x8] sm:$0xff]
        %v342 = vld [vmem:[#allocation2 + $0x10] sm:$0xff]
        %v343 = vld [vmem:[#allocation2 + $0x18] sm:$0xff]
        %v344 = vld [vmem:[#allocation2 + $0x20] sm:$0xff]
        %v345 = vld [vmem:[#allocation2 + $0x28] sm:$0xff]
        %v346 = vld [vmem:[#allocation2 + $0x30] sm:$0xff]
        %v347 = vld [vmem:[#allocation2 + $0x38] sm:$0xff]
        %v348 = vld [vmem:[%s303] sm:$0xff]
        %v349 = vld [vmem:[%s303 + $0x8] sm:$0xff]
        %v350 = vld [vmem:[%s303 + $0x10] sm:$0xff]
        %v351 = vld [vmem:[%s303 + $0x18] sm:$0xff]
        %v352 = vld [vmem:[%s303 + $0x20] sm:$0xff]
        %v353 = vld [vmem:[%s303 + $0x28] sm:$0xff]
        %v354 = vld [vmem:[%s303 + $0x30] sm:$0xff]
        %v355 = vld [vmem:[%s303 + $0x38] sm:$0xff]
        %v356 = vld [vmem:[%s303 + $0x40] sm:$0xff]
        %v357 = vld [vmem:[%s303 + $0x48] sm:$0xff]
        %v358 = vld [vmem:[%s303 + $0x50] sm:$0xff]
        %v359 = vld [vmem:[%s303 + $0x58] sm:$0xff]
        %v360 = vld [vmem:[%s303 + $0x60] sm:$0xff]
        %v361 = vld [vmem:[%s303 + $0x68] sm:$0xff]
        %v362 = vld [vmem:[%s303 + $0x70] sm:$0xff]
        %v363 = vld [vmem:[%s303 + $0x78] sm:$0xff]
        %v368 = vunpack.c.l.b16 %v336
        %v369 = vunpack.c.l.b16 %v337
        %v370 = vunpack.c.l.b16 %v338
        %v371 = vunpack.c.l.b16 %v339
        %v372 = vpack.c.b16 %v369, %v368
        %v373 = vpack.c.b16 %v371, %v370
        %v392 = vunpack.c.l.b16 %v348
        %v393 = vunpack.c.h.b16 %v348
        %v394 = vunpack.c.l.b16 %v349
        %v395 = vunpack.c.h.b16 %v349
        %v396 = vunpack.c.l.b16 %v350
        %v397 = vunpack.c.h.b16 %v350
        %v398 = vunpack.c.l.b16 %v351
        %v399 = vunpack.c.h.b16 %v351
        %v400 = vunpack.c.l.b16 %v352
        %v401 = vunpack.c.h.b16 %v352
        %v402 = vunpack.c.l.b16 %v353
        %v403 = vunpack.c.h.b16 %v353
        %v404 = vunpack.c.l.b16 %v354
        %v405 = vunpack.c.h.b16 %v354
        %v406 = vunpack.c.l.b16 %v355
        %v407 = vunpack.c.h.b16 %v355
        %v408 = vunpack.c.l.b16 %v356
        %v409 = vunpack.c.h.b16 %v356
        %v410 = vunpack.c.l.b16 %v357
        %v411 = vunpack.c.h.b16 %v357
        %v412 = vunpack.c.l.b16 %v358
        %v413 = vunpack.c.h.b16 %v358
        %v414 = vunpack.c.l.b16 %v359
        %v415 = vunpack.c.h.b16 %v359
        %v416 = vunpack.c.l.b16 %v360
        %v417 = vunpack.c.h.b16 %v360
        %v418 = vunpack.c.l.b16 %v361
        %v419 = vunpack.c.h.b16 %v361
        %v420 = vunpack.c.l.b16 %v362
        %v421 = vunpack.c.h.b16 %v362
        %v422 = vunpack.c.l.b16 %v363
        %v423 = vunpack.c.h.b16 %v363
        %v424 = vpack.c.b16 %v394, %v392
        %v425 = vpack.c.b16 %v395, %v393
        %v426 = vpack.c.b16 %v398, %v396
        %v427 = vpack.c.b16 %v399, %v397
        %v428 = vpack.c.b16 %v402, %v400
        %v429 = vpack.c.b16 %v403, %v401
        %v430 = vpack.c.b16 %v406, %v404
        %v431 = vpack.c.b16 %v407, %v405
        %v432 = vpack.c.b16 %v410, %v408
        %v433 = vpack.c.b16 %v411, %v409
        %v434 = vpack.c.b16 %v414, %v412
        %v435 = vpack.c.b16 %v415, %v413
        %v436 = vpack.c.b16 %v418, %v416
        %v437 = vpack.c.b16 %v419, %v417
        %v438 = vpack.c.b16 %v422, %v420
        %v439 = vpack.c.b16 %v423, %v421
        %456 = vmatprep.subr.bf16.mxu0 %v425
        %457 = vmatpush1.bf16.msra.mxu0 %v424
        %458 = vmatprep.subr.bf16.mxu0 %v427
        %459 = vmatpush1.bf16.msra.mxu0 %v426
        %460 = vmatprep.subr.bf16.mxu0 %v429
        %461 = vmatpush1.bf16.msra.mxu0 %v428
        %462 = vmatprep.subr.bf16.mxu0 %v431
        %463 = vmatpush1.bf16.msra.mxu0 %v430
        %464 = vmatprep.subr.bf16.mxu0 %v433
        %465 = vmatpush1.bf16.msra.mxu0 %v432
        %466 = vmatprep.subr.bf16.mxu0 %v435
        %467 = vmatpush1.bf16.msra.mxu0 %v434
        %468 = vmatprep.subr.bf16.mxu0 %v437
        %469 = vmatpush1.bf16.msra.mxu0 %v436
        %470 = vmatprep.subr.bf16.mxu0 %v439
        %471 = vmatpush1.bf16.msra.mxu0 %v438
        %472 = vmatprep.subr.bf16.mxu0 0
        %473 = vmatpush1.bf16.msra.mxu0 0
        %474 = vmatprep.subr.bf16.mxu0 0
        %475 = vmatpush1.bf16.msra.mxu0 0
        %476 = vmatprep.subr.bf16.mxu0 0
        %477 = vmatpush1.bf16.msra.mxu0 0
        %478 = vmatprep.subr.bf16.mxu0 0
        %479 = vmatpush1.bf16.msra.mxu0 0
        %480 = vmatprep.subr.bf16.mxu0 0
        %481 = vmatpush1.bf16.msra.mxu0 0
        %482 = vmatprep.subr.bf16.mxu0 0
        %483 = vmatpush1.bf16.msra.mxu0 0
        %484 = vmatprep.subr.bf16.mxu0 0
        %485 = vmatpush1.bf16.msra.mxu0 0
        %486 = vmatprep.subr.bf16.mxu0 0
        %487 = vmatpush1.bf16.msra.mxu0 0
        %488 = vmatprep.mubr.bf16.mxu0 0
        %489 = vmatmul.mubr.bf16.gmra.mrb[0].mxu0 %v372
        %v490 = vpop.f32.mrb[0].mxu0
        %v491 = vadd.f32 0.0, %v490
        %v492 = vpop.f32.mrb[0].mxu0
        %v493 = vadd.f32 0.0, %v492
        %v494 = vpop.f32.mrb[0].mxu0
        %v495 = vadd.f32 0.0, %v494
        %v496 = vpop.f32.mrb[0].mxu0
        %v497 = vadd.f32 0.0, %v496
        %498 = vmatprep.mubr.bf16.mxu0 0
        %499 = vmatmul.mubr.bf16.gmra.mrb[0].mxu0 %v373
        %v500 = vpop.f32.mrb[0].mxu0
        %v501 = vadd.f32 0.0, %v500
        %v502 = vpop.f32.mrb[0].mxu0
        %v503 = vadd.f32 0.0, %v502
        %v504 = vpop.f32.mrb[0].mxu0
        %v505 = vadd.f32 0.0, %v504
        %v506 = vpop.f32.mrb[0].mxu0
        %v507 = vadd.f32 0.0, %v506
        %508 = vdwg.mxu0
        %v509 = vadd.f32 %v340, %v491
        %v510 = vadd.f32 %v341, %v493
        %v511 = vadd.f32 %v342, %v495
        %v512 = vadd.f32 %v343, %v497
        %v513 = vadd.f32 %v344, %v501
        %v514 = vadd.f32 %v345, %v503
        %v515 = vadd.f32 %v346, %v505
        %v516 = vadd.f32 %v347, %v507
        %517 = vst [vmem:[#allocation2] sm:$0xff] %v509
        %518 = vst [vmem:[#allocation2 + $0x8] sm:$0xff] %v510
        %519 = vst [vmem:[#allocation2 + $0x10] sm:$0xff] %v511
        %520 = vst [vmem:[#allocation2 + $0x18] sm:$0xff] %v512
        %521 = vst [vmem:[#allocation2 + $0x20] sm:$0xff] %v513
        %522 = vst [vmem:[#allocation2 + $0x28] sm:$0xff] %v514
        %523 = vst [vmem:[#allocation2 + $0x30] sm:$0xff] %v515
        %524 = vst [vmem:[#allocation2 + $0x38] sm:$0xff] %v516
        %p525 = scmp.eq.s32.totalorder %s21, 4
        // Predicated region
        $region78: #{transformer_forward.15} parent=68 // pred_check
          %p526 = pneg %p525
        $region79: #{transformer_forward.15} parent=68 // pred_check_branch
          %528 = sbr.rel (%p526) target = $region81
        $region80: #{transformer_forward.15} parent=68 // pred_region
          %v529 = vld [vmem:[#allocation2] sm:$0xff]
          %v530 = vld [vmem:[#allocation2 + $0x8] sm:$0xff]
          %v531 = vld [vmem:[#allocation2 + $0x10] sm:$0xff]
          %v532 = vld [vmem:[#allocation2 + $0x18] sm:$0xff]
          %v533 = vld [vmem:[#allocation2 + $0x20] sm:$0xff]
          %v534 = vld [vmem:[#allocation2 + $0x28] sm:$0xff]
          %v535 = vld [vmem:[#allocation2 + $0x30] sm:$0xff]
          %v536 = vld [vmem:[#allocation2 + $0x38] sm:$0xff]
          %v537 = vld [vmem:[%s309] sm:$0x3]
          %v539 = vlaneseq
          %v540 = vshrl.u32 %v539, 7
          %v541 = vsub.s32 0, %v540
          %v542 = vrot.slane %v537, %v541
          %v543 = vlaneseq
          %v544 = vshrl.u32 %v543, 7
          %v545 = vsub.s32 1, %v544
          %v546 = vrot.slane %v537, %v545
          %v549 = vadd.f32 %v529, %v542
          %v550 = vadd.f32 %v530, %v546
          %v551 = vadd.f32 %v531, %v542
          %v552 = vadd.f32 %v532, %v546
          %v553 = vadd.f32 %v533, %v542
          %v554 = vadd.f32 %v534, %v546
          %v555 = vadd.f32 %v535, %v542
          %v556 = vadd.f32 %v536, %v546
          %v557 = vmul.f32 %v549, 0.5
          %v558 = vmul.f32 %v550, 0.5
          %v559 = vmul.f32 %v551, 0.5
          %v560 = vmul.f32 %v552, 0.5
          %v561 = vmul.f32 %v553, 0.5
          %v562 = vmul.f32 %v554, 0.5
          %v563 = vmul.f32 %v555, 0.5
          %v564 = vmul.f32 %v556, 0.5
          %v565 = vmul.f32 %v549, 0.044715
          %v566 = vmul.f32 %v550, 0.044715
          %v567 = vmul.f32 %v551, 0.044715
          %v568 = vmul.f32 %v552, 0.044715
          %v569 = vmul.f32 %v553, 0.044715
          %v570 = vmul.f32 %v554, 0.044715
          %v571 = vmul.f32 %v555, 0.044715
          %v572 = vmul.f32 %v556, 0.044715
          %v573 = vmul.f32 %v565, %v549
          %v574 = vmul.f32 %v566, %v550
          %v575 = vmul.f32 %v567, %v551
          %v576 = vmul.f32 %v568, %v552
          %v577 = vmul.f32 %v569, %v553
          %v578 = vmul.f32 %v570, %v554
          %v579 = vmul.f32 %v571, %v555
          %v580 = vmul.f32 %v572, %v556
          %v581 = vmul.f32 %v573, %v549
          %v582 = vmul.f32 %v574, %v550
          %v583 = vmul.f32 %v575, %v551
          %v584 = vmul.f32 %v576, %v552
          %v585 = vmul.f32 %v577, %v553
          %v586 = vmul.f32 %v578, %v554
          %v587 = vmul.f32 %v579, %v555
          %v588 = vmul.f32 %v580, %v556
          %v589 = vadd.f32 %v549, %v581
          %v590 = vadd.f32 %v550, %v582
          %v591 = vadd.f32 %v551, %v583
          %v592 = vadd.f32 %v552, %v584
          %v593 = vadd.f32 %v553, %v585
          %v594 = vadd.f32 %v554, %v586
          %v595 = vadd.f32 %v555, %v587
          %v596 = vadd.f32 %v556, %v588
          %v597 = vmul.f32 %v589, 0.7978846
          %v598 = vmul.f32 %v590, 0.7978846
          %v599 = vmul.f32 %v591, 0.7978846
          %v600 = vmul.f32 %v592, 0.7978846
          %v601 = vmul.f32 %v593, 0.7978846
          %v602 = vmul.f32 %v594, 0.7978846
          %v603 = vmul.f32 %v595, 0.7978846
          %v604 = vmul.f32 %v596, 0.7978846
          %v605 = vtanh.pop %v597
          %v606 = vtanh.pop %v598
          %v607 = vtanh.pop %v599
          %v608 = vtanh.pop %v600
          %v609 = vtanh.pop %v601
          %v610 = vtanh.pop %v602
          %v611 = vtanh.pop %v603
          %v612 = vtanh.pop %v604
          %v613 = vadd.f32 %v605, 1.0
          %v614 = vadd.f32 %v606, 1.0
          %v615 = vadd.f32 %v607, 1.0
          %v616 = vadd.f32 %v608, 1.0
          %v617 = vadd.f32 %v609, 1.0
          %v618 = vadd.f32 %v610, 1.0
          %v619 = vadd.f32 %v611, 1.0
          %v620 = vadd.f32 %v612, 1.0
          %v621 = vmul.f32 %v557, %v613
          %v622 = vmul.f32 %v558, %v614
          %v623 = vmul.f32 %v559, %v615
          %v624 = vmul.f32 %v560, %v616
          %v625 = vmul.f32 %v561, %v617
          %v626 = vmul.f32 %v562, %v618
          %v627 = vmul.f32 %v563, %v619
          %v628 = vmul.f32 %v564, %v620
          %v629 = vpack.c.bf16 %v623, %v621
          %v630 = vpack.c.bf16 %v624, %v622
          %v631 = vpack.c.bf16 %v627, %v625
          %v632 = vpack.c.bf16 %v628, %v626
          %v637 = vunpack.c.l.b16 %v629
          %v638 = vunpack.c.l.b16 %v630
          %v639 = vunpack.c.h.b16 %v629
          %v640 = vunpack.c.h.b16 %v630
          %v641 = vunpack.c.l.b16 %v631
          %v642 = vunpack.c.l.b16 %v632
          %v643 = vunpack.c.h.b16 %v631
          %v644 = vunpack.c.h.b16 %v632
          %v645 = vpack.c.b16 %v638, %v637
          %v646 = vpack.c.b16 %v640, %v639
          %v647 = vpack.c.b16 %v642, %v641
          %v648 = vpack.c.b16 %v644, %v643
          %653 = vst [vmem:[%s320] sm:$0xff] %v645
          %654 = vst [vmem:[%s320 + $0x8] sm:$0xff] %v646
          %655 = vst [vmem:[%s320 + $0x10] sm:$0xff] %v647
          %656 = vst [vmem:[%s320 + $0x18] sm:$0xff] %v648
        $region81: #{transformer_forward.15} parent=68 // pred_fallthru
          _
        %s657 = smul.u32 4, %s19
        %s658 = smul.u32 2, %s20
        %p659 = scmp.lt.s32.totalorder %s657, 3
        %s660 = scalar_select %p659, %s657, 3
        %p661 = scmp.lt.s32.totalorder %s658, 1
        %s662 = scalar_select %p661, %s658, 1
        %s663 = smul.addr %s660, 2
        %s664 = sadd.s32 %s662, %s663
        %s665 = smul.addr %s664, 4
        %s666 = scalar_lea.vmem %s3, %s665
        // Predicated region
        $region82: #{transformer_forward.15} parent=68 // pred_check
          %p667 = pneg %p135
        $region83: #{transformer_forward.15} parent=68 // pred_check_branch
          %669 = sbr.rel (%p667) target = $region85
        $region84: #{transformer_forward.15} parent=68 // pred_region
          %s670 = smul.u32 4, %s19
          %s671 = smul.u32 2, %s20
        $region85: #{transformer_forward.15} parent=68 // pred_fallthru
          _
        // Predicated region
        $region86: #{transformer_forward.15} parent=68 // pred_check
          %p672 = pneg %p135
        $region87: #{transformer_forward.15} parent=68 // pred_check_branch
          %674 = sbr.rel (%p672) target = $region89
        $region88: #{transformer_forward.15} parent=68 // pred_region
          %s675 = smul.u32 4, %s19
          %s676 = smul.u32 2, %s20
          %p677 = scmp.lt.s32.totalorder %s675, 3
          %s678 = scalar_select %p677, %s675, 3
          %p679 = scmp.lt.s32.totalorder %s676, 1
          %s680 = scalar_select %p679, %s676, 1
          %s681 = smul.addr %s678, 2
          %s682 = sadd.s32 %s680, %s681
          %s683 = smul.addr %s682, 4
          %s684 = scalar_lea.vmem %s3, %s683
        $region89: #{transformer_forward.15} parent=68 // pred_fallthru
          _
      $region69: #{transformer_forward.15} parent=5 // pred_fallthru
        _
      %p685 = scmp.le.s32.totalorder 2, %s9
      // Predicated region
      $region90: #{transformer_forward.15} parent=5 // pred_check
        %p686 = pneg %p685
      $region91: #{transformer_forward.15} parent=5 // pred_check_branch
        %688 = sbr.rel (%p686) target = $region93
      $region92: #{transformer_forward.15} parent=5 // pred_region
        %s689 = ssub.s32 %s9, 2
      $region93: #{transformer_forward.15} parent=5 // pred_fallthru
        _
    $region6: #{transformer_forward.15} parent=1 // loop_footer
      %s13 = sadd.s32 1, %s9
    $region7: #{transformer_forward.15} parent=1 // loop_footer_branch
      %8 = sbr.rel target = $region3
    $region8: #{transformer_forward.15} parent=1 // loop_exit
      _

// kernel: transformer_forward.14
$region0: #{transformer_forward.14}
  #allocation0 [shape = 'u32[]', space=smem, size = 0x4, offset = 0x4, fixed_abs, tag = 'smem constant byte address 0x4 - core index']
  #allocation1 [shape = 'u32[144,128]{1,0:T(1,128)}', space=vmem, size = 0x12000, scoped, tag = 'internal scratch']
  #allocation2 [shape = 'f32[64,128]{1,0:T(8,128)}', space=vmem, size = 0x8000, scoped, tag = 'scratch operand']
  %s0 = inlined_call_operand.vmem [shape: bf16[64,14], index: 0, kind: input, shape index: {}]
  %s1 = inlined_call_operand.vmem [shape: bf16[14,128], index: 1, kind: input, shape index: {}]
  %s2 = inlined_call_operand.vmem [shape: f32[1,128], index: 2, kind: input, shape index: {}]
  %s3 = inlined_call_operand.vmem [shape: bf16[64,128], index: 3, kind: output, shape index: {}]
  %s4 = sld [smem:[#allocation0]]
  $region30: #{transformer_forward.14} parent=0
    _
  %s6 = ssub.s32 1, %s4
  %s7 = scalar_select 0, %s6, %s4
  // Predicated region
  $region2: #{transformer_forward.14} parent=0 // pred_check
    _
  $region3: #{transformer_forward.14} parent=0 // pred_check_branch
    %9 = sbr.rel (0) target = $region5
  $region4: #{transformer_forward.14} parent=0 // pred_region
    _
  $region5: #{transformer_forward.14} parent=0 // pred_fallthru
    _
  // Predicated region
  $region6: #{transformer_forward.14} parent=0 // pred_check
    _
  $region7: #{transformer_forward.14} parent=0 // pred_check_branch
    %11 = sbr.rel (0) target = $region9
  $region8: #{transformer_forward.14} parent=0 // pred_region
    _
  $region9: #{transformer_forward.14} parent=0 // pred_fallthru
    _
  // Predicated region
  $region10: #{transformer_forward.14} parent=0 // pred_check
    _
  $region11: #{transformer_forward.14} parent=0 // pred_check_branch
    %13 = sbr.rel (0) target = $region13
  $region12: #{transformer_forward.14} parent=0 // pred_region
    _
  $region13: #{transformer_forward.14} parent=0 // pred_fallthru
    _
  %p15 = scmp.eq.s32.totalorder 0, 0
  // Predicated region
  $region14: #{transformer_forward.14} parent=0 // pred_check
    %p16 = pneg %p15
  $region15: #{transformer_forward.14} parent=0 // pred_check_branch
    %18 = sbr.rel (%p16) target = $region17
  $region16: #{transformer_forward.14} parent=0 // pred_region
    %19 = vst [vmem:[#allocation2] sm:$0xff] 0.0
    %20 = vst [vmem:[#allocation2 + $0x8] sm:$0xff] 0.0
    %21 = vst [vmem:[#allocation2 + $0x10] sm:$0xff] 0.0
    %22 = vst [vmem:[#allocation2 + $0x18] sm:$0xff] 0.0
    %23 = vst [vmem:[#allocation2 + $0x20] sm:$0xff] 0.0
    %24 = vst [vmem:[#allocation2 + $0x28] sm:$0xff] 0.0
    %25 = vst [vmem:[#allocation2 + $0x30] sm:$0xff] 0.0
    %26 = vst [vmem:[#allocation2 + $0x38] sm:$0xff] 0.0
  $region17: #{transformer_forward.14} parent=0 // pred_fallthru
    _
  %v27 = vld [vmem:[%s0] sm:$0xf]
  %v28 = vld [vmem:[%s0 + $0x4] sm:$0xf]
  %v29 = vld [vmem:[%s0 + $0x8] sm:$0xf]
  %v30 = vld [vmem:[%s0 + $0xc] sm:$0xf]
  %v31 = vld [vmem:[%s0 + $0x10] sm:$0xf]
  %v32 = vld [vmem:[%s0 + $0x14] sm:$0xf]
  %v33 = vld [vmem:[%s0 + $0x18] sm:$0xf]
  %v34 = vld [vmem:[%s0 + $0x1c] sm:$0xf]
  %v35 = vld [vmem:[#allocation2] sm:$0xff]
  %v36 = vld [vmem:[#allocation2 + $0x8] sm:$0xff]
  %v37 = vld [vmem:[#allocation2 + $0x10] sm:$0xff]
  %v38 = vld [vmem:[#allocation2 + $0x18] sm:$0xff]
  %v39 = vld [vmem:[#allocation2 + $0x20] sm:$0xff]
  %v40 = vld [vmem:[#allocation2 + $0x28] sm:$0xff]
  %v41 = vld [vmem:[#allocation2 + $0x30] sm:$0xff]
  %v42 = vld [vmem:[#allocation2 + $0x38] sm:$0xff]
  %v43 = vld [vmem:[%s1] sm:$0xf]
  %v44 = vld [vmem:[%s1 + $0x4] sm:$0x7]
  %v53 = vunpack.c.l.b16 %v27
  %v54 = vunpack.c.l.b16 %v28
  %v55 = vunpack.c.l.b16 %v29
  %v56 = vunpack.c.l.b16 %v30
  %v57 = vunpack.c.l.b16 %v31
  %v58 = vunpack.c.l.b16 %v32
  %v59 = vunpack.c.l.b16 %v33
  %v60 = vunpack.c.l.b16 %v34
  %v61 = vpack.c.b16 %v54, %v53
  %v62 = vpack.c.b16 %v56, %v55
  %v63 = vpack.c.b16 %v58, %v57
  %v64 = vpack.c.b16 %v60, %v59
  %v67 = vunpack.c.l.b16 %v43
  %v68 = vunpack.c.l.b16 %v44
  %v69 = vpack.c.b16 %v68, %v67
  %vm70 = vcmask 113664
  %v72 = vsel %vm70, %v61, 0
  %v75 = vsel %vm70, %v62, 0
  %v78 = vsel %vm70, %v63, 0
  %v81 = vsel %vm70, %v64, 0
  %vm83 = vcmask 1046528
  %v85 = vsel %vm83, %v69, 0
  %87 = vmatprep.subr.bf16.mxu0 0
  %88 = vmatpush1.bf16.msra.mxu0 %v85
  %89 = vmatprep.subr.bf16.mxu0 0
  %90 = vmatpush1.bf16.msra.mxu0 0
  %91 = vmatprep.subr.bf16.mxu0 0
  %92 = vmatpush1.bf16.msra.mxu0 0
  %93 = vmatprep.subr.bf16.mxu0 0
  %94 = vmatpush1.bf16.msra.mxu0 0
  %95 = vmatprep.subr.bf16.mxu0 0
  %96 = vmatpush1.bf16.msra.mxu0 0
  %97 = vmatprep.subr.bf16.mxu0 0
  %98 = vmatpush1.bf16.msra.mxu0 0
  %99 = vmatprep.subr.bf16.mxu0 0
  %100 = vmatpush1.bf16.msra.mxu0 0
  %101 = vmatprep.subr.bf16.mxu0 0
  %102 = vmatpush1.bf16.msra.mxu0 0
  %103 = vmatprep.subr.bf16.mxu0 0
  %104 = vmatpush1.bf16.msra.mxu0 0
  %105 = vmatprep.subr.bf16.mxu0 0
  %106 = vmatpush1.bf16.msra.mxu0 0
  %107 = vmatprep.subr.bf16.mxu0 0
  %108 = vmatpush1.bf16.msra.mxu0 0
  %109 = vmatprep.subr.bf16.mxu0 0
  %110 = vmatpush1.bf16.msra.mxu0 0
  %111 = vmatprep.subr.bf16.mxu0 0
  %112 = vmatpush1.bf16.msra.mxu0 0
  %113 = vmatprep.subr.bf16.mxu0 0
  %114 = vmatpush1.bf16.msra.mxu0 0
  %115 = vmatprep.subr.bf16.mxu0 0
  %116 = vmatpush1.bf16.msra.mxu0 0
  %117 = vmatprep.subr.bf16.mxu0 0
  %118 = vmatpush1.bf16.msra.mxu0 0
  %119 = vmatprep.mubr.bf16.mxu0 0
  %120 = vmatmul.mubr.bf16.gmra.mrb[0].mxu0 %v72
  %v121 = vpop.f32.mrb[0].mxu0
  %v122 = vadd.f32 0.0, %v121
  %v123 = vpop.f32.mrb[0].mxu0
  %v124 = vpop.f32.mrb[0].mxu0
  %v125 = vadd.f32 0.0, %v124
  %v126 = vpop.f32.mrb[0].mxu0
  %127 = vmatprep.mubr.bf16.mxu0 0
  %128 = vmatmul.mubr.bf16.gmra.mrb[0].mxu0 %v75
  %v129 = vpop.f32.mrb[0].mxu0
  %v130 = vadd.f32 0.0, %v129
  %v131 = vpop.f32.mrb[0].mxu0
  %v132 = vpop.f32.mrb[0].mxu0
  %v133 = vadd.f32 0.0, %v132
  %v134 = vpop.f32.mrb[0].mxu0
  %135 = vmatprep.mubr.bf16.mxu0 0
  %136 = vmatmul.mubr.bf16.gmra.mrb[0].mxu0 %v78
  %v137 = vpop.f32.mrb[0].mxu0
  %v138 = vadd.f32 0.0, %v137
  %v139 = vpop.f32.mrb[0].mxu0
  %v140 = vpop.f32.mrb[0].mxu0
  %v141 = vadd.f32 0.0, %v140
  %v142 = vpop.f32.mrb[0].mxu0
  %143 = vmatprep.mubr.bf16.mxu0 0
  %144 = vmatmul.mubr.bf16.gmra.mrb[0].mxu0 %v81
  %v145 = vpop.f32.mrb[0].mxu0
  %v146 = vadd.f32 0.0, %v145
  %v147 = vpop.f32.mrb[0].mxu0
  %v148 = vpop.f32.mrb[0].mxu0
  %v149 = vadd.f32 0.0, %v148
  %v150 = vpop.f32.mrb[0].mxu0
  %151 = vdwg.mxu0
  %v152 = vadd.f32 %v35, %v122
  %v153 = vadd.f32 %v36, %v125
  %v154 = vadd.f32 %v37, %v130
  %v155 = vadd.f32 %v38, %v133
  %v156 = vadd.f32 %v39, %v138
  %v157 = vadd.f32 %v40, %v141
  %v158 = vadd.f32 %v41, %v146
  %v159 = vadd.f32 %v42, %v149
  %160 = vst [vmem:[#allocation2] sm:$0xff] %v152
  %161 = vst [vmem:[#allocation2 + $0x8] sm:$0xff] %v153
  %162 = vst [vmem:[#allocation2 + $0x10] sm:$0xff] %v154
  %163 = vst [vmem:[#allocation2 + $0x18] sm:$0xff] %v155
  %164 = vst [vmem:[#allocation2 + $0x20] sm:$0xff] %v156
  %165 = vst [vmem:[#allocation2 + $0x28] sm:$0xff] %v157
  %166 = vst [vmem:[#allocation2 + $0x30] sm:$0xff] %v158
  %167 = vst [vmem:[#allocation2 + $0x38] sm:$0xff] %v159
  // Predicated region
  $region18: #{transformer_forward.14} parent=0 // pred_check
    %p168 = pneg %p15
  $region19: #{transformer_forward.14} parent=0 // pred_check_branch
    %170 = sbr.rel (%p168) target = $region21
  $region20: #{transformer_forward.14} parent=0 // pred_region
    %v171 = vld [vmem:[#allocation2] sm:$0xff]
    %v172 = vld [vmem:[#allocation2 + $0x8] sm:$0xff]
    %v173 = vld [vmem:[#allocation2 + $0x10] sm:$0xff]
    %v174 = vld [vmem:[#allocation2 + $0x18] sm:$0xff]
    %v175 = vld [vmem:[#allocation2 + $0x20] sm:$0xff]
    %v176 = vld [vmem:[#allocation2 + $0x28] sm:$0xff]
    %v177 = vld [vmem:[#allocation2 + $0x30] sm:$0xff]
    %v178 = vld [vmem:[#allocation2 + $0x38] sm:$0xff]
    %v179 = vld [vmem:[%s2] sm:$0x1]
    %v181 = vlaneseq
    %v182 = vshrl.u32 %v181, 7
    %v183 = vsub.s32 0, %v182
    %v184 = vrot.slane %v179, %v183
    %v186 = vadd.f32 %v171, %v184
    %v187 = vadd.f32 %v172, %v184
    %v188 = vadd.f32 %v173, %v184
    %v189 = vadd.f32 %v174, %v184
    %v190 = vadd.f32 %v175, %v184
    %v191 = vadd.f32 %v176, %v184
    %v192 = vadd.f32 %v177, %v184
    %v193 = vadd.f32 %v178, %v184
    %v194 = vmul.f32 %v186, 0.5
    %v195 = vmul.f32 %v187, 0.5
    %v196 = vmul.f32 %v188, 0.5
    %v197 = vmul.f32 %v189, 0.5
    %v198 = vmul.f32 %v190, 0.5
    %v199 = vmul.f32 %v191, 0.5
    %v200 = vmul.f32 %v192, 0.5
    %v201 = vmul.f32 %v193, 0.5
    %v202 = vmul.f32 %v186, 0.044715
    %v203 = vmul.f32 %v187, 0.044715
    %v204 = vmul.f32 %v188, 0.044715
    %v205 = vmul.f32 %v189, 0.044715
    %v206 = vmul.f32 %v190, 0.044715
    %v207 = vmul.f32 %v191, 0.044715
    %v208 = vmul.f32 %v192, 0.044715
    %v209 = vmul.f32 %v193, 0.044715
    %v210 = vmul.f32 %v202, %v186
    %v211 = vmul.f32 %v203, %v187
    %v212 = vmul.f32 %v204, %v188
    %v213 = vmul.f32 %v205, %v189
    %v214 = vmul.f32 %v206, %v190
    %v215 = vmul.f32 %v207, %v191
    %v216 = vmul.f32 %v208, %v192
    %v217 = vmul.f32 %v209, %v193
    %v218 = vmul.f32 %v210, %v186
    %v219 = vmul.f32 %v211, %v187
    %v220 = vmul.f32 %v212, %v188
    %v221 = vmul.f32 %v213, %v189
    %v222 = vmul.f32 %v214, %v190
    %v223 = vmul.f32 %v215, %v191
    %v224 = vmul.f32 %v216, %v192
    %v225 = vmul.f32 %v217, %v193
    %v226 = vadd.f32 %v186, %v218
    %v227 = vadd.f32 %v187, %v219
    %v228 = vadd.f32 %v188, %v220
    %v229 = vadd.f32 %v189, %v221
    %v230 = vadd.f32 %v190, %v222
    %v231 = vadd.f32 %v191, %v223
    %v232 = vadd.f32 %v192, %v224
    %v233 = vadd.f32 %v193, %v225
    %v234 = vmul.f32 %v226, 0.7978846
    %v235 = vmul.f32 %v227, 0.7978846
    %v236 = vmul.f32 %v228, 0.7978846
    %v237 = vmul.f32 %v229, 0.7978846
    %v238 = vmul.f32 %v230, 0.7978846
    %v239 = vmul.f32 %v231, 0.7978846
    %v240 = vmul.f32 %v232, 0.7978846
    %v241 = vmul.f32 %v233, 0.7978846
    %v242 = vtanh.pop %v234
    %v243 = vtanh.pop %v235
    %v244 = vtanh.pop %v236
    %v245 = vtanh.pop %v237
    %v246 = vtanh.pop %v238
    %v247 = vtanh.pop %v239
    %v248 = vtanh.pop %v240
    %v249 = vtanh.pop %v241
    %v250 = vadd.f32 %v242, 1.0
    %v251 = vadd.f32 %v243, 1.0
    %v252 = vadd.f32 %v244, 1.0
    %v253 = vadd.f32 %v245, 1.0
    %v254 = vadd.f32 %v246, 1.0
    %v255 = vadd.f32 %v247, 1.0
    %v256 = vadd.f32 %v248, 1.0
    %v257 = vadd.f32 %v249, 1.0
    %v258 = vmul.f32 %v194, %v250
    %v259 = vmul.f32 %v195, %v251
    %v260 = vmul.f32 %v196, %v252
    %v261 = vmul.f32 %v197, %v253
    %v262 = vmul.f32 %v198, %v254
    %v263 = vmul.f32 %v199, %v255
    %v264 = vmul.f32 %v200, %v256
    %v265 = vmul.f32 %v201, %v257
    %v266 = vpack.c.bf16 %v259, %v258
    %v267 = vpack.c.bf16 %v261, %v260
    %v268 = vpack.c.bf16 %v263, %v262
    %v269 = vpack.c.bf16 %v265, %v264
    %v274 = vunpack.c.l.b16 %v266
    %v275 = vunpack.c.h.b16 %v266
    %v276 = vunpack.c.l.b16 %v267
    %v277 = vunpack.c.h.b16 %v267
    %v278 = vunpack.c.l.b16 %v268
    %v279 = vunpack.c.h.b16 %v268
    %v280 = vunpack.c.l.b16 %v269
    %v281 = vunpack.c.h.b16 %v269
    %v282 = vpack.c.b16 %v274, %v274
    %v283 = vpack.c.b16 %v275, %v275
    %v284 = vpack.c.b16 %v276, %v276
    %v285 = vpack.c.b16 %v277, %v277
    %v286 = vpack.c.b16 %v278, %v278
    %v287 = vpack.c.b16 %v279, %v279
    %v288 = vpack.c.b16 %v280, %v280
    %v289 = vpack.c.b16 %v281, %v281
    %298 = vst [vmem:[%s3] sm:$0xf] %v282
    %299 = vst [vmem:[%s3 + $0x4] sm:$0xf] %v283
    %300 = vst [vmem:[%s3 + $0x8] sm:$0xf] %v284
    %301 = vst [vmem:[%s3 + $0xc] sm:$0xf] %v285
    %302 = vst [vmem:[%s3 + $0x10] sm:$0xf] %v286
    %303 = vst [vmem:[%s3 + $0x14] sm:$0xf] %v287
    %304 = vst [vmem:[%s3 + $0x18] sm:$0xf] %v288
    %305 = vst [vmem:[%s3 + $0x1c] sm:$0xf] %v289
  $region21: #{transformer_forward.14} parent=0 // pred_fallthru
    _
  // Predicated region
  $region22: #{transformer_forward.14} parent=0 // pred_check
    _
  $region23: #{transformer_forward.14} parent=0 // pred_check_branch
    %307 = sbr.rel (0) target = $region25
  $region24: #{transformer_forward.14} parent=0 // pred_region
    _
  $region25: #{transformer_forward.14} parent=0 // pred_fallthru
    _
  // Predicated region
  $region26: #{transformer_forward.14} parent=0 // pred_check
    _
  $region27: #{transformer_forward.14} parent=0 // pred_check_branch
    %309 = sbr.rel (0) target = $region29
  $region28: #{transformer_forward.14} parent=0 // pred_region
    _
  $region29: #{transformer_forward.14} parent=0 // pred_fallthru
    _

// kernel: transformer_forward.16
$region0: #{transformer_forward.16}
  #allocation0 [shape = 'u32[]', space=smem, size = 0x4, offset = 0x4, fixed_abs, tag = 'smem constant byte address 0x4 - core index']
  #allocation1 [shape = 'u32[144,128]{1,0:T(1,128)}', space=vmem, size = 0x12000, scoped, tag = 'internal scratch']
  #allocation2 [shape = 'f32[16,256]{1,0:T(8,128)}', space=vmem, size = 0x4000, scoped, tag = 'scratch operand']
  %s0 = inlined_call_operand.vmem [shape: bf16[16,768], index: 0, kind: input, shape index: {}]
  %s1 = inlined_call_operand.vmem [shape: bf16[768,256], index: 1, kind: input, shape index: {}]
  %s2 = inlined_call_operand.vmem [shape: f32[1,256], index: 2, kind: input, shape index: {}]
  %s3 = inlined_call_operand.vmem [shape: bf16[16,256], index: 3, kind: output, shape index: {}]
  %s4 = sld [smem:[#allocation0]]
  $region79: #{transformer_forward.16} parent=0
    _
  %s6 = ssub.s32 1, %s4
  %s7 = scalar_select 0, %s6, %s4
  $region1: #{transformer_forward.16} parent=0
    #allocation3 [shape = 'u8[24576]{0}', space=vmem, size = 0x6000, scoped, tag = 'input window, operand 0']
    loop: start=0, step=1, limit=4
    $region2: #{transformer_forward.16} parent=1 // loop_pre_header
      _
    $region3: #{transformer_forward.16} parent=1 // loop_header
      %s9 = sphi 0, %s13
      %p10 = scmp.ge.s32.totalorder %s9, 4
      %s16 = sphi 0, %s35
      %s17 = sphi 0, %s31
      %s18 = sphi 0, %s27
      %s19 = sphi 0, %s16
      %s20 = sphi 0, %s17
      %s21 = sphi 0, %s18
      %s22 = sphi 0, %s19
      %s23 = sphi 0, %s20
      %s24 = sphi 0, %s21
      %s40 = sphi 0, %s42
      %s43 = sphi 0, %s40
      %s44 = sphi 0, %s43
      %s60 = sphi 0, %s44
      %s68 = sphi 0, %s70
      %s71 = sphi 0, %s68
      %s72 = sphi 0, %s71
      %s88 = sphi 0, %s72
      %s94 = sphi 0, %s96
      %s97 = sphi 0, %s94
      %s98 = sphi 0, %s97
      %s114 = sphi 0, %s98
      %s122 = sphi 0, %s124
      %s125 = sphi 0, %s122
      %s126 = sphi 0, %s125
      %s142 = sphi 0, %s126
    $region4: #{transformer_forward.16} parent=1 // loop_header_branch
      %12 = sbr.rel (%p10) target = $region8
    $region5: #{transformer_forward.16} parent=1 // loop_body
      %s14 = ssub.s32 %s9, 1
      %s15 = ssub.s32 %s9, 2
      %s25 = sadd.s32 1, %s18
      %p26 = scmp.ge.s32.totalorder %s25, 2
      %s27 = scalar_select %p26, 0, %s25
      %s28 = sadd.s32 1, %s17
      %s29 = scalar_select %p26, %s28, %s17
      %p30 = scmp.ge.s32.totalorder %s29, 1
      %s31 = scalar_select %p30, 0, %s29
      %s32 = sadd.s32 1, %s16
      %s33 = scalar_select %p30, %s32, %s16
      %p34 = scmp.ge.s32.totalorder %s33, 1
      %s35 = scalar_select %p34, 0, %s33
      %s36 = ssub.s32 %s16, %s35
      %s37 = ssub.s32 %s18, %s27
      %s38 = sor.u32 %s36, %s37
      %p39 = scmp.eq.s32.totalorder %s38, 0
      %s41 = sadd.s32 %s40, 1
      %s42 = scalar_select %p39, %s40, %s41
      %p45 = pneg %p39
      %p46 = scmp.eq.s32.totalorder %s9, 1
      %p47 = por %p45, %p46
      %p48 = scmp.ne.s32.totalorder %s40, %s43
      %p49 = scmp.eq.s32.totalorder %s9, 0
      %p50 = por %p48, %p49
      %p51 = scmp.ne.s32.totalorder %s40, %s43
      %p52 = scmp.eq.s32.totalorder %s14, 1
      %p53 = por %p51, %p52
      %p54 = scmp.ne.s32.totalorder %s43, %s44
      %p55 = scmp.eq.s32.totalorder %s14, 0
      %p56 = por %p54, %p55
      %p57 = scmp.ne.s32.totalorder %s43, %s44
      %p58 = scmp.eq.s32.totalorder %s15, 1
      %p59 = por %p57, %p58
      %p61 = scmp.ne.s32.totalorder %s44, %s60
      %p62 = scmp.eq.s32.totalorder %s15, 0
      %p63 = por %p61, %p62
      %s64 = ssub.s32 %s18, %s27
      %s65 = ssub.s32 %s17, %s31
      %s66 = sor.u32 %s64, %s65
      %p67 = scmp.eq.s32.totalorder %s66, 0
      %s69 = sadd.s32 %s68, 1
      %s70 = scalar_select %p67, %s68, %s69
      %p73 = pneg %p67
      %p74 = scmp.eq.s32.totalorder %s9, 1
      %p75 = por %p73, %p74
      %p76 = scmp.ne.s32.totalorder %s68, %s71
      %p77 = scmp.eq.s32.totalorder %s9, 0
      %p78 = por %p76, %p77
      %p79 = scmp.ne.s32.totalorder %s68, %s71
      %p80 = scmp.eq.s32.totalorder %s14, 1
      %p81 = por %p79, %p80
      %p82 = scmp.ne.s32.totalorder %s71, %s72
      %p83 = scmp.eq.s32.totalorder %s14, 0
      %p84 = por %p82, %p83
      %p85 = scmp.ne.s32.totalorder %s71, %s72
      %p86 = scmp.eq.s32.totalorder %s15, 1
      %p87 = por %p85, %p86
      %p89 = scmp.ne.s32.totalorder %s72, %s88
      %p90 = scmp.eq.s32.totalorder %s15, 0
      %p91 = por %p89, %p90
      %s92 = ssub.s32 %s17, %s31
      %p93 = scmp.eq.s32.totalorder %s92, 0
      %s95 = sadd.s32 %s94, 1
      %s96 = scalar_select %p93, %s94, %s95
      %p99 = pneg %p93
      %p100 = scmp.eq.s32.totalorder %s9, 1
      %p101 = por %p99, %p100
      %p102 = scmp.ne.s32.totalorder %s94, %s97
      %p103 = scmp.eq.s32.totalorder %s9, 0
      %p104 = por %p102, %p103
      %p105 = scmp.ne.s32.totalorder %s94, %s97
      %p106 = scmp.eq.s32.totalorder %s14, 1
      %p107 = por %p105, %p106
      %p108 = scmp.ne.s32.totalorder %s97, %s98
      %p109 = scmp.eq.s32.totalorder %s14, 0
      %p110 = por %p108, %p109
      %p111 = scmp.ne.s32.totalorder %s97, %s98
      %p112 = scmp.eq.s32.totalorder %s15, 1
      %p113 = por %p111, %p112
      %p115 = scmp.ne.s32.totalorder %s98, %s114
      %p116 = scmp.eq.s32.totalorder %s15, 0
      %p117 = por %p115, %p116
      %s118 = ssub.s32 %s16, %s35
      %s119 = ssub.s32 %s17, %s31
      %s120 = sor.u32 %s118, %s119
      %p121 = scmp.eq.s32.totalorder %s120, 0
      %s123 = sadd.s32 %s122, 1
      %s124 = scalar_select %p121, %s122, %s123
      %p127 = pneg %p121
      %p128 = scmp.eq.s32.totalorder %s9, 1
      %p129 = por %p127, %p128
      %p130 = scmp.ne.s32.totalorder %s122, %s125
      %p131 = scmp.eq.s32.totalorder %s9, 0
      %p132 = por %p130, %p131
      %p133 = scmp.ne.s32.totalorder %s122, %s125
      %p134 = scmp.eq.s32.totalorder %s14, 1
      %p135 = por %p133, %p134
      %p136 = scmp.ne.s32.totalorder %s125, %s126
      %p137 = scmp.eq.s32.totalorder %s14, 0
      %p138 = por %p136, %p137
      %p139 = scmp.ne.s32.totalorder %s125, %s126
      %p140 = scmp.eq.s32.totalorder %s15, 1
      %p141 = por %p139, %p140
      %p143 = scmp.ne.s32.totalorder %s126, %s142
      %p144 = scmp.eq.s32.totalorder %s15, 0
      %p145 = por %p143, %p144
      %p146 = scmp.le.s32.totalorder 1, %s9
      %p147 = scmp.lt.s32.totalorder %s9, 3
      %p148 = pnand %p146, %p147
      %p149 = pneg %p148
      // Predicated region
      $region9: #{transformer_forward.16} parent=5 // pred_check
        _
      $region10: #{transformer_forward.16} parent=5 // pred_check_branch
        %151 = sbr.rel (%p148) target = $region12
      $region11: #{transformer_forward.16} parent=5 // pred_region
        %s152 = ssub.s32 %s9, 1
        // Predicated region
        $region13: #{transformer_forward.16} parent=11 // pred_check
          %p153 = pneg %p110
        $region14: #{transformer_forward.16} parent=11 // pred_check_branch
          %155 = sbr.rel (%p153) target = $region16
        $region15: #{transformer_forward.16} parent=11 // pred_region
          %s156 = smul.u32 2, %s20
          %p157 = scmp.lt.s32.totalorder %s156, 1
          %s158 = scalar_select %p157, %s156, 1
          %s159 = scalar_lea.vmem %s2, %s158
          %s160 = smul.u32 2, %s20
        $region16: #{transformer_forward.16} parent=11 // pred_fallthru
          _
      $region12: #{transformer_forward.16} parent=5 // pred_fallthru
        _
      %p161 = scmp.lt.s32.totalorder %s9, 2
      // Predicated region
      $region17: #{transformer_forward.16} parent=5 // pred_check
        %p162 = pneg %p161
      $region18: #{transformer_forward.16} parent=5 // pred_check_branch
        %164 = sbr.rel (%p162) target = $region20
      $region19: #{transformer_forward.16} parent=5 // pred_region
        // Predicated region
        $region21: #{transformer_forward.16} parent=19 // pred_check
          %p165 = pneg %p50
        $region22: #{transformer_forward.16} parent=19 // pred_check_branch
          %167 = sbr.rel (%p165) target = $region24
        $region23: #{transformer_forward.16} parent=19 // pred_region
          %s168 = sand.u32 %s40, 1
          %s169 = sand.u32 %s40, 1
          %s170 = smul.addr %s169, 24
          %s171 = scalar_lea.vmem [#allocation3], %s170
          %s172 = smul.u32 2, %s16
          %s173 = smul.u32 3, %s18
          %s174 = smul.addr %s172, 6
          %s175 = sadd.s32 %s173, %s174
          %s176 = smul.addr %s175, 4
          %s177 = scalar_lea.vmem %s0, %s176
          // Predicated region
          $region25: #{transformer_forward.16} parent=23 // pred_check
            _
          $region26: #{transformer_forward.16} parent=23 // pred_check_branch
            %179 = sbr.rel (0) target = $region28
          $region27: #{transformer_forward.16} parent=23 // pred_region
            // Predicated region
            $region29: #{transformer_forward.16} parent=27 // pred_check
              _
            $region30: #{transformer_forward.16} parent=27 // pred_check_branch
              %181 = sbr.rel (0) target = $region32
            $region31: #{transformer_forward.16} parent=27 // pred_region
              %s182 = scalar_lea.vmem %s177, 8
              %s183 = scalar_lea.vmem %s171, 8 [#allocation3]
              loop: start=0, step=1, limit=1
              $region33: #{transformer_forward.16} parent=31 // loop_pre_header
                _
              $region34: #{transformer_forward.16} parent=31 // loop_header
                %s185 = sphi 0, %s189
                %p186 = scmp.ge.s32.totalorder %s185, 1
                %s190 = sphi %s177, %s177
                %s191 = sphi %s171, %s171
              $region35: #{transformer_forward.16} parent=31 // loop_header_branch
                %188 = sbr.rel (%p186) target = $region39
              $region36: #{transformer_forward.16} parent=31 // loop_body
                %v192 = vld [vmem:[%s190] sm:$0xff]
                %193 = vst [vmem:[%s191] sm:$0xff] %v192
                %v194 = vld [vmem:[%s190 + $0x18] sm:$0xff]
                %195 = vst [vmem:[%s191 + $0xc] sm:$0xff] %v194
              $region37: #{transformer_forward.16} parent=31 // loop_footer
                %s189 = sadd.s32 1, %s185
              $region38: #{transformer_forward.16} parent=31 // loop_footer_branch
                %184 = sbr.rel target = $region34
              $region39: #{transformer_forward.16} parent=31 // loop_exit
                _
              loop: start=0, step=1, limit=1
              $region40: #{transformer_forward.16} parent=31 // loop_pre_header
                _
              $region41: #{transformer_forward.16} parent=31 // loop_header
                %s198 = sphi 0, %s202
                %p199 = scmp.ge.s32.totalorder %s198, 1
                %s203 = sphi %s182, %s182
                %s204 = sphi %s183, %s183
              $region42: #{transformer_forward.16} parent=31 // loop_header_branch
                %201 = sbr.rel (%p199) target = $region46
              $region43: #{transformer_forward.16} parent=31 // loop_body
                %v205 = vld [vmem:[%s203] sm:$0xf]
                %206 = vst [vmem:[%s204] sm:$0xf] %v205
                %v207 = vld [vmem:[%s203 + $0x18] sm:$0xf]
                %208 = vst [vmem:[%s204 + $0xc] sm:$0xf] %v207
              $region44: #{transformer_forward.16} parent=31 // loop_footer
                %s202 = sadd.s32 1, %s198
              $region45: #{transformer_forward.16} parent=31 // loop_footer_branch
                %197 = sbr.rel target = $region41
              $region46: #{transformer_forward.16} parent=31 // loop_exit
                _
            $region32: #{transformer_forward.16} parent=27 // pred_fallthru
              _
          $region28: #{transformer_forward.16} parent=23 // pred_fallthru
            _
          %209 = vnop
        $region24: #{transformer_forward.16} parent=19 // pred_fallthru
          _
        // Predicated region
        $region47: #{transformer_forward.16} parent=19 // pred_check
          %p210 = pneg %p78
        $region48: #{transformer_forward.16} parent=19 // pred_check_branch
          %212 = sbr.rel (%p210) target = $region50
        $region49: #{transformer_forward.16} parent=19 // pred_region
          %s213 = smul.u32 48, %s18
          %s214 = smul.u32 2, %s17
          %p215 = scmp.lt.s32.totalorder %s213, 95
          %s216 = scalar_select %p215, %s213, 95
          %p217 = scmp.lt.s32.totalorder %s214, 1
          %s218 = scalar_select %p217, %s214, 1
          %s219 = smul.addr %s216, 2
          %s220 = sadd.s32 %s218, %s219
          %s221 = smul.addr %s220, 4
          %s222 = scalar_lea.vmem %s1, %s221
          %s223 = smul.u32 48, %s18
          %s224 = smul.u32 2, %s17
        $region50: #{transformer_forward.16} parent=19 // pred_fallthru
          _
      $region20: #{transformer_forward.16} parent=5 // pred_fallthru
        _
      %p225 = scmp.le.s32.totalorder 1, %s9
      %p226 = scmp.lt.s32.totalorder %s9, 3
      %p227 = pnand %p225, %p226
      %p228 = pneg %p227
      // Predicated region
      $region51: #{transformer_forward.16} parent=5 // pred_check
        _
      $region52: #{transformer_forward.16} parent=5 // pred_check_branch
        %230 = sbr.rel (%p227) target = $region54
      $region53: #{transformer_forward.16} parent=5 // pred_region
        %s231 = ssub.s32 %s9, 1
        %s232 = sand.u32 %s43, 1
        %s233 = sand.u32 %s43, 1
        %s234 = smul.addr %s233, 24
        %s235 = scalar_lea.vmem [#allocation3], %s234
        // Predicated region
        $region55: #{transformer_forward.16} parent=53 // pred_check
          %p236 = pneg %p56
        $region56: #{transformer_forward.16} parent=53 // pred_check_branch
          %238 = sbr.rel (%p236) target = $region58
        $region57: #{transformer_forward.16} parent=53 // pred_region
          _
        $region58: #{transformer_forward.16} parent=53 // pred_fallthru
          _
        %s239 = sand.u32 %s43, 1
        %s240 = sand.u32 %s43, 1
        %s241 = smul.addr %s240, 24
        %s242 = scalar_lea.vmem [#allocation3], %s241
        %p243 = pneg %p56
        %p244 = pneg %p53
        %s245 = smul.u32 48, %s21
        %s246 = smul.u32 2, %s20
        %p247 = scmp.lt.s32.totalorder %s245, 95
        %s248 = scalar_select %p247, %s245, 95
        %p249 = scmp.lt.s32.totalorder %s246, 1
        %s250 = scalar_select %p249, %s246, 1
        %s251 = smul.addr %s248, 2
        %s252 = sadd.s32 %s250, %s251
        %s253 = smul.addr %s252, 4
        %s254 = scalar_lea.vmem %s1, %s253
        %p255 = pneg %p84
        %p256 = pneg %p81
        %s257 = smul.u32 2, %s20
        %p258 = scmp.lt.s32.totalorder %s257, 1
        %s259 = scalar_select %p258, %s257, 1
        %s260 = scalar_lea.vmem %s2, %s259
        %p261 = pneg %p110
        %p262 = pneg %p107
        %p263 = pneg %p138
        %p264 = pneg %p135
        %s265 = smul.u32 2, %s19
        %s266 = smul.u32 2, %s20
        %p267 = scmp.lt.s32.totalorder %s265, 1
        %s268 = scalar_select %p267, %s265, 1
        %p269 = scmp.lt.s32.totalorder %s266, 1
        %s270 = scalar_select %p269, %s266, 1
        %s271 = smul.addr %s268, 2
        %s272 = sadd.s32 %s270, %s271
        %s273 = smul.addr %s272, 4
        %s274 = scalar_lea.vmem %s3, %s273
        %s275 = smul.u32 2, %s19
        %s276 = smul.u32 3, %s21
        %s277 = smul.u32 48, %s21
        %s278 = smul.u32 2, %s20
        %p279 = scmp.lt.s32.totalorder %s277, 95
        %s280 = scalar_select %p279, %s277, 95
        %p281 = scmp.lt.s32.totalorder %s278, 1
        %s282 = scalar_select %p281, %s278, 1
        %s283 = smul.addr %s280, 2
        %s284 = sadd.s32 %s282, %s283
        %s285 = smul.addr %s284, 4
        %s286 = scalar_lea.vmem %s1, %s285
        %s287 = smul.u32 48, %s21
        %s288 = smul.u32 2, %s20
        %s289 = smul.u32 2, %s20
        %p290 = scmp.lt.s32.totalorder %s289, 1
        %s291 = scalar_select %p290, %s289, 1
        %s292 = scalar_lea.vmem %s2, %s291
        %s293 = smul.u32 2, %s20
        %s294 = smul.u32 2, %s19
        %s295 = smul.u32 2, %s20
        %p296 = scmp.lt.s32.totalorder %s294, 1
        %s297 = scalar_select %p296, %s294, 1
        %p298 = scmp.lt.s32.totalorder %s295, 1
        %s299 = scalar_select %p298, %s295, 1
        %s300 = smul.addr %s297, 2
        %s301 = sadd.s32 %s299, %s300
        %s302 = smul.addr %s301, 4
        %s303 = scalar_lea.vmem %s3, %s302
        %s304 = smul.u32 2, %s19
        %s305 = smul.u32 2, %s20
        %p307 = scmp.eq.s32.totalorder %s21, 0
        // Predicated region
        $region59: #{transformer_forward.16} parent=53 // pred_check
          %p308 = pneg %p307
        $region60: #{transformer_forward.16} parent=53 // pred_check_branch
          %310 = sbr.rel (%p308) target = $region62
        $region61: #{transformer_forward.16} parent=53 // pred_region
          %311 = vst [vmem:[#allocation2] sm:$0xff] 0.0
          %312 = vst [vmem:[#allocation2 + $0x8] sm:$0xff] 0.0
          %313 = vst [vmem:[#allocation2 + $0x10] sm:$0xff] 0.0
          %314 = vst [vmem:[#allocation2 + $0x18] sm:$0xff] 0.0
        $region62: #{transformer_forward.16} parent=53 // pred_fallthru
          _
        %v315 = vld [vmem:[%s235] sm:$0xff]
        %v316 = vld [vmem:[%s235 + $0x8] sm:$0xf]
        %v317 = vld [vmem:[%s235 + $0xc] sm:$0xff]
        %v318 = vld [vmem:[%s235 + $0x14] sm:$0xf]
        %v319 = vld [vmem:[#allocation2] sm:$0xff]
        %v320 = vld [vmem:[#allocation2 + $0x8] sm:$0xff]
        %v321 = vld [vmem:[#allocation2 + $0x10] sm:$0xff]
        %v322 = vld [vmem:[#allocation2 + $0x18] sm:$0xff]
        %v323 = vld [vmem:[%s286] sm:$0xff]
        %v324 = vld [vmem:[%s286 + $0x8] sm:$0xff]
        %v325 = vld [vmem:[%s286 + $0x10] sm:$0xff]
        %v326 = vld [vmem:[%s286 + $0x18] sm:$0xff]
        %v327 = vld [vmem:[%s286 + $0x20] sm:$0xff]
        %v328 = vld [vmem:[%s286 + $0x28] sm:$0xff]
        %v329 = vld [vmem:[%s286 + $0x30] sm:$0xff]
        %v330 = vld [vmem:[%s286 + $0x38] sm:$0xff]
        %v331 = vld [vmem:[%s286 + $0x40] sm:$0xff]
        %v332 = vld [vmem:[%s286 + $0x48] sm:$0xff]
        %v333 = vld [vmem:[%s286 + $0x50] sm:$0xff]
        %v334 = vld [vmem:[%s286 + $0x58] sm:$0xff]
        %v335 = vld [vmem:[%s286 + $0x60] sm:$0xff]
        %v336 = vld [vmem:[%s286 + $0x68] sm:$0xff]
        %v337 = vld [vmem:[%s286 + $0x70] sm:$0xff]
        %v338 = vld [vmem:[%s286 + $0x78] sm:$0xff]
        %v339 = vld [vmem:[%s286 + $0x80] sm:$0xff]
        %v340 = vld [vmem:[%s286 + $0x88] sm:$0xff]
        %v341 = vld [vmem:[%s286 + $0x90] sm:$0xff]
        %v342 = vld [vmem:[%s286 + $0x98] sm:$0xff]
        %v343 = vld [vmem:[%s286 + $0xa0] sm:$0xff]
        %v344 = vld [vmem:[%s286 + $0xa8] sm:$0xff]
        %v345 = vld [vmem:[%s286 + $0xb0] sm:$0xff]
        %v346 = vld [vmem:[%s286 + $0xb8] sm:$0xff]
        %v347 = vld [vmem:[%s286 + $0xc0] sm:$0xff]
        %v348 = vld [vmem:[%s286 + $0xc8] sm:$0xff]
        %v349 = vld [vmem:[%s286 + $0xd0] sm:$0xff]
        %v350 = vld [vmem:[%s286 + $0xd8] sm:$0xff]
        %v351 = vld [vmem:[%s286 + $0xe0] sm:$0xff]
        %v352 = vld [vmem:[%s286 + $0xe8] sm:$0xff]
        %v353 = vld [vmem:[%s286 + $0xf0] sm:$0xff]
        %v354 = vld [vmem:[%s286 + $0xf8] sm:$0xff]
        %v355 = vld [vmem:[%s286 + $0x100] sm:$0xff]
        %v356 = vld [vmem:[%s286 + $0x108] sm:$0xff]
        %v357 = vld [vmem:[%s286 + $0x110] sm:$0xff]
        %v358 = vld [vmem:[%s286 + $0x118] sm:$0xff]
        %v359 = vld [vmem:[%s286 + $0x120] sm:$0xff]
        %v360 = vld [vmem:[%s286 + $0x128] sm:$0xff]
        %v361 = vld [vmem:[%s286 + $0x130] sm:$0xff]
        %v362 = vld [vmem:[%s286 + $0x138] sm:$0xff]
        %v363 = vld [vmem:[%s286 + $0x140] sm:$0xff]
        %v364 = vld [vmem:[%s286 + $0x148] sm:$0xff]
        %v365 = vld [vmem:[%s286 + $0x150] sm:$0xff]
        %v366 = vld [vmem:[%s286 + $0x158] sm:$0xff]
        %v367 = vld [vmem:[%s286 + $0x160] sm:$0xff]
        %v368 = vld [vmem:[%s286 + $0x168] sm:$0xff]
        %v369 = vld [vmem:[%s286 + $0x170] sm:$0xff]
        %v370 = vld [vmem:[%s286 + $0x178] sm:$0xff]
        %v375 = vunpack.c.l.b16 %v315
        %v376 = vunpack.c.h.b16 %v315
        %v377 = vunpack.c.l.b16 %v316
        %v378 = vunpack.c.l.b16 %v317
        %v379 = vunpack.c.h.b16 %v317
        %v380 = vunpack.c.l.b16 %v318
        %v381 = vpack.c.b16 %v378, %v375
        %v382 = vpack.c.b16 %v379, %v376
        %v383 = vpack.c.b16 %v380, %v377
        %v435 = vunpack.c.l.b16 %v323
        %v436 = vunpack.c.h.b16 %v323
        %v437 = vunpack.c.l.b16 %v324
        %v438 = vunpack.c.h.b16 %v324
        %v439 = vunpack.c.l.b16 %v325
        %v440 = vunpack.c.h.b16 %v325
        %v441 = vunpack.c.l.b16 %v326
        %v442 = vunpack.c.h.b16 %v326
        %v443 = vunpack.c.l.b16 %v327
        %v444 = vunpack.c.h.b16 %v327
        %v445 = vunpack.c.l.b16 %v328
        %v446 = vunpack.c.h.b16 %v328
        %v447 = vunpack.c.l.b16 %v329
        %v448 = vunpack.c.h.b16 %v329
        %v449 = vunpack.c.l.b16 %v330
        %v450 = vunpack.c.h.b16 %v330
        %v451 = vunpack.c.l.b16 %v331
        %v452 = vunpack.c.h.b16 %v331
        %v453 = vunpack.c.l.b16 %v332
        %v454 = vunpack.c.h.b16 %v332
        %v455 = vunpack.c.l.b16 %v333
        %v456 = vunpack.c.h.b16 %v333
        %v457 = vunpack.c.l.b16 %v334
        %v458 = vunpack.c.h.b16 %v334
        %v459 = vunpack.c.l.b16 %v335
        %v460 = vunpack.c.h.b16 %v335
        %v461 = vunpack.c.l.b16 %v336
        %v462 = vunpack.c.h.b16 %v336
        %v463 = vunpack.c.l.b16 %v337
        %v464 = vunpack.c.h.b16 %v337
        %v465 = vunpack.c.l.b16 %v338
        %v466 = vunpack.c.h.b16 %v338
        %v467 = vunpack.c.l.b16 %v339
        %v468 = vunpack.c.h.b16 %v339
        %v469 = vunpack.c.l.b16 %v340
        %v470 = vunpack.c.h.b16 %v340
        %v471 = vunpack.c.l.b16 %v341
        %v472 = vunpack.c.h.b16 %v341
        %v473 = vunpack.c.l.b16 %v342
        %v474 = vunpack.c.h.b16 %v342
        %v475 = vunpack.c.l.b16 %v343
        %v476 = vunpack.c.h.b16 %v343
        %v477 = vunpack.c.l.b16 %v344
        %v478 = vunpack.c.h.b16 %v344
        %v479 = vunpack.c.l.b16 %v345
        %v480 = vunpack.c.h.b16 %v345
        %v481 = vunpack.c.l.b16 %v346
        %v482 = vunpack.c.h.b16 %v346
        %v483 = vunpack.c.l.b16 %v347
        %v484 = vunpack.c.h.b16 %v347
        %v485 = vunpack.c.l.b16 %v348
        %v486 = vunpack.c.h.b16 %v348
        %v487 = vunpack.c.l.b16 %v349
        %v488 = vunpack.c.h.b16 %v349
        %v489 = vunpack.c.l.b16 %v350
        %v490 = vunpack.c.h.b16 %v350
        %v491 = vunpack.c.l.b16 %v351
        %v492 = vunpack.c.h.b16 %v351
        %v493 = vunpack.c.l.b16 %v352
        %v494 = vunpack.c.h.b16 %v352
        %v495 = vunpack.c.l.b16 %v353
        %v496 = vunpack.c.h.b16 %v353
        %v497 = vunpack.c.l.b16 %v354
        %v498 = vunpack.c.h.b16 %v354
        %v499 = vunpack.c.l.b16 %v355
        %v500 = vunpack.c.h.b16 %v355
        %v501 = vunpack.c.l.b16 %v356
        %v502 = vunpack.c.h.b16 %v356
        %v503 = vunpack.c.l.b16 %v357
        %v504 = vunpack.c.h.b16 %v357
        %v505 = vunpack.c.l.b16 %v358
        %v506 = vunpack.c.h.b16 %v358
        %v507 = vunpack.c.l.b16 %v359
        %v508 = vunpack.c.h.b16 %v359
        %v509 = vunpack.c.l.b16 %v360
        %v510 = vunpack.c.h.b16 %v360
        %v511 = vunpack.c.l.b16 %v361
        %v512 = vunpack.c.h.b16 %v361
        %v513 = vunpack.c.l.b16 %v362
        %v514 = vunpack.c.h.b16 %v362
        %v515 = vunpack.c.l.b16 %v363
        %v516 = vunpack.c.h.b16 %v363
        %v517 = vunpack.c.l.b16 %v364
        %v518 = vunpack.c.h.b16 %v364
        %v519 = vunpack.c.l.b16 %v365
        %v520 = vunpack.c.h.b16 %v365
        %v521 = vunpack.c.l.b16 %v366
        %v522 = vunpack.c.h.b16 %v366
        %v523 = vunpack.c.l.b16 %v367
        %v524 = vunpack.c.h.b16 %v367
        %v525 = vunpack.c.l.b16 %v368
        %v526 = vunpack.c.h.b16 %v368
        %v527 = vunpack.c.l.b16 %v369
        %v528 = vunpack.c.h.b16 %v369
        %v529 = vunpack.c.l.b16 %v370
        %v530 = vunpack.c.h.b16 %v370
        %v531 = vpack.c.b16 %v437, %v435
        %v532 = vpack.c.b16 %v438, %v436
        %v533 = vpack.c.b16 %v441, %v439
        %v534 = vpack.c.b16 %v442, %v440
        %v535 = vpack.c.b16 %v445, %v443
        %v536 = vpack.c.b16 %v446, %v444
        %v537 = vpack.c.b16 %v449, %v447
        %v538 = vpack.c.b16 %v450, %v448
        %v539 = vpack.c.b16 %v453, %v451
        %v540 = vpack.c.b16 %v454, %v452
        %v541 = vpack.c.b16 %v457, %v455
        %v542 = vpack.c.b16 %v458, %v456
        %v543 = vpack.c.b16 %v461, %v459
        %v544 = vpack.c.b16 %v462, %v460
        %v545 = vpack.c.b16 %v465, %v463
        %v546 = vpack.c.b16 %v466, %v464
        %v547 = vpack.c.b16 %v469, %v467
        %v548 = vpack.c.b16 %v470, %v468
        %v549 = vpack.c.b16 %v473, %v471
        %v550 = vpack.c.b16 %v474, %v472
        %v551 = vpack.c.b16 %v477, %v475
        %v552 = vpack.c.b16 %v478, %v476
        %v553 = vpack.c.b16 %v481, %v479
        %v554 = vpack.c.b16 %v482, %v480
        %v555 = vpack.c.b16 %v485, %v483
        %v556 = vpack.c.b16 %v486, %v484
        %v557 = vpack.c.b16 %v489, %v487
        %v558 = vpack.c.b16 %v490, %v488
        %v559 = vpack.c.b16 %v493, %v491
        %v560 = vpack.c.b16 %v494, %v492
        %v561 = vpack.c.b16 %v497, %v495
        %v562 = vpack.c.b16 %v498, %v496
        %v563 = vpack.c.b16 %v501, %v499
        %v564 = vpack.c.b16 %v502, %v500
        %v565 = vpack.c.b16 %v505, %v503
        %v566 = vpack.c.b16 %v506, %v504
        %v567 = vpack.c.b16 %v509, %v507
        %v568 = vpack.c.b16 %v510, %v508
        %v569 = vpack.c.b16 %v513, %v511
        %v570 = vpack.c.b16 %v514, %v512
        %v571 = vpack.c.b16 %v517, %v515
        %v572 = vpack.c.b16 %v518, %v516
        %v573 = vpack.c.b16 %v521, %v519
        %v574 = vpack.c.b16 %v522, %v520
        %v575 = vpack.c.b16 %v525, %v523
        %v576 = vpack.c.b16 %v526, %v524
        %v577 = vpack.c.b16 %v529, %v527
        %v578 = vpack.c.b16 %v530, %v528
        %627 = vmatprep.subr.bf16.mxu0 %v532
        %628 = vmatpush1.bf16.msra.mxu0 %v531
        %629 = vmatprep.subr.bf16.mxu0 %v534
        %630 = vmatpush1.bf16.msra.mxu0 %v533
        %631 = vmatprep.subr.bf16.mxu0 %v536
        %632 = vmatpush1.bf16.msra.mxu0 %v535
        %633 = vmatprep.subr.bf16.mxu0 %v538
        %634 = vmatpush1.bf16.msra.mxu0 %v537
        %635 = vmatprep.subr.bf16.mxu0 %v540
        %636 = vmatpush1.bf16.msra.mxu0 %v539
        %637 = vmatprep.subr.bf16.mxu0 %v542
        %638 = vmatpush1.bf16.msra.mxu0 %v541
        %639 = vmatprep.subr.bf16.mxu0 %v544
        %640 = vmatpush1.bf16.msra.mxu0 %v543
        %641 = vmatprep.subr.bf16.mxu0 %v546
        %642 = vmatpush1.bf16.msra.mxu0 %v545
        %643 = vmatprep.subr.bf16.mxu0 %v548
        %644 = vmatpush1.bf16.msra.mxu0 %v547
        %645 = vmatprep.subr.bf16.mxu0 %v550
        %646 = vmatpush1.bf16.msra.mxu0 %v549
        %647 = vmatprep.subr.bf16.mxu0 %v552
        %648 = vmatpush1.bf16.msra.mxu0 %v551
        %649 = vmatprep.subr.bf16.mxu0 %v554
        %650 = vmatpush1.bf16.msra.mxu0 %v553
        %651 = vmatprep.subr.bf16.mxu0 %v556
        %652 = vmatpush1.bf16.msra.mxu0 %v555
        %653 = vmatprep.subr.bf16.mxu0 %v558
        %654 = vmatpush1.bf16.msra.mxu0 %v557
        %655 = vmatprep.subr.bf16.mxu0 %v560
        %656 = vmatpush1.bf16.msra.mxu0 %v559
        %657 = vmatprep.subr.bf16.mxu0 %v562
        %658 = vmatpush1.bf16.msra.mxu0 %v561
        %659 = vmatprep.mubr.bf16.mxu0 %v382
        %660 = vmatmul.mubr.bf16.gmra.mrb[0].mxu0 %v381
        %v661 = vpop.f32.mrb[0].mxu0
        %v662 = vadd.f32 0.0, %v661
        %v663 = vpop.f32.mrb[0].mxu0
        %v664 = vadd.f32 0.0, %v663
        %v665 = vpop.f32.mrb[0].mxu0
        %v666 = vadd.f32 0.0, %v665
        %v667 = vpop.f32.mrb[0].mxu0
        %v668 = vadd.f32 0.0, %v667
        %669 = vdwg.mxu0
        %670 = vmatprep.subr.bf16.mxu0 %v564
        %671 = vmatpush1.bf16.msra.mxu0 %v563
        %672 = vmatprep.subr.bf16.mxu0 %v566
        %673 = vmatpush1.bf16.msra.mxu0 %v565
        %674 = vmatprep.subr.bf16.mxu0 %v568
        %675 = vmatpush1.bf16.msra.mxu0 %v567
        %676 = vmatprep.subr.bf16.mxu0 %v570
        %677 = vmatpush1.bf16.msra.mxu0 %v569
        %678 = vmatprep.subr.bf16.mxu0 %v572
        %679 = vmatpush1.bf16.msra.mxu0 %v571
        %680 = vmatprep.subr.bf16.mxu0 %v574
        %681 = vmatpush1.bf16.msra.mxu0 %v573
        %682 = vmatprep.subr.bf16.mxu0 %v576
        %683 = vmatpush1.bf16.msra.mxu0 %v575
        %684 = vmatprep.subr.bf16.mxu0 %v578
        %685 = vmatpush1.bf16.msra.mxu0 %v577
        %686 = vmatprep.subr.bf16.mxu0 0
        %687 = vmatpush1.bf16.msra.mxu0 0
        %688 = vmatprep.subr.bf16.mxu0 0
        %689 = vmatpush1.bf16.msra.mxu0 0
        %690 = vmatprep.subr.bf16.mxu0 0
        %691 = vmatpush1.bf16.msra.mxu0 0
        %692 = vmatprep.subr.bf16.mxu0 0
        %693 = vmatpush1.bf16.msra.mxu0 0
        %694 = vmatprep.subr.bf16.mxu0 0
        %695 = vmatpush1.bf16.msra.mxu0 0
        %696 = vmatprep.subr.bf16.mxu0 0
        %697 = vmatpush1.bf16.msra.mxu0 0
        %698 = vmatprep.subr.bf16.mxu0 0
        %699 = vmatpush1.bf16.msra.mxu0 0
        %700 = vmatprep.subr.bf16.mxu0 0
        %701 = vmatpush1.bf16.msra.mxu0 0
        %702 = vmatprep.mubr.bf16.mxu0 0
        %703 = vmatmul.mubr.bf16.gmra.mrb[0].mxu0 %v383
        %v704 = vpop.f32.mrb[0].mxu0
        %v705 = vadd.f32 %v662, %v704
        %v706 = vpop.f32.mrb[0].mxu0
        %v707 = vadd.f32 %v664, %v706
        %v708 = vpop.f32.mrb[0].mxu0
        %v709 = vadd.f32 %v666, %v708
        %v710 = vpop.f32.mrb[0].mxu0
        %v711 = vadd.f32 %v668, %v710
        %712 = vdwg.mxu0
        %v713 = vadd.f32 %v319, %v705
        %v714 = vadd.f32 %v320, %v707
        %v715 = vadd.f32 %v321, %v709
        %v716 = vadd.f32 %v322, %v711
        %717 = vst [vmem:[#allocation2] sm:$0xff] %v713
        %718 = vst [vmem:[#allocation2 + $0x8] sm:$0xff] %v714
        %719 = vst [vmem:[#allocation2 + $0x10] sm:$0xff] %v715
        %720 = vst [vmem:[#allocation2 + $0x18] sm:$0xff] %v716
        %p721 = scmp.eq.s32.totalorder %s21, 1
        // Predicated region
        $region63: #{transformer_forward.16} parent=53 // pred_check
          %p722 = pneg %p721
        $region64: #{transformer_forward.16} parent=53 // pred_check_branch
          %724 = sbr.rel (%p722) target = $region66
        $region65: #{transformer_forward.16} parent=53 // pred_region
          %v725 = vld [vmem:[#allocation2] sm:$0xff]
          %v726 = vld [vmem:[#allocation2 + $0x8] sm:$0xff]
          %v727 = vld [vmem:[#allocation2 + $0x10] sm:$0xff]
          %v728 = vld [vmem:[#allocation2 + $0x18] sm:$0xff]
          %v729 = vld [vmem:[%s292] sm:$0x3]
          %v731 = vlaneseq
          %v732 = vshrl.u32 %v731, 7
          %v733 = vsub.s32 0, %v732
          %v734 = vrot.slane %v729, %v733
          %v735 = vlaneseq
          %v736 = vshrl.u32 %v735, 7
          %v737 = vsub.s32 1, %v736
          %v738 = vrot.slane %v729, %v737
          %v741 = vadd.f32 %v725, %v734
          %v742 = vadd.f32 %v726, %v738
          %v743 = vadd.f32 %v727, %v734
          %v744 = vadd.f32 %v728, %v738
          %v745 = vmul.f32 %v741, 0.5
          %v746 = vmul.f32 %v742, 0.5
          %v747 = vmul.f32 %v743, 0.5
          %v748 = vmul.f32 %v744, 0.5
          %v749 = vmul.f32 %v741, 0.044715
          %v750 = vmul.f32 %v742, 0.044715
          %v751 = vmul.f32 %v743, 0.044715
          %v752 = vmul.f32 %v744, 0.044715
          %v753 = vmul.f32 %v749, %v741
          %v754 = vmul.f32 %v750, %v742
          %v755 = vmul.f32 %v751, %v743
          %v756 = vmul.f32 %v752, %v744
          %v757 = vmul.f32 %v753, %v741
          %v758 = vmul.f32 %v754, %v742
          %v759 = vmul.f32 %v755, %v743
          %v760 = vmul.f32 %v756, %v744
          %v761 = vadd.f32 %v741, %v757
          %v762 = vadd.f32 %v742, %v758
          %v763 = vadd.f32 %v743, %v759
          %v764 = vadd.f32 %v744, %v760
          %v765 = vmul.f32 %v761, 0.7978846
          %v766 = vmul.f32 %v762, 0.7978846
          %v767 = vmul.f32 %v763, 0.7978846
          %v768 = vmul.f32 %v764, 0.7978846
          %v769 = vtanh.pop %v765
          %v770 = vtanh.pop %v766
          %v771 = vtanh.pop %v767
          %v772 = vtanh.pop %v768
          %v773 = vadd.f32 %v769, 1.0
          %v774 = vadd.f32 %v770, 1.0
          %v775 = vadd.f32 %v771, 1.0
          %v776 = vadd.f32 %v772, 1.0
          %v777 = vmul.f32 %v745, %v773
          %v778 = vmul.f32 %v746, %v774
          %v779 = vmul.f32 %v747, %v775
          %v780 = vmul.f32 %v748, %v776
          %v781 = vpack.c.bf16 %v779, %v777
          %v782 = vpack.c.bf16 %v780, %v778
          %v785 = vunpack.c.l.b16 %v781
          %v786 = vunpack.c.l.b16 %v782
          %v787 = vunpack.c.h.b16 %v781
          %v788 = vunpack.c.h.b16 %v782
          %v789 = vpack.c.b16 %v786, %v785
          %v790 = vpack.c.b16 %v788, %v787
          %793 = vst [vmem:[%s303] sm:$0xff] %v789
          %794 = vst [vmem:[%s303 + $0x8] sm:$0xff] %v790
        $region66: #{transformer_forward.16} parent=53 // pred_fallthru
          _
        %s795 = smul.u32 2, %s19
        %s796 = smul.u32 2, %s20
        %p797 = scmp.lt.s32.totalorder %s795, 1
        %s798 = scalar_select %p797, %s795, 1
        %p799 = scmp.lt.s32.totalorder %s796, 1
        %s800 = scalar_select %p799, %s796, 1
        %s801 = smul.addr %s798, 2
        %s802 = sadd.s32 %s800, %s801
        %s803 = smul.addr %s802, 4
        %s804 = scalar_lea.vmem %s3, %s803
        // Predicated region
        $region67: #{transformer_forward.16} parent=53 // pred_check
          %p805 = pneg %p135
        $region68: #{transformer_forward.16} parent=53 // pred_check_branch
          %807 = sbr.rel (%p805) target = $region70
        $region69: #{transformer_forward.16} parent=53 // pred_region
          %s808 = smul.u32 2, %s19
          %s809 = smul.u32 2, %s20
        $region70: #{transformer_forward.16} parent=53 // pred_fallthru
          _
        // Predicated region
        $region71: #{transformer_forward.16} parent=53 // pred_check
          %p810 = pneg %p135
        $region72: #{transformer_forward.16} parent=53 // pred_check_branch
          %812 = sbr.rel (%p810) target = $region74
        $region73: #{transformer_forward.16} parent=53 // pred_region
          %s813 = smul.u32 2, %s19
          %s814 = smul.u32 2, %s20
          %p815 = scmp.lt.s32.totalorder %s813, 1
          %s816 = scalar_select %p815, %s813, 1
          %p817 = scmp.lt.s32.totalorder %s814, 1
          %s818 = scalar_select %p817, %s814, 1
          %s819 = smul.addr %s816, 2
          %s820 = sadd.s32 %s818, %s819
          %s821 = smul.addr %s820, 4
          %s822 = scalar_lea.vmem %s3, %s821
        $region74: #{transformer_forward.16} parent=53 // pred_fallthru
          _
      $region54: #{transformer_forward.16} parent=5 // pred_fallthru
        _
      %p823 = scmp.le.s32.totalorder 2, %s9
      // Predicated region
      $region75: #{transformer_forward.16} parent=5 // pred_check
        %p824 = pneg %p823
      $region76: #{transformer_forward.16} parent=5 // pred_check_branch
        %826 = sbr.rel (%p824) target = $region78
      $region77: #{transformer_forward.16} parent=5 // pred_region
        %s827 = ssub.s32 %s9, 2
      $region78: #{transformer_forward.16} parent=5 // pred_fallthru
        _
    $region6: #{transformer_forward.16} parent=1 // loop_footer
      %s13 = sadd.s32 1, %s9
    $region7: #{transformer_forward.16} parent=1 // loop_footer_branch
      %8 = sbr.rel target = $region3
    $region8: #{transformer_forward.16} parent=1 // loop_exit
      _

// kernel: transformer_forward.17
$region0: #{transformer_forward.17}
  #allocation0 [shape = 'u32[]', space=smem, size = 0x4, offset = 0x4, fixed_abs, tag = 'smem constant byte address 0x4 - core index']
  #allocation1 [shape = 'u32[144,128]{1,0:T(1,128)}', space=vmem, size = 0x12000, scoped, tag = 'internal scratch']
  #allocation2 [shape = 'f32[16,512]{1,0:T(8,128)}', space=vmem, size = 0x8000, scoped, tag = 'scratch operand']
  %s0 = inlined_call_operand.vmem [shape: bf16[16,256], index: 0, kind: input, shape index: {}]
  %s1 = inlined_call_operand.vmem [shape: bf16[256,512], index: 1, kind: input, shape index: {}]
  %s2 = inlined_call_operand.vmem [shape: f32[1,512], index: 2, kind: input, shape index: {}]
  %s3 = inlined_call_operand.vmem [shape: f32[1,256], index: 3, kind: input, shape index: {}]
  %s4 = inlined_call_operand.vmem [shape: f32[1,256], index: 4, kind: input, shape index: {}]
  %s5 = inlined_call_operand.vmem [shape: bf16[16,512], index: 5, kind: output, shape index: {}]
  %s6 = sld [smem:[#allocation0]]
  $region38: #{transformer_forward.17} parent=0
    _
  %s8 = ssub.s32 1, %s6
  %s9 = scalar_select 0, %s8, %s6
  // Predicated region
  $region2: #{transformer_forward.17} parent=0 // pred_check
    _
  $region3: #{transformer_forward.17} parent=0 // pred_check_branch
    %11 = sbr.rel (0) target = $region5
  $region4: #{transformer_forward.17} parent=0 // pred_region
    _
  $region5: #{transformer_forward.17} parent=0 // pred_fallthru
    _
  // Predicated region
  $region6: #{transformer_forward.17} parent=0 // pred_check
    _
  $region7: #{transformer_forward.17} parent=0 // pred_check_branch
    %13 = sbr.rel (0) target = $region9
  $region8: #{transformer_forward.17} parent=0 // pred_region
    _
  $region9: #{transformer_forward.17} parent=0 // pred_fallthru
    _
  // Predicated region
  $region10: #{transformer_forward.17} parent=0 // pred_check
    _
  $region11: #{transformer_forward.17} parent=0 // pred_check_branch
    %15 = sbr.rel (0) target = $region13
  $region12: #{transformer_forward.17} parent=0 // pred_region
    _
  $region13: #{transformer_forward.17} parent=0 // pred_fallthru
    _
  // Predicated region
  $region14: #{transformer_forward.17} parent=0 // pred_check
    _
  $region15: #{transformer_forward.17} parent=0 // pred_check_branch
    %17 = sbr.rel (0) target = $region17
  $region16: #{transformer_forward.17} parent=0 // pred_region
    _
  $region17: #{transformer_forward.17} parent=0 // pred_fallthru
    _
  // Predicated region
  $region18: #{transformer_forward.17} parent=0 // pred_check
    _
  $region19: #{transformer_forward.17} parent=0 // pred_check_branch
    %19 = sbr.rel (0) target = $region21
  $region20: #{transformer_forward.17} parent=0 // pred_region
    _
  $region21: #{transformer_forward.17} parent=0 // pred_fallthru
    _
  %p20 = scmp.eq.s32.totalorder 0, 0
  // Predicated region
  $region22: #{transformer_forward.17} parent=0 // pred_check
    %p21 = pneg %p20
  $region23: #{transformer_forward.17} parent=0 // pred_check_branch
    %23 = sbr.rel (%p21) target = $region25
  $region24: #{transformer_forward.17} parent=0 // pred_region
    %24 = vst [vmem:[#allocation2] sm:$0xff] 0.0
    %25 = vst [vmem:[#allocation2 + $0x8] sm:$0xff] 0.0
    %26 = vst [vmem:[#allocation2 + $0x10] sm:$0xff] 0.0
    %27 = vst [vmem:[#allocation2 + $0x18] sm:$0xff] 0.0
    %28 = vst [vmem:[#allocation2 + $0x20] sm:$0xff] 0.0
    %29 = vst [vmem:[#allocation2 + $0x28] sm:$0xff] 0.0
    %30 = vst [vmem:[#allocation2 + $0x30] sm:$0xff] 0.0
    %31 = vst [vmem:[#allocation2 + $0x38] sm:$0xff] 0.0
  $region25: #{transformer_forward.17} parent=0 // pred_fallthru
    _
  %v32 = vld [vmem:[%s0] sm:$0xff]
  %v33 = vld [vmem:[%s0 + $0x8] sm:$0xff]
  %v34 = vunpack.c.l.bf16 %v32
  %v35 = vunpack.c.h.bf16 %v32
  %v36 = vunpack.c.l.bf16 %v33
  %v37 = vunpack.c.h.bf16 %v33
  %v38 = vadd.f32 %v34, %v35
  %39 = vadd.xlane.f32.xlu0 %v38
  %v40 = vpop.xlane.xlu0 %39
  %v41 = vadd.f32 %v36, %v37
  %42 = vadd.xlane.f32.xlu0 %v41
  %v43 = vpop.xlane.xlu0 %42
  %v44 = vrcp.pop 256.0
  %v45 = vmul.f32 %v40, %v44
  %v46 = vmul.f32 %v43, %v44
  %v47 = vsub.f32 %v34, %v45
  %v48 = vsub.f32 %v35, %v45
  %v49 = vsub.f32 %v36, %v46
  %v50 = vsub.f32 %v37, %v46
  %v51 = vmul.f32 %v47, %v47
  %v52 = vmul.f32 %v48, %v48
  %v53 = vmul.f32 %v49, %v49
  %v54 = vmul.f32 %v50, %v50
  %v55 = vadd.f32 %v51, %v52
  %56 = vadd.xlane.f32.xlu0 %v55
  %v57 = vpop.xlane.xlu0 %56
  %v58 = vadd.f32 %v53, %v54
  %59 = vadd.xlane.f32.xlu0 %v58
  %v60 = vpop.xlane.xlu0 %59
  %v61 = vmul.f32 %v57, %v44
  %v62 = vmul.f32 %v60, %v44
  %v63 = vadd.f32 %v61, 1e-05
  %v64 = vadd.f32 %v62, 1e-05
  %v65 = vrsqrt.pop %v63
  %v66 = vrsqrt.pop %v64
  %v67 = vmul.f32 %v47, %v65
  %v68 = vmul.f32 %v48, %v65
  %v69 = vmul.f32 %v49, %v66
  %v70 = vmul.f32 %v50, %v66
  %v71 = vld [vmem:[%s3] sm:$0x3]
  %v73 = vlaneseq
  %v74 = vshrl.u32 %v73, 7
  %v75 = vsub.s32 0, %v74
  %v76 = vrot.slane %v71, %v75
  %v77 = vlaneseq
  %v78 = vshrl.u32 %v77, 7
  %v79 = vsub.s32 1, %v78
  %v80 = vrot.slane %v71, %v79
  %v83 = vmul.f32 %v67, %v76
  %v84 = vmul.f32 %v68, %v80
  %v85 = vmul.f32 %v69, %v76
  %v86 = vmul.f32 %v70, %v80
  %v87 = vld [vmem:[%s4] sm:$0x3]
  %v89 = vlaneseq
  %v90 = vshrl.u32 %v89, 7
  %v91 = vsub.s32 0, %v90
  %v92 = vrot.slane %v87, %v91
  %v93 = vlaneseq
  %v94 = vshrl.u32 %v93, 7
  %v95 = vsub.s32 1, %v94
  %v96 = vrot.slane %v87, %v95
  %v99 = vadd.f32 %v83, %v92
  %v100 = vadd.f32 %v84, %v96
  %v101 = vadd.f32 %v85, %v92
  %v102 = vadd.f32 %v86, %v96
  %v103 = vpack.c.bf16 %v101, %v99
  %v104 = vpack.c.bf16 %v102, %v100
  %v105 = vld [vmem:[#allocation2] sm:$0xff]
  %v106 = vld [vmem:[#allocation2 + $0x8] sm:$0xff]
  %v107 = vld [vmem:[#allocation2 + $0x10] sm:$0xff]
  %v108 = vld [vmem:[#allocation2 + $0x18] sm:$0xff]
  %v109 = vld [vmem:[#allocation2 + $0x20] sm:$0xff]
  %v110 = vld [vmem:[#allocation2 + $0x28] sm:$0xff]
  %v111 = vld [vmem:[#allocation2 + $0x30] sm:$0xff]
  %v112 = vld [vmem:[#allocation2 + $0x38] sm:$0xff]
  %v113 = vld [vmem:[%s1] sm:$0xff]
  %v114 = vld [vmem:[%s1 + $0x8] sm:$0xff]
  %v115 = vld [vmem:[%s1 + $0x10] sm:$0xff]
  %v116 = vld [vmem:[%s1 + $0x18] sm:$0xff]
  %v117 = vld [vmem:[%s1 + $0x20] sm:$0xff]
  %v118 = vld [vmem:[%s1 + $0x28] sm:$0xff]
  %v119 = vld [vmem:[%s1 + $0x30] sm:$0xff]
  %v120 = vld [vmem:[%s1 + $0x38] sm:$0xff]
  %v121 = vld [vmem:[%s1 + $0x40] sm:$0xff]
  %v122 = vld [vmem:[%s1 + $0x48] sm:$0xff]
  %v123 = vld [vmem:[%s1 + $0x50] sm:$0xff]
  %v124 = vld [vmem:[%s1 + $0x58] sm:$0xff]
  %v125 = vld [vmem:[%s1 + $0x60] sm:$0xff]
  %v126 = vld [vmem:[%s1 + $0x68] sm:$0xff]
  %v127 = vld [vmem:[%s1 + $0x70] sm:$0xff]
  %v128 = vld [vmem:[%s1 + $0x78] sm:$0xff]
  %v129 = vld [vmem:[%s1 + $0x80] sm:$0xff]
  %v130 = vld [vmem:[%s1 + $0x88] sm:$0xff]
  %v131 = vld [vmem:[%s1 + $0x90] sm:$0xff]
  %v132 = vld [vmem:[%s1 + $0x98] sm:$0xff]
  %v133 = vld [vmem:[%s1 + $0xa0] sm:$0xff]
  %v134 = vld [vmem:[%s1 + $0xa8] sm:$0xff]
  %v135 = vld [vmem:[%s1 + $0xb0] sm:$0xff]
  %v136 = vld [vmem:[%s1 + $0xb8] sm:$0xff]
  %v137 = vld [vmem:[%s1 + $0xc0] sm:$0xff]
  %v138 = vld [vmem:[%s1 + $0xc8] sm:$0xff]
  %v139 = vld [vmem:[%s1 + $0xd0] sm:$0xff]
  %v140 = vld [vmem:[%s1 + $0xd8] sm:$0xff]
  %v141 = vld [vmem:[%s1 + $0xe0] sm:$0xff]
  %v142 = vld [vmem:[%s1 + $0xe8] sm:$0xff]
  %v143 = vld [vmem:[%s1 + $0xf0] sm:$0xff]
  %v144 = vld [vmem:[%s1 + $0xf8] sm:$0xff]
  %v145 = vld [vmem:[%s1 + $0x100] sm:$0xff]
  %v146 = vld [vmem:[%s1 + $0x108] sm:$0xff]
  %v147 = vld [vmem:[%s1 + $0x110] sm:$0xff]
  %v148 = vld [vmem:[%s1 + $0x118] sm:$0xff]
  %v149 = vld [vmem:[%s1 + $0x120] sm:$0xff]
  %v150 = vld [vmem:[%s1 + $0x128] sm:$0xff]
  %v151 = vld [vmem:[%s1 + $0x130] sm:$0xff]
  %v152 = vld [vmem:[%s1 + $0x138] sm:$0xff]
  %v153 = vld [vmem:[%s1 + $0x140] sm:$0xff]
  %v154 = vld [vmem:[%s1 + $0x148] sm:$0xff]
  %v155 = vld [vmem:[%s1 + $0x150] sm:$0xff]
  %v156 = vld [vmem:[%s1 + $0x158] sm:$0xff]
  %v157 = vld [vmem:[%s1 + $0x160] sm:$0xff]
  %v158 = vld [vmem:[%s1 + $0x168] sm:$0xff]
  %v159 = vld [vmem:[%s1 + $0x170] sm:$0xff]
  %v160 = vld [vmem:[%s1 + $0x178] sm:$0xff]
  %v161 = vld [vmem:[%s1 + $0x180] sm:$0xff]
  %v162 = vld [vmem:[%s1 + $0x188] sm:$0xff]
  %v163 = vld [vmem:[%s1 + $0x190] sm:$0xff]
  %v164 = vld [vmem:[%s1 + $0x198] sm:$0xff]
  %v165 = vld [vmem:[%s1 + $0x1a0] sm:$0xff]
  %v166 = vld [vmem:[%s1 + $0x1a8] sm:$0xff]
  %v167 = vld [vmem:[%s1 + $0x1b0] sm:$0xff]
  %v168 = vld [vmem:[%s1 + $0x1b8] sm:$0xff]
  %v169 = vld [vmem:[%s1 + $0x1c0] sm:$0xff]
  %v170 = vld [vmem:[%s1 + $0x1c8] sm:$0xff]
  %v171 = vld [vmem:[%s1 + $0x1d0] sm:$0xff]
  %v172 = vld [vmem:[%s1 + $0x1d8] sm:$0xff]
  %v173 = vld [vmem:[%s1 + $0x1e0] sm:$0xff]
  %v174 = vld [vmem:[%s1 + $0x1e8] sm:$0xff]
  %v175 = vld [vmem:[%s1 + $0x1f0] sm:$0xff]
  %v176 = vld [vmem:[%s1 + $0x1f8] sm:$0xff]
  %v241 = vunpack.c.l.b16 %v113
  %v242 = vunpack.c.h.b16 %v113
  %v243 = vunpack.c.l.b16 %v114
  %v244 = vunpack.c.h.b16 %v114
  %v245 = vunpack.c.l.b16 %v115
  %v246 = vunpack.c.h.b16 %v115
  %v247 = vunpack.c.l.b16 %v116
  %v248 = vunpack.c.h.b16 %v116
  %v249 = vunpack.c.l.b16 %v117
  %v250 = vunpack.c.h.b16 %v117
  %v251 = vunpack.c.l.b16 %v118
  %v252 = vunpack.c.h.b16 %v118
  %v253 = vunpack.c.l.b16 %v119
  %v254 = vunpack.c.h.b16 %v119
  %v255 = vunpack.c.l.b16 %v120
  %v256 = vunpack.c.h.b16 %v120
  %v257 = vunpack.c.l.b16 %v121
  %v258 = vunpack.c.h.b16 %v121
  %v259 = vunpack.c.l.b16 %v122
  %v260 = vunpack.c.h.b16 %v122
  %v261 = vunpack.c.l.b16 %v123
  %v262 = vunpack.c.h.b16 %v123
  %v263 = vunpack.c.l.b16 %v124
  %v264 = vunpack.c.h.b16 %v124
  %v265 = vunpack.c.l.b16 %v125
  %v266 = vunpack.c.h.b16 %v125
  %v267 = vunpack.c.l.b16 %v126
  %v268 = vunpack.c.h.b16 %v126
  %v269 = vunpack.c.l.b16 %v127
  %v270 = vunpack.c.h.b16 %v127
  %v271 = vunpack.c.l.b16 %v128
  %v272 = vunpack.c.h.b16 %v128
  %v273 = vunpack.c.l.b16 %v129
  %v274 = vunpack.c.h.b16 %v129
  %v275 = vunpack.c.l.b16 %v130
  %v276 = vunpack.c.h.b16 %v130
  %v277 = vunpack.c.l.b16 %v131
  %v278 = vunpack.c.h.b16 %v131
  %v279 = vunpack.c.l.b16 %v132
  %v280 = vunpack.c.h.b16 %v132
  %v281 = vunpack.c.l.b16 %v133
  %v282 = vunpack.c.h.b16 %v133
  %v283 = vunpack.c.l.b16 %v134
  %v284 = vunpack.c.h.b16 %v134
  %v285 = vunpack.c.l.b16 %v135
  %v286 = vunpack.c.h.b16 %v135
  %v287 = vunpack.c.l.b16 %v136
  %v288 = vunpack.c.h.b16 %v136
  %v289 = vunpack.c.l.b16 %v137
  %v290 = vunpack.c.h.b16 %v137
  %v291 = vunpack.c.l.b16 %v138
  %v292 = vunpack.c.h.b16 %v138
  %v293 = vunpack.c.l.b16 %v139
  %v294 = vunpack.c.h.b16 %v139
  %v295 = vunpack.c.l.b16 %v140
  %v296 = vunpack.c.h.b16 %v140
  %v297 = vunpack.c.l.b16 %v141
  %v298 = vunpack.c.h.b16 %v141
  %v299 = vunpack.c.l.b16 %v142
  %v300 = vunpack.c.h.b16 %v142
  %v301 = vunpack.c.l.b16 %v143
  %v302 = vunpack.c.h.b16 %v143
  %v303 = vunpack.c.l.b16 %v144
  %v304 = vunpack.c.h.b16 %v144
  %v305 = vunpack.c.l.b16 %v145
  %v306 = vunpack.c.h.b16 %v145
  %v307 = vunpack.c.l.b16 %v146
  %v308 = vunpack.c.h.b16 %v146
  %v309 = vunpack.c.l.b16 %v147
  %v310 = vunpack.c.h.b16 %v147
  %v311 = vunpack.c.l.b16 %v148
  %v312 = vunpack.c.h.b16 %v148
  %v313 = vunpack.c.l.b16 %v149
  %v314 = vunpack.c.h.b16 %v149
  %v315 = vunpack.c.l.b16 %v150
  %v316 = vunpack.c.h.b16 %v150
  %v317 = vunpack.c.l.b16 %v151
  %v318 = vunpack.c.h.b16 %v151
  %v319 = vunpack.c.l.b16 %v152
  %v320 = vunpack.c.h.b16 %v152
  %v321 = vunpack.c.l.b16 %v153
  %v322 = vunpack.c.h.b16 %v153
  %v323 = vunpack.c.l.b16 %v154
  %v324 = vunpack.c.h.b16 %v154
  %v325 = vunpack.c.l.b16 %v155
  %v326 = vunpack.c.h.b16 %v155
  %v327 = vunpack.c.l.b16 %v156
  %v328 = vunpack.c.h.b16 %v156
  %v329 = vunpack.c.l.b16 %v157
  %v330 = vunpack.c.h.b16 %v157
  %v331 = vunpack.c.l.b16 %v158
  %v332 = vunpack.c.h.b16 %v158
  %v333 = vunpack.c.l.b16 %v159
  %v334 = vunpack.c.h.b16 %v159
  %v335 = vunpack.c.l.b16 %v160
  %v336 = vunpack.c.h.b16 %v160
  %v337 = vunpack.c.l.b16 %v161
  %v338 = vunpack.c.h.b16 %v161
  %v339 = vunpack.c.l.b16 %v162
  %v340 = vunpack.c.h.b16 %v162
  %v341 = vunpack.c.l.b16 %v163
  %v342 = vunpack.c.h.b16 %v163
  %v343 = vunpack.c.l.b16 %v164
  %v344 = vunpack.c.h.b16 %v164
  %v345 = vunpack.c.l.b16 %v165
  %v346 = vunpack.c.h.b16 %v165
  %v347 = vunpack.c.l.b16 %v166
  %v348 = vunpack.c.h.b16 %v166
  %v349 = vunpack.c.l.b16 %v167
  %v350 = vunpack.c.h.b16 %v167
  %v351 = vunpack.c.l.b16 %v168
  %v352 = vunpack.c.h.b16 %v168
  %v353 = vunpack.c.l.b16 %v169
  %v354 = vunpack.c.h.b16 %v169
  %v355 = vunpack.c.l.b16 %v170
  %v356 = vunpack.c.h.b16 %v170
  %v357 = vunpack.c.l.b16 %v171
  %v358 = vunpack.c.h.b16 %v171
  %v359 = vunpack.c.l.b16 %v172
  %v360 = vunpack.c.h.b16 %v172
  %v361 = vunpack.c.l.b16 %v173
  %v362 = vunpack.c.h.b16 %v173
  %v363 = vunpack.c.l.b16 %v174
  %v364 = vunpack.c.h.b16 %v174
  %v365 = vunpack.c.l.b16 %v175
  %v366 = vunpack.c.h.b16 %v175
  %v367 = vunpack.c.l.b16 %v176
  %v368 = vunpack.c.h.b16 %v176
  %v369 = vpack.c.b16 %v245, %v241
  %v370 = vpack.c.b16 %v246, %v242
  %v371 = vpack.c.b16 %v247, %v243
  %v372 = vpack.c.b16 %v248, %v244
  %v373 = vpack.c.b16 %v253, %v249
  %v374 = vpack.c.b16 %v254, %v250
  %v375 = vpack.c.b16 %v255, %v251
  %v376 = vpack.c.b16 %v256, %v252
  %v377 = vpack.c.b16 %v261, %v257
  %v378 = vpack.c.b16 %v262, %v258
  %v379 = vpack.c.b16 %v263, %v259
  %v380 = vpack.c.b16 %v264, %v260
  %v381 = vpack.c.b16 %v269, %v265
  %v382 = vpack.c.b16 %v270, %v266
  %v383 = vpack.c.b16 %v271, %v267
  %v384 = vpack.c.b16 %v272, %v268
  %v385 = vpack.c.b16 %v277, %v273
  %v386 = vpack.c.b16 %v278, %v274
  %v387 = vpack.c.b16 %v279, %v275
  %v388 = vpack.c.b16 %v280, %v276
  %v389 = vpack.c.b16 %v285, %v281
  %v390 = vpack.c.b16 %v286, %v282
  %v391 = vpack.c.b16 %v287, %v283
  %v392 = vpack.c.b16 %v288, %v284
  %v393 = vpack.c.b16 %v293, %v289
  %v394 = vpack.c.b16 %v294, %v290
  %v395 = vpack.c.b16 %v295, %v291
  %v396 = vpack.c.b16 %v296, %v292
  %v397 = vpack.c.b16 %v301, %v297
  %v398 = vpack.c.b16 %v302, %v298
  %v399 = vpack.c.b16 %v303, %v299
  %v400 = vpack.c.b16 %v304, %v300
  %v401 = vpack.c.b16 %v309, %v305
  %v402 = vpack.c.b16 %v310, %v306
  %v403 = vpack.c.b16 %v311, %v307
  %v404 = vpack.c.b16 %v312, %v308
  %v405 = vpack.c.b16 %v317, %v313
  %v406 = vpack.c.b16 %v318, %v314
  %v407 = vpack.c.b16 %v319, %v315
  %v408 = vpack.c.b16 %v320, %v316
  %v409 = vpack.c.b16 %v325, %v321
  %v410 = vpack.c.b16 %v326, %v322
  %v411 = vpack.c.b16 %v327, %v323
  %v412 = vpack.c.b16 %v328, %v324
  %v413 = vpack.c.b16 %v333, %v329
  %v414 = vpack.c.b16 %v334, %v330
  %v415 = vpack.c.b16 %v335, %v331
  %v416 = vpack.c.b16 %v336, %v332
  %v417 = vpack.c.b16 %v341, %v337
  %v418 = vpack.c.b16 %v342, %v338
  %v419 = vpack.c.b16 %v343, %v339
  %v420 = vpack.c.b16 %v344, %v340
  %v421 = vpack.c.b16 %v349, %v345
  %v422 = vpack.c.b16 %v350, %v346
  %v423 = vpack.c.b16 %v351, %v347
  %v424 = vpack.c.b16 %v352, %v348
  %v425 = vpack.c.b16 %v357, %v353
  %v426 = vpack.c.b16 %v358, %v354
  %v427 = vpack.c.b16 %v359, %v355
  %v428 = vpack.c.b16 %v360, %v356
  %v429 = vpack.c.b16 %v365, %v361
  %v430 = vpack.c.b16 %v366, %v362
  %v431 = vpack.c.b16 %v367, %v363
  %v432 = vpack.c.b16 %v368, %v364
  %497 = vmatprep.subr.bf16.mxu0 %v370
  %498 = vmatpush1.bf16.msra.mxu0 %v369
  %499 = vmatprep.subr.bf16.mxu0 %v374
  %500 = vmatpush1.bf16.msra.mxu0 %v373
  %501 = vmatprep.subr.bf16.mxu0 %v378
  %502 = vmatpush1.bf16.msra.mxu0 %v377
  %503 = vmatprep.subr.bf16.mxu0 %v382
  %504 = vmatpush1.bf16.msra.mxu0 %v381
  %505 = vmatprep.subr.bf16.mxu0 %v386
  %506 = vmatpush1.bf16.msra.mxu0 %v385
  %507 = vmatprep.subr.bf16.mxu0 %v390
  %508 = vmatpush1.bf16.msra.mxu0 %v389
  %509 = vmatprep.subr.bf16.mxu0 %v394
  %510 = vmatpush1.bf16.msra.mxu0 %v393
  %511 = vmatprep.subr.bf16.mxu0 %v398
  %512 = vmatpush1.bf16.msra.mxu0 %v397
  %513 = vmatprep.subr.bf16.mxu0 %v402
  %514 = vmatpush1.bf16.msra.mxu0 %v401
  %515 = vmatprep.subr.bf16.mxu0 %v406
  %516 = vmatpush1.bf16.msra.mxu0 %v405
  %517 = vmatprep.subr.bf16.mxu0 %v410
  %518 = vmatpush1.bf16.msra.mxu0 %v409
  %519 = vmatprep.subr.bf16.mxu0 %v414
  %520 = vmatpush1.bf16.msra.mxu0 %v413
  %521 = vmatprep.subr.bf16.mxu0 %v418
  %522 = vmatpush1.bf16.msra.mxu0 %v417
  %523 = vmatprep.subr.bf16.mxu0 %v422
  %524 = vmatpush1.bf16.msra.mxu0 %v421
  %525 = vmatprep.subr.bf16.mxu0 %v426
  %526 = vmatpush1.bf16.msra.mxu0 %v425
  %527 = vmatprep.subr.bf16.mxu0 %v430
  %528 = vmatpush1.bf16.msra.mxu0 %v429
  %529 = vmatprep.mubr.bf16.mxu0 %v104
  %530 = vmatmul.mubr.bf16.gmra.mrb[0].mxu0 %v103
  %v531 = vpop.f32.mrb[0].mxu0
  %v532 = vadd.f32 0.0, %v531
  %v533 = vpop.f32.mrb[0].mxu0
  %v534 = vadd.f32 0.0, %v533
  %v535 = vpop.f32.mrb[0].mxu0
  %v536 = vadd.f32 0.0, %v535
  %v537 = vpop.f32.mrb[0].mxu0
  %v538 = vadd.f32 0.0, %v537
  %539 = vdwg.mxu0
  %540 = vmatprep.subr.bf16.mxu0 %v372
  %541 = vmatpush1.bf16.msra.mxu0 %v371
  %542 = vmatprep.subr.bf16.mxu0 %v376
  %543 = vmatpush1.bf16.msra.mxu0 %v375
  %544 = vmatprep.subr.bf16.mxu0 %v380
  %545 = vmatpush1.bf16.msra.mxu0 %v379
  %546 = vmatprep.subr.bf16.mxu0 %v384
  %547 = vmatpush1.bf16.msra.mxu0 %v383
  %548 = vmatprep.subr.bf16.mxu0 %v388
  %549 = vmatpush1.bf16.msra.mxu0 %v387
  %550 = vmatprep.subr.bf16.mxu0 %v392
  %551 = vmatpush1.bf16.msra.mxu0 %v391
  %552 = vmatprep.subr.bf16.mxu0 %v396
  %553 = vmatpush1.bf16.msra.mxu0 %v395
  %554 = vmatprep.subr.bf16.mxu0 %v400
  %555 = vmatpush1.bf16.msra.mxu0 %v399
  %556 = vmatprep.subr.bf16.mxu0 %v404
  %557 = vmatpush1.bf16.msra.mxu0 %v403
  %558 = vmatprep.subr.bf16.mxu0 %v408
  %559 = vmatpush1.bf16.msra.mxu0 %v407
  %560 = vmatprep.subr.bf16.mxu0 %v412
  %561 = vmatpush1.bf16.msra.mxu0 %v411
  %562 = vmatprep.subr.bf16.mxu0 %v416
  %563 = vmatpush1.bf16.msra.mxu0 %v415
  %564 = vmatprep.subr.bf16.mxu0 %v420
  %565 = vmatpush1.bf16.msra.mxu0 %v419
  %566 = vmatprep.subr.bf16.mxu0 %v424
  %567 = vmatpush1.bf16.msra.mxu0 %v423
  %568 = vmatprep.subr.bf16.mxu0 %v428
  %569 = vmatpush1.bf16.msra.mxu0 %v427
  %570 = vmatprep.subr.bf16.mxu0 %v432
  %571 = vmatpush1.bf16.msra.mxu0 %v431
  %572 = vmatprep.mubr.bf16.mxu0 %v104
  %573 = vmatmul.mubr.bf16.gmra.mrb[0].mxu0 %v103
  %v574 = vpop.f32.mrb[0].mxu0
  %v575 = vadd.f32 0.0, %v574
  %v576 = vpop.f32.mrb[0].mxu0
  %v577 = vadd.f32 0.0, %v576
  %v578 = vpop.f32.mrb[0].mxu0
  %v579 = vadd.f32 0.0, %v578
  %v580 = vpop.f32.mrb[0].mxu0
  %v581 = vadd.f32 0.0, %v580
  %582 = vdwg.mxu0
  %v583 = vadd.f32 %v105, %v532
  %v584 = vadd.f32 %v106, %v534
  %v585 = vadd.f32 %v107, %v575
  %v586 = vadd.f32 %v108, %v577
  %v587 = vadd.f32 %v109, %v536
  %v588 = vadd.f32 %v110, %v538
  %v589 = vadd.f32 %v111, %v579
  %v590 = vadd.f32 %v112, %v581
  %591 = vst [vmem:[#allocation2] sm:$0xff] %v583
  %592 = vst [vmem:[#allocation2 + $0x8] sm:$0xff] %v584
  %593 = vst [vmem:[#allocation2 + $0x10] sm:$0xff] %v585
  %594 = vst [vmem:[#allocation2 + $0x18] sm:$0xff] %v586
  %595 = vst [vmem:[#allocation2 + $0x20] sm:$0xff] %v587
  %596 = vst [vmem:[#allocation2 + $0x28] sm:$0xff] %v588
  %597 = vst [vmem:[#allocation2 + $0x30] sm:$0xff] %v589
  %598 = vst [vmem:[#allocation2 + $0x38] sm:$0xff] %v590
  // Predicated region
  $region26: #{transformer_forward.17} parent=0 // pred_check
    %p599 = pneg %p20
  $region27: #{transformer_forward.17} parent=0 // pred_check_branch
    %601 = sbr.rel (%p599) target = $region29
  $region28: #{transformer_forward.17} parent=0 // pred_region
    %v602 = vld [vmem:[#allocation2] sm:$0xff]
    %v603 = vld [vmem:[#allocation2 + $0x8] sm:$0xff]
    %v604 = vld [vmem:[#allocation2 + $0x10] sm:$0xff]
    %v605 = vld [vmem:[#allocation2 + $0x18] sm:$0xff]
    %v606 = vld [vmem:[#allocation2 + $0x20] sm:$0xff]
    %v607 = vld [vmem:[#allocation2 + $0x28] sm:$0xff]
    %v608 = vld [vmem:[#allocation2 + $0x30] sm:$0xff]
    %v609 = vld [vmem:[#allocation2 + $0x38] sm:$0xff]
    %v610 = vld [vmem:[%s2] sm:$0xf]
    %v612 = vlaneseq
    %v613 = vshrl.u32 %v612, 7
    %v614 = vsub.s32 0, %v613
    %v615 = vrot.slane %v610, %v614
    %v616 = vlaneseq
    %v617 = vshrl.u32 %v616, 7
    %v618 = vsub.s32 1, %v617
    %v619 = vrot.slane %v610, %v618
    %v620 = vlaneseq
    %v621 = vshrl.u32 %v620, 7
    %v622 = vsub.s32 2, %v621
    %v623 = vrot.slane %v610, %v622
    %v624 = vlaneseq
    %v625 = vshrl.u32 %v624, 7
    %v626 = vsub.s32 3, %v625
    %v627 = vrot.slane %v610, %v626
    %v632 = vadd.f32 %v602, %v615
    %v633 = vadd.f32 %v603, %v619
    %v634 = vadd.f32 %v604, %v623
    %v635 = vadd.f32 %v605, %v627
    %v636 = vadd.f32 %v606, %v615
    %v637 = vadd.f32 %v607, %v619
    %v638 = vadd.f32 %v608, %v623
    %v639 = vadd.f32 %v609, %v627
    %v640 = vpack.c.bf16 %v636, %v632
    %v641 = vpack.c.bf16 %v637, %v633
    %v642 = vpack.c.bf16 %v638, %v634
    %v643 = vpack.c.bf16 %v639, %v635
    %v648 = vunpack.c.l.b16 %v640
    %v649 = vunpack.c.l.b16 %v641
    %v650 = vunpack.c.l.b16 %v642
    %v651 = vunpack.c.l.b16 %v643
    %v652 = vunpack.c.h.b16 %v640
    %v653 = vunpack.c.h.b16 %v641
    %v654 = vunpack.c.h.b16 %v642
    %v655 = vunpack.c.h.b16 %v643
    %v656 = vpack.c.b16 %v649, %v648
    %v657 = vpack.c.b16 %v651, %v650
    %v658 = vpack.c.b16 %v653, %v652
    %v659 = vpack.c.b16 %v655, %v654
    %664 = vst [vmem:[%s5] sm:$0xff] %v656
    %665 = vst [vmem:[%s5 + $0x8] sm:$0xff] %v657
    %666 = vst [vmem:[%s5 + $0x10] sm:$0xff] %v658
    %667 = vst [vmem:[%s5 + $0x18] sm:$0xff] %v659
  $region29: #{transformer_forward.17} parent=0 // pred_fallthru
    _
  // Predicated region
  $region30: #{transformer_forward.17} parent=0 // pred_check
    _
  $region31: #{transformer_forward.17} parent=0 // pred_check_branch
    %669 = sbr.rel (0) target = $region33
  $region32: #{transformer_forward.17} parent=0 // pred_region
    _
  $region33: #{transformer_forward.17} parent=0 // pred_fallthru
    _
  // Predicated region
  $region34: #{transformer_forward.17} parent=0 // pred_check
    _
  $region35: #{transformer_forward.17} parent=0 // pred_check_branch
    %671 = sbr.rel (0) target = $region37
  $region36: #{transformer_forward.17} parent=0 // pred_region
    _
  $region37: #{transformer_forward.17} parent=0 // pred_fallthru
    _

// kernel: transformer_forward.18
$region0: #{transformer_forward.18}
  #allocation0 [shape = 'u32[]', space=smem, size = 0x4, offset = 0x4, fixed_abs, tag = 'smem constant byte address 0x4 - core index']
  #allocation1 [shape = 'u32[144,128]{1,0:T(1,128)}', space=vmem, size = 0x12000, scoped, tag = 'internal scratch']
  #allocation2 [shape = 'bf16[16,64]{1,0:T(16,128)(2,1)}', space=vmem, size = 0x1000, scoped, tag = 'scratch operand']
  #allocation3 [shape = 'f32[16,1]{1,0:T(8,128)}', space=vmem, size = 0x2000, scoped, tag = 'scratch operand']
  #allocation4 [shape = 'f32[16,1]{1,0:T(8,128)}', space=vmem, size = 0x2000, scoped, tag = 'scratch operand']
  #allocation5 [shape = 'f32[16,1]{1,0:T(8,128)}', space=vmem, size = 0x2000, scoped, tag = 'scratch operand']
  #allocation6 [shape = 'f32[16,64]{1,0:T(8,128)}', space=vmem, size = 0x2000, scoped, tag = 'scratch operand']
  %s0 = inlined_call_operand.vmem [shape: bf16[2,8,512], index: 0, kind: input, shape index: {}, may-alias: {0,1}]
  %s1 = inlined_call_operand.vmem [shape: bf16[2,8,512], index: 1, kind: input, shape index: {}, may-alias: {0,1}]
  %s2 = inlined_call_operand.vmem [shape: bf16[4,8,8], index: 2, kind: input, shape index: {}]
  %s3 = inlined_call_operand.vmem [shape: s32[2,8,1], index: 3, kind: input, shape index: {}]
  %s4 = inlined_call_operand.vmem [shape: bf16[2,8,256], index: 4, kind: output, shape index: {}]
  %s5 = sld [smem:[#allocation0]]
  $region57: #{transformer_forward.18} parent=0
    _
  %s7 = ssub.s32 1, %s5
  %s8 = scalar_select 0, %s7, %s5
  loop: start=0, step=1, limit=6
  $region2: #{transformer_forward.18} parent=0 // loop_pre_header
    _
  $region3: #{transformer_forward.18} parent=0 // loop_header
    %s10 = sphi 0, %s14
    %p11 = scmp.ge.s32.totalorder %s10, 6
    %s17 = sphi 0, %s43
    %s18 = sphi 0, %s39
    %s19 = sphi 0, %s35
    %s20 = sphi 0, %s31
    %s21 = sphi 0, %s17
    %s22 = sphi 0, %s18
    %s23 = sphi 0, %s19
    %s24 = sphi 0, %s20
    %s25 = sphi 0, %s21
    %s26 = sphi 0, %s22
    %s27 = sphi 0, %s23
    %s28 = sphi 0, %s24
    %s50 = sphi 0, %s52
    %s53 = sphi 0, %s50
    %s54 = sphi 0, %s53
    %s70 = sphi 0, %s54
    %s82 = sphi 0, %s84
    %s85 = sphi 0, %s82
    %s86 = sphi 0, %s85
    %s102 = sphi 0, %s86
    %s112 = sphi 0, %s114
    %s115 = sphi 0, %s112
    %s116 = sphi 0, %s115
    %s132 = sphi 0, %s116
    %s140 = sphi 0, %s142
    %s143 = sphi 0, %s140
    %s144 = sphi 0, %s143
    %s160 = sphi 0, %s144
    %s170 = sphi 0, %s172
    %s173 = sphi 0, %s170
    %s174 = sphi 0, %s173
    %s190 = sphi 0, %s174
  $region4: #{transformer_forward.18} parent=0 // loop_header_branch
    %13 = sbr.rel (%p11) target = $region8
  $region5: #{transformer_forward.18} parent=0 // loop_body
    %s15 = ssub.s32 %s10, 1
    %s16 = ssub.s32 %s10, 2
    %s29 = sadd.s32 1, %s20
    %p30 = scmp.ge.s32.totalorder %s29, 1
    %s31 = scalar_select %p30, 0, %s29
    %s32 = sadd.s32 1, %s19
    %s33 = scalar_select %p30, %s32, %s19
    %p34 = scmp.ge.s32.totalorder %s33, 1
    %s35 = scalar_select %p34, 0, %s33
    %s36 = sadd.s32 1, %s18
    %s37 = scalar_select %p34, %s36, %s18
    %p38 = scmp.ge.s32.totalorder %s37, 2
    %s39 = scalar_select %p38, 0, %s37
    %s40 = sadd.s32 1, %s17
    %s41 = scalar_select %p38, %s40, %s17
    %p42 = scmp.ge.s32.totalorder %s41, 2
    %s43 = scalar_select %p42, 0, %s41
    %s44 = ssub.s32 %s17, %s43
    %s45 = ssub.s32 %s19, %s35
    %s46 = sor.u32 %s44, %s45
    %s47 = ssub.s32 %s18, %s39
    %s48 = sor.u32 %s46, %s47
    %p49 = scmp.eq.s32.totalorder %s48, 0
    %s51 = sadd.s32 %s50, 1
    %s52 = scalar_select %p49, %s50, %s51
    %p55 = pneg %p49
    %p56 = scmp.eq.s32.totalorder %s10, 3
    %p57 = por %p55, %p56
    %p58 = scmp.ne.s32.totalorder %s50, %s53
    %p59 = scmp.eq.s32.totalorder %s10, 0
    %p60 = por %p58, %p59
    %p61 = scmp.ne.s32.totalorder %s50, %s53
    %p62 = scmp.eq.s32.totalorder %s15, 3
    %p63 = por %p61, %p62
    %p64 = scmp.ne.s32.totalorder %s53, %s54
    %p65 = scmp.eq.s32.totalorder %s15, 0
    %p66 = por %p64, %p65
    %p67 = scmp.ne.s32.totalorder %s53, %s54
    %p68 = scmp.eq.s32.totalorder %s16, 3
    %p69 = por %p67, %p68
    %p71 = scmp.ne.s32.totalorder %s54, %s70
    %p72 = scmp.eq.s32.totalorder %s16, 0
    %p73 = por %p71, %p72
    %s74 = sadd.s32 %s18, 2
    %s75 = sadd.s32 %s39, 2
    %s76 = ssub.s32 %s17, %s43
    %s77 = ssub.s32 %s20, %s31
    %s78 = sor.u32 %s76, %s77
    %s79 = ssub.s32 %s74, %s75
    %s80 = sor.u32 %s78, %s79
    %p81 = scmp.eq.s32.totalorder %s80, 0
    %s83 = sadd.s32 %s82, 1
    %s84 = scalar_select %p81, %s82, %s83
    %p87 = pneg %p81
    %p88 = scmp.eq.s32.totalorder %s10, 3
    %p89 = por %p87, %p88
    %p90 = scmp.ne.s32.totalorder %s82, %s85
    %p91 = scmp.eq.s32.totalorder %s10, 0
    %p92 = por %p90, %p91
    %p93 = scmp.ne.s32.totalorder %s82, %s85
    %p94 = scmp.eq.s32.totalorder %s15, 3
    %p95 = por %p93, %p94
    %p96 = scmp.ne.s32.totalorder %s85, %s86
    %p97 = scmp.eq.s32.totalorder %s15, 0
    %p98 = por %p96, %p97
    %p99 = scmp.ne.s32.totalorder %s85, %s86
    %p100 = scmp.eq.s32.totalorder %s16, 3
    %p101 = por %p99, %p100
    %p103 = scmp.ne.s32.totalorder %s86, %s102
    %p104 = scmp.eq.s32.totalorder %s16, 0
    %p105 = por %p103, %p104
    %s106 = ssub.s32 %s18, %s39
    %s107 = ssub.s32 %s19, %s35
    %s108 = sor.u32 %s106, %s107
    %s109 = ssub.s32 %s20, %s31
    %s110 = sor.u32 %s108, %s109
    %p111 = scmp.eq.s32.totalorder %s110, 0
    %s113 = sadd.s32 %s112, 1
    %s114 = scalar_select %p111, %s112, %s113
    %p117 = pneg %p111
    %p118 = scmp.eq.s32.totalorder %s10, 3
    %p119 = por %p117, %p118
    %p120 = scmp.ne.s32.totalorder %s112, %s115
    %p121 = scmp.eq.s32.totalorder %s10, 0
    %p122 = por %p120, %p121
    %p123 = scmp.ne.s32.totalorder %s112, %s115
    %p124 = scmp.eq.s32.totalorder %s15, 3
    %p125 = por %p123, %p124
    %p126 = scmp.ne.s32.totalorder %s115, %s116
    %p127 = scmp.eq.s32.totalorder %s15, 0
    %p128 = por %p126, %p127
    %p129 = scmp.ne.s32.totalorder %s115, %s116
    %p130 = scmp.eq.s32.totalorder %s16, 3
    %p131 = por %p129, %p130
    %p133 = scmp.ne.s32.totalorder %s116, %s132
    %p134 = scmp.eq.s32.totalorder %s16, 0
    %p135 = por %p133, %p134
    %s136 = ssub.s32 %s17, %s43
    %s137 = ssub.s32 %s19, %s35
    %s138 = sor.u32 %s136, %s137
    %p139 = scmp.eq.s32.totalorder %s138, 0
    %s141 = sadd.s32 %s140, 1
    %s142 = scalar_select %p139, %s140, %s141
    %p145 = pneg %p139
    %p146 = scmp.eq.s32.totalorder %s10, 3
    %p147 = por %p145, %p146
    %p148 = scmp.ne.s32.totalorder %s140, %s143
    %p149 = scmp.eq.s32.totalorder %s10, 0
    %p150 = por %p148, %p149
    %p151 = scmp.ne.s32.totalorder %s140, %s143
    %p152 = scmp.eq.s32.totalorder %s15, 3
    %p153 = por %p151, %p152
    %p154 = scmp.ne.s32.totalorder %s143, %s144
    %p155 = scmp.eq.s32.totalorder %s15, 0
    %p156 = por %p154, %p155
    %p157 = scmp.ne.s32.totalorder %s143, %s144
    %p158 = scmp.eq.s32.totalorder %s16, 3
    %p159 = por %p157, %p158
    %p161 = scmp.ne.s32.totalorder %s144, %s160
    %p162 = scmp.eq.s32.totalorder %s16, 0
    %p163 = por %p161, %p162
    %s164 = ssub.s32 %s17, %s43
    %s165 = ssub.s32 %s19, %s35
    %s166 = sor.u32 %s164, %s165
    %s167 = ssub.s32 %s18, %s39
    %s168 = sor.u32 %s166, %s167
    %p169 = scmp.eq.s32.totalorder %s168, 0
    %s171 = sadd.s32 %s170, 1
    %s172 = scalar_select %p169, %s170, %s171
    %p175 = pneg %p169
    %p176 = scmp.eq.s32.totalorder %s10, 3
    %p177 = por %p175, %p176
    %p178 = scmp.ne.s32.totalorder %s170, %s173
    %p179 = scmp.eq.s32.totalorder %s10, 0
    %p180 = por %p178, %p179
    %p181 = scmp.ne.s32.totalorder %s170, %s173
    %p182 = scmp.eq.s32.totalorder %s15, 3
    %p183 = por %p181, %p182
    %p184 = scmp.ne.s32.totalorder %s173, %s174
    %p185 = scmp.eq.s32.totalorder %s15, 0
    %p186 = por %p184, %p185
    %p187 = scmp.ne.s32.totalorder %s173, %s174
    %p188 = scmp.eq.s32.totalorder %s16, 3
    %p189 = por %p187, %p188
    %p191 = scmp.ne.s32.totalorder %s174, %s190
    %p192 = scmp.eq.s32.totalorder %s16, 0
    %p193 = por %p191, %p192
    %p194 = scmp.le.s32.totalorder 1, %s10
    %p195 = scmp.lt.s32.totalorder %s10, 5
    %p196 = pnand %p194, %p195
    %p197 = pneg %p196
    // Predicated region
    $region9: #{transformer_forward.18} parent=5 // pred_check
      _
    $region10: #{transformer_forward.18} parent=5 // pred_check_branch
      %199 = sbr.rel (%p196) target = $region12
    $region11: #{transformer_forward.18} parent=5 // pred_region
      %s200 = ssub.s32 %s10, 1
    $region12: #{transformer_forward.18} parent=5 // pred_fallthru
      _
    %p201 = scmp.lt.s32.totalorder %s10, 4
    // Predicated region
    $region13: #{transformer_forward.18} parent=5 // pred_check
      %p202 = pneg %p201
    $region14: #{transformer_forward.18} parent=5 // pred_check_branch
      %204 = sbr.rel (%p202) target = $region16
    $region15: #{transformer_forward.18} parent=5 // pred_region
      // Predicated region
      $region17: #{transformer_forward.18} parent=15 // pred_check
        %p205 = pneg %p60
      $region18: #{transformer_forward.18} parent=15 // pred_check_branch
        %207 = sbr.rel (%p205) target = $region20
      $region19: #{transformer_forward.18} parent=15 // pred_region
        %p208 = scmp.lt.s32.totalorder %s17, 1
        %s209 = scalar_select %p208, %s17, 1
        %p210 = scmp.lt.s32.totalorder %s19, 0
        %s211 = scalar_select %p210, %s19, 0
        %p212 = scmp.lt.s32.totalorder %s18, 3
        %s213 = scalar_select %p212, %s18, 3
        %s214 = smul.addr %s211, 4
        %s215 = sadd.s32 %s213, %s214
        %s216 = smul.addr %s209, 4
        %s217 = sadd.s32 %s215, %s216
        %s218 = smul.addr %s217, 4
        %s219 = scalar_lea.vmem %s0, %s218
      $region20: #{transformer_forward.18} parent=15 // pred_fallthru
        _
      // Predicated region
      $region21: #{transformer_forward.18} parent=15 // pred_check
        %p220 = pneg %p92
      $region22: #{transformer_forward.18} parent=15 // pred_check_branch
        %222 = sbr.rel (%p220) target = $region24
      $region23: #{transformer_forward.18} parent=15 // pred_region
        %s223 = sadd.s32 %s18, 2
        %p224 = scmp.lt.s32.totalorder %s17, 1
        %s225 = scalar_select %p224, %s17, 1
        %p226 = scmp.lt.s32.totalorder %s20, 0
        %s227 = scalar_select %p226, %s20, 0
        %p228 = scmp.lt.s32.totalorder %s223, 3
        %s229 = scalar_select %p228, %s223, 3
        %s230 = smul.addr %s227, 4
        %s231 = sadd.s32 %s229, %s230
        %s232 = smul.addr %s225, 4
        %s233 = sadd.s32 %s231, %s232
        %s234 = smul.addr %s233, 4
        %s235 = scalar_lea.vmem %s1, %s234
        %s236 = sadd.s32 %s18, 2
      $region24: #{transformer_forward.18} parent=15 // pred_fallthru
        _
      // Predicated region
      $region25: #{transformer_forward.18} parent=15 // pred_check
        %p237 = pneg %p122
      $region26: #{transformer_forward.18} parent=15 // pred_check_branch
        %239 = sbr.rel (%p237) target = $region28
      $region27: #{transformer_forward.18} parent=15 // pred_region
        %s240 = smul.u32 2, %s18
        %p241 = scmp.lt.s32.totalorder %s240, 3
        %s242 = scalar_select %p241, %s240, 3
        %p243 = scmp.lt.s32.totalorder %s19, 0
        %s244 = scalar_select %p243, %s19, 0
        %p245 = scmp.lt.s32.totalorder %s20, 0
        %s246 = scalar_select %p245, %s20, 0
        %s247 = sadd.s32 %s246, %s244
        %s248 = sadd.s32 %s247, %s242
        %s249 = smul.addr %s248, 4
        %s250 = scalar_lea.vmem %s2, %s249
        %s251 = smul.u32 2, %s18
      $region28: #{transformer_forward.18} parent=15 // pred_fallthru
        _
      // Predicated region
      $region29: #{transformer_forward.18} parent=15 // pred_check
        %p252 = pneg %p150
      $region30: #{transformer_forward.18} parent=15 // pred_check_branch
        %254 = sbr.rel (%p252) target = $region32
      $region31: #{transformer_forward.18} parent=15 // pred_region
        %p255 = scmp.lt.s32.totalorder %s17, 1
        %s256 = scalar_select %p255, %s17, 1
        %p257 = scmp.lt.s32.totalorder %s19, 0
        %s258 = scalar_select %p257, %s19, 0
        %s259 = sadd.s32 %s258, %s256
        %s260 = smul.addr %s259, 8
        %s261 = scalar_lea.vmem %s3, %s260
      $region32: #{transformer_forward.18} parent=15 // pred_fallthru
        _
    $region16: #{transformer_forward.18} parent=5 // pred_fallthru
      _
    %p262 = scmp.le.s32.totalorder 1, %s10
    %p263 = scmp.lt.s32.totalorder %s10, 5
    %p264 = pnand %p262, %p263
    %p265 = pneg %p264
    // Predicated region
    $region33: #{transformer_forward.18} parent=5 // pred_check
      _
    $region34: #{transformer_forward.18} parent=5 // pred_check_branch
      %267 = sbr.rel (%p264) target = $region36
    $region35: #{transformer_forward.18} parent=5 // pred_region
      %s268 = ssub.s32 %s10, 1
      %p269 = scmp.lt.s32.totalorder %s21, 1
      %s270 = scalar_select %p269, %s21, 1
      %p271 = scmp.lt.s32.totalorder %s23, 0
      %s272 = scalar_select %p271, %s23, 0
      %p273 = scmp.lt.s32.totalorder %s22, 3
      %s274 = scalar_select %p273, %s22, 3
      %s275 = smul.addr %s272, 4
      %s276 = sadd.s32 %s274, %s275
      %s277 = smul.addr %s270, 4
      %s278 = sadd.s32 %s276, %s277
      %s279 = smul.addr %s278, 4
      %s280 = scalar_lea.vmem %s0, %s279
      %p281 = pneg %p66
      %p282 = pneg %p63
      %s283 = sadd.s32 %s22, 2
      %p284 = scmp.lt.s32.totalorder %s21, 1
      %s285 = scalar_select %p284, %s21, 1
      %p286 = scmp.lt.s32.totalorder %s24, 0
      %s287 = scalar_select %p286, %s24, 0
      %p288 = scmp.lt.s32.totalorder %s283, 3
      %s289 = scalar_select %p288, %s283, 3
      %s290 = smul.addr %s287, 4
      %s291 = sadd.s32 %s289, %s290
      %s292 = smul.addr %s285, 4
      %s293 = sadd.s32 %s291, %s292
      %s294 = smul.addr %s293, 4
      %s295 = scalar_lea.vmem %s1, %s294
      %p296 = pneg %p98
      %p297 = pneg %p95
      %s298 = smul.u32 2, %s22
      %p299 = scmp.lt.s32.totalorder %s298, 3
      %s300 = scalar_select %p299, %s298, 3
      %p301 = scmp.lt.s32.totalorder %s23, 0
      %s302 = scalar_select %p301, %s23, 0
      %p303 = scmp.lt.s32.totalorder %s24, 0
      %s304 = scalar_select %p303, %s24, 0
      %s305 = sadd.s32 %s304, %s302
      %s306 = sadd.s32 %s305, %s300
      %s307 = smul.addr %s306, 4
      %s308 = scalar_lea.vmem %s2, %s307
      %p309 = pneg %p128
      %p310 = pneg %p125
      %p311 = scmp.lt.s32.totalorder %s21, 1
      %s312 = scalar_select %p311, %s21, 1
      %p313 = scmp.lt.s32.totalorder %s23, 0
      %s314 = scalar_select %p313, %s23, 0
      %s315 = sadd.s32 %s314, %s312
      %s316 = smul.addr %s315, 8
      %s317 = scalar_lea.vmem %s3, %s316
      %p318 = pneg %p156
      %p319 = pneg %p153
      %p320 = pneg %p186
      %p321 = pneg %p183
      %p322 = scmp.lt.s32.totalorder %s21, 1
      %s323 = scalar_select %p322, %s21, 1
      %p324 = scmp.lt.s32.totalorder %s23, 0
      %s325 = scalar_select %p324, %s23, 0
      %p326 = scmp.lt.s32.totalorder %s22, 1
      %s327 = scalar_select %p326, %s22, 1
      %s328 = smul.addr %s325, 2
      %s329 = sadd.s32 %s327, %s328
      %s330 = smul.addr %s323, 2
      %s331 = sadd.s32 %s329, %s330
      %s332 = smul.addr %s331, 4
      %s333 = scalar_lea.vmem %s4, %s332
      %p334 = scmp.lt.s32.totalorder %s21, 1
      %s335 = scalar_select %p334, %s21, 1
      %p336 = scmp.lt.s32.totalorder %s23, 0
      %s337 = scalar_select %p336, %s23, 0
      %p338 = scmp.lt.s32.totalorder %s22, 3
      %s339 = scalar_select %p338, %s22, 3
      %s340 = smul.addr %s337, 4
      %s341 = sadd.s32 %s339, %s340
      %s342 = smul.addr %s335, 4
      %s343 = sadd.s32 %s341, %s342
      %s344 = smul.addr %s343, 4
      %s345 = scalar_lea.vmem %s0, %s344
      %s346 = sadd.s32 %s22, 2
      %p347 = scmp.lt.s32.totalorder %s21, 1
      %s348 = scalar_select %p347, %s21, 1
      %p349 = scmp.lt.s32.totalorder %s24, 0
      %s350 = scalar_select %p349, %s24, 0
      %p351 = scmp.lt.s32.totalorder %s346, 3
      %s352 = scalar_select %p351, %s346, 3
      %s353 = smul.addr %s350, 4
      %s354 = sadd.s32 %s352, %s353
      %s355 = smul.addr %s348, 4
      %s356 = sadd.s32 %s354, %s355
      %s357 = smul.addr %s356, 4
      %s358 = scalar_lea.vmem %s1, %s357
      %s359 = sadd.s32 %s22, 2
      %s360 = smul.u32 2, %s22
      %p361 = scmp.lt.s32.totalorder %s360, 3
      %s362 = scalar_select %p361, %s360, 3
      %p363 = scmp.lt.s32.totalorder %s23, 0
      %s364 = scalar_select %p363, %s23, 0
      %p365 = scmp.lt.s32.totalorder %s24, 0
      %s366 = scalar_select %p365, %s24, 0
      %s367 = sadd.s32 %s366, %s364
      %s368 = sadd.s32 %s367, %s362
      %s369 = smul.addr %s368, 4
      %s370 = scalar_lea.vmem %s2, %s369
      %s371 = smul.u32 2, %s22
      %p372 = scmp.lt.s32.totalorder %s21, 1
      %s373 = scalar_select %p372, %s21, 1
      %p374 = scmp.lt.s32.totalorder %s23, 0
      %s375 = scalar_select %p374, %s23, 0
      %s376 = sadd.s32 %s375, %s373
      %s377 = smul.addr %s376, 8
      %s378 = scalar_lea.vmem %s3, %s377
      %p379 = scmp.lt.s32.totalorder %s21, 1
      %s380 = scalar_select %p379, %s21, 1
      %p381 = scmp.lt.s32.totalorder %s23, 0
      %s382 = scalar_select %p381, %s23, 0
      %p383 = scmp.lt.s32.totalorder %s22, 1
      %s384 = scalar_select %p383, %s22, 1
      %s385 = smul.addr %s382, 2
      %s386 = sadd.s32 %s384, %s385
      %s387 = smul.addr %s380, 2
      %s388 = sadd.s32 %s386, %s387
      %s389 = smul.addr %s388, 4
      %s390 = scalar_lea.vmem %s4, %s389
      %p392 = scmp.eq.s32.totalorder %s24, 0
      // Predicated region
      $region37: #{transformer_forward.18} parent=35 // pred_check
        %p393 = pneg %p392
      $region38: #{transformer_forward.18} parent=35 // pred_check_branch
        %395 = sbr.rel (%p393) target = $region40
      $region39: #{transformer_forward.18} parent=35 // pred_region
        %v396 = vld [vmem:[%s345] sm:$0xf]
        %v397 = vld [vmem:[%s378] sm:$0xff]
        %v398 = vcvt.s32.f32 %v397
        %vm399 = vcmask 519168
        %400 = vst.msk [vmem:[#allocation2] sm:$0xf] %vm399, %v396
        %vm401 = vcmask 7168
        %402 = vst.msk [vmem:[#allocation3] sm:$0xff] %vm401, %v398
        %v404 = vunpack.c.l.b16 %v396
        %v405 = vpack.c.b16 %v404, %v404
        %406 = vrot.lane.b32.xlu0 %v405, 64
        %v407 = vpop.permute.xlu0 %406
        %vm409 = vcmask 523268
        %410 = vst.msk [vmem:[#allocation2] sm:$0xf0] %vm409, %v407
        %411 = vst.msk [vmem:[#allocation3 + $0x8] sm:$0xff] %vm401, %v398
        %412 = vst.msk [vmem:[#allocation4] sm:$0xff] %vm401, -inf
        %413 = vst.msk [vmem:[#allocation4 + $0x8] sm:$0xff] %vm401, -inf
        %414 = vst.msk [vmem:[#allocation5] sm:$0xff] %vm401, 0.0
        %415 = vst.msk [vmem:[#allocation5 + $0x8] sm:$0xff] %vm401, 0.0
        %vm416 = vcmask 523264
        %417 = vst.msk [vmem:[#allocation6] sm:$0xff] %vm416, 0.0
        %418 = vst.msk [vmem:[#allocation6 + $0x8] sm:$0xff] %vm416, 0.0
      $region40: #{transformer_forward.18} parent=35 // pred_fallthru
        _
      %v419 = vld [vmem:[%s358] sm:$0xf]
      %v420 = vld [vmem:[#allocation2] sm:$0xff]
      %vm421 = vcmask 523264
      %v423 = vsel %vm421, %v420, 0
      %v426 = vsel %vm421, %v419, 0
      %428 = vmatprep.subr.bf16.mxu0 0
      %429 = vmatpush1.bf16.xpose.msra.mxu0 %v426
      %430 = vmatprep.subr.bf16.mxu0 0
      %431 = vmatpush1.bf16.xpose.msra.mxu0 0
      %432 = vmatprep.subr.bf16.mxu0 0
      %433 = vmatpush1.bf16.xpose.msra.mxu0 0
      %434 = vmatprep.subr.bf16.mxu0 0
      %435 = vmatpush1.bf16.xpose.msra.mxu0 0
      %436 = vmatprep.subr.bf16.mxu0 0
      %437 = vmatpush1.bf16.xpose.msra.mxu0 0
      %438 = vmatprep.subr.bf16.mxu0 0
      %439 = vmatpush1.bf16.xpose.msra.mxu0 0
      %440 = vmatprep.subr.bf16.mxu0 0
      %441 = vmatpush1.bf16.xpose.msra.mxu0 0
      %442 = vmatprep.subr.bf16.mxu0 0
      %443 = vmatpush1.bf16.xpose.msra.mxu0 0
      %444 = vmatprep.subr.bf16.mxu0 0
      %445 = vmatpush1.bf16.xpose.msra.mxu0 0
      %446 = vmatprep.subr.bf16.mxu0 0
      %447 = vmatpush1.bf16.xpose.msra.mxu0 0
      %448 = vmatprep.subr.bf16.mxu0 0
      %449 = vmatpush1.bf16.xpose.msra.mxu0 0
      %450 = vmatprep.subr.bf16.mxu0 0
      %451 = vmatpush1.bf16.xpose.msra.mxu0 0
      %452 = vmatprep.subr.bf16.mxu0 0
      %453 = vmatpush1.bf16.xpose.msra.mxu0 0
      %454 = vmatprep.subr.bf16.mxu0 0
      %455 = vmatpush1.bf16.xpose.msra.mxu0 0
      %456 = vmatprep.subr.bf16.mxu0 0
      %457 = vmatpush1.bf16.xpose.msra.mxu0 0
      %458 = vmatprep.subr.bf16.mxu0 0
      %459 = vmatpush1.bf16.xpose.msra.mxu0 0
      %460 = vmatprep.mubr.bf16.mxu0 0
      %461 = vmatmul.mubr.bf16.gmra.mrb[0].mxu0 %v423
      %v462 = vpop.f32.mrb[0].mxu0
      %v463 = vadd.f32 0.0, %v462
      %v464 = vpop.f32.mrb[0].mxu0
      %v465 = vpop.f32.mrb[0].mxu0
      %v466 = vadd.f32 0.0, %v465
      %v467 = vpop.f32.mrb[0].mxu0
      %468 = vdwg.mxu0
      %v469 = vmul.f32 %v463, 0.125
      %v470 = vmul.f32 %v466, 0.125
      %v471 = vld [vmem:[%s370] sm:$0xf]
      %v472 = vld [vmem:[%s370 + $0x4] sm:$0xf]
      %v473 = vunpack.c.l.bf16 %v471
      %v474 = vunpack.c.l.bf16 %v472
      %v475 = vadd.f32 %v469, %v473
      %v476 = vadd.f32 %v470, %v474
      %v477 = vld [vmem:[#allocation3] sm:$0xff]
      %v478 = vld [vmem:[#allocation3 + $0x8] sm:$0xff]
      %vm479 = vcmp.ne.f32.partialorder %v477, 0.0
      %vm480 = vcmp.ne.f32.partialorder %v478, 0.0
      %v481 = vsel %vm479, 1, 0
      %v482 = vsel %vm480, 1, 0
      %483 = vset.pattern.permute.xlu0 0
      %484 = vperm.xlu0 %483, %v481
      %v485 = vpop.permute.xlu0 %484
      %486 = vset.pattern.permute.xlu0 0
      %487 = vperm.xlu0 %486, %v482
      %v488 = vpop.permute.xlu0 %487
      %vm489 = vcmp.eq.s32.totalorder %v485, 1
      %vm490 = vcmp.eq.s32.totalorder %v488, 1
      %v491 = vsel %vm489, %v475, -10000.0
      %v492 = vsel %vm490, %v476, -10000.0
      %v493 = vld [vmem:[#allocation4] sm:$0xff]
      %v494 = vld [vmem:[#allocation4 + $0x8] sm:$0xff]
      %vm495 = vcmask 64512
      %v496 = vsel %vm495, %v491, -inf
      %497 = vmax.xlane.f32.xlu0 %v496
      %v498 = vpop.xlane.xlu0 %497
      %v499 = vsel %vm495, %v492, -inf
      %500 = vmax.xlane.f32.xlu0 %v499
      %v501 = vpop.xlane.xlu0 %500
      %v502 = vmax.f32 %v493, %v498
      %v503 = vmax.f32 %v494, %v501
      %v504 = vsub.f32 %v493, %v502
      %v505 = vsub.f32 %v494, %v503
      %v506 = vmul.f32 %v504, 1.442695
      %v507 = vpow.pop %v506
      %v508 = vmul.f32 %v505, 1.442695
      %v509 = vpow.pop %v508
      %511 = vset.pattern.permute.xlu0 0
      %512 = vperm.xlu0 %511, %v502
      %v513 = vpop.permute.xlu0 %512
      %516 = vset.pattern.permute.xlu0 0
      %517 = vperm.xlu0 %516, %v503
      %v518 = vpop.permute.xlu0 %517
      %v520 = vsub.f32 %v491, %v513
      %v521 = vsub.f32 %v492, %v518
      %v522 = vmul.f32 %v520, 1.442695
      %v523 = vpow.pop %v522
      %v524 = vmul.f32 %v521, 1.442695
      %v525 = vpow.pop %v524
      %v526 = vld [vmem:[#allocation5] sm:$0xff]
      %v527 = vld [vmem:[#allocation5 + $0x8] sm:$0xff]
      %v528 = vmul.f32 %v507, %v526
      %v529 = vmul.f32 %v509, %v527
      %v530 = vsel %vm495, %v523, 0.0
      %531 = vadd.xlane.f32.xlu0 %v530
      %v532 = vpop.xlane.xlu0 %531
      %v533 = vsel %vm495, %v525, 0.0
      %534 = vadd.xlane.f32.xlu0 %v533
      %v535 = vpop.xlane.xlu0 %534
      %v536 = vadd.f32 %v528, %v532
      %v537 = vadd.f32 %v529, %v535
      %vm538 = vcmask 7168
      %539 = vst.msk [vmem:[#allocation5] sm:$0xff] %vm538, %v536
      %540 = vst.msk [vmem:[#allocation5 + $0x8] sm:$0xff] %vm538, %v537
      %v541 = vld [vmem:[#allocation6] sm:$0xff]
      %v542 = vld [vmem:[#allocation6 + $0x8] sm:$0xff]
      %544 = vset.pattern.permute.xlu0 0
      %545 = vperm.xlu0 %544, %v507
      %v546 = vpop.permute.xlu0 %545
      %549 = vset.pattern.permute.xlu0 0
      %550 = vperm.xlu0 %549, %v509
      %v551 = vpop.permute.xlu0 %550
      %v553 = vmul.f32 %v546, %v541
      %v554 = vmul.f32 %v551, %v542
      %v555 = vpack.c.bf16 %v525, %v523
      %v557 = vunpack.c.l.b16 %v419
      %v558 = vpack.c.b16 %v557, %v557
      %559 = vrot.lane.b32.xlu0 %v558, 64
      %v560 = vpop.permute.xlu0 %559
      %v562 = vsel %vm495, %v555, 0
      %vm564 = vcmask 1043456
      %v566 = vsel %vm564, %v560, 0
      %568 = vmatprep.subr.bf16.mxu0 0
      %569 = vmatpush1.bf16.msra.mxu0 %v566
      %570 = vmatprep.subr.bf16.mxu0 0
      %571 = vmatpush1.bf16.msra.mxu0 0
      %572 = vmatprep.subr.bf16.mxu0 0
      %573 = vmatpush1.bf16.msra.mxu0 0
      %574 = vmatprep.subr.bf16.mxu0 0
      %575 = vmatpush1.bf16.msra.mxu0 0
      %576 = vmatprep.subr.bf16.mxu0 0
      %577 = vmatpush1.bf16.msra.mxu0 0
      %578 = vmatprep.subr.bf16.mxu0 0
      %579 = vmatpush1.bf16.msra.mxu0 0
      %580 = vmatprep.subr.bf16.mxu0 0
      %581 = vmatpush1.bf16.msra.mxu0 0
      %582 = vmatprep.subr.bf16.mxu0 0
      %583 = vmatpush1.bf16.msra.mxu0 0
      %584 = vmatprep.subr.bf16.mxu0 0
      %585 = vmatpush1.bf16.msra.mxu0 0
      %586 = vmatprep.subr.bf16.mxu0 0
      %587 = vmatpush1.bf16.msra.mxu0 0
      %588 = vmatprep.subr.bf16.mxu0 0
      %589 = vmatpush1.bf16.msra.mxu0 0
      %590 = vmatprep.subr.bf16.mxu0 0
      %591 = vmatpush1.bf16.msra.mxu0 0
      %592 = vmatprep.subr.bf16.mxu0 0
      %593 = vmatpush1.bf16.msra.mxu0 0
      %594 = vmatprep.subr.bf16.mxu0 0
      %595 = vmatpush1.bf16.msra.mxu0 0
      %596 = vmatprep.subr.bf16.mxu0 0
      %597 = vmatpush1.bf16.msra.mxu0 0
      %598 = vmatprep.subr.bf16.mxu0 0
      %599 = vmatpush1.bf16.msra.mxu0 0
      %600 = vmatprep.mubr.bf16.mxu0 0
      %601 = vmatmul.mubr.bf16.gmra.mrb[0].mxu0 %v562
      %v602 = vpop.f32.mrb[0].mxu0
      %v603 = vadd.f32 0.0, %v602
      %v604 = vpop.f32.mrb[0].mxu0
      %v605 = vpop.f32.mrb[0].mxu0
      %v606 = vadd.f32 0.0, %v605
      %v607 = vpop.f32.mrb[0].mxu0
      %608 = vdwg.mxu0
      %v609 = vadd.f32 %v553, %v603
      %v610 = vadd.f32 %v554, %v606
      %611 = vst.msk [vmem:[#allocation6] sm:$0xff] %vm421, %v609
      %612 = vst.msk [vmem:[#allocation6 + $0x8] sm:$0xff] %vm421, %v610
      %613 = vst.msk [vmem:[#allocation4] sm:$0xff] %vm538, %v502
      %614 = vst.msk [vmem:[#allocation4 + $0x8] sm:$0xff] %vm538, %v503
      // Predicated region
      $region41: #{transformer_forward.18} parent=35 // pred_check
        %p615 = pneg %p392
      $region42: #{transformer_forward.18} parent=35 // pred_check_branch
        %617 = sbr.rel (%p615) target = $region44
      $region43: #{transformer_forward.18} parent=35 // pred_region
        %v618 = vld [vmem:[#allocation6] sm:$0xff]
        %v619 = vld [vmem:[#allocation6 + $0x8] sm:$0xff]
        %v620 = vld [vmem:[#allocation5] sm:$0xff]
        %v621 = vld [vmem:[#allocation5 + $0x8] sm:$0xff]
        %v622 = vrcp.pop %v620
        %v623 = vrcp.pop %v621
        %625 = vset.pattern.permute.xlu0 0
        %626 = vperm.xlu0 %625, %v622
        %v627 = vpop.permute.xlu0 %626
        %630 = vset.pattern.permute.xlu0 0
        %631 = vperm.xlu0 %630, %v623
        %v632 = vpop.permute.xlu0 %631
        %v634 = vmul.f32 %v618, %v627
        %v635 = vmul.f32 %v619, %v632
        %637 = vrot.lane.b32.xlu0 %v635, 64
        %v638 = vpop.permute.xlu0 %637
        %v640 = vsel %vm421, %v634, %v638
        %v641 = vpack.c.bf16 %v640, %v640
        %642 = vst [vmem:[%s390] sm:$0xf] %v641
      $region44: #{transformer_forward.18} parent=35 // pred_fallthru
        _
      %p643 = scmp.lt.s32.totalorder %s21, 1
      %s644 = scalar_select %p643, %s21, 1
      %p645 = scmp.lt.s32.totalorder %s23, 0
      %s646 = scalar_select %p645, %s23, 0
      %p647 = scmp.lt.s32.totalorder %s22, 1
      %s648 = scalar_select %p647, %s22, 1
      %s649 = smul.addr %s646, 2
      %s650 = sadd.s32 %s648, %s649
      %s651 = smul.addr %s644, 2
      %s652 = sadd.s32 %s650, %s651
      %s653 = smul.addr %s652, 4
      %s654 = scalar_lea.vmem %s4, %s653
      // Predicated region
      $region45: #{transformer_forward.18} parent=35 // pred_check
        %p655 = pneg %p183
      $region46: #{transformer_forward.18} parent=35 // pred_check_branch
        %657 = sbr.rel (%p655) target = $region48
      $region47: #{transformer_forward.18} parent=35 // pred_region
        _
      $region48: #{transformer_forward.18} parent=35 // pred_fallthru
        _
    $region36: #{transformer_forward.18} parent=5 // pred_fallthru
      _
    %p658 = scmp.le.s32.totalorder 2, %s10
    // Predicated region
    $region49: #{transformer_forward.18} parent=5 // pred_check
      %p659 = pneg %p658
    $region50: #{transformer_forward.18} parent=5 // pred_check_branch
      %661 = sbr.rel (%p659) target = $region52
    $region51: #{transformer_forward.18} parent=5 // pred_region
      %s662 = ssub.s32 %s10, 2
      // Predicated region
      $region53: #{transformer_forward.18} parent=51 // pred_check
        %p663 = pneg %p189
      $region54: #{transformer_forward.18} parent=51 // pred_check_branch
        %665 = sbr.rel (%p663) target = $region56
      $region55: #{transformer_forward.18} parent=51 // pred_region
        %p666 = scmp.lt.s32.totalorder %s25, 1
        %s667 = scalar_select %p666, %s25, 1
        %p668 = scmp.lt.s32.totalorder %s27, 0
        %s669 = scalar_select %p668, %s27, 0
        %p670 = scmp.lt.s32.totalorder %s26, 1
        %s671 = scalar_select %p670, %s26, 1
        %s672 = smul.addr %s669, 2
        %s673 = sadd.s32 %s671, %s672
        %s674 = smul.addr %s667, 2
        %s675 = sadd.s32 %s673, %s674
        %s676 = smul.addr %s675, 4
        %s677 = scalar_lea.vmem %s4, %s676
      $region56: #{transformer_forward.18} parent=51 // pred_fallthru
        _
    $region52: #{transformer_forward.18} parent=5 // pred_fallthru
      _
  $region6: #{transformer_forward.18} parent=0 // loop_footer
    %s14 = sadd.s32 1, %s10
  $region7: #{transformer_forward.18} parent=0 // loop_footer_branch
    %9 = sbr.rel target = $region3
  $region8: #{transformer_forward.18} parent=0 // loop_exit
    _

// kernel: transformer_forward.19
$region0: #{transformer_forward.19}
  #allocation0 [shape = 'u32[]', space=smem, size = 0x4, offset = 0x4, fixed_abs, tag = 'smem constant byte address 0x4 - core index']
  #allocation1 [shape = 'u32[144,128]{1,0:T(1,128)}', space=vmem, size = 0x12000, scoped, tag = 'internal scratch']
  #allocation2 [shape = 'f32[16,256]{1,0:T(8,128)}', space=vmem, size = 0x4000, scoped, tag = 'scratch operand']
  %s0 = inlined_call_operand.vmem [shape: bf16[16,256], index: 0, kind: input, shape index: {}]
  %s1 = inlined_call_operand.vmem [shape: bf16[256,256], index: 1, kind: input, shape index: {}]
  %s2 = inlined_call_operand.vmem [shape: f32[1,256], index: 2, kind: input, shape index: {}]
  %s3 = inlined_call_operand.vmem [shape: bf16[16,256], index: 3, kind: input, shape index: {}]
  %s4 = inlined_call_operand.vmem [shape: bf16[16,256], index: 4, kind: output, shape index: {}]
  %s5 = sld [smem:[#allocation0]]
  $region34: #{transformer_forward.19} parent=0
    _
  %s7 = ssub.s32 1, %s5
  %s8 = scalar_select 0, %s7, %s5
  // Predicated region
  $region2: #{transformer_forward.19} parent=0 // pred_check
    _
  $region3: #{transformer_forward.19} parent=0 // pred_check_branch
    %10 = sbr.rel (0) target = $region5
  $region4: #{transformer_forward.19} parent=0 // pred_region
    _
  $region5: #{transformer_forward.19} parent=0 // pred_fallthru
    _
  // Predicated region
  $region6: #{transformer_forward.19} parent=0 // pred_check
    _
  $region7: #{transformer_forward.19} parent=0 // pred_check_branch
    %12 = sbr.rel (0) target = $region9
  $region8: #{transformer_forward.19} parent=0 // pred_region
    _
  $region9: #{transformer_forward.19} parent=0 // pred_fallthru
    _
  // Predicated region
  $region10: #{transformer_forward.19} parent=0 // pred_check
    _
  $region11: #{transformer_forward.19} parent=0 // pred_check_branch
    %14 = sbr.rel (0) target = $region13
  $region12: #{transformer_forward.19} parent=0 // pred_region
    _
  $region13: #{transformer_forward.19} parent=0 // pred_fallthru
    _
  // Predicated region
  $region14: #{transformer_forward.19} parent=0 // pred_check
    _
  $region15: #{transformer_forward.19} parent=0 // pred_check_branch
    %16 = sbr.rel (0) target = $region17
  $region16: #{transformer_forward.19} parent=0 // pred_region
    _
  $region17: #{transformer_forward.19} parent=0 // pred_fallthru
    _
  %p17 = scmp.eq.s32.totalorder 0, 0
  // Predicated region
  $region18: #{transformer_forward.19} parent=0 // pred_check
    %p18 = pneg %p17
  $region19: #{transformer_forward.19} parent=0 // pred_check_branch
    %20 = sbr.rel (%p18) target = $region21
  $region20: #{transformer_forward.19} parent=0 // pred_region
    %21 = vst [vmem:[#allocation2] sm:$0xff] 0.0
    %22 = vst [vmem:[#allocation2 + $0x8] sm:$0xff] 0.0
    %23 = vst [vmem:[#allocation2 + $0x10] sm:$0xff] 0.0
    %24 = vst [vmem:[#allocation2 + $0x18] sm:$0xff] 0.0
  $region21: #{transformer_forward.19} parent=0 // pred_fallthru
    _
  %v25 = vld [vmem:[%s0] sm:$0xff]
  %v26 = vld [vmem:[%s0 + $0x8] sm:$0xff]
  %v27 = vld [vmem:[#allocation2] sm:$0xff]
  %v28 = vld [vmem:[#allocation2 + $0x8] sm:$0xff]
  %v29 = vld [vmem:[#allocation2 + $0x10] sm:$0xff]
  %v30 = vld [vmem:[#allocation2 + $0x18] sm:$0xff]
  %v31 = vld [vmem:[%s1] sm:$0xff]
  %v32 = vld [vmem:[%s1 + $0x8] sm:$0xff]
  %v33 = vld [vmem:[%s1 + $0x10] sm:$0xff]
  %v34 = vld [vmem:[%s1 + $0x18] sm:$0xff]
  %v35 = vld [vmem:[%s1 + $0x20] sm:$0xff]
  %v36 = vld [vmem:[%s1 + $0x28] sm:$0xff]
  %v37 = vld [vmem:[%s1 + $0x30] sm:$0xff]
  %v38 = vld [vmem:[%s1 + $0x38] sm:$0xff]
  %v39 = vld [vmem:[%s1 + $0x40] sm:$0xff]
  %v40 = vld [vmem:[%s1 + $0x48] sm:$0xff]
  %v41 = vld [vmem:[%s1 + $0x50] sm:$0xff]
  %v42 = vld [vmem:[%s1 + $0x58] sm:$0xff]
  %v43 = vld [vmem:[%s1 + $0x60] sm:$0xff]
  %v44 = vld [vmem:[%s1 + $0x68] sm:$0xff]
  %v45 = vld [vmem:[%s1 + $0x70] sm:$0xff]
  %v46 = vld [vmem:[%s1 + $0x78] sm:$0xff]
  %v47 = vld [vmem:[%s1 + $0x80] sm:$0xff]
  %v48 = vld [vmem:[%s1 + $0x88] sm:$0xff]
  %v49 = vld [vmem:[%s1 + $0x90] sm:$0xff]
  %v50 = vld [vmem:[%s1 + $0x98] sm:$0xff]
  %v51 = vld [vmem:[%s1 + $0xa0] sm:$0xff]
  %v52 = vld [vmem:[%s1 + $0xa8] sm:$0xff]
  %v53 = vld [vmem:[%s1 + $0xb0] sm:$0xff]
  %v54 = vld [vmem:[%s1 + $0xb8] sm:$0xff]
  %v55 = vld [vmem:[%s1 + $0xc0] sm:$0xff]
  %v56 = vld [vmem:[%s1 + $0xc8] sm:$0xff]
  %v57 = vld [vmem:[%s1 + $0xd0] sm:$0xff]
  %v58 = vld [vmem:[%s1 + $0xd8] sm:$0xff]
  %v59 = vld [vmem:[%s1 + $0xe0] sm:$0xff]
  %v60 = vld [vmem:[%s1 + $0xe8] sm:$0xff]
  %v61 = vld [vmem:[%s1 + $0xf0] sm:$0xff]
  %v62 = vld [vmem:[%s1 + $0xf8] sm:$0xff]
  %v65 = vunpack.c.l.b16 %v25
  %v66 = vunpack.c.h.b16 %v25
  %v67 = vunpack.c.l.b16 %v26
  %v68 = vunpack.c.h.b16 %v26
  %v69 = vpack.c.b16 %v67, %v65
  %v70 = vpack.c.b16 %v68, %v66
  %v105 = vunpack.c.l.b16 %v31
  %v106 = vunpack.c.h.b16 %v31
  %v107 = vunpack.c.l.b16 %v32
  %v108 = vunpack.c.h.b16 %v32
  %v109 = vunpack.c.l.b16 %v33
  %v110 = vunpack.c.h.b16 %v33
  %v111 = vunpack.c.l.b16 %v34
  %v112 = vunpack.c.h.b16 %v34
  %v113 = vunpack.c.l.b16 %v35
  %v114 = vunpack.c.h.b16 %v35
  %v115 = vunpack.c.l.b16 %v36
  %v116 = vunpack.c.h.b16 %v36
  %v117 = vunpack.c.l.b16 %v37
  %v118 = vunpack.c.h.b16 %v37
  %v119 = vunpack.c.l.b16 %v38
  %v120 = vunpack.c.h.b16 %v38
  %v121 = vunpack.c.l.b16 %v39
  %v122 = vunpack.c.h.b16 %v39
  %v123 = vunpack.c.l.b16 %v40
  %v124 = vunpack.c.h.b16 %v40
  %v125 = vunpack.c.l.b16 %v41
  %v126 = vunpack.c.h.b16 %v41
  %v127 = vunpack.c.l.b16 %v42
  %v128 = vunpack.c.h.b16 %v42
  %v129 = vunpack.c.l.b16 %v43
  %v130 = vunpack.c.h.b16 %v43
  %v131 = vunpack.c.l.b16 %v44
  %v132 = vunpack.c.h.b16 %v44
  %v133 = vunpack.c.l.b16 %v45
  %v134 = vunpack.c.h.b16 %v45
  %v135 = vunpack.c.l.b16 %v46
  %v136 = vunpack.c.h.b16 %v46
  %v137 = vunpack.c.l.b16 %v47
  %v138 = vunpack.c.h.b16 %v47
  %v139 = vunpack.c.l.b16 %v48
  %v140 = vunpack.c.h.b16 %v48
  %v141 = vunpack.c.l.b16 %v49
  %v142 = vunpack.c.h.b16 %v49
  %v143 = vunpack.c.l.b16 %v50
  %v144 = vunpack.c.h.b16 %v50
  %v145 = vunpack.c.l.b16 %v51
  %v146 = vunpack.c.h.b16 %v51
  %v147 = vunpack.c.l.b16 %v52
  %v148 = vunpack.c.h.b16 %v52
  %v149 = vunpack.c.l.b16 %v53
  %v150 = vunpack.c.h.b16 %v53
  %v151 = vunpack.c.l.b16 %v54
  %v152 = vunpack.c.h.b16 %v54
  %v153 = vunpack.c.l.b16 %v55
  %v154 = vunpack.c.h.b16 %v55
  %v155 = vunpack.c.l.b16 %v56
  %v156 = vunpack.c.h.b16 %v56
  %v157 = vunpack.c.l.b16 %v57
  %v158 = vunpack.c.h.b16 %v57
  %v159 = vunpack.c.l.b16 %v58
  %v160 = vunpack.c.h.b16 %v58
  %v161 = vunpack.c.l.b16 %v59
  %v162 = vunpack.c.h.b16 %v59
  %v163 = vunpack.c.l.b16 %v60
  %v164 = vunpack.c.h.b16 %v60
  %v165 = vunpack.c.l.b16 %v61
  %v166 = vunpack.c.h.b16 %v61
  %v167 = vunpack.c.l.b16 %v62
  %v168 = vunpack.c.h.b16 %v62
  %v169 = vpack.c.b16 %v107, %v105
  %v170 = vpack.c.b16 %v108, %v106
  %v171 = vpack.c.b16 %v111, %v109
  %v172 = vpack.c.b16 %v112, %v110
  %v173 = vpack.c.b16 %v115, %v113
  %v174 = vpack.c.b16 %v116, %v114
  %v175 = vpack.c.b16 %v119, %v117
  %v176 = vpack.c.b16 %v120, %v118
  %v177 = vpack.c.b16 %v123, %v121
  %v178 = vpack.c.b16 %v124, %v122
  %v179 = vpack.c.b16 %v127, %v125
  %v180 = vpack.c.b16 %v128, %v126
  %v181 = vpack.c.b16 %v131, %v129
  %v182 = vpack.c.b16 %v132, %v130
  %v183 = vpack.c.b16 %v135, %v133
  %v184 = vpack.c.b16 %v136, %v134
  %v185 = vpack.c.b16 %v139, %v137
  %v186 = vpack.c.b16 %v140, %v138
  %v187 = vpack.c.b16 %v143, %v141
  %v188 = vpack.c.b16 %v144, %v142
  %v189 = vpack.c.b16 %v147, %v145
  %v190 = vpack.c.b16 %v148, %v146
  %v191 = vpack.c.b16 %v151, %v149
  %v192 = vpack.c.b16 %v152, %v150
  %v193 = vpack.c.b16 %v155, %v153
  %v194 = vpack.c.b16 %v156, %v154
  %v195 = vpack.c.b16 %v159, %v157
  %v196 = vpack.c.b16 %v160, %v158
  %v197 = vpack.c.b16 %v163, %v161
  %v198 = vpack.c.b16 %v164, %v162
  %v199 = vpack.c.b16 %v167, %v165
  %v200 = vpack.c.b16 %v168, %v166
  %233 = vmatprep.subr.bf16.mxu0 %v170
  %234 = vmatpush1.bf16.msra.mxu0 %v169
  %235 = vmatprep.subr.bf16.mxu0 %v172
  %236 = vmatpush1.bf16.msra.mxu0 %v171
  %237 = vmatprep.subr.bf16.mxu0 %v174
  %238 = vmatpush1.bf16.msra.mxu0 %v173
  %239 = vmatprep.subr.bf16.mxu0 %v176
  %240 = vmatpush1.bf16.msra.mxu0 %v175
  %241 = vmatprep.subr.bf16.mxu0 %v178
  %242 = vmatpush1.bf16.msra.mxu0 %v177
  %243 = vmatprep.subr.bf16.mxu0 %v180
  %244 = vmatpush1.bf16.msra.mxu0 %v179
  %245 = vmatprep.subr.bf16.mxu0 %v182
  %246 = vmatpush1.bf16.msra.mxu0 %v181
  %247 = vmatprep.subr.bf16.mxu0 %v184
  %248 = vmatpush1.bf16.msra.mxu0 %v183
  %249 = vmatprep.subr.bf16.mxu0 %v186
  %250 = vmatpush1.bf16.msra.mxu0 %v185
  %251 = vmatprep.subr.bf16.mxu0 %v188
  %252 = vmatpush1.bf16.msra.mxu0 %v187
  %253 = vmatprep.subr.bf16.mxu0 %v190
  %254 = vmatpush1.bf16.msra.mxu0 %v189
  %255 = vmatprep.subr.bf16.mxu0 %v192
  %256 = vmatpush1.bf16.msra.mxu0 %v191
  %257 = vmatprep.subr.bf16.mxu0 %v194
  %258 = vmatpush1.bf16.msra.mxu0 %v193
  %259 = vmatprep.subr.bf16.mxu0 %v196
  %260 = vmatpush1.bf16.msra.mxu0 %v195
  %261 = vmatprep.subr.bf16.mxu0 %v198
  %262 = vmatpush1.bf16.msra.mxu0 %v197
  %263 = vmatprep.subr.bf16.mxu0 %v200
  %264 = vmatpush1.bf16.msra.mxu0 %v199
  %265 = vmatprep.mubr.bf16.mxu0 %v70
  %266 = vmatmul.mubr.bf16.gmra.mrb[0].mxu0 %v69
  %v267 = vpop.f32.mrb[0].mxu0
  %v268 = vadd.f32 0.0, %v267
  %v269 = vpop.f32.mrb[0].mxu0
  %v270 = vadd.f32 0.0, %v269
  %v271 = vpop.f32.mrb[0].mxu0
  %v272 = vadd.f32 0.0, %v271
  %v273 = vpop.f32.mrb[0].mxu0
  %v274 = vadd.f32 0.0, %v273
  %275 = vdwg.mxu0
  %v276 = vadd.f32 %v27, %v268
  %v277 = vadd.f32 %v28, %v270
  %v278 = vadd.f32 %v29, %v272
  %v279 = vadd.f32 %v30, %v274
  %280 = vst [vmem:[#allocation2] sm:$0xff] %v276
  %281 = vst [vmem:[#allocation2 + $0x8] sm:$0xff] %v277
  %282 = vst [vmem:[#allocation2 + $0x10] sm:$0xff] %v278
  %283 = vst [vmem:[#allocation2 + $0x18] sm:$0xff] %v279
  // Predicated region
  $region22: #{transformer_forward.19} parent=0 // pred_check
    %p284 = pneg %p17
  $region23: #{transformer_forward.19} parent=0 // pred_check_branch
    %286 = sbr.rel (%p284) target = $region25
  $region24: #{transformer_forward.19} parent=0 // pred_region
    %v287 = vld [vmem:[#allocation2] sm:$0xff]
    %v288 = vld [vmem:[#allocation2 + $0x8] sm:$0xff]
    %v289 = vld [vmem:[#allocation2 + $0x10] sm:$0xff]
    %v290 = vld [vmem:[#allocation2 + $0x18] sm:$0xff]
    %v291 = vld [vmem:[%s2] sm:$0x3]
    %v293 = vlaneseq
    %v294 = vshrl.u32 %v293, 7
    %v295 = vsub.s32 0, %v294
    %v296 = vrot.slane %v291, %v295
    %v297 = vlaneseq
    %v298 = vshrl.u32 %v297, 7
    %v299 = vsub.s32 1, %v298
    %v300 = vrot.slane %v291, %v299
    %v303 = vadd.f32 %v287, %v296
    %v304 = vadd.f32 %v288, %v300
    %v305 = vadd.f32 %v289, %v296
    %v306 = vadd.f32 %v290, %v300
    %v307 = vld [vmem:[%s3] sm:$0xff]
    %v308 = vld [vmem:[%s3 + $0x8] sm:$0xff]
    %v309 = vunpack.c.l.bf16 %v307
    %v310 = vunpack.c.h.bf16 %v307
    %v311 = vunpack.c.l.bf16 %v308
    %v312 = vunpack.c.h.bf16 %v308
    %v313 = vadd.f32 %v303, %v309
    %v314 = vadd.f32 %v304, %v310
    %v315 = vadd.f32 %v305, %v311
    %v316 = vadd.f32 %v306, %v312
    %v317 = vpack.c.bf16 %v315, %v313
    %v318 = vpack.c.bf16 %v316, %v314
    %v321 = vunpack.c.l.b16 %v317
    %v322 = vunpack.c.l.b16 %v318
    %v323 = vunpack.c.h.b16 %v317
    %v324 = vunpack.c.h.b16 %v318
    %v325 = vpack.c.b16 %v322, %v321
    %v326 = vpack.c.b16 %v324, %v323
    %329 = vst [vmem:[%s4] sm:$0xff] %v325
    %330 = vst [vmem:[%s4 + $0x8] sm:$0xff] %v326
  $region25: #{transformer_forward.19} parent=0 // pred_fallthru
    _
  // Predicated region
  $region26: #{transformer_forward.19} parent=0 // pred_check
    _
  $region27: #{transformer_forward.19} parent=0 // pred_check_branch
    %332 = sbr.rel (0) target = $region29
  $region28: #{transformer_forward.19} parent=0 // pred_region
    _
  $region29: #{transformer_forward.19} parent=0 // pred_fallthru
    _
  // Predicated region
  $region30: #{transformer_forward.19} parent=0 // pred_check
    _
  $region31: #{transformer_forward.19} parent=0 // pred_check_branch
    %334 = sbr.rel (0) target = $region33
  $region32: #{transformer_forward.19} parent=0 // pred_region
    _
  $region33: #{transformer_forward.19} parent=0 // pred_fallthru
    _

// kernel: transformer_forward.20
$region0: #{transformer_forward.20}
  #allocation0 [shape = 'u32[]', space=smem, size = 0x4, offset = 0x4, fixed_abs, tag = 'smem constant byte address 0x4 - core index']
  #allocation1 [shape = 'u32[144,128]{1,0:T(1,128)}', space=vmem, size = 0x12000, scoped, tag = 'internal scratch']
  #allocation2 [shape = 'f32[16,512]{1,0:T(8,128)}', space=vmem, size = 0x8000, scoped, tag = 'scratch operand']
  %s0 = inlined_call_operand.vmem [shape: bf16[16,256], index: 0, kind: input, shape index: {}]
  %s1 = inlined_call_operand.vmem [shape: bf16[256,1024], index: 1, kind: input, shape index: {}]
  %s2 = inlined_call_operand.vmem [shape: f32[1,1024], index: 2, kind: input, shape index: {}]
  %s3 = inlined_call_operand.vmem [shape: f32[1,256], index: 3, kind: input, shape index: {}]
  %s4 = inlined_call_operand.vmem [shape: f32[1,256], index: 4, kind: input, shape index: {}]
  %s5 = inlined_call_operand.vmem [shape: bf16[16,1024], index: 5, kind: output, shape index: {}]
  %s6 = sld [smem:[#allocation0]]
  $region103: #{transformer_forward.20} parent=0
    _
  %s8 = ssub.s32 1, %s6
  %s9 = scalar_select 0, %s8, %s6
  $region1: #{transformer_forward.20} parent=0
    #allocation3 [shape = 'u8[524288]{0}', space=vmem, size = 0x80000, scoped, tag = 'input window, operand 1']
    #allocation4 [shape = 'u8[32768]{0}', space=vmem, size = 0x8000, scoped, tag = 'output window, operand 0']
    loop: start=0, step=1, limit=4
    $region2: #{transformer_forward.20} parent=1 // loop_pre_header
      _
    $region3: #{transformer_forward.20} parent=1 // loop_header
      %s11 = sphi 0, %s15
      %p12 = scmp.ge.s32.totalorder %s11, 4
      %s18 = sphi 0, %s37
      %s19 = sphi 0, %s33
      %s20 = sphi 0, %s29
      %s21 = sphi 0, %s18
      %s22 = sphi 0, %s19
      %s23 = sphi 0, %s20
      %s24 = sphi 0, %s21
      %s25 = sphi 0, %s22
      %s26 = sphi 0, %s23
      %s42 = sphi 0, %s44
      %s45 = sphi 0, %s42
      %s46 = sphi 0, %s45
      %s62 = sphi 0, %s46
      %s70 = sphi 0, %s72
      %s73 = sphi 0, %s70
      %s74 = sphi 0, %s73
      %s90 = sphi 0, %s74
      %s96 = sphi 0, %s98
      %s99 = sphi 0, %s96
      %s100 = sphi 0, %s99
      %s116 = sphi 0, %s100
      %s120 = sphi 0, %s120
      %s122 = sphi 0, %s120
      %s123 = sphi 0, %s122
      %s137 = sphi 0, %s123
      %s141 = sphi 0, %s141
      %s143 = sphi 0, %s141
      %s144 = sphi 0, %s143
      %s158 = sphi 0, %s144
      %s166 = sphi 0, %s168
      %s169 = sphi 0, %s166
      %s170 = sphi 0, %s169
      %s186 = sphi 0, %s170
    $region4: #{transformer_forward.20} parent=1 // loop_header_branch
      %14 = sbr.rel (%p12) target = $region8
    $region5: #{transformer_forward.20} parent=1 // loop_body
      %s16 = ssub.s32 %s11, 1
      %s17 = ssub.s32 %s11, 2
      %s27 = sadd.s32 1, %s20
      %p28 = scmp.ge.s32.totalorder %s27, 1
      %s29 = scalar_select %p28, 0, %s27
      %s30 = sadd.s32 1, %s19
      %s31 = scalar_select %p28, %s30, %s19
      %p32 = scmp.ge.s32.totalorder %s31, 2
      %s33 = scalar_select %p32, 0, %s31
      %s34 = sadd.s32 1, %s18
      %s35 = scalar_select %p32, %s34, %s18
      %p36 = scmp.ge.s32.totalorder %s35, 1
      %s37 = scalar_select %p36, 0, %s35
      %s38 = ssub.s32 %s18, %s37
      %s39 = ssub.s32 %s20, %s29
      %s40 = sor.u32 %s38, %s39
      %p41 = scmp.eq.s32.totalorder %s40, 0
      %s43 = sadd.s32 %s42, 1
      %s44 = scalar_select %p41, %s42, %s43
      %p47 = pneg %p41
      %p48 = scmp.eq.s32.totalorder %s11, 1
      %p49 = por %p47, %p48
      %p50 = scmp.ne.s32.totalorder %s42, %s45
      %p51 = scmp.eq.s32.totalorder %s11, 0
      %p52 = por %p50, %p51
      %p53 = scmp.ne.s32.totalorder %s42, %s45
      %p54 = scmp.eq.s32.totalorder %s16, 1
      %p55 = por %p53, %p54
      %p56 = scmp.ne.s32.totalorder %s45, %s46
      %p57 = scmp.eq.s32.totalorder %s16, 0
      %p58 = por %p56, %p57
      %p59 = scmp.ne.s32.totalorder %s45, %s46
      %p60 = scmp.eq.s32.totalorder %s17, 1
      %p61 = por %p59, %p60
      %p63 = scmp.ne.s32.totalorder %s46, %s62
      %p64 = scmp.eq.s32.totalorder %s17, 0
      %p65 = por %p63, %p64
      %s66 = ssub.s32 %s20, %s29
      %s67 = ssub.s32 %s19, %s33
      %s68 = sor.u32 %s66, %s67
      %p69 = scmp.eq.s32.totalorder %s68, 0
      %s71 = sadd.s32 %s70, 1
      %s72 = scalar_select %p69, %s70, %s71
      %p75 = pneg %p69
      %p76 = scmp.eq.s32.totalorder %s11, 1
      %p77 = por %p75, %p76
      %p78 = scmp.ne.s32.totalorder %s70, %s73
      %p79 = scmp.eq.s32.totalorder %s11, 0
      %p80 = por %p78, %p79
      %p81 = scmp.ne.s32.totalorder %s70, %s73
      %p82 = scmp.eq.s32.totalorder %s16, 1
      %p83 = por %p81, %p82
      %p84 = scmp.ne.s32.totalorder %s73, %s74
      %p85 = scmp.eq.s32.totalorder %s16, 0
      %p86 = por %p84, %p85
      %p87 = scmp.ne.s32.totalorder %s73, %s74
      %p88 = scmp.eq.s32.totalorder %s17, 1
      %p89 = por %p87, %p88
      %p91 = scmp.ne.s32.totalorder %s74, %s90
      %p92 = scmp.eq.s32.totalorder %s17, 0
      %p93 = por %p91, %p92
      %s94 = ssub.s32 %s19, %s33
      %p95 = scmp.eq.s32.totalorder %s94, 0
      %s97 = sadd.s32 %s96, 1
      %s98 = scalar_select %p95, %s96, %s97
      %p101 = pneg %p95
      %p102 = scmp.eq.s32.totalorder %s11, 1
      %p103 = por %p101, %p102
      %p104 = scmp.ne.s32.totalorder %s96, %s99
      %p105 = scmp.eq.s32.totalorder %s11, 0
      %p106 = por %p104, %p105
      %p107 = scmp.ne.s32.totalorder %s96, %s99
      %p108 = scmp.eq.s32.totalorder %s16, 1
      %p109 = por %p107, %p108
      %p110 = scmp.ne.s32.totalorder %s99, %s100
      %p111 = scmp.eq.s32.totalorder %s16, 0
      %p112 = por %p110, %p111
      %p113 = scmp.ne.s32.totalorder %s99, %s100
      %p114 = scmp.eq.s32.totalorder %s17, 1
      %p115 = por %p113, %p114
      %p117 = scmp.ne.s32.totalorder %s100, %s116
      %p118 = scmp.eq.s32.totalorder %s17, 0
      %p119 = por %p117, %p118
      %s121 = sadd.s32 %s120, 1
      %p124 = scmp.eq.s32.totalorder %s11, 1
      %p125 = scmp.ne.s32.totalorder %s120, %s122
      %p126 = scmp.eq.s32.totalorder %s11, 0
      %p127 = por %p125, %p126
      %p128 = scmp.ne.s32.totalorder %s120, %s122
      %p129 = scmp.eq.s32.totalorder %s16, 1
      %p130 = por %p128, %p129
      %p131 = scmp.ne.s32.totalorder %s122, %s123
      %p132 = scmp.eq.s32.totalorder %s16, 0
      %p133 = por %p131, %p132
      %p134 = scmp.ne.s32.totalorder %s122, %s123
      %p135 = scmp.eq.s32.totalorder %s17, 1
      %p136 = por %p134, %p135
      %p138 = scmp.ne.s32.totalorder %s123, %s137
      %p139 = scmp.eq.s32.totalorder %s17, 0
      %p140 = por %p138, %p139
      %s142 = sadd.s32 %s141, 1
      %p145 = scmp.eq.s32.totalorder %s11, 1
      %p146 = scmp.ne.s32.totalorder %s141, %s143
      %p147 = scmp.eq.s32.totalorder %s11, 0
      %p148 = por %p146, %p147
      %p149 = scmp.ne.s32.totalorder %s141, %s143
      %p150 = scmp.eq.s32.totalorder %s16, 1
      %p151 = por %p149, %p150
      %p152 = scmp.ne.s32.totalorder %s143, %s144
      %p153 = scmp.eq.s32.totalorder %s16, 0
      %p154 = por %p152, %p153
      %p155 = scmp.ne.s32.totalorder %s143, %s144
      %p156 = scmp.eq.s32.totalorder %s17, 1
      %p157 = por %p155, %p156
      %p159 = scmp.ne.s32.totalorder %s144, %s158
      %p160 = scmp.eq.s32.totalorder %s17, 0
      %p161 = por %p159, %p160
      %s162 = ssub.s32 %s18, %s37
      %s163 = ssub.s32 %s19, %s33
      %s164 = sor.u32 %s162, %s163
      %p165 = scmp.eq.s32.totalorder %s164, 0
      %s167 = sadd.s32 %s166, 1
      %s168 = scalar_select %p165, %s166, %s167
      %p171 = pneg %p165
      %p172 = scmp.eq.s32.totalorder %s11, 1
      %p173 = por %p171, %p172
      %p174 = scmp.ne.s32.totalorder %s166, %s169
      %p175 = scmp.eq.s32.totalorder %s11, 0
      %p176 = por %p174, %p175
      %p177 = scmp.ne.s32.totalorder %s166, %s169
      %p178 = scmp.eq.s32.totalorder %s16, 1
      %p179 = por %p177, %p178
      %p180 = scmp.ne.s32.totalorder %s169, %s170
      %p181 = scmp.eq.s32.totalorder %s16, 0
      %p182 = por %p180, %p181
      %p183 = scmp.ne.s32.totalorder %s169, %s170
      %p184 = scmp.eq.s32.totalorder %s17, 1
      %p185 = por %p183, %p184
      %p187 = scmp.ne.s32.totalorder %s170, %s186
      %p188 = scmp.eq.s32.totalorder %s17, 0
      %p189 = por %p187, %p188
      %p190 = scmp.le.s32.totalorder 1, %s11
      %p191 = scmp.lt.s32.totalorder %s11, 3
      %p192 = pnand %p190, %p191
      %p193 = pneg %p192
      // Predicated region
      $region9: #{transformer_forward.20} parent=5 // pred_check
        _
      $region10: #{transformer_forward.20} parent=5 // pred_check_branch
        %195 = sbr.rel (%p192) target = $region12
      $region11: #{transformer_forward.20} parent=5 // pred_region
        %s196 = ssub.s32 %s11, 1
        // Predicated region
        $region13: #{transformer_forward.20} parent=11 // pred_check
          %p197 = pneg %p58
        $region14: #{transformer_forward.20} parent=11 // pred_check_branch
          %199 = sbr.rel (%p197) target = $region16
        $region15: #{transformer_forward.20} parent=11 // pred_region
          %s200 = smul.u32 2, %s21
          %s201 = smul.u32 2, %s23
          %p202 = scmp.lt.s32.totalorder %s200, 1
          %s203 = scalar_select %p202, %s200, 1
          %p204 = scmp.lt.s32.totalorder %s201, 1
          %s205 = scalar_select %p204, %s201, 1
          %s206 = smul.addr %s203, 2
          %s207 = sadd.s32 %s205, %s206
          %s208 = smul.addr %s207, 4
          %s209 = scalar_lea.vmem %s0, %s208
          %s210 = smul.u32 2, %s21
          %s211 = smul.u32 2, %s23
        $region16: #{transformer_forward.20} parent=11 // pred_fallthru
          _
        // Predicated region
        $region17: #{transformer_forward.20} parent=11 // pred_check
          %p212 = pneg %p133
        $region18: #{transformer_forward.20} parent=11 // pred_check_branch
          %214 = sbr.rel (%p212) target = $region20
        $region19: #{transformer_forward.20} parent=11 // pred_region
          _
        $region20: #{transformer_forward.20} parent=11 // pred_fallthru
          _
        // Predicated region
        $region21: #{transformer_forward.20} parent=11 // pred_check
          %p215 = pneg %p154
        $region22: #{transformer_forward.20} parent=11 // pred_check_branch
          %217 = sbr.rel (%p215) target = $region24
        $region23: #{transformer_forward.20} parent=11 // pred_region
          _
        $region24: #{transformer_forward.20} parent=11 // pred_fallthru
          _
      $region12: #{transformer_forward.20} parent=5 // pred_fallthru
        _
      %p218 = scmp.lt.s32.totalorder %s11, 2
      // Predicated region
      $region25: #{transformer_forward.20} parent=5 // pred_check
        %p219 = pneg %p218
      $region26: #{transformer_forward.20} parent=5 // pred_check_branch
        %221 = sbr.rel (%p219) target = $region28
      $region27: #{transformer_forward.20} parent=5 // pred_region
        // Predicated region
        $region29: #{transformer_forward.20} parent=27 // pred_check
          %p222 = pneg %p80
        $region30: #{transformer_forward.20} parent=27 // pred_check_branch
          %224 = sbr.rel (%p222) target = $region32
        $region31: #{transformer_forward.20} parent=27 // pred_region
          %s225 = sand.u32 %s70, 1
          %s226 = sand.u32 %s70, 1
          %s227 = smul.addr %s226, 512
          %s228 = scalar_lea.vmem [#allocation3], %s227
          %s229 = smul.u32 32, %s20
          %s230 = smul.u32 4, %s19
          %s231 = smul.addr %s229, 8
          %s232 = sadd.s32 %s230, %s231
          %s233 = smul.addr %s232, 4
          %s234 = scalar_lea.vmem %s1, %s233
          // Predicated region
          $region33: #{transformer_forward.20} parent=31 // pred_check
            _
          $region34: #{transformer_forward.20} parent=31 // pred_check_branch
            %236 = sbr.rel (0) target = $region36
          $region35: #{transformer_forward.20} parent=31 // pred_region
            // Predicated region
            $region37: #{transformer_forward.20} parent=35 // pred_check
              _
            $region38: #{transformer_forward.20} parent=35 // pred_check_branch
              %238 = sbr.rel (0) target = $region40
            $region39: #{transformer_forward.20} parent=35 // pred_region
              loop: start=0, step=1, limit=1
              $region41: #{transformer_forward.20} parent=39 // loop_pre_header
                _
              $region42: #{transformer_forward.20} parent=39 // loop_header
                %s240 = sphi 0, %s244
                %p241 = scmp.ge.s32.totalorder %s240, 1
                %s245 = sphi %s234, %s234
                %s246 = sphi %s228, %s228
              $region43: #{transformer_forward.20} parent=39 // loop_header_branch
                %243 = sbr.rel (%p241) target = $region47
              $region44: #{transformer_forward.20} parent=39 // loop_body
                %v247 = vld [vmem:[%s245] sm:$0xff]
                %248 = vst [vmem:[%s246] sm:$0xff] %v247
                %v249 = vld [vmem:[%s245 + $0x8] sm:$0xff]
                %250 = vst [vmem:[%s246 + $0x8] sm:$0xff] %v249
                %v251 = vld [vmem:[%s245 + $0x20] sm:$0xff]
                %252 = vst [vmem:[%s246 + $0x10] sm:$0xff] %v251
                %v253 = vld [vmem:[%s245 + $0x28] sm:$0xff]
                %254 = vst [vmem:[%s246 + $0x18] sm:$0xff] %v253
                %v255 = vld [vmem:[%s245 + $0x40] sm:$0xff]
                %256 = vst [vmem:[%s246 + $0x20] sm:$0xff] %v255
                %v257 = vld [vmem:[%s245 + $0x48] sm:$0xff]
                %258 = vst [vmem:[%s246 + $0x28] sm:$0xff] %v257
                %v259 = vld [vmem:[%s245 + $0x60] sm:$0xff]
                %260 = vst [vmem:[%s246 + $0x30] sm:$0xff] %v259
                %v261 = vld [vmem:[%s245 + $0x68] sm:$0xff]
                %262 = vst [vmem:[%s246 + $0x38] sm:$0xff] %v261
                %v263 = vld [vmem:[%s245 + $0x80] sm:$0xff]
                %264 = vst [vmem:[%s246 + $0x40] sm:$0xff] %v263
                %v265 = vld [vmem:[%s245 + $0x88] sm:$0xff]
                %266 = vst [vmem:[%s246 + $0x48] sm:$0xff] %v265
                %v267 = vld [vmem:[%s245 + $0xa0] sm:$0xff]
                %268 = vst [vmem:[%s246 + $0x50] sm:$0xff] %v267
                %v269 = vld [vmem:[%s245 + $0xa8] sm:$0xff]
                %270 = vst [vmem:[%s246 + $0x58] sm:$0xff] %v269
                %v271 = vld [vmem:[%s245 + $0xc0] sm:$0xff]
                %272 = vst [vmem:[%s246 + $0x60] sm:$0xff] %v271
                %v273 = vld [vmem:[%s245 + $0xc8] sm:$0xff]
                %274 = vst [vmem:[%s246 + $0x68] sm:$0xff] %v273
                %v275 = vld [vmem:[%s245 + $0xe0] sm:$0xff]
                %276 = vst [vmem:[%s246 + $0x70] sm:$0xff] %v275
                %v277 = vld [vmem:[%s245 + $0xe8] sm:$0xff]
                %278 = vst [vmem:[%s246 + $0x78] sm:$0xff] %v277
                %v279 = vld [vmem:[%s245 + $0x100] sm:$0xff]
                %280 = vst [vmem:[%s246 + $0x80] sm:$0xff] %v279
                %v281 = vld [vmem:[%s245 + $0x108] sm:$0xff]
                %282 = vst [vmem:[%s246 + $0x88] sm:$0xff] %v281
                %v283 = vld [vmem:[%s245 + $0x120] sm:$0xff]
                %284 = vst [vmem:[%s246 + $0x90] sm:$0xff] %v283
                %v285 = vld [vmem:[%s245 + $0x128] sm:$0xff]
                %286 = vst [vmem:[%s246 + $0x98] sm:$0xff] %v285
                %v287 = vld [vmem:[%s245 + $0x140] sm:$0xff]
                %288 = vst [vmem:[%s246 + $0xa0] sm:$0xff] %v287
                %v289 = vld [vmem:[%s245 + $0x148] sm:$0xff]
                %290 = vst [vmem:[%s246 + $0xa8] sm:$0xff] %v289
                %v291 = vld [vmem:[%s245 + $0x160] sm:$0xff]
                %292 = vst [vmem:[%s246 + $0xb0] sm:$0xff] %v291
                %v293 = vld [vmem:[%s245 + $0x168] sm:$0xff]
                %294 = vst [vmem:[%s246 + $0xb8] sm:$0xff] %v293
                %v295 = vld [vmem:[%s245 + $0x180] sm:$0xff]
                %296 = vst [vmem:[%s246 + $0xc0] sm:$0xff] %v295
                %v297 = vld [vmem:[%s245 + $0x188] sm:$0xff]
                %298 = vst [vmem:[%s246 + $0xc8] sm:$0xff] %v297
                %v299 = vld [vmem:[%s245 + $0x1a0] sm:$0xff]
                %300 = vst [vmem:[%s246 + $0xd0] sm:$0xff] %v299
                %v301 = vld [vmem:[%s245 + $0x1a8] sm:$0xff]
                %302 = vst [vmem:[%s246 + $0xd8] sm:$0xff] %v301
                %v303 = vld [vmem:[%s245 + $0x1c0] sm:$0xff]
                %304 = vst [vmem:[%s246 + $0xe0] sm:$0xff] %v303
                %v305 = vld [vmem:[%s245 + $0x1c8] sm:$0xff]
                %306 = vst [vmem:[%s246 + $0xe8] sm:$0xff] %v305
                %v307 = vld [vmem:[%s245 + $0x1e0] sm:$0xff]
                %308 = vst [vmem:[%s246 + $0xf0] sm:$0xff] %v307
                %v309 = vld [vmem:[%s245 + $0x1e8] sm:$0xff]
                %310 = vst [vmem:[%s246 + $0xf8] sm:$0xff] %v309
                %v311 = vld [vmem:[%s245 + $0x200] sm:$0xff]
                %312 = vst [vmem:[%s246 + $0x100] sm:$0xff] %v311
                %v313 = vld [vmem:[%s245 + $0x208] sm:$0xff]
                %314 = vst [vmem:[%s246 + $0x108] sm:$0xff] %v313
                %v315 = vld [vmem:[%s245 + $0x220] sm:$0xff]
                %316 = vst [vmem:[%s246 + $0x110] sm:$0xff] %v315
                %v317 = vld [vmem:[%s245 + $0x228] sm:$0xff]
                %318 = vst [vmem:[%s246 + $0x118] sm:$0xff] %v317
                %v319 = vld [vmem:[%s245 + $0x240] sm:$0xff]
                %320 = vst [vmem:[%s246 + $0x120] sm:$0xff] %v319
                %v321 = vld [vmem:[%s245 + $0x248] sm:$0xff]
                %322 = vst [vmem:[%s246 + $0x128] sm:$0xff] %v321
                %v323 = vld [vmem:[%s245 + $0x260] sm:$0xff]
                %324 = vst [vmem:[%s246 + $0x130] sm:$0xff] %v323
                %v325 = vld [vmem:[%s245 + $0x268] sm:$0xff]
                %326 = vst [vmem:[%s246 + $0x138] sm:$0xff] %v325
                %v327 = vld [vmem:[%s245 + $0x280] sm:$0xff]
                %328 = vst [vmem:[%s246 + $0x140] sm:$0xff] %v327
                %v329 = vld [vmem:[%s245 + $0x288] sm:$0xff]
                %330 = vst [vmem:[%s246 + $0x148] sm:$0xff] %v329
                %v331 = vld [vmem:[%s245 + $0x2a0] sm:$0xff]
                %332 = vst [vmem:[%s246 + $0x150] sm:$0xff] %v331
                %v333 = vld [vmem:[%s245 + $0x2a8] sm:$0xff]
                %334 = vst [vmem:[%s246 + $0x158] sm:$0xff] %v333
                %v335 = vld [vmem:[%s245 + $0x2c0] sm:$0xff]
                %336 = vst [vmem:[%s246 + $0x160] sm:$0xff] %v335
                %v337 = vld [vmem:[%s245 + $0x2c8] sm:$0xff]
                %338 = vst [vmem:[%s246 + $0x168] sm:$0xff] %v337
                %v339 = vld [vmem:[%s245 + $0x2e0] sm:$0xff]
                %340 = vst [vmem:[%s246 + $0x170] sm:$0xff] %v339
                %v341 = vld [vmem:[%s245 + $0x2e8] sm:$0xff]
                %342 = vst [vmem:[%s246 + $0x178] sm:$0xff] %v341
                %v343 = vld [vmem:[%s245 + $0x300] sm:$0xff]
                %344 = vst [vmem:[%s246 + $0x180] sm:$0xff] %v343
                %v345 = vld [vmem:[%s245 + $0x308] sm:$0xff]
                %346 = vst [vmem:[%s246 + $0x188] sm:$0xff] %v345
                %v347 = vld [vmem:[%s245 + $0x320] sm:$0xff]
                %348 = vst [vmem:[%s246 + $0x190] sm:$0xff] %v347
                %v349 = vld [vmem:[%s245 + $0x328] sm:$0xff]
                %350 = vst [vmem:[%s246 + $0x198] sm:$0xff] %v349
                %v351 = vld [vmem:[%s245 + $0x340] sm:$0xff]
                %352 = vst [vmem:[%s246 + $0x1a0] sm:$0xff] %v351
                %v353 = vld [vmem:[%s245 + $0x348] sm:$0xff]
                %354 = vst [vmem:[%s246 + $0x1a8] sm:$0xff] %v353
                %v355 = vld [vmem:[%s245 + $0x360] sm:$0xff]
                %356 = vst [vmem:[%s246 + $0x1b0] sm:$0xff] %v355
                %v357 = vld [vmem:[%s245 + $0x368] sm:$0xff]
                %358 = vst [vmem:[%s246 + $0x1b8] sm:$0xff] %v357
                %v359 = vld [vmem:[%s245 + $0x380] sm:$0xff]
                %360 = vst [vmem:[%s246 + $0x1c0] sm:$0xff] %v359
                %v361 = vld [vmem:[%s245 + $0x388] sm:$0xff]
                %362 = vst [vmem:[%s246 + $0x1c8] sm:$0xff] %v361
                %v363 = vld [vmem:[%s245 + $0x3a0] sm:$0xff]
                %364 = vst [vmem:[%s246 + $0x1d0] sm:$0xff] %v363
                %v365 = vld [vmem:[%s245 + $0x3a8] sm:$0xff]
                %366 = vst [vmem:[%s246 + $0x1d8] sm:$0xff] %v365
                %v367 = vld [vmem:[%s245 + $0x3c0] sm:$0xff]
                %368 = vst [vmem:[%s246 + $0x1e0] sm:$0xff] %v367
                %v369 = vld [vmem:[%s245 + $0x3c8] sm:$0xff]
                %370 = vst [vmem:[%s246 + $0x1e8] sm:$0xff] %v369
                %v371 = vld [vmem:[%s245 + $0x3e0] sm:$0xff]
                %372 = vst [vmem:[%s246 + $0x1f0] sm:$0xff] %v371
                %v373 = vld [vmem:[%s245 + $0x3e8] sm:$0xff]
                %374 = vst [vmem:[%s246 + $0x1f8] sm:$0xff] %v373
              $region45: #{transformer_forward.20} parent=39 // loop_footer
                %s244 = sadd.s32 1, %s240
              $region46: #{transformer_forward.20} parent=39 // loop_footer_branch
                %239 = sbr.rel target = $region42
              $region47: #{transformer_forward.20} parent=39 // loop_exit
                _
            $region40: #{transformer_forward.20} parent=35 // pred_fallthru
              _
            // Predicated region
            $region48: #{transformer_forward.20} parent=35 // pred_check
              _
            $region49: #{transformer_forward.20} parent=35 // pred_check_branch
              %376 = sbr.rel target = $region51
            $region50: #{transformer_forward.20} parent=35 // pred_region
              _
            $region51: #{transformer_forward.20} parent=35 // pred_fallthru
              _
          $region36: #{transformer_forward.20} parent=31 // pred_fallthru
            _
          %377 = vnop
        $region32: #{transformer_forward.20} parent=27 // pred_fallthru
          _
        // Predicated region
        $region52: #{transformer_forward.20} parent=27 // pred_check
          %p378 = pneg %p106
        $region53: #{transformer_forward.20} parent=27 // pred_check_branch
          %380 = sbr.rel (%p378) target = $region55
        $region54: #{transformer_forward.20} parent=27 // pred_region
          %s381 = smul.u32 4, %s19
          %p382 = scmp.lt.s32.totalorder %s381, 7
          %s383 = scalar_select %p382, %s381, 7
          %s384 = scalar_lea.vmem %s2, %s383
          %s385 = smul.u32 4, %s19
        $region55: #{transformer_forward.20} parent=27 // pred_fallthru
          _
      $region28: #{transformer_forward.20} parent=5 // pred_fallthru
        _
      %p386 = scmp.le.s32.totalorder 1, %s11
      %p387 = scmp.lt.s32.totalorder %s11, 3
      %p388 = pnand %p386, %p387
      %p389 = pneg %p388
      // Predicated region
      $region56: #{transformer_forward.20} parent=5 // pred_check
        _
      $region57: #{transformer_forward.20} parent=5 // pred_check_branch
        %391 = sbr.rel (%p388) target = $region59
      $region58: #{transformer_forward.20} parent=5 // pred_region
        %s392 = ssub.s32 %s11, 1
        %s393 = sand.u32 %s73, 1
        %s394 = sand.u32 %s73, 1
        %s395 = smul.addr %s394, 512
        %s396 = scalar_lea.vmem [#allocation3], %s395
        // Predicated region
        $region60: #{transformer_forward.20} parent=58 // pred_check
          %p397 = pneg %p86
        $region61: #{transformer_forward.20} parent=58 // pred_check_branch
          %399 = sbr.rel (%p397) target = $region63
        $region62: #{transformer_forward.20} parent=58 // pred_region
          _
        $region63: #{transformer_forward.20} parent=58 // pred_fallthru
          _
        %s400 = smul.u32 2, %s21
        %s401 = smul.u32 2, %s23
        %p402 = scmp.lt.s32.totalorder %s400, 1
        %s403 = scalar_select %p402, %s400, 1
        %p404 = scmp.lt.s32.totalorder %s401, 1
        %s405 = scalar_select %p404, %s401, 1
        %s406 = smul.addr %s403, 2
        %s407 = sadd.s32 %s405, %s406
        %s408 = smul.addr %s407, 4
        %s409 = scalar_lea.vmem %s0, %s408
        %p410 = pneg %p58
        %p411 = pneg %p55
        %s412 = sand.u32 %s73, 1
        %s413 = sand.u32 %s73, 1
        %s414 = smul.addr %s413, 512
        %s415 = scalar_lea.vmem [#allocation3], %s414
        %p416 = pneg %p86
        %p417 = pneg %p83
        %s418 = smul.u32 4, %s22
        %p419 = scmp.lt.s32.totalorder %s418, 7
        %s420 = scalar_select %p419, %s418, 7
        %s421 = scalar_lea.vmem %s2, %s420
        %p422 = pneg %p112
        %p423 = pneg %p109
        %p424 = pneg %p133
        %p425 = pneg %p130
        %p426 = pneg %p154
        %p427 = pneg %p151
        %p428 = pneg %p182
        %p429 = pneg %p179
        %s430 = sand.u32 %s169, 1
        %s431 = sand.u32 %s169, 1
        %s432 = smul.addr %s431, 32
        %s433 = scalar_lea.vmem [#allocation4], %s432
        %s434 = smul.u32 2, %s21
        %s435 = smul.u32 2, %s23
        %p436 = scmp.lt.s32.totalorder %s434, 1
        %s437 = scalar_select %p436, %s434, 1
        %p438 = scmp.lt.s32.totalorder %s435, 1
        %s439 = scalar_select %p438, %s435, 1
        %s440 = smul.addr %s437, 2
        %s441 = sadd.s32 %s439, %s440
        %s442 = smul.addr %s441, 4
        %s443 = scalar_lea.vmem %s0, %s442
        %s444 = smul.u32 2, %s21
        %s445 = smul.u32 2, %s23
        %s446 = smul.u32 32, %s23
        %s447 = smul.u32 4, %s22
        %s448 = smul.u32 4, %s22
        %p449 = scmp.lt.s32.totalorder %s448, 7
        %s450 = scalar_select %p449, %s448, 7
        %s451 = scalar_lea.vmem %s2, %s450
        %s452 = smul.u32 4, %s22
        %s453 = smul.u32 2, %s21
        %s454 = smul.u32 4, %s22
        %p455 = scmp.eq.s32.totalorder %s23, 0
        // Predicated region
        $region64: #{transformer_forward.20} parent=58 // pred_check
          %p456 = pneg %p455
        $region65: #{transformer_forward.20} parent=58 // pred_check_branch
          %458 = sbr.rel (%p456) target = $region67
        $region66: #{transformer_forward.20} parent=58 // pred_region
          %459 = vst [vmem:[#allocation2] sm:$0xff] 0.0
          %460 = vst [vmem:[#allocation2 + $0x8] sm:$0xff] 0.0
          %461 = vst [vmem:[#allocation2 + $0x10] sm:$0xff] 0.0
          %462 = vst [vmem:[#allocation2 + $0x18] sm:$0xff] 0.0
          %463 = vst [vmem:[#allocation2 + $0x20] sm:$0xff] 0.0
          %464 = vst [vmem:[#allocation2 + $0x28] sm:$0xff] 0.0
          %465 = vst [vmem:[#allocation2 + $0x30] sm:$0xff] 0.0
          %466 = vst [vmem:[#allocation2 + $0x38] sm:$0xff] 0.0
        $region67: #{transformer_forward.20} parent=58 // pred_fallthru
          _
        %v467 = vld [vmem:[%s443] sm:$0xff]
        %v468 = vld [vmem:[%s443 + $0x8] sm:$0xff]
        %v469 = vunpack.c.l.bf16 %v467
        %v470 = vunpack.c.h.bf16 %v467
        %v471 = vunpack.c.l.bf16 %v468
        %v472 = vunpack.c.h.bf16 %v468
        %v473 = vadd.f32 %v469, %v470
        %474 = vadd.xlane.f32.xlu0 %v473
        %v475 = vpop.xlane.xlu0 %474
        %v476 = vadd.f32 %v471, %v472
        %477 = vadd.xlane.f32.xlu0 %v476
        %v478 = vpop.xlane.xlu0 %477
        %v479 = vrcp.pop 256.0
        %v480 = vmul.f32 %v475, %v479
        %v481 = vmul.f32 %v478, %v479
        %v482 = vsub.f32 %v469, %v480
        %v483 = vsub.f32 %v470, %v480
        %v484 = vsub.f32 %v471, %v481
        %v485 = vsub.f32 %v472, %v481
        %v486 = vmul.f32 %v482, %v482
        %v487 = vmul.f32 %v483, %v483
        %v488 = vmul.f32 %v484, %v484
        %v489 = vmul.f32 %v485, %v485
        %v490 = vadd.f32 %v486, %v487
        %491 = vadd.xlane.f32.xlu0 %v490
        %v492 = vpop.xlane.xlu0 %491
        %v493 = vadd.f32 %v488, %v489
        %494 = vadd.xlane.f32.xlu0 %v493
        %v495 = vpop.xlane.xlu0 %494
        %v496 = vmul.f32 %v492, %v479
        %v497 = vmul.f32 %v495, %v479
        %v498 = vadd.f32 %v496, 1e-05
        %v499 = vadd.f32 %v497, 1e-05
        %v500 = vrsqrt.pop %v498
        %v501 = vrsqrt.pop %v499
        %v502 = vmul.f32 %v482, %v500
        %v503 = vmul.f32 %v483, %v500
        %v504 = vmul.f32 %v484, %v501
        %v505 = vmul.f32 %v485, %v501
        %v506 = vld [vmem:[%s3] sm:$0x3]
        %v508 = vlaneseq
        %v509 = vshrl.u32 %v508, 7
        %v510 = vsub.s32 0, %v509
        %v511 = vrot.slane %v506, %v510
        %v512 = vlaneseq
        %v513 = vshrl.u32 %v512, 7
        %v514 = vsub.s32 1, %v513
        %v515 = vrot.slane %v506, %v514
        %v518 = vmul.f32 %v502, %v511
        %v519 = vmul.f32 %v503, %v515
        %v520 = vmul.f32 %v504, %v511
        %v521 = vmul.f32 %v505, %v515
        %v522 = vld [vmem:[%s4] sm:$0x3]
        %v524 = vlaneseq
        %v525 = vshrl.u32 %v524, 7
        %v526 = vsub.s32 0, %v525
        %v527 = vrot.slane %v522, %v526
        %v528 = vlaneseq
        %v529 = vshrl.u32 %v528, 7
        %v530 = vsub.s32 1, %v529
        %v531 = vrot.slane %v522, %v530
        %v534 = vadd.f32 %v518, %v527
        %v535 = vadd.f32 %v519, %v531
        %v536 = vadd.f32 %v520, %v527
        %v537 = vadd.f32 %v521, %v531
        %v538 = vpack.c.bf16 %v536, %v534
        %v539 = vpack.c.bf16 %v537, %v535
        %v540 = vld [vmem:[#allocation2] sm:$0xff]
        %v541 = vld [vmem:[#allocation2 + $0x8] sm:$0xff]
        %v542 = vld [vmem:[#allocation2 + $0x10] sm:$0xff]
        %v543 = vld [vmem:[#allocation2 + $0x18] sm:$0xff]
        %v544 = vld [vmem:[#allocation2 + $0x20] sm:$0xff]
        %v545 = vld [vmem:[#allocation2 + $0x28] sm:$0xff]
        %v546 = vld [vmem:[#allocation2 + $0x30] sm:$0xff]
        %v547 = vld [vmem:[#allocation2 + $0x38] sm:$0xff]
        %v548 = vld [vmem:[%s396] sm:$0xff]
        %v549 = vld [vmem:[%s396 + $0x8] sm:$0xff]
        %v550 = vld [vmem:[%s396 + $0x10] sm:$0xff]
        %v551 = vld [vmem:[%s396 + $0x18] sm:$0xff]
        %v552 = vld [vmem:[%s396 + $0x20] sm:$0xff]
        %v553 = vld [vmem:[%s396 + $0x28] sm:$0xff]
        %v554 = vld [vmem:[%s396 + $0x30] sm:$0xff]
        %v555 = vld [vmem:[%s396 + $0x38] sm:$0xff]
        %v556 = vld [vmem:[%s396 + $0x40] sm:$0xff]
        %v557 = vld [vmem:[%s396 + $0x48] sm:$0xff]
        %v558 = vld [vmem:[%s396 + $0x50] sm:$0xff]
        %v559 = vld [vmem:[%s396 + $0x58] sm:$0xff]
        %v560 = vld [vmem:[%s396 + $0x60] sm:$0xff]
        %v561 = vld [vmem:[%s396 + $0x68] sm:$0xff]
        %v562 = vld [vmem:[%s396 + $0x70] sm:$0xff]
        %v563 = vld [vmem:[%s396 + $0x78] sm:$0xff]
        %v564 = vld [vmem:[%s396 + $0x80] sm:$0xff]
        %v565 = vld [vmem:[%s396 + $0x88] sm:$0xff]
        %v566 = vld [vmem:[%s396 + $0x90] sm:$0xff]
        %v567 = vld [vmem:[%s396 + $0x98] sm:$0xff]
        %v568 = vld [vmem:[%s396 + $0xa0] sm:$0xff]
        %v569 = vld [vmem:[%s396 + $0xa8] sm:$0xff]
        %v570 = vld [vmem:[%s396 + $0xb0] sm:$0xff]
        %v571 = vld [vmem:[%s396 + $0xb8] sm:$0xff]
        %v572 = vld [vmem:[%s396 + $0xc0] sm:$0xff]
        %v573 = vld [vmem:[%s396 + $0xc8] sm:$0xff]
        %v574 = vld [vmem:[%s396 + $0xd0] sm:$0xff]
        %v575 = vld [vmem:[%s396 + $0xd8] sm:$0xff]
        %v576 = vld [vmem:[%s396 + $0xe0] sm:$0xff]
        %v577 = vld [vmem:[%s396 + $0xe8] sm:$0xff]
        %v578 = vld [vmem:[%s396 + $0xf0] sm:$0xff]
        %v579 = vld [vmem:[%s396 + $0xf8] sm:$0xff]
        %v580 = vld [vmem:[%s396 + $0x100] sm:$0xff]
        %v581 = vld [vmem:[%s396 + $0x108] sm:$0xff]
        %v582 = vld [vmem:[%s396 + $0x110] sm:$0xff]
        %v583 = vld [vmem:[%s396 + $0x118] sm:$0xff]
        %v584 = vld [vmem:[%s396 + $0x120] sm:$0xff]
        %v585 = vld [vmem:[%s396 + $0x128] sm:$0xff]
        %v586 = vld [vmem:[%s396 + $0x130] sm:$0xff]
        %v587 = vld [vmem:[%s396 + $0x138] sm:$0xff]
        %v588 = vld [vmem:[%s396 + $0x140] sm:$0xff]
        %v589 = vld [vmem:[%s396 + $0x148] sm:$0xff]
        %v590 = vld [vmem:[%s396 + $0x150] sm:$0xff]
        %v591 = vld [vmem:[%s396 + $0x158] sm:$0xff]
        %v592 = vld [vmem:[%s396 + $0x160] sm:$0xff]
        %v593 = vld [vmem:[%s396 + $0x168] sm:$0xff]
        %v594 = vld [vmem:[%s396 + $0x170] sm:$0xff]
        %v595 = vld [vmem:[%s396 + $0x178] sm:$0xff]
        %v596 = vld [vmem:[%s396 + $0x180] sm:$0xff]
        %v597 = vld [vmem:[%s396 + $0x188] sm:$0xff]
        %v598 = vld [vmem:[%s396 + $0x190] sm:$0xff]
        %v599 = vld [vmem:[%s396 + $0x198] sm:$0xff]
        %v600 = vld [vmem:[%s396 + $0x1a0] sm:$0xff]
        %v601 = vld [vmem:[%s396 + $0x1a8] sm:$0xff]
        %v602 = vld [vmem:[%s396 + $0x1b0] sm:$0xff]
        %v603 = vld [vmem:[%s396 + $0x1b8] sm:$0xff]
        %v604 = vld [vmem:[%s396 + $0x1c0] sm:$0xff]
        %v605 = vld [vmem:[%s396 + $0x1c8] sm:$0xff]
        %v606 = vld [vmem:[%s396 + $0x1d0] sm:$0xff]
        %v607 = vld [vmem:[%s396 + $0x1d8] sm:$0xff]
        %v608 = vld [vmem:[%s396 + $0x1e0] sm:$0xff]
        %v609 = vld [vmem:[%s396 + $0x1e8] sm:$0xff]
        %v610 = vld [vmem:[%s396 + $0x1f0] sm:$0xff]
        %v611 = vld [vmem:[%s396 + $0x1f8] sm:$0xff]
        %v676 = vunpack.c.l.b16 %v548
        %v677 = vunpack.c.h.b16 %v548
        %v678 = vunpack.c.l.b16 %v549
        %v679 = vunpack.c.h.b16 %v549
        %v680 = vunpack.c.l.b16 %v550
        %v681 = vunpack.c.h.b16 %v550
        %v682 = vunpack.c.l.b16 %v551
        %v683 = vunpack.c.h.b16 %v551
        %v684 = vunpack.c.l.b16 %v552
        %v685 = vunpack.c.h.b16 %v552
        %v686 = vunpack.c.l.b16 %v553
        %v687 = vunpack.c.h.b16 %v553
        %v688 = vunpack.c.l.b16 %v554
        %v689 = vunpack.c.h.b16 %v554
        %v690 = vunpack.c.l.b16 %v555
        %v691 = vunpack.c.h.b16 %v555
        %v692 = vunpack.c.l.b16 %v556
        %v693 = vunpack.c.h.b16 %v556
        %v694 = vunpack.c.l.b16 %v557
        %v695 = vunpack.c.h.b16 %v557
        %v696 = vunpack.c.l.b16 %v558
        %v697 = vunpack.c.h.b16 %v558
        %v698 = vunpack.c.l.b16 %v559
        %v699 = vunpack.c.h.b16 %v559
        %v700 = vunpack.c.l.b16 %v560
        %v701 = vunpack.c.h.b16 %v560
        %v702 = vunpack.c.l.b16 %v561
        %v703 = vunpack.c.h.b16 %v561
        %v704 = vunpack.c.l.b16 %v562
        %v705 = vunpack.c.h.b16 %v562
        %v706 = vunpack.c.l.b16 %v563
        %v707 = vunpack.c.h.b16 %v563
        %v708 = vunpack.c.l.b16 %v564
        %v709 = vunpack.c.h.b16 %v564
        %v710 = vunpack.c.l.b16 %v565
        %v711 = vunpack.c.h.b16 %v565
        %v712 = vunpack.c.l.b16 %v566
        %v713 = vunpack.c.h.b16 %v566
        %v714 = vunpack.c.l.b16 %v567
        %v715 = vunpack.c.h.b16 %v567
        %v716 = vunpack.c.l.b16 %v568
        %v717 = vunpack.c.h.b16 %v568
        %v718 = vunpack.c.l.b16 %v569
        %v719 = vunpack.c.h.b16 %v569
        %v720 = vunpack.c.l.b16 %v570
        %v721 = vunpack.c.h.b16 %v570
        %v722 = vunpack.c.l.b16 %v571
        %v723 = vunpack.c.h.b16 %v571
        %v724 = vunpack.c.l.b16 %v572
        %v725 = vunpack.c.h.b16 %v572
        %v726 = vunpack.c.l.b16 %v573
        %v727 = vunpack.c.h.b16 %v573
        %v728 = vunpack.c.l.b16 %v574
        %v729 = vunpack.c.h.b16 %v574
        %v730 = vunpack.c.l.b16 %v575
        %v731 = vunpack.c.h.b16 %v575
        %v732 = vunpack.c.l.b16 %v576
        %v733 = vunpack.c.h.b16 %v576
        %v734 = vunpack.c.l.b16 %v577
        %v735 = vunpack.c.h.b16 %v577
        %v736 = vunpack.c.l.b16 %v578
        %v737 = vunpack.c.h.b16 %v578
        %v738 = vunpack.c.l.b16 %v579
        %v739 = vunpack.c.h.b16 %v579
        %v740 = vunpack.c.l.b16 %v580
        %v741 = vunpack.c.h.b16 %v580
        %v742 = vunpack.c.l.b16 %v581
        %v743 = vunpack.c.h.b16 %v581
        %v744 = vunpack.c.l.b16 %v582
        %v745 = vunpack.c.h.b16 %v582
        %v746 = vunpack.c.l.b16 %v583
        %v747 = vunpack.c.h.b16 %v583
        %v748 = vunpack.c.l.b16 %v584
        %v749 = vunpack.c.h.b16 %v584
        %v750 = vunpack.c.l.b16 %v585
        %v751 = vunpack.c.h.b16 %v585
        %v752 = vunpack.c.l.b16 %v586
        %v753 = vunpack.c.h.b16 %v586
        %v754 = vunpack.c.l.b16 %v587
        %v755 = vunpack.c.h.b16 %v587
        %v756 = vunpack.c.l.b16 %v588
        %v757 = vunpack.c.h.b16 %v588
        %v758 = vunpack.c.l.b16 %v589
        %v759 = vunpack.c.h.b16 %v589
        %v760 = vunpack.c.l.b16 %v590
        %v761 = vunpack.c.h.b16 %v590
        %v762 = vunpack.c.l.b16 %v591
        %v763 = vunpack.c.h.b16 %v591
        %v764 = vunpack.c.l.b16 %v592
        %v765 = vunpack.c.h.b16 %v592
        %v766 = vunpack.c.l.b16 %v593
        %v767 = vunpack.c.h.b16 %v593
        %v768 = vunpack.c.l.b16 %v594
        %v769 = vunpack.c.h.b16 %v594
        %v770 = vunpack.c.l.b16 %v595
        %v771 = vunpack.c.h.b16 %v595
        %v772 = vunpack.c.l.b16 %v596
        %v773 = vunpack.c.h.b16 %v596
        %v774 = vunpack.c.l.b16 %v597
        %v775 = vunpack.c.h.b16 %v597
        %v776 = vunpack.c.l.b16 %v598
        %v777 = vunpack.c.h.b16 %v598
        %v778 = vunpack.c.l.b16 %v599
        %v779 = vunpack.c.h.b16 %v599
        %v780 = vunpack.c.l.b16 %v600
        %v781 = vunpack.c.h.b16 %v600
        %v782 = vunpack.c.l.b16 %v601
        %v783 = vunpack.c.h.b16 %v601
        %v784 = vunpack.c.l.b16 %v602
        %v785 = vunpack.c.h.b16 %v602
        %v786 = vunpack.c.l.b16 %v603
        %v787 = vunpack.c.h.b16 %v603
        %v788 = vunpack.c.l.b16 %v604
        %v789 = vunpack.c.h.b16 %v604
        %v790 = vunpack.c.l.b16 %v605
        %v791 = vunpack.c.h.b16 %v605
        %v792 = vunpack.c.l.b16 %v606
        %v793 = vunpack.c.h.b16 %v606
        %v794 = vunpack.c.l.b16 %v607
        %v795 = vunpack.c.h.b16 %v607
        %v796 = vunpack.c.l.b16 %v608
        %v797 = vunpack.c.h.b16 %v608
        %v798 = vunpack.c.l.b16 %v609
        %v799 = vunpack.c.h.b16 %v609
        %v800 = vunpack.c.l.b16 %v610
        %v801 = vunpack.c.h.b16 %v610
        %v802 = vunpack.c.l.b16 %v611
        %v803 = vunpack.c.h.b16 %v611
        %v804 = vpack.c.b16 %v680, %v676
        %v805 = vpack.c.b16 %v681, %v677
        %v806 = vpack.c.b16 %v682, %v678
        %v807 = vpack.c.b16 %v683, %v679
        %v808 = vpack.c.b16 %v688, %v684
        %v809 = vpack.c.b16 %v689, %v685
        %v810 = vpack.c.b16 %v690, %v686
        %v811 = vpack.c.b16 %v691, %v687
        %v812 = vpack.c.b16 %v696, %v692
        %v813 = vpack.c.b16 %v697, %v693
        %v814 = vpack.c.b16 %v698, %v694
        %v815 = vpack.c.b16 %v699, %v695
        %v816 = vpack.c.b16 %v704, %v700
        %v817 = vpack.c.b16 %v705, %v701
        %v818 = vpack.c.b16 %v706, %v702
        %v819 = vpack.c.b16 %v707, %v703
        %v820 = vpack.c.b16 %v712, %v708
        %v821 = vpack.c.b16 %v713, %v709
        %v822 = vpack.c.b16 %v714, %v710
        %v823 = vpack.c.b16 %v715, %v711
        %v824 = vpack.c.b16 %v720, %v716
        %v825 = vpack.c.b16 %v721, %v717
        %v826 = vpack.c.b16 %v722, %v718
        %v827 = vpack.c.b16 %v723, %v719
        %v828 = vpack.c.b16 %v728, %v724
        %v829 = vpack.c.b16 %v729, %v725
        %v830 = vpack.c.b16 %v730, %v726
        %v831 = vpack.c.b16 %v731, %v727
        %v832 = vpack.c.b16 %v736, %v732
        %v833 = vpack.c.b16 %v737, %v733
        %v834 = vpack.c.b16 %v738, %v734
        %v835 = vpack.c.b16 %v739, %v735
        %v836 = vpack.c.b16 %v744, %v740
        %v837 = vpack.c.b16 %v745, %v741
        %v838 = vpack.c.b16 %v746, %v742
        %v839 = vpack.c.b16 %v747, %v743
        %v840 = vpack.c.b16 %v752, %v748
        %v841 = vpack.c.b16 %v753, %v749
        %v842 = vpack.c.b16 %v754, %v750
        %v843 = vpack.c.b16 %v755, %v751
        %v844 = vpack.c.b16 %v760, %v756
        %v845 = vpack.c.b16 %v761, %v757
        %v846 = vpack.c.b16 %v762, %v758
        %v847 = vpack.c.b16 %v763, %v759
        %v848 = vpack.c.b16 %v768, %v764
        %v849 = vpack.c.b16 %v769, %v765
        %v850 = vpack.c.b16 %v770, %v766
        %v851 = vpack.c.b16 %v771, %v767
        %v852 = vpack.c.b16 %v776, %v772
        %v853 = vpack.c.b16 %v777, %v773
        %v854 = vpack.c.b16 %v778, %v774
        %v855 = vpack.c.b16 %v779, %v775
        %v856 = vpack.c.b16 %v784, %v780
        %v857 = vpack.c.b16 %v785, %v781
        %v858 = vpack.c.b16 %v786, %v782
        %v859 = vpack.c.b16 %v787, %v783
        %v860 = vpack.c.b16 %v792, %v788
        %v861 = vpack.c.b16 %v793, %v789
        %v862 = vpack.c.b16 %v794, %v790
        %v863 = vpack.c.b16 %v795, %v791
        %v864 = vpack.c.b16 %v800, %v796
        %v865 = vpack.c.b16 %v801, %v797
        %v866 = vpack.c.b16 %v802, %v798
        %v867 = vpack.c.b16 %v803, %v799
        %932 = vmatprep.subr.bf16.mxu0 %v805
        %933 = vmatpush1.bf16.msra.mxu0 %v804
        %934 = vmatprep.subr.bf16.mxu0 %v809
        %935 = vmatpush1.bf16.msra.mxu0 %v808
        %936 = vmatprep.subr.bf16.mxu0 %v813
        %937 = vmatpush1.bf16.msra.mxu0 %v812
        %938 = vmatprep.subr.bf16.mxu0 %v817
        %939 = vmatpush1.bf16.msra.mxu0 %v816
        %940 = vmatprep.subr.bf16.mxu0 %v821
        %941 = vmatpush1.bf16.msra.mxu0 %v820
        %942 = vmatprep.subr.bf16.mxu0 %v825
        %943 = vmatpush1.bf16.msra.mxu0 %v824
        %944 = vmatprep.subr.bf16.mxu0 %v829
        %945 = vmatpush1.bf16.msra.mxu0 %v828
        %946 = vmatprep.subr.bf16.mxu0 %v833
        %947 = vmatpush1.bf16.msra.mxu0 %v832
        %948 = vmatprep.subr.bf16.mxu0 %v837
        %949 = vmatpush1.bf16.msra.mxu0 %v836
        %950 = vmatprep.subr.bf16.mxu0 %v841
        %951 = vmatpush1.bf16.msra.mxu0 %v840
        %952 = vmatprep.subr.bf16.mxu0 %v845
        %953 = vmatpush1.bf16.msra.mxu0 %v844
        %954 = vmatprep.subr.bf16.mxu0 %v849
        %955 = vmatpush1.bf16.msra.mxu0 %v848
        %956 = vmatprep.subr.bf16.mxu0 %v853
        %957 = vmatpush1.bf16.msra.mxu0 %v852
        %958 = vmatprep.subr.bf16.mxu0 %v857
        %959 = vmatpush1.bf16.msra.mxu0 %v856
        %960 = vmatprep.subr.bf16.mxu0 %v861
        %961 = vmatpush1.bf16.msra.mxu0 %v860
        %962 = vmatprep.subr.bf16.mxu0 %v865
        %963 = vmatpush1.bf16.msra.mxu0 %v864
        %964 = vmatprep.mubr.bf16.mxu0 %v539
        %965 = vmatmul.mubr.bf16.gmra.mrb[0].mxu0 %v538
        %v966 = vpop.f32.mrb[0].mxu0
        %v967 = vadd.f32 0.0, %v966
        %v968 = vpop.f32.mrb[0].mxu0
        %v969 = vadd.f32 0.0, %v968
        %v970 = vpop.f32.mrb[0].mxu0
        %v971 = vadd.f32 0.0, %v970
        %v972 = vpop.f32.mrb[0].mxu0
        %v973 = vadd.f32 0.0, %v972
        %974 = vdwg.mxu0
        %975 = vmatprep.subr.bf16.mxu0 %v807
        %976 = vmatpush1.bf16.msra.mxu0 %v806
        %977 = vmatprep.subr.bf16.mxu0 %v811
        %978 = vmatpush1.bf16.msra.mxu0 %v810
        %979 = vmatprep.subr.bf16.mxu0 %v815
        %980 = vmatpush1.bf16.msra.mxu0 %v814
        %981 = vmatprep.subr.bf16.mxu0 %v819
        %982 = vmatpush1.bf16.msra.mxu0 %v818
        %983 = vmatprep.subr.bf16.mxu0 %v823
        %984 = vmatpush1.bf16.msra.mxu0 %v822
        %985 = vmatprep.subr.bf16.mxu0 %v827
        %986 = vmatpush1.bf16.msra.mxu0 %v826
        %987 = vmatprep.subr.bf16.mxu0 %v831
        %988 = vmatpush1.bf16.msra.mxu0 %v830
        %989 = vmatprep.subr.bf16.mxu0 %v835
        %990 = vmatpush1.bf16.msra.mxu0 %v834
        %991 = vmatprep.subr.bf16.mxu0 %v839
        %992 = vmatpush1.bf16.msra.mxu0 %v838
        %993 = vmatprep.subr.bf16.mxu0 %v843
        %994 = vmatpush1.bf16.msra.mxu0 %v842
        %995 = vmatprep.subr.bf16.mxu0 %v847
        %996 = vmatpush1.bf16.msra.mxu0 %v846
        %997 = vmatprep.subr.bf16.mxu0 %v851
        %998 = vmatpush1.bf16.msra.mxu0 %v850
        %999 = vmatprep.subr.bf16.mxu0 %v855
        %1000 = vmatpush1.bf16.msra.mxu0 %v854
        %1001 = vmatprep.subr.bf16.mxu0 %v859
        %1002 = vmatpush1.bf16.msra.mxu0 %v858
        %1003 = vmatprep.subr.bf16.mxu0 %v863
        %1004 = vmatpush1.bf16.msra.mxu0 %v862
        %1005 = vmatprep.subr.bf16.mxu0 %v867
        %1006 = vmatpush1.bf16.msra.mxu0 %v866
        %1007 = vmatprep.mubr.bf16.mxu0 %v539
        %1008 = vmatmul.mubr.bf16.gmra.mrb[0].mxu0 %v538
        %v1009 = vpop.f32.mrb[0].mxu0
        %v1010 = vadd.f32 0.0, %v1009
        %v1011 = vpop.f32.mrb[0].mxu0
        %v1012 = vadd.f32 0.0, %v1011
        %v1013 = vpop.f32.mrb[0].mxu0
        %v1014 = vadd.f32 0.0, %v1013
        %v1015 = vpop.f32.mrb[0].mxu0
        %v1016 = vadd.f32 0.0, %v1015
        %1017 = vdwg.mxu0
        %v1018 = vadd.f32 %v540, %v967
        %v1019 = vadd.f32 %v541, %v969
        %v1020 = vadd.f32 %v542, %v1010
        %v1021 = vadd.f32 %v543, %v1012
        %v1022 = vadd.f32 %v544, %v971
        %v1023 = vadd.f32 %v545, %v973
        %v1024 = vadd.f32 %v546, %v1014
        %v1025 = vadd.f32 %v547, %v1016
        %1026 = vst [vmem:[#allocation2] sm:$0xff] %v1018
        %1027 = vst [vmem:[#allocation2 + $0x8] sm:$0xff] %v1019
        %1028 = vst [vmem:[#allocation2 + $0x10] sm:$0xff] %v1020
        %1029 = vst [vmem:[#allocation2 + $0x18] sm:$0xff] %v1021
        %1030 = vst [vmem:[#allocation2 + $0x20] sm:$0xff] %v1022
        %1031 = vst [vmem:[#allocation2 + $0x28] sm:$0xff] %v1023
        %1032 = vst [vmem:[#allocation2 + $0x30] sm:$0xff] %v1024
        %1033 = vst [vmem:[#allocation2 + $0x38] sm:$0xff] %v1025
        // Predicated region
        $region68: #{transformer_forward.20} parent=58 // pred_check
          %p1034 = pneg %p455
        $region69: #{transformer_forward.20} parent=58 // pred_check_branch
          %1036 = sbr.rel (%p1034) target = $region71
        $region70: #{transformer_forward.20} parent=58 // pred_region
          %v1037 = vld [vmem:[#allocation2] sm:$0xff]
          %v1038 = vld [vmem:[#allocation2 + $0x8] sm:$0xff]
          %v1039 = vld [vmem:[#allocation2 + $0x10] sm:$0xff]
          %v1040 = vld [vmem:[#allocation2 + $0x18] sm:$0xff]
          %v1041 = vld [vmem:[#allocation2 + $0x20] sm:$0xff]
          %v1042 = vld [vmem:[#allocation2 + $0x28] sm:$0xff]
          %v1043 = vld [vmem:[#allocation2 + $0x30] sm:$0xff]
          %v1044 = vld [vmem:[#allocation2 + $0x38] sm:$0xff]
          %v1045 = vld [vmem:[%s451] sm:$0xf]
          %v1047 = vlaneseq
          %v1048 = vshrl.u32 %v1047, 7
          %v1049 = vsub.s32 0, %v1048
          %v1050 = vrot.slane %v1045, %v1049
          %v1051 = vlaneseq
          %v1052 = vshrl.u32 %v1051, 7
          %v1053 = vsub.s32 1, %v1052
          %v1054 = vrot.slane %v1045, %v1053
          %v1055 = vlaneseq
          %v1056 = vshrl.u32 %v1055, 7
          %v1057 = vsub.s32 2, %v1056
          %v1058 = vrot.slane %v1045, %v1057
          %v1059 = vlaneseq
          %v1060 = vshrl.u32 %v1059, 7
          %v1061 = vsub.s32 3, %v1060
          %v1062 = vrot.slane %v1045, %v1061
          %v1067 = vadd.f32 %v1037, %v1050
          %v1068 = vadd.f32 %v1038, %v1054
          %v1069 = vadd.f32 %v1039, %v1058
          %v1070 = vadd.f32 %v1040, %v1062
          %v1071 = vadd.f32 %v1041, %v1050
          %v1072 = vadd.f32 %v1042, %v1054
          %v1073 = vadd.f32 %v1043, %v1058
          %v1074 = vadd.f32 %v1044, %v1062
          %v1075 = vmul.f32 %v1067, 0.5
          %v1076 = vmul.f32 %v1068, 0.5
          %v1077 = vmul.f32 %v1069, 0.5
          %v1078 = vmul.f32 %v1070, 0.5
          %v1079 = vmul.f32 %v1071, 0.5
          %v1080 = vmul.f32 %v1072, 0.5
          %v1081 = vmul.f32 %v1073, 0.5
          %v1082 = vmul.f32 %v1074, 0.5
          %v1083 = vmul.f32 %v1067, 0.044715
          %v1084 = vmul.f32 %v1068, 0.044715
          %v1085 = vmul.f32 %v1069, 0.044715
          %v1086 = vmul.f32 %v1070, 0.044715
          %v1087 = vmul.f32 %v1071, 0.044715
          %v1088 = vmul.f32 %v1072, 0.044715
          %v1089 = vmul.f32 %v1073, 0.044715
          %v1090 = vmul.f32 %v1074, 0.044715
          %v1091 = vmul.f32 %v1083, %v1067
          %v1092 = vmul.f32 %v1084, %v1068
          %v1093 = vmul.f32 %v1085, %v1069
          %v1094 = vmul.f32 %v1086, %v1070
          %v1095 = vmul.f32 %v1087, %v1071
          %v1096 = vmul.f32 %v1088, %v1072
          %v1097 = vmul.f32 %v1089, %v1073
          %v1098 = vmul.f32 %v1090, %v1074
          %v1099 = vmul.f32 %v1091, %v1067
          %v1100 = vmul.f32 %v1092, %v1068
          %v1101 = vmul.f32 %v1093, %v1069
          %v1102 = vmul.f32 %v1094, %v1070
          %v1103 = vmul.f32 %v1095, %v1071
          %v1104 = vmul.f32 %v1096, %v1072
          %v1105 = vmul.f32 %v1097, %v1073
          %v1106 = vmul.f32 %v1098, %v1074
          %v1107 = vadd.f32 %v1067, %v1099
          %v1108 = vadd.f32 %v1068, %v1100
          %v1109 = vadd.f32 %v1069, %v1101
          %v1110 = vadd.f32 %v1070, %v1102
          %v1111 = vadd.f32 %v1071, %v1103
          %v1112 = vadd.f32 %v1072, %v1104
          %v1113 = vadd.f32 %v1073, %v1105
          %v1114 = vadd.f32 %v1074, %v1106
          %v1115 = vmul.f32 %v1107, 0.7978846
          %v1116 = vmul.f32 %v1108, 0.7978846
          %v1117 = vmul.f32 %v1109, 0.7978846
          %v1118 = vmul.f32 %v1110, 0.7978846
          %v1119 = vmul.f32 %v1111, 0.7978846
          %v1120 = vmul.f32 %v1112, 0.7978846
          %v1121 = vmul.f32 %v1113, 0.7978846
          %v1122 = vmul.f32 %v1114, 0.7978846
          %v1123 = vtanh.pop %v1115
          %v1124 = vtanh.pop %v1116
          %v1125 = vtanh.pop %v1117
          %v1126 = vtanh.pop %v1118
          %v1127 = vtanh.pop %v1119
          %v1128 = vtanh.pop %v1120
          %v1129 = vtanh.pop %v1121
          %v1130 = vtanh.pop %v1122
          %v1131 = vadd.f32 %v1123, 1.0
          %v1132 = vadd.f32 %v1124, 1.0
          %v1133 = vadd.f32 %v1125, 1.0
          %v1134 = vadd.f32 %v1126, 1.0
          %v1135 = vadd.f32 %v1127, 1.0
          %v1136 = vadd.f32 %v1128, 1.0
          %v1137 = vadd.f32 %v1129, 1.0
          %v1138 = vadd.f32 %v1130, 1.0
          %v1139 = vmul.f32 %v1075, %v1131
          %v1140 = vmul.f32 %v1076, %v1132
          %v1141 = vmul.f32 %v1077, %v1133
          %v1142 = vmul.f32 %v1078, %v1134
          %v1143 = vmul.f32 %v1079, %v1135
          %v1144 = vmul.f32 %v1080, %v1136
          %v1145 = vmul.f32 %v1081, %v1137
          %v1146 = vmul.f32 %v1082, %v1138
          %v1147 = vpack.c.bf16 %v1143, %v1139
          %v1148 = vpack.c.bf16 %v1144, %v1140
          %v1149 = vpack.c.bf16 %v1145, %v1141
          %v1150 = vpack.c.bf16 %v1146, %v1142
          %v1155 = vunpack.c.l.b16 %v1147
          %v1156 = vunpack.c.l.b16 %v1148
          %v1157 = vunpack.c.l.b16 %v1149
          %v1158 = vunpack.c.l.b16 %v1150
          %v1159 = vunpack.c.h.b16 %v1147
          %v1160 = vunpack.c.h.b16 %v1148
          %v1161 = vunpack.c.h.b16 %v1149
          %v1162 = vunpack.c.h.b16 %v1150
          %v1163 = vpack.c.b16 %v1156, %v1155
          %v1164 = vpack.c.b16 %v1158, %v1157
          %v1165 = vpack.c.b16 %v1160, %v1159
          %v1166 = vpack.c.b16 %v1162, %v1161
          %1171 = vst [vmem:[%s433] sm:$0xff] %v1163
          %1172 = vst [vmem:[%s433 + $0x8] sm:$0xff] %v1164
          %1173 = vst [vmem:[%s433 + $0x10] sm:$0xff] %v1165
          %1174 = vst [vmem:[%s433 + $0x18] sm:$0xff] %v1166
        $region71: #{transformer_forward.20} parent=58 // pred_fallthru
          _
        %s1175 = sand.u32 %s169, 1
        %s1176 = sand.u32 %s169, 1
        %s1177 = smul.addr %s1176, 32
        %s1178 = scalar_lea.vmem [#allocation4], %s1177
        // Predicated region
        $region72: #{transformer_forward.20} parent=58 // pred_check
          %p1179 = pneg %p179
        $region73: #{transformer_forward.20} parent=58 // pred_check_branch
          %1181 = sbr.rel (%p1179) target = $region75
        $region74: #{transformer_forward.20} parent=58 // pred_region
          %s1182 = smul.u32 2, %s21
          %s1183 = smul.u32 4, %s22
          %s1184 = smul.addr %s1182, 8
          %s1185 = sadd.s32 %s1183, %s1184
          %s1186 = smul.addr %s1185, 4
          %s1187 = scalar_lea.vmem %s5, %s1186
          // Predicated region
          $region76: #{transformer_forward.20} parent=74 // pred_check
            _
          $region77: #{transformer_forward.20} parent=74 // pred_check_branch
            %1189 = sbr.rel (0) target = $region79
          $region78: #{transformer_forward.20} parent=74 // pred_region
            // Predicated region
            $region80: #{transformer_forward.20} parent=78 // pred_check
              _
            $region81: #{transformer_forward.20} parent=78 // pred_check_branch
              %1191 = sbr.rel (0) target = $region83
            $region82: #{transformer_forward.20} parent=78 // pred_region
              loop: start=0, step=1, limit=1
              $region84: #{transformer_forward.20} parent=82 // loop_pre_header
                _
              $region85: #{transformer_forward.20} parent=82 // loop_header
                %s1193 = sphi 0, %s1197
                %p1194 = scmp.ge.s32.totalorder %s1193, 1
                %s1198 = sphi %s1178, %s1178
                %s1199 = sphi %s1187, %s1187
              $region86: #{transformer_forward.20} parent=82 // loop_header_branch
                %1196 = sbr.rel (%p1194) target = $region90
              $region87: #{transformer_forward.20} parent=82 // loop_body
                %v1200 = vld [vmem:[%s1198] sm:$0xff]
                %1201 = vst [vmem:[%s1199] sm:$0xff] %v1200
                %v1202 = vld [vmem:[%s1198 + $0x8] sm:$0xff]
                %1203 = vst [vmem:[%s1199 + $0x8] sm:$0xff] %v1202
                %v1204 = vld [vmem:[%s1198 + $0x10] sm:$0xff]
                %1205 = vst [vmem:[%s1199 + $0x20] sm:$0xff] %v1204
                %v1206 = vld [vmem:[%s1198 + $0x18] sm:$0xff]
                %1207 = vst [vmem:[%s1199 + $0x28] sm:$0xff] %v1206
              $region88: #{transformer_forward.20} parent=82 // loop_footer
                %s1197 = sadd.s32 1, %s1193
              $region89: #{transformer_forward.20} parent=82 // loop_footer_branch
                %1192 = sbr.rel target = $region85
              $region90: #{transformer_forward.20} parent=82 // loop_exit
                _
            $region83: #{transformer_forward.20} parent=78 // pred_fallthru
              _
            // Predicated region
            $region91: #{transformer_forward.20} parent=78 // pred_check
              _
            $region92: #{transformer_forward.20} parent=78 // pred_check_branch
              %1209 = sbr.rel target = $region94
            $region93: #{transformer_forward.20} parent=78 // pred_region
              _
            $region94: #{transformer_forward.20} parent=78 // pred_fallthru
              _
          $region79: #{transformer_forward.20} parent=74 // pred_fallthru
            _
          %1210 = vnop
        $region75: #{transformer_forward.20} parent=58 // pred_fallthru
          _
      $region59: #{transformer_forward.20} parent=5 // pred_fallthru
        _
      %p1211 = scmp.le.s32.totalorder 2, %s11
      // Predicated region
      $region95: #{transformer_forward.20} parent=5 // pred_check
        %p1212 = pneg %p1211
      $region96: #{transformer_forward.20} parent=5 // pred_check_branch
        %1214 = sbr.rel (%p1212) target = $region98
      $region97: #{transformer_forward.20} parent=5 // pred_region
        %s1215 = ssub.s32 %s11, 2
        // Predicated region
        $region99: #{transformer_forward.20} parent=97 // pred_check
          %p1216 = pneg %p185
        $region100: #{transformer_forward.20} parent=97 // pred_check_branch
          %1218 = sbr.rel (%p1216) target = $region102
        $region101: #{transformer_forward.20} parent=97 // pred_region
          %s1219 = sand.u32 %s170, 1
          %s1220 = sand.u32 %s170, 1
          %s1221 = smul.addr %s1220, 32
          %s1222 = scalar_lea.vmem [#allocation4], %s1221
        $region102: #{transformer_forward.20} parent=97 // pred_fallthru
          _
      $region98: #{transformer_forward.20} parent=5 // pred_fallthru
        _
    $region6: #{transformer_forward.20} parent=1 // loop_footer
      %s15 = sadd.s32 1, %s11
    $region7: #{transformer_forward.20} parent=1 // loop_footer_branch
      %10 = sbr.rel target = $region3
    $region8: #{transformer_forward.20} parent=1 // loop_exit
      _

// kernel: transformer_forward.21
$region0: #{transformer_forward.21}
  #allocation0 [shape = 'u32[]', space=smem, size = 0x4, offset = 0x4, fixed_abs, tag = 'smem constant byte address 0x4 - core index']
  #allocation1 [shape = 'u32[144,128]{1,0:T(1,128)}', space=vmem, size = 0x12000, scoped, tag = 'internal scratch']
  #allocation2 [shape = 'f32[16,256]{1,0:T(8,128)}', space=vmem, size = 0x4000, scoped, tag = 'scratch operand']
  %s0 = inlined_call_operand.vmem [shape: bf16[16,1024], index: 0, kind: input, shape index: {}]
  %s1 = inlined_call_operand.vmem [shape: bf16[1024,256], index: 1, kind: input, shape index: {}]
  %s2 = inlined_call_operand.vmem [shape: f32[1,256], index: 2, kind: input, shape index: {}]
  %s3 = inlined_call_operand.vmem [shape: bf16[16,256], index: 3, kind: input, shape index: {}]
  %s4 = inlined_call_operand.vmem [shape: bf16[16,256], index: 4, kind: output, shape index: {}]
  %s5 = sld [smem:[#allocation0]]
  $region80: #{transformer_forward.21} parent=0
    _
  %s7 = ssub.s32 1, %s5
  %s8 = scalar_select 0, %s7, %s5
  $region1: #{transformer_forward.21} parent=0
    #allocation3 [shape = 'u8[32768]{0}', space=vmem, size = 0x8000, scoped, tag = 'input window, operand 0']
    loop: start=0, step=1, limit=4
    $region2: #{transformer_forward.21} parent=1 // loop_pre_header
      _
    $region3: #{transformer_forward.21} parent=1 // loop_header
      %s10 = sphi 0, %s14
      %p11 = scmp.ge.s32.totalorder %s10, 4
      %s17 = sphi 0, %s36
      %s18 = sphi 0, %s32
      %s19 = sphi 0, %s28
      %s20 = sphi 0, %s17
      %s21 = sphi 0, %s18
      %s22 = sphi 0, %s19
      %s23 = sphi 0, %s20
      %s24 = sphi 0, %s21
      %s25 = sphi 0, %s22
      %s41 = sphi 0, %s43
      %s44 = sphi 0, %s41
      %s45 = sphi 0, %s44
      %s61 = sphi 0, %s45
      %s69 = sphi 0, %s71
      %s72 = sphi 0, %s69
      %s73 = sphi 0, %s72
      %s89 = sphi 0, %s73
      %s95 = sphi 0, %s97
      %s98 = sphi 0, %s95
      %s99 = sphi 0, %s98
      %s115 = sphi 0, %s99
      %s123 = sphi 0, %s125
      %s126 = sphi 0, %s123
      %s127 = sphi 0, %s126
      %s143 = sphi 0, %s127
      %s151 = sphi 0, %s153
      %s154 = sphi 0, %s151
      %s155 = sphi 0, %s154
      %s171 = sphi 0, %s155
    $region4: #{transformer_forward.21} parent=1 // loop_header_branch
      %13 = sbr.rel (%p11) target = $region8
    $region5: #{transformer_forward.21} parent=1 // loop_body
      %s15 = ssub.s32 %s10, 1
      %s16 = ssub.s32 %s10, 2
      %s26 = sadd.s32 1, %s19
      %p27 = scmp.ge.s32.totalorder %s26, 2
      %s28 = scalar_select %p27, 0, %s26
      %s29 = sadd.s32 1, %s18
      %s30 = scalar_select %p27, %s29, %s18
      %p31 = scmp.ge.s32.totalorder %s30, 1
      %s32 = scalar_select %p31, 0, %s30
      %s33 = sadd.s32 1, %s17
      %s34 = scalar_select %p31, %s33, %s17
      %p35 = scmp.ge.s32.totalorder %s34, 1
      %s36 = scalar_select %p35, 0, %s34
      %s37 = ssub.s32 %s17, %s36
      %s38 = ssub.s32 %s19, %s28
      %s39 = sor.u32 %s37, %s38
      %p40 = scmp.eq.s32.totalorder %s39, 0
      %s42 = sadd.s32 %s41, 1
      %s43 = scalar_select %p40, %s41, %s42
      %p46 = pneg %p40
      %p47 = scmp.eq.s32.totalorder %s10, 1
      %p48 = por %p46, %p47
      %p49 = scmp.ne.s32.totalorder %s41, %s44
      %p50 = scmp.eq.s32.totalorder %s10, 0
      %p51 = por %p49, %p50
      %p52 = scmp.ne.s32.totalorder %s41, %s44
      %p53 = scmp.eq.s32.totalorder %s15, 1
      %p54 = por %p52, %p53
      %p55 = scmp.ne.s32.totalorder %s44, %s45
      %p56 = scmp.eq.s32.totalorder %s15, 0
      %p57 = por %p55, %p56
      %p58 = scmp.ne.s32.totalorder %s44, %s45
      %p59 = scmp.eq.s32.totalorder %s16, 1
      %p60 = por %p58, %p59
      %p62 = scmp.ne.s32.totalorder %s45, %s61
      %p63 = scmp.eq.s32.totalorder %s16, 0
      %p64 = por %p62, %p63
      %s65 = ssub.s32 %s19, %s28
      %s66 = ssub.s32 %s18, %s32
      %s67 = sor.u32 %s65, %s66
      %p68 = scmp.eq.s32.totalorder %s67, 0
      %s70 = sadd.s32 %s69, 1
      %s71 = scalar_select %p68, %s69, %s70
      %p74 = pneg %p68
      %p75 = scmp.eq.s32.totalorder %s10, 1
      %p76 = por %p74, %p75
      %p77 = scmp.ne.s32.totalorder %s69, %s72
      %p78 = scmp.eq.s32.totalorder %s10, 0
      %p79 = por %p77, %p78
      %p80 = scmp.ne.s32.totalorder %s69, %s72
      %p81 = scmp.eq.s32.totalorder %s15, 1
      %p82 = por %p80, %p81
      %p83 = scmp.ne.s32.totalorder %s72, %s73
      %p84 = scmp.eq.s32.totalorder %s15, 0
      %p85 = por %p83, %p84
      %p86 = scmp.ne.s32.totalorder %s72, %s73
      %p87 = scmp.eq.s32.totalorder %s16, 1
      %p88 = por %p86, %p87
      %p90 = scmp.ne.s32.totalorder %s73, %s89
      %p91 = scmp.eq.s32.totalorder %s16, 0
      %p92 = por %p90, %p91
      %s93 = ssub.s32 %s18, %s32
      %p94 = scmp.eq.s32.totalorder %s93, 0
      %s96 = sadd.s32 %s95, 1
      %s97 = scalar_select %p94, %s95, %s96
      %p100 = pneg %p94
      %p101 = scmp.eq.s32.totalorder %s10, 1
      %p102 = por %p100, %p101
      %p103 = scmp.ne.s32.totalorder %s95, %s98
      %p104 = scmp.eq.s32.totalorder %s10, 0
      %p105 = por %p103, %p104
      %p106 = scmp.ne.s32.totalorder %s95, %s98
      %p107 = scmp.eq.s32.totalorder %s15, 1
      %p108 = por %p106, %p107
      %p109 = scmp.ne.s32.totalorder %s98, %s99
      %p110 = scmp.eq.s32.totalorder %s15, 0
      %p111 = por %p109, %p110
      %p112 = scmp.ne.s32.totalorder %s98, %s99
      %p113 = scmp.eq.s32.totalorder %s16, 1
      %p114 = por %p112, %p113
      %p116 = scmp.ne.s32.totalorder %s99, %s115
      %p117 = scmp.eq.s32.totalorder %s16, 0
      %p118 = por %p116, %p117
      %s119 = ssub.s32 %s17, %s36
      %s120 = ssub.s32 %s18, %s32
      %s121 = sor.u32 %s119, %s120
      %p122 = scmp.eq.s32.totalorder %s121, 0
      %s124 = sadd.s32 %s123, 1
      %s125 = scalar_select %p122, %s123, %s124
      %p128 = pneg %p122
      %p129 = scmp.eq.s32.totalorder %s10, 1
      %p130 = por %p128, %p129
      %p131 = scmp.ne.s32.totalorder %s123, %s126
      %p132 = scmp.eq.s32.totalorder %s10, 0
      %p133 = por %p131, %p132
      %p134 = scmp.ne.s32.totalorder %s123, %s126
      %p135 = scmp.eq.s32.totalorder %s15, 1
      %p136 = por %p134, %p135
      %p137 = scmp.ne.s32.totalorder %s126, %s127
      %p138 = scmp.eq.s32.totalorder %s15, 0
      %p139 = por %p137, %p138
      %p140 = scmp.ne.s32.totalorder %s126, %s127
      %p141 = scmp.eq.s32.totalorder %s16, 1
      %p142 = por %p140, %p141
      %p144 = scmp.ne.s32.totalorder %s127, %s143
      %p145 = scmp.eq.s32.totalorder %s16, 0
      %p146 = por %p144, %p145
      %s147 = ssub.s32 %s17, %s36
      %s148 = ssub.s32 %s18, %s32
      %s149 = sor.u32 %s147, %s148
      %p150 = scmp.eq.s32.totalorder %s149, 0
      %s152 = sadd.s32 %s151, 1
      %s153 = scalar_select %p150, %s151, %s152
      %p156 = pneg %p150
      %p157 = scmp.eq.s32.totalorder %s10, 1
      %p158 = por %p156, %p157
      %p159 = scmp.ne.s32.totalorder %s151, %s154
      %p160 = scmp.eq.s32.totalorder %s10, 0
      %p161 = por %p159, %p160
      %p162 = scmp.ne.s32.totalorder %s151, %s154
      %p163 = scmp.eq.s32.totalorder %s15, 1
      %p164 = por %p162, %p163
      %p165 = scmp.ne.s32.totalorder %s154, %s155
      %p166 = scmp.eq.s32.totalorder %s15, 0
      %p167 = por %p165, %p166
      %p168 = scmp.ne.s32.totalorder %s154, %s155
      %p169 = scmp.eq.s32.totalorder %s16, 1
      %p170 = por %p168, %p169
      %p172 = scmp.ne.s32.totalorder %s155, %s171
      %p173 = scmp.eq.s32.totalorder %s16, 0
      %p174 = por %p172, %p173
      %p175 = scmp.le.s32.totalorder 1, %s10
      %p176 = scmp.lt.s32.totalorder %s10, 3
      %p177 = pnand %p175, %p176
      %p178 = pneg %p177
      // Predicated region
      $region9: #{transformer_forward.21} parent=5 // pred_check
        _
      $region10: #{transformer_forward.21} parent=5 // pred_check_branch
        %180 = sbr.rel (%p177) target = $region12
      $region11: #{transformer_forward.21} parent=5 // pred_region
        %s181 = ssub.s32 %s10, 1
        // Predicated region
        $region13: #{transformer_forward.21} parent=11 // pred_check
          %p182 = pneg %p111
        $region14: #{transformer_forward.21} parent=11 // pred_check_branch
          %184 = sbr.rel (%p182) target = $region16
        $region15: #{transformer_forward.21} parent=11 // pred_region
          %s185 = smul.u32 2, %s21
          %p186 = scmp.lt.s32.totalorder %s185, 1
          %s187 = scalar_select %p186, %s185, 1
          %s188 = scalar_lea.vmem %s2, %s187
          %s189 = smul.u32 2, %s21
        $region16: #{transformer_forward.21} parent=11 // pred_fallthru
          _
        // Predicated region
        $region17: #{transformer_forward.21} parent=11 // pred_check
          %p190 = pneg %p139
        $region18: #{transformer_forward.21} parent=11 // pred_check_branch
          %192 = sbr.rel (%p190) target = $region20
        $region19: #{transformer_forward.21} parent=11 // pred_region
          %s193 = smul.u32 2, %s20
          %s194 = smul.u32 2, %s21
          %p195 = scmp.lt.s32.totalorder %s193, 1
          %s196 = scalar_select %p195, %s193, 1
          %p197 = scmp.lt.s32.totalorder %s194, 1
          %s198 = scalar_select %p197, %s194, 1
          %s199 = smul.addr %s196, 2
          %s200 = sadd.s32 %s198, %s199
          %s201 = smul.addr %s200, 4
          %s202 = scalar_lea.vmem %s3, %s201
          %s203 = smul.u32 2, %s20
          %s204 = smul.u32 2, %s21
        $region20: #{transformer_forward.21} parent=11 // pred_fallthru
          _
      $region12: #{transformer_forward.21} parent=5 // pred_fallthru
        _
      %p205 = scmp.lt.s32.totalorder %s10, 2
      // Predicated region
      $region21: #{transformer_forward.21} parent=5 // pred_check
        %p206 = pneg %p205
      $region22: #{transformer_forward.21} parent=5 // pred_check_branch
        %208 = sbr.rel (%p206) target = $region24
      $region23: #{transformer_forward.21} parent=5 // pred_region
        // Predicated region
        $region25: #{transformer_forward.21} parent=23 // pred_check
          %p209 = pneg %p51
        $region26: #{transformer_forward.21} parent=23 // pred_check_branch
          %211 = sbr.rel (%p209) target = $region28
        $region27: #{transformer_forward.21} parent=23 // pred_region
          %s212 = sand.u32 %s41, 1
          %s213 = sand.u32 %s41, 1
          %s214 = smul.addr %s213, 32
          %s215 = scalar_lea.vmem [#allocation3], %s214
          %s216 = smul.u32 2, %s17
          %s217 = smul.u32 4, %s19
          %s218 = smul.addr %s216, 8
          %s219 = sadd.s32 %s217, %s218
          %s220 = smul.addr %s219, 4
          %s221 = scalar_lea.vmem %s0, %s220
          // Predicated region
          $region29: #{transformer_forward.21} parent=27 // pred_check
            _
          $region30: #{transformer_forward.21} parent=27 // pred_check_branch
            %223 = sbr.rel (0) target = $region32
          $region31: #{transformer_forward.21} parent=27 // pred_region
            // Predicated region
            $region33: #{transformer_forward.21} parent=31 // pred_check
              _
            $region34: #{transformer_forward.21} parent=31 // pred_check_branch
              %225 = sbr.rel (0) target = $region36
            $region35: #{transformer_forward.21} parent=31 // pred_region
              loop: start=0, step=1, limit=1
              $region37: #{transformer_forward.21} parent=35 // loop_pre_header
                _
              $region38: #{transformer_forward.21} parent=35 // loop_header
                %s227 = sphi 0, %s231
                %p228 = scmp.ge.s32.totalorder %s227, 1
                %s232 = sphi %s221, %s221
                %s233 = sphi %s215, %s215
              $region39: #{transformer_forward.21} parent=35 // loop_header_branch
                %230 = sbr.rel (%p228) target = $region43
              $region40: #{transformer_forward.21} parent=35 // loop_body
                %v234 = vld [vmem:[%s232] sm:$0xff]
                %235 = vst [vmem:[%s233] sm:$0xff] %v234
                %v236 = vld [vmem:[%s232 + $0x8] sm:$0xff]
                %237 = vst [vmem:[%s233 + $0x8] sm:$0xff] %v236
                %v238 = vld [vmem:[%s232 + $0x20] sm:$0xff]
                %239 = vst [vmem:[%s233 + $0x10] sm:$0xff] %v238
                %v240 = vld [vmem:[%s232 + $0x28] sm:$0xff]
                %241 = vst [vmem:[%s233 + $0x18] sm:$0xff] %v240
              $region41: #{transformer_forward.21} parent=35 // loop_footer
                %s231 = sadd.s32 1, %s227
              $region42: #{transformer_forward.21} parent=35 // loop_footer_branch
                %226 = sbr.rel target = $region38
              $region43: #{transformer_forward.21} parent=35 // loop_exit
                _
            $region36: #{transformer_forward.21} parent=31 // pred_fallthru
              _
            // Predicated region
            $region44: #{transformer_forward.21} parent=31 // pred_check
              _
            $region45: #{transformer_forward.21} parent=31 // pred_check_branch
              %243 = sbr.rel target = $region47
            $region46: #{transformer_forward.21} parent=31 // pred_region
              _
            $region47: #{transformer_forward.21} parent=31 // pred_fallthru
              _
          $region32: #{transformer_forward.21} parent=27 // pred_fallthru
            _
          %244 = vnop
        $region28: #{transformer_forward.21} parent=23 // pred_fallthru
          _
        // Predicated region
        $region48: #{transformer_forward.21} parent=23 // pred_check
          %p245 = pneg %p79
        $region49: #{transformer_forward.21} parent=23 // pred_check_branch
          %247 = sbr.rel (%p245) target = $region51
        $region50: #{transformer_forward.21} parent=23 // pred_region
          %s248 = smul.u32 64, %s19
          %s249 = smul.u32 2, %s18
          %p250 = scmp.lt.s32.totalorder %s248, 127
          %s251 = scalar_select %p250, %s248, 127
          %p252 = scmp.lt.s32.totalorder %s249, 1
          %s253 = scalar_select %p252, %s249, 1
          %s254 = smul.addr %s251, 2
          %s255 = sadd.s32 %s253, %s254
          %s256 = smul.addr %s255, 4
          %s257 = scalar_lea.vmem %s1, %s256
          %s258 = smul.u32 64, %s19
          %s259 = smul.u32 2, %s18
        $region51: #{transformer_forward.21} parent=23 // pred_fallthru
          _
      $region24: #{transformer_forward.21} parent=5 // pred_fallthru
        _
      %p260 = scmp.le.s32.totalorder 1, %s10
      %p261 = scmp.lt.s32.totalorder %s10, 3
      %p262 = pnand %p260, %p261
      %p263 = pneg %p262
      // Predicated region
      $region52: #{transformer_forward.21} parent=5 // pred_check
        _
      $region53: #{transformer_forward.21} parent=5 // pred_check_branch
        %265 = sbr.rel (%p262) target = $region55
      $region54: #{transformer_forward.21} parent=5 // pred_region
        %s266 = ssub.s32 %s10, 1
        %s267 = sand.u32 %s44, 1
        %s268 = sand.u32 %s44, 1
        %s269 = smul.addr %s268, 32
        %s270 = scalar_lea.vmem [#allocation3], %s269
        // Predicated region
        $region56: #{transformer_forward.21} parent=54 // pred_check
          %p271 = pneg %p57
        $region57: #{transformer_forward.21} parent=54 // pred_check_branch
          %273 = sbr.rel (%p271) target = $region59
        $region58: #{transformer_forward.21} parent=54 // pred_region
          _
        $region59: #{transformer_forward.21} parent=54 // pred_fallthru
          _
        %s274 = sand.u32 %s44, 1
        %s275 = sand.u32 %s44, 1
        %s276 = smul.addr %s275, 32
        %s277 = scalar_lea.vmem [#allocation3], %s276
        %p278 = pneg %p57
        %p279 = pneg %p54
        %s280 = smul.u32 64, %s22
        %s281 = smul.u32 2, %s21
        %p282 = scmp.lt.s32.totalorder %s280, 127
        %s283 = scalar_select %p282, %s280, 127
        %p284 = scmp.lt.s32.totalorder %s281, 1
        %s285 = scalar_select %p284, %s281, 1
        %s286 = smul.addr %s283, 2
        %s287 = sadd.s32 %s285, %s286
        %s288 = smul.addr %s287, 4
        %s289 = scalar_lea.vmem %s1, %s288
        %p290 = pneg %p85
        %p291 = pneg %p82
        %s292 = smul.u32 2, %s21
        %p293 = scmp.lt.s32.totalorder %s292, 1
        %s294 = scalar_select %p293, %s292, 1
        %s295 = scalar_lea.vmem %s2, %s294
        %p296 = pneg %p111
        %p297 = pneg %p108
        %s298 = smul.u32 2, %s20
        %s299 = smul.u32 2, %s21
        %p300 = scmp.lt.s32.totalorder %s298, 1
        %s301 = scalar_select %p300, %s298, 1
        %p302 = scmp.lt.s32.totalorder %s299, 1
        %s303 = scalar_select %p302, %s299, 1
        %s304 = smul.addr %s301, 2
        %s305 = sadd.s32 %s303, %s304
        %s306 = smul.addr %s305, 4
        %s307 = scalar_lea.vmem %s3, %s306
        %p308 = pneg %p139
        %p309 = pneg %p136
        %p310 = pneg %p167
        %p311 = pneg %p164
        %s312 = smul.u32 2, %s20
        %s313 = smul.u32 2, %s21
        %p314 = scmp.lt.s32.totalorder %s312, 1
        %s315 = scalar_select %p314, %s312, 1
        %p316 = scmp.lt.s32.totalorder %s313, 1
        %s317 = scalar_select %p316, %s313, 1
        %s318 = smul.addr %s315, 2
        %s319 = sadd.s32 %s317, %s318
        %s320 = smul.addr %s319, 4
        %s321 = scalar_lea.vmem %s4, %s320
        %s322 = smul.u32 2, %s20
        %s323 = smul.u32 4, %s22
        %s324 = smul.u32 64, %s22
        %s325 = smul.u32 2, %s21
        %p326 = scmp.lt.s32.totalorder %s324, 127
        %s327 = scalar_select %p326, %s324, 127
        %p328 = scmp.lt.s32.totalorder %s325, 1
        %s329 = scalar_select %p328, %s325, 1
        %s330 = smul.addr %s327, 2
        %s331 = sadd.s32 %s329, %s330
        %s332 = smul.addr %s331, 4
        %s333 = scalar_lea.vmem %s1, %s332
        %s334 = smul.u32 64, %s22
        %s335 = smul.u32 2, %s21
        %s336 = smul.u32 2, %s21
        %p337 = scmp.lt.s32.totalorder %s336, 1
        %s338 = scalar_select %p337, %s336, 1
        %s339 = scalar_lea.vmem %s2, %s338
        %s340 = smul.u32 2, %s21
        %s341 = smul.u32 2, %s20
        %s342 = smul.u32 2, %s21
        %p343 = scmp.lt.s32.totalorder %s341, 1
        %s344 = scalar_select %p343, %s341, 1
        %p345 = scmp.lt.s32.totalorder %s342, 1
        %s346 = scalar_select %p345, %s342, 1
        %s347 = smul.addr %s344, 2
        %s348 = sadd.s32 %s346, %s347
        %s349 = smul.addr %s348, 4
        %s350 = scalar_lea.vmem %s3, %s349
        %s351 = smul.u32 2, %s20
        %s352 = smul.u32 2, %s21
        %s353 = smul.u32 2, %s20
        %s354 = smul.u32 2, %s21
        %p355 = scmp.lt.s32.totalorder %s353, 1
        %s356 = scalar_select %p355, %s353, 1
        %p357 = scmp.lt.s32.totalorder %s354, 1
        %s358 = scalar_select %p357, %s354, 1
        %s359 = smul.addr %s356, 2
        %s360 = sadd.s32 %s358, %s359
        %s361 = smul.addr %s360, 4
        %s362 = scalar_lea.vmem %s4, %s361
        %s363 = smul.u32 2, %s20
        %s364 = smul.u32 2, %s21
        %p365 = scmp.eq.s32.totalorder %s22, 0
        // Predicated region
        $region60: #{transformer_forward.21} parent=54 // pred_check
          %p366 = pneg %p365
        $region61: #{transformer_forward.21} parent=54 // pred_check_branch
          %368 = sbr.rel (%p366) target = $region63
        $region62: #{transformer_forward.21} parent=54 // pred_region
          %369 = vst [vmem:[#allocation2] sm:$0xff] 0.0
          %370 = vst [vmem:[#allocation2 + $0x8] sm:$0xff] 0.0
          %371 = vst [vmem:[#allocation2 + $0x10] sm:$0xff] 0.0
          %372 = vst [vmem:[#allocation2 + $0x18] sm:$0xff] 0.0
        $region63: #{transformer_forward.21} parent=54 // pred_fallthru
          _
        %v373 = vld [vmem:[%s270] sm:$0xff]
        %v374 = vld [vmem:[%s270 + $0x8] sm:$0xff]
        %v375 = vld [vmem:[%s270 + $0x10] sm:$0xff]
        %v376 = vld [vmem:[%s270 + $0x18] sm:$0xff]
        %v377 = vld [vmem:[#allocation2] sm:$0xff]
        %v378 = vld [vmem:[#allocation2 + $0x8] sm:$0xff]
        %v379 = vld [vmem:[#allocation2 + $0x10] sm:$0xff]
        %v380 = vld [vmem:[#allocation2 + $0x18] sm:$0xff]
        %v381 = vld [vmem:[%s333] sm:$0xff]
        %v382 = vld [vmem:[%s333 + $0x8] sm:$0xff]
        %v383 = vld [vmem:[%s333 + $0x10] sm:$0xff]
        %v384 = vld [vmem:[%s333 + $0x18] sm:$0xff]
        %v385 = vld [vmem:[%s333 + $0x20] sm:$0xff]
        %v386 = vld [vmem:[%s333 + $0x28] sm:$0xff]
        %v387 = vld [vmem:[%s333 + $0x30] sm:$0xff]
        %v388 = vld [vmem:[%s333 + $0x38] sm:$0xff]
        %v389 = vld [vmem:[%s333 + $0x40] sm:$0xff]
        %v390 = vld [vmem:[%s333 + $0x48] sm:$0xff]
        %v391 = vld [vmem:[%s333 + $0x50] sm:$0xff]
        %v392 = vld [vmem:[%s333 + $0x58] sm:$0xff]
        %v393 = vld [vmem:[%s333 + $0x60] sm:$0xff]
        %v394 = vld [vmem:[%s333 + $0x68] sm:$0xff]
        %v395 = vld [vmem:[%s333 + $0x70] sm:$0xff]
        %v396 = vld [vmem:[%s333 + $0x78] sm:$0xff]
        %v397 = vld [vmem:[%s333 + $0x80] sm:$0xff]
        %v398 = vld [vmem:[%s333 + $0x88] sm:$0xff]
        %v399 = vld [vmem:[%s333 + $0x90] sm:$0xff]
        %v400 = vld [vmem:[%s333 + $0x98] sm:$0xff]
        %v401 = vld [vmem:[%s333 + $0xa0] sm:$0xff]
        %v402 = vld [vmem:[%s333 + $0xa8] sm:$0xff]
        %v403 = vld [vmem:[%s333 + $0xb0] sm:$0xff]
        %v404 = vld [vmem:[%s333 + $0xb8] sm:$0xff]
        %v405 = vld [vmem:[%s333 + $0xc0] sm:$0xff]
        %v406 = vld [vmem:[%s333 + $0xc8] sm:$0xff]
        %v407 = vld [vmem:[%s333 + $0xd0] sm:$0xff]
        %v408 = vld [vmem:[%s333 + $0xd8] sm:$0xff]
        %v409 = vld [vmem:[%s333 + $0xe0] sm:$0xff]
        %v410 = vld [vmem:[%s333 + $0xe8] sm:$0xff]
        %v411 = vld [vmem:[%s333 + $0xf0] sm:$0xff]
        %v412 = vld [vmem:[%s333 + $0xf8] sm:$0xff]
        %v413 = vld [vmem:[%s333 + $0x100] sm:$0xff]
        %v414 = vld [vmem:[%s333 + $0x108] sm:$0xff]
        %v415 = vld [vmem:[%s333 + $0x110] sm:$0xff]
        %v416 = vld [vmem:[%s333 + $0x118] sm:$0xff]
        %v417 = vld [vmem:[%s333 + $0x120] sm:$0xff]
        %v418 = vld [vmem:[%s333 + $0x128] sm:$0xff]
        %v419 = vld [vmem:[%s333 + $0x130] sm:$0xff]
        %v420 = vld [vmem:[%s333 + $0x138] sm:$0xff]
        %v421 = vld [vmem:[%s333 + $0x140] sm:$0xff]
        %v422 = vld [vmem:[%s333 + $0x148] sm:$0xff]
        %v423 = vld [vmem:[%s333 + $0x150] sm:$0xff]
        %v424 = vld [vmem:[%s333 + $0x158] sm:$0xff]
        %v425 = vld [vmem:[%s333 + $0x160] sm:$0xff]
        %v426 = vld [vmem:[%s333 + $0x168] sm:$0xff]
        %v427 = vld [vmem:[%s333 + $0x170] sm:$0xff]
        %v428 = vld [vmem:[%s333 + $0x178] sm:$0xff]
        %v429 = vld [vmem:[%s333 + $0x180] sm:$0xff]
        %v430 = vld [vmem:[%s333 + $0x188] sm:$0xff]
        %v431 = vld [vmem:[%s333 + $0x190] sm:$0xff]
        %v432 = vld [vmem:[%s333 + $0x198] sm:$0xff]
        %v433 = vld [vmem:[%s333 + $0x1a0] sm:$0xff]
        %v434 = vld [vmem:[%s333 + $0x1a8] sm:$0xff]
        %v435 = vld [vmem:[%s333 + $0x1b0] sm:$0xff]
        %v436 = vld [vmem:[%s333 + $0x1b8] sm:$0xff]
        %v437 = vld [vmem:[%s333 + $0x1c0] sm:$0xff]
        %v438 = vld [vmem:[%s333 + $0x1c8] sm:$0xff]
        %v439 = vld [vmem:[%s333 + $0x1d0] sm:$0xff]
        %v440 = vld [vmem:[%s333 + $0x1d8] sm:$0xff]
        %v441 = vld [vmem:[%s333 + $0x1e0] sm:$0xff]
        %v442 = vld [vmem:[%s333 + $0x1e8] sm:$0xff]
        %v443 = vld [vmem:[%s333 + $0x1f0] sm:$0xff]
        %v444 = vld [vmem:[%s333 + $0x1f8] sm:$0xff]
        %v449 = vunpack.c.l.b16 %v373
        %v450 = vunpack.c.h.b16 %v373
        %v451 = vunpack.c.l.b16 %v374
        %v452 = vunpack.c.h.b16 %v374
        %v453 = vunpack.c.l.b16 %v375
        %v454 = vunpack.c.h.b16 %v375
        %v455 = vunpack.c.l.b16 %v376
        %v456 = vunpack.c.h.b16 %v376
        %v457 = vpack.c.b16 %v453, %v449
        %v458 = vpack.c.b16 %v454, %v450
        %v459 = vpack.c.b16 %v455, %v451
        %v460 = vpack.c.b16 %v456, %v452
        %v529 = vunpack.c.l.b16 %v381
        %v530 = vunpack.c.h.b16 %v381
        %v531 = vunpack.c.l.b16 %v382
        %v532 = vunpack.c.h.b16 %v382
        %v533 = vunpack.c.l.b16 %v383
        %v534 = vunpack.c.h.b16 %v383
        %v535 = vunpack.c.l.b16 %v384
        %v536 = vunpack.c.h.b16 %v384
        %v537 = vunpack.c.l.b16 %v385
        %v538 = vunpack.c.h.b16 %v385
        %v539 = vunpack.c.l.b16 %v386
        %v540 = vunpack.c.h.b16 %v386
        %v541 = vunpack.c.l.b16 %v387
        %v542 = vunpack.c.h.b16 %v387
        %v543 = vunpack.c.l.b16 %v388
        %v544 = vunpack.c.h.b16 %v388
        %v545 = vunpack.c.l.b16 %v389
        %v546 = vunpack.c.h.b16 %v389
        %v547 = vunpack.c.l.b16 %v390
        %v548 = vunpack.c.h.b16 %v390
        %v549 = vunpack.c.l.b16 %v391
        %v550 = vunpack.c.h.b16 %v391
        %v551 = vunpack.c.l.b16 %v392
        %v552 = vunpack.c.h.b16 %v392
        %v553 = vunpack.c.l.b16 %v393
        %v554 = vunpack.c.h.b16 %v393
        %v555 = vunpack.c.l.b16 %v394
        %v556 = vunpack.c.h.b16 %v394
        %v557 = vunpack.c.l.b16 %v395
        %v558 = vunpack.c.h.b16 %v395
        %v559 = vunpack.c.l.b16 %v396
        %v560 = vunpack.c.h.b16 %v396
        %v561 = vunpack.c.l.b16 %v397
        %v562 = vunpack.c.h.b16 %v397
        %v563 = vunpack.c.l.b16 %v398
        %v564 = vunpack.c.h.b16 %v398
        %v565 = vunpack.c.l.b16 %v399
        %v566 = vunpack.c.h.b16 %v399
        %v567 = vunpack.c.l.b16 %v400
        %v568 = vunpack.c.h.b16 %v400
        %v569 = vunpack.c.l.b16 %v401
        %v570 = vunpack.c.h.b16 %v401
        %v571 = vunpack.c.l.b16 %v402
        %v572 = vunpack.c.h.b16 %v402
        %v573 = vunpack.c.l.b16 %v403
        %v574 = vunpack.c.h.b16 %v403
        %v575 = vunpack.c.l.b16 %v404
        %v576 = vunpack.c.h.b16 %v404
        %v577 = vunpack.c.l.b16 %v405
        %v578 = vunpack.c.h.b16 %v405
        %v579 = vunpack.c.l.b16 %v406
        %v580 = vunpack.c.h.b16 %v406
        %v581 = vunpack.c.l.b16 %v407
        %v582 = vunpack.c.h.b16 %v407
        %v583 = vunpack.c.l.b16 %v408
        %v584 = vunpack.c.h.b16 %v408
        %v585 = vunpack.c.l.b16 %v409
        %v586 = vunpack.c.h.b16 %v409
        %v587 = vunpack.c.l.b16 %v410
        %v588 = vunpack.c.h.b16 %v410
        %v589 = vunpack.c.l.b16 %v411
        %v590 = vunpack.c.h.b16 %v411
        %v591 = vunpack.c.l.b16 %v412
        %v592 = vunpack.c.h.b16 %v412
        %v593 = vunpack.c.l.b16 %v413
        %v594 = vunpack.c.h.b16 %v413
        %v595 = vunpack.c.l.b16 %v414
        %v596 = vunpack.c.h.b16 %v414
        %v597 = vunpack.c.l.b16 %v415
        %v598 = vunpack.c.h.b16 %v415
        %v599 = vunpack.c.l.b16 %v416
        %v600 = vunpack.c.h.b16 %v416
        %v601 = vunpack.c.l.b16 %v417
        %v602 = vunpack.c.h.b16 %v417
        %v603 = vunpack.c.l.b16 %v418
        %v604 = vunpack.c.h.b16 %v418
        %v605 = vunpack.c.l.b16 %v419
        %v606 = vunpack.c.h.b16 %v419
        %v607 = vunpack.c.l.b16 %v420
        %v608 = vunpack.c.h.b16 %v420
        %v609 = vunpack.c.l.b16 %v421
        %v610 = vunpack.c.h.b16 %v421
        %v611 = vunpack.c.l.b16 %v422
        %v612 = vunpack.c.h.b16 %v422
        %v613 = vunpack.c.l.b16 %v423
        %v614 = vunpack.c.h.b16 %v423
        %v615 = vunpack.c.l.b16 %v424
        %v616 = vunpack.c.h.b16 %v424
        %v617 = vunpack.c.l.b16 %v425
        %v618 = vunpack.c.h.b16 %v425
        %v619 = vunpack.c.l.b16 %v426
        %v620 = vunpack.c.h.b16 %v426
        %v621 = vunpack.c.l.b16 %v427
        %v622 = vunpack.c.h.b16 %v427
        %v623 = vunpack.c.l.b16 %v428
        %v624 = vunpack.c.h.b16 %v428
        %v625 = vunpack.c.l.b16 %v429
        %v626 = vunpack.c.h.b16 %v429
        %v627 = vunpack.c.l.b16 %v430
        %v628 = vunpack.c.h.b16 %v430
        %v629 = vunpack.c.l.b16 %v431
        %v630 = vunpack.c.h.b16 %v431
        %v631 = vunpack.c.l.b16 %v432
        %v632 = vunpack.c.h.b16 %v432
        %v633 = vunpack.c.l.b16 %v433
        %v634 = vunpack.c.h.b16 %v433
        %v635 = vunpack.c.l.b16 %v434
        %v636 = vunpack.c.h.b16 %v434
        %v637 = vunpack.c.l.b16 %v435
        %v638 = vunpack.c.h.b16 %v435
        %v639 = vunpack.c.l.b16 %v436
        %v640 = vunpack.c.h.b16 %v436
        %v641 = vunpack.c.l.b16 %v437
        %v642 = vunpack.c.h.b16 %v437
        %v643 = vunpack.c.l.b16 %v438
        %v644 = vunpack.c.h.b16 %v438
        %v645 = vunpack.c.l.b16 %v439
        %v646 = vunpack.c.h.b16 %v439
        %v647 = vunpack.c.l.b16 %v440
        %v648 = vunpack.c.h.b16 %v440
        %v649 = vunpack.c.l.b16 %v441
        %v650 = vunpack.c.h.b16 %v441
        %v651 = vunpack.c.l.b16 %v442
        %v652 = vunpack.c.h.b16 %v442
        %v653 = vunpack.c.l.b16 %v443
        %v654 = vunpack.c.h.b16 %v443
        %v655 = vunpack.c.l.b16 %v444
        %v656 = vunpack.c.h.b16 %v444
        %v657 = vpack.c.b16 %v531, %v529
        %v658 = vpack.c.b16 %v532, %v530
        %v659 = vpack.c.b16 %v535, %v533
        %v660 = vpack.c.b16 %v536, %v534
        %v661 = vpack.c.b16 %v539, %v537
        %v662 = vpack.c.b16 %v540, %v538
        %v663 = vpack.c.b16 %v543, %v541
        %v664 = vpack.c.b16 %v544, %v542
        %v665 = vpack.c.b16 %v547, %v545
        %v666 = vpack.c.b16 %v548, %v546
        %v667 = vpack.c.b16 %v551, %v549
        %v668 = vpack.c.b16 %v552, %v550
        %v669 = vpack.c.b16 %v555, %v553
        %v670 = vpack.c.b16 %v556, %v554
        %v671 = vpack.c.b16 %v559, %v557
        %v672 = vpack.c.b16 %v560, %v558
        %v673 = vpack.c.b16 %v563, %v561
        %v674 = vpack.c.b16 %v564, %v562
        %v675 = vpack.c.b16 %v567, %v565
        %v676 = vpack.c.b16 %v568, %v566
        %v677 = vpack.c.b16 %v571, %v569
        %v678 = vpack.c.b16 %v572, %v570
        %v679 = vpack.c.b16 %v575, %v573
        %v680 = vpack.c.b16 %v576, %v574
        %v681 = vpack.c.b16 %v579, %v577
        %v682 = vpack.c.b16 %v580, %v578
        %v683 = vpack.c.b16 %v583, %v581
        %v684 = vpack.c.b16 %v584, %v582
        %v685 = vpack.c.b16 %v587, %v585
        %v686 = vpack.c.b16 %v588, %v586
        %v687 = vpack.c.b16 %v591, %v589
        %v688 = vpack.c.b16 %v592, %v590
        %v689 = vpack.c.b16 %v595, %v593
        %v690 = vpack.c.b16 %v596, %v594
        %v691 = vpack.c.b16 %v599, %v597
        %v692 = vpack.c.b16 %v600, %v598
        %v693 = vpack.c.b16 %v603, %v601
        %v694 = vpack.c.b16 %v604, %v602
        %v695 = vpack.c.b16 %v607, %v605
        %v696 = vpack.c.b16 %v608, %v606
        %v697 = vpack.c.b16 %v611, %v609
        %v698 = vpack.c.b16 %v612, %v610
        %v699 = vpack.c.b16 %v615, %v613
        %v700 = vpack.c.b16 %v616, %v614
        %v701 = vpack.c.b16 %v619, %v617
        %v702 = vpack.c.b16 %v620, %v618
        %v703 = vpack.c.b16 %v623, %v621
        %v704 = vpack.c.b16 %v624, %v622
        %v705 = vpack.c.b16 %v627, %v625
        %v706 = vpack.c.b16 %v628, %v626
        %v707 = vpack.c.b16 %v631, %v629
        %v708 = vpack.c.b16 %v632, %v630
        %v709 = vpack.c.b16 %v635, %v633
        %v710 = vpack.c.b16 %v636, %v634
        %v711 = vpack.c.b16 %v639, %v637
        %v712 = vpack.c.b16 %v640, %v638
        %v713 = vpack.c.b16 %v643, %v641
        %v714 = vpack.c.b16 %v644, %v642
        %v715 = vpack.c.b16 %v647, %v645
        %v716 = vpack.c.b16 %v648, %v646
        %v717 = vpack.c.b16 %v651, %v649
        %v718 = vpack.c.b16 %v652, %v650
        %v719 = vpack.c.b16 %v655, %v653
        %v720 = vpack.c.b16 %v656, %v654
        %785 = vmatprep.subr.bf16.mxu0 %v658
        %786 = vmatpush1.bf16.msra.mxu0 %v657
        %787 = vmatprep.subr.bf16.mxu0 %v660
        %788 = vmatpush1.bf16.msra.mxu0 %v659
        %789 = vmatprep.subr.bf16.mxu0 %v662
        %790 = vmatpush1.bf16.msra.mxu0 %v661
        %791 = vmatprep.subr.bf16.mxu0 %v664
        %792 = vmatpush1.bf16.msra.mxu0 %v663
        %793 = vmatprep.subr.bf16.mxu0 %v666
        %794 = vmatpush1.bf16.msra.mxu0 %v665
        %795 = vmatprep.subr.bf16.mxu0 %v668
        %796 = vmatpush1.bf16.msra.mxu0 %v667
        %797 = vmatprep.subr.bf16.mxu0 %v670
        %798 = vmatpush1.bf16.msra.mxu0 %v669
        %799 = vmatprep.subr.bf16.mxu0 %v672
        %800 = vmatpush1.bf16.msra.mxu0 %v671
        %801 = vmatprep.subr.bf16.mxu0 %v674
        %802 = vmatpush1.bf16.msra.mxu0 %v673
        %803 = vmatprep.subr.bf16.mxu0 %v676
        %804 = vmatpush1.bf16.msra.mxu0 %v675
        %805 = vmatprep.subr.bf16.mxu0 %v678
        %806 = vmatpush1.bf16.msra.mxu0 %v677
        %807 = vmatprep.subr.bf16.mxu0 %v680
        %808 = vmatpush1.bf16.msra.mxu0 %v679
        %809 = vmatprep.subr.bf16.mxu0 %v682
        %810 = vmatpush1.bf16.msra.mxu0 %v681
        %811 = vmatprep.subr.bf16.mxu0 %v684
        %812 = vmatpush1.bf16.msra.mxu0 %v683
        %813 = vmatprep.subr.bf16.mxu0 %v686
        %814 = vmatpush1.bf16.msra.mxu0 %v685
        %815 = vmatprep.subr.bf16.mxu0 %v688
        %816 = vmatpush1.bf16.msra.mxu0 %v687
        %817 = vmatprep.mubr.bf16.mxu0 %v458
        %818 = vmatmul.mubr.bf16.gmra.mrb[0].mxu0 %v457
        %v819 = vpop.f32.mrb[0].mxu0
        %v820 = vadd.f32 0.0, %v819
        %v821 = vpop.f32.mrb[0].mxu0
        %v822 = vadd.f32 0.0, %v821
        %v823 = vpop.f32.mrb[0].mxu0
        %v824 = vadd.f32 0.0, %v823
        %v825 = vpop.f32.mrb[0].mxu0
        %v826 = vadd.f32 0.0, %v825
        %827 = vdwg.mxu0
        %828 = vmatprep.subr.bf16.mxu0 %v690
        %829 = vmatpush1.bf16.msra.mxu0 %v689
        %830 = vmatprep.subr.bf16.mxu0 %v692
        %831 = vmatpush1.bf16.msra.mxu0 %v691
        %832 = vmatprep.subr.bf16.mxu0 %v694
        %833 = vmatpush1.bf16.msra.mxu0 %v693
        %834 = vmatprep.subr.bf16.mxu0 %v696
        %835 = vmatpush1.bf16.msra.mxu0 %v695
        %836 = vmatprep.subr.bf16.mxu0 %v698
        %837 = vmatpush1.bf16.msra.mxu0 %v697
        %838 = vmatprep.subr.bf16.mxu0 %v700
        %839 = vmatpush1.bf16.msra.mxu0 %v699
        %840 = vmatprep.subr.bf16.mxu0 %v702
        %841 = vmatpush1.bf16.msra.mxu0 %v701
        %842 = vmatprep.subr.bf16.mxu0 %v704
        %843 = vmatpush1.bf16.msra.mxu0 %v703
        %844 = vmatprep.subr.bf16.mxu0 %v706
        %845 = vmatpush1.bf16.msra.mxu0 %v705
        %846 = vmatprep.subr.bf16.mxu0 %v708
        %847 = vmatpush1.bf16.msra.mxu0 %v707
        %848 = vmatprep.subr.bf16.mxu0 %v710
        %849 = vmatpush1.bf16.msra.mxu0 %v709
        %850 = vmatprep.subr.bf16.mxu0 %v712
        %851 = vmatpush1.bf16.msra.mxu0 %v711
        %852 = vmatprep.subr.bf16.mxu0 %v714
        %853 = vmatpush1.bf16.msra.mxu0 %v713
        %854 = vmatprep.subr.bf16.mxu0 %v716
        %855 = vmatpush1.bf16.msra.mxu0 %v715
        %856 = vmatprep.subr.bf16.mxu0 %v718
        %857 = vmatpush1.bf16.msra.mxu0 %v717
        %858 = vmatprep.subr.bf16.mxu0 %v720
        %859 = vmatpush1.bf16.msra.mxu0 %v719
        %860 = vmatprep.mubr.bf16.mxu0 %v460
        %861 = vmatmul.mubr.bf16.gmra.mrb[0].mxu0 %v459
        %v862 = vpop.f32.mrb[0].mxu0
        %v863 = vadd.f32 %v820, %v862
        %v864 = vpop.f32.mrb[0].mxu0
        %v865 = vadd.f32 %v822, %v864
        %v866 = vpop.f32.mrb[0].mxu0
        %v867 = vadd.f32 %v824, %v866
        %v868 = vpop.f32.mrb[0].mxu0
        %v869 = vadd.f32 %v826, %v868
        %870 = vdwg.mxu0
        %v871 = vadd.f32 %v377, %v863
        %v872 = vadd.f32 %v378, %v865
        %v873 = vadd.f32 %v379, %v867
        %v874 = vadd.f32 %v380, %v869
        %875 = vst [vmem:[#allocation2] sm:$0xff] %v871
        %876 = vst [vmem:[#allocation2 + $0x8] sm:$0xff] %v872
        %877 = vst [vmem:[#allocation2 + $0x10] sm:$0xff] %v873
        %878 = vst [vmem:[#allocation2 + $0x18] sm:$0xff] %v874
        %p879 = scmp.eq.s32.totalorder %s22, 1
        // Predicated region
        $region64: #{transformer_forward.21} parent=54 // pred_check
          %p880 = pneg %p879
        $region65: #{transformer_forward.21} parent=54 // pred_check_branch
          %882 = sbr.rel (%p880) target = $region67
        $region66: #{transformer_forward.21} parent=54 // pred_region
          %v883 = vld [vmem:[#allocation2] sm:$0xff]
          %v884 = vld [vmem:[#allocation2 + $0x8] sm:$0xff]
          %v885 = vld [vmem:[#allocation2 + $0x10] sm:$0xff]
          %v886 = vld [vmem:[#allocation2 + $0x18] sm:$0xff]
          %v887 = vld [vmem:[%s339] sm:$0x3]
          %v889 = vlaneseq
          %v890 = vshrl.u32 %v889, 7
          %v891 = vsub.s32 0, %v890
          %v892 = vrot.slane %v887, %v891
          %v893 = vlaneseq
          %v894 = vshrl.u32 %v893, 7
          %v895 = vsub.s32 1, %v894
          %v896 = vrot.slane %v887, %v895
          %v899 = vadd.f32 %v883, %v892
          %v900 = vadd.f32 %v884, %v896
          %v901 = vadd.f32 %v885, %v892
          %v902 = vadd.f32 %v886, %v896
          %v903 = vld [vmem:[%s350] sm:$0xff]
          %v904 = vld [vmem:[%s350 + $0x8] sm:$0xff]
          %v905 = vunpack.c.l.bf16 %v903
          %v906 = vunpack.c.h.bf16 %v903
          %v907 = vunpack.c.l.bf16 %v904
          %v908 = vunpack.c.h.bf16 %v904
          %v909 = vadd.f32 %v899, %v905
          %v910 = vadd.f32 %v900, %v906
          %v911 = vadd.f32 %v901, %v907
          %v912 = vadd.f32 %v902, %v908
          %v913 = vpack.c.bf16 %v911, %v909
          %v914 = vpack.c.bf16 %v912, %v910
          %v917 = vunpack.c.l.b16 %v913
          %v918 = vunpack.c.l.b16 %v914
          %v919 = vunpack.c.h.b16 %v913
          %v920 = vunpack.c.h.b16 %v914
          %v921 = vpack.c.b16 %v918, %v917
          %v922 = vpack.c.b16 %v920, %v919
          %925 = vst [vmem:[%s362] sm:$0xff] %v921
          %926 = vst [vmem:[%s362 + $0x8] sm:$0xff] %v922
        $region67: #{transformer_forward.21} parent=54 // pred_fallthru
          _
        %s927 = smul.u32 2, %s20
        %s928 = smul.u32 2, %s21
        %p929 = scmp.lt.s32.totalorder %s927, 1
        %s930 = scalar_select %p929, %s927, 1
        %p931 = scmp.lt.s32.totalorder %s928, 1
        %s932 = scalar_select %p931, %s928, 1
        %s933 = smul.addr %s930, 2
        %s934 = sadd.s32 %s932, %s933
        %s935 = smul.addr %s934, 4
        %s936 = scalar_lea.vmem %s4, %s935
        // Predicated region
        $region68: #{transformer_forward.21} parent=54 // pred_check
          %p937 = pneg %p164
        $region69: #{transformer_forward.21} parent=54 // pred_check_branch
          %939 = sbr.rel (%p937) target = $region71
        $region70: #{transformer_forward.21} parent=54 // pred_region
          %s940 = smul.u32 2, %s20
          %s941 = smul.u32 2, %s21
        $region71: #{transformer_forward.21} parent=54 // pred_fallthru
          _
        // Predicated region
        $region72: #{transformer_forward.21} parent=54 // pred_check
          %p942 = pneg %p164
        $region73: #{transformer_forward.21} parent=54 // pred_check_branch
          %944 = sbr.rel (%p942) target = $region75
        $region74: #{transformer_forward.21} parent=54 // pred_region
          %s945 = smul.u32 2, %s20
          %s946 = smul.u32 2, %s21
          %p947 = scmp.lt.s32.totalorder %s945, 1
          %s948 = scalar_select %p947, %s945, 1
          %p949 = scmp.lt.s32.totalorder %s946, 1
          %s950 = scalar_select %p949, %s946, 1
          %s951 = smul.addr %s948, 2
          %s952 = sadd.s32 %s950, %s951
          %s953 = smul.addr %s952, 4
          %s954 = scalar_lea.vmem %s4, %s953
        $region75: #{transformer_forward.21} parent=54 // pred_fallthru
          _
      $region55: #{transformer_forward.21} parent=5 // pred_fallthru
        _
      %p955 = scmp.le.s32.totalorder 2, %s10
      // Predicated region
      $region76: #{transformer_forward.21} parent=5 // pred_check
        %p956 = pneg %p955
      $region77: #{transformer_forward.21} parent=5 // pred_check_branch
        %958 = sbr.rel (%p956) target = $region79
      $region78: #{transformer_forward.21} parent=5 // pred_region
        %s959 = ssub.s32 %s10, 2
      $region79: #{transformer_forward.21} parent=5 // pred_fallthru
        _
    $region6: #{transformer_forward.21} parent=1 // loop_footer
      %s14 = sadd.s32 1, %s10
    $region7: #{transformer_forward.21} parent=1 // loop_footer_branch
      %9 = sbr.rel target = $region3
    $region8: #{transformer_forward.21} parent=1 // loop_exit
      _

// kernel: transformer_forward.27
$region0: #{transformer_forward.27}
  #allocation0 [shape = 'u32[]', space=smem, size = 0x4, offset = 0x4, fixed_abs, tag = 'smem constant byte address 0x4 - core index']
  #allocation1 [shape = 'u32[144,128]{1,0:T(1,128)}', space=vmem, size = 0x12000, scoped, tag = 'internal scratch']
  #allocation2 [shape = 'f32[16,128]{1,0:T(8,128)}', space=vmem, size = 0x2000, scoped, tag = 'scratch operand']
  %s0 = inlined_call_operand.vmem [shape: bf16[16,256], index: 0, kind: input, shape index: {}]
  %s1 = inlined_call_operand.vmem [shape: bf16[256,128], index: 1, kind: input, shape index: {}]
  %s2 = inlined_call_operand.vmem [shape: f32[1,128], index: 2, kind: input, shape index: {}]
  %s3 = inlined_call_operand.vmem [shape: f32[16,128], index: 3, kind: output, shape index: {}]
  %s4 = sld [smem:[#allocation0]]
  $region30: #{transformer_forward.27} parent=0
    _
  %s6 = ssub.s32 1, %s4
  %s7 = scalar_select 0, %s6, %s4
  // Predicated region
  $region2: #{transformer_forward.27} parent=0 // pred_check
    _
  $region3: #{transformer_forward.27} parent=0 // pred_check_branch
    %9 = sbr.rel (0) target = $region5
  $region4: #{transformer_forward.27} parent=0 // pred_region
    _
  $region5: #{transformer_forward.27} parent=0 // pred_fallthru
    _
  // Predicated region
  $region6: #{transformer_forward.27} parent=0 // pred_check
    _
  $region7: #{transformer_forward.27} parent=0 // pred_check_branch
    %11 = sbr.rel (0) target = $region9
  $region8: #{transformer_forward.27} parent=0 // pred_region
    _
  $region9: #{transformer_forward.27} parent=0 // pred_fallthru
    _
  // Predicated region
  $region10: #{transformer_forward.27} parent=0 // pred_check
    _
  $region11: #{transformer_forward.27} parent=0 // pred_check_branch
    %13 = sbr.rel (0) target = $region13
  $region12: #{transformer_forward.27} parent=0 // pred_region
    _
  $region13: #{transformer_forward.27} parent=0 // pred_fallthru
    _
  %p15 = scmp.eq.s32.totalorder 0, 0
  // Predicated region
  $region14: #{transformer_forward.27} parent=0 // pred_check
    %p16 = pneg %p15
  $region15: #{transformer_forward.27} parent=0 // pred_check_branch
    %18 = sbr.rel (%p16) target = $region17
  $region16: #{transformer_forward.27} parent=0 // pred_region
    %19 = vst [vmem:[#allocation2] sm:$0xff] 0.0
    %20 = vst [vmem:[#allocation2 + $0x8] sm:$0xff] 0.0
  $region17: #{transformer_forward.27} parent=0 // pred_fallthru
    _
  %v21 = vld [vmem:[%s0] sm:$0xff]
  %v22 = vld [vmem:[%s0 + $0x8] sm:$0xff]
  %v23 = vld [vmem:[#allocation2] sm:$0xff]
  %v24 = vld [vmem:[#allocation2 + $0x8] sm:$0xff]
  %v25 = vld [vmem:[%s1] sm:$0xf]
  %v26 = vld [vmem:[%s1 + $0x4] sm:$0xf]
  %v27 = vld [vmem:[%s1 + $0x8] sm:$0xf]
  %v28 = vld [vmem:[%s1 + $0xc] sm:$0xf]
  %v29 = vld [vmem:[%s1 + $0x10] sm:$0xf]
  %v30 = vld [vmem:[%s1 + $0x14] sm:$0xf]
  %v31 = vld [vmem:[%s1 + $0x18] sm:$0xf]
  %v32 = vld [vmem:[%s1 + $0x1c] sm:$0xf]
  %v33 = vld [vmem:[%s1 + $0x20] sm:$0xf]
  %v34 = vld [vmem:[%s1 + $0x24] sm:$0xf]
  %v35 = vld [vmem:[%s1 + $0x28] sm:$0xf]
  %v36 = vld [vmem:[%s1 + $0x2c] sm:$0xf]
  %v37 = vld [vmem:[%s1 + $0x30] sm:$0xf]
  %v38 = vld [vmem:[%s1 + $0x34] sm:$0xf]
  %v39 = vld [vmem:[%s1 + $0x38] sm:$0xf]
  %v40 = vld [vmem:[%s1 + $0x3c] sm:$0xf]
  %v41 = vld [vmem:[%s1 + $0x40] sm:$0xf]
  %v42 = vld [vmem:[%s1 + $0x44] sm:$0xf]
  %v43 = vld [vmem:[%s1 + $0x48] sm:$0xf]
  %v44 = vld [vmem:[%s1 + $0x4c] sm:$0xf]
  %v45 = vld [vmem:[%s1 + $0x50] sm:$0xf]
  %v46 = vld [vmem:[%s1 + $0x54] sm:$0xf]
  %v47 = vld [vmem:[%s1 + $0x58] sm:$0xf]
  %v48 = vld [vmem:[%s1 + $0x5c] sm:$0xf]
  %v49 = vld [vmem:[%s1 + $0x60] sm:$0xf]
  %v50 = vld [vmem:[%s1 + $0x64] sm:$0xf]
  %v51 = vld [vmem:[%s1 + $0x68] sm:$0xf]
  %v52 = vld [vmem:[%s1 + $0x6c] sm:$0xf]
  %v53 = vld [vmem:[%s1 + $0x70] sm:$0xf]
  %v54 = vld [vmem:[%s1 + $0x74] sm:$0xf]
  %v55 = vld [vmem:[%s1 + $0x78] sm:$0xf]
  %v56 = vld [vmem:[%s1 + $0x7c] sm:$0xf]
  %v59 = vunpack.c.l.b16 %v21
  %v60 = vunpack.c.h.b16 %v21
  %v61 = vunpack.c.l.b16 %v22
  %v62 = vunpack.c.h.b16 %v22
  %v63 = vpack.c.b16 %v61, %v59
  %v64 = vpack.c.b16 %v62, %v60
  %v99 = vunpack.c.l.b16 %v25
  %v100 = vunpack.c.l.b16 %v26
  %v101 = vunpack.c.l.b16 %v27
  %v102 = vunpack.c.l.b16 %v28
  %v103 = vunpack.c.l.b16 %v29
  %v104 = vunpack.c.l.b16 %v30
  %v105 = vunpack.c.l.b16 %v31
  %v106 = vunpack.c.l.b16 %v32
  %v107 = vunpack.c.l.b16 %v33
  %v108 = vunpack.c.l.b16 %v34
  %v109 = vunpack.c.l.b16 %v35
  %v110 = vunpack.c.l.b16 %v36
  %v111 = vunpack.c.l.b16 %v37
  %v112 = vunpack.c.l.b16 %v38
  %v113 = vunpack.c.l.b16 %v39
  %v114 = vunpack.c.l.b16 %v40
  %v115 = vunpack.c.l.b16 %v41
  %v116 = vunpack.c.l.b16 %v42
  %v117 = vunpack.c.l.b16 %v43
  %v118 = vunpack.c.l.b16 %v44
  %v119 = vunpack.c.l.b16 %v45
  %v120 = vunpack.c.l.b16 %v46
  %v121 = vunpack.c.l.b16 %v47
  %v122 = vunpack.c.l.b16 %v48
  %v123 = vunpack.c.l.b16 %v49
  %v124 = vunpack.c.l.b16 %v50
  %v125 = vunpack.c.l.b16 %v51
  %v126 = vunpack.c.l.b16 %v52
  %v127 = vunpack.c.l.b16 %v53
  %v128 = vunpack.c.l.b16 %v54
  %v129 = vunpack.c.l.b16 %v55
  %v130 = vunpack.c.l.b16 %v56
  %v131 = vpack.c.b16 %v100, %v99
  %v132 = vpack.c.b16 %v102, %v101
  %v133 = vpack.c.b16 %v104, %v103
  %v134 = vpack.c.b16 %v106, %v105
  %v135 = vpack.c.b16 %v108, %v107
  %v136 = vpack.c.b16 %v110, %v109
  %v137 = vpack.c.b16 %v112, %v111
  %v138 = vpack.c.b16 %v114, %v113
  %v139 = vpack.c.b16 %v116, %v115
  %v140 = vpack.c.b16 %v118, %v117
  %v141 = vpack.c.b16 %v120, %v119
  %v142 = vpack.c.b16 %v122, %v121
  %v143 = vpack.c.b16 %v124, %v123
  %v144 = vpack.c.b16 %v126, %v125
  %v145 = vpack.c.b16 %v128, %v127
  %v146 = vpack.c.b16 %v130, %v129
  %163 = vmatprep.subr.bf16.mxu0 0
  %164 = vmatpush1.bf16.msra.mxu0 %v131
  %165 = vmatprep.subr.bf16.mxu0 0
  %166 = vmatpush1.bf16.msra.mxu0 %v132
  %167 = vmatprep.subr.bf16.mxu0 0
  %168 = vmatpush1.bf16.msra.mxu0 %v133
  %169 = vmatprep.subr.bf16.mxu0 0
  %170 = vmatpush1.bf16.msra.mxu0 %v134
  %171 = vmatprep.subr.bf16.mxu0 0
  %172 = vmatpush1.bf16.msra.mxu0 %v135
  %173 = vmatprep.subr.bf16.mxu0 0
  %174 = vmatpush1.bf16.msra.mxu0 %v136
  %175 = vmatprep.subr.bf16.mxu0 0
  %176 = vmatpush1.bf16.msra.mxu0 %v137
  %177 = vmatprep.subr.bf16.mxu0 0
  %178 = vmatpush1.bf16.msra.mxu0 %v138
  %179 = vmatprep.subr.bf16.mxu0 0
  %180 = vmatpush1.bf16.msra.mxu0 %v139
  %181 = vmatprep.subr.bf16.mxu0 0
  %182 = vmatpush1.bf16.msra.mxu0 %v140
  %183 = vmatprep.subr.bf16.mxu0 0
  %184 = vmatpush1.bf16.msra.mxu0 %v141
  %185 = vmatprep.subr.bf16.mxu0 0
  %186 = vmatpush1.bf16.msra.mxu0 %v142
  %187 = vmatprep.subr.bf16.mxu0 0
  %188 = vmatpush1.bf16.msra.mxu0 %v143
  %189 = vmatprep.subr.bf16.mxu0 0
  %190 = vmatpush1.bf16.msra.mxu0 %v144
  %191 = vmatprep.subr.bf16.mxu0 0
  %192 = vmatpush1.bf16.msra.mxu0 %v145
  %193 = vmatprep.subr.bf16.mxu0 0
  %194 = vmatpush1.bf16.msra.mxu0 %v146
  %195 = vmatprep.mubr.bf16.mxu0 %v64
  %196 = vmatmul.mubr.bf16.gmra.mrb[0].mxu0 %v63
  %v197 = vpop.f32.mrb[0].mxu0
  %v198 = vadd.f32 0.0, %v197
  %v199 = vpop.f32.mrb[0].mxu0
  %v200 = vpop.f32.mrb[0].mxu0
  %v201 = vadd.f32 0.0, %v200
  %v202 = vpop.f32.mrb[0].mxu0
  %203 = vdwg.mxu0
  %v204 = vadd.f32 %v23, %v198
  %v205 = vadd.f32 %v24, %v201
  %206 = vst [vmem:[#allocation2] sm:$0xff] %v204
  %207 = vst [vmem:[#allocation2 + $0x8] sm:$0xff] %v205
  // Predicated region
  $region18: #{transformer_forward.27} parent=0 // pred_check
    %p208 = pneg %p15
  $region19: #{transformer_forward.27} parent=0 // pred_check_branch
    %210 = sbr.rel (%p208) target = $region21
  $region20: #{transformer_forward.27} parent=0 // pred_region
    %v211 = vld [vmem:[#allocation2] sm:$0xff]
    %v212 = vld [vmem:[#allocation2 + $0x8] sm:$0xff]
    %v213 = vld [vmem:[%s2] sm:$0x1]
    %v215 = vlaneseq
    %v216 = vshrl.u32 %v215, 7
    %v217 = vsub.s32 0, %v216
    %v218 = vrot.slane %v213, %v217
    %v220 = vadd.f32 %v211, %v218
    %v221 = vadd.f32 %v212, %v218
    %222 = vst [vmem:[%s3] sm:$0xff] %v220
    %223 = vst [vmem:[%s3 + $0x8] sm:$0xff] %v221
  $region21: #{transformer_forward.27} parent=0 // pred_fallthru
    _
  // Predicated region
  $region22: #{transformer_forward.27} parent=0 // pred_check
    _
  $region23: #{transformer_forward.27} parent=0 // pred_check_branch
    %225 = sbr.rel (0) target = $region25
  $region24: #{transformer_forward.27} parent=0 // pred_region
    _
  $region25: #{transformer_forward.27} parent=0 // pred_fallthru
    _
  // Predicated region
  $region26: #{transformer_forward.27} parent=0 // pred_check
    _
  $region27: #{transformer_forward.27} parent=0 // pred_check_branch
    %227 = sbr.rel (0) target = $region29
  $region28: #{transformer_forward.27} parent=0 // pred_region
    _
  $region29: #{transformer_forward.27} parent=0 // pred_fallthru
    _

</llo_original>
